<compile_context>
chip_gen: v7x
topology: tpu7x:2x2x1
jax: 0.10.0
libtpu: 0.0.40
codegen_flags: <defaults>
</compile_context>

<pallas_src>
import jax
import jax.numpy as jnp
from jax import lax
from jax.experimental import pallas as pl
from jax.experimental.pallas import tpu as pltpu

MAX_LENGTH = 16   # module default is 160; reduced for the smoke test (wrapper is length-agnostic)
SOS_token = 0


def attn_decoder_kernel(gi_emb_ref, keys_ref, ua_keys_ref, wa_ref, bwa_ref, va_ref,
                        wih_ctx_ref, whh_ref, bhh_ref, wout_ref, bout_ref, h0_ref,
                        logp_ref, attn_ref, hn_ref, h_sc):
    """One grid step == one chunk of Tc decode steps; hidden state persists in h_sc."""
    c = pl.program_id(0)
    tc = gi_emb_ref.shape[0]
    hsz = h0_ref.shape[1]

    @pl.when(c == 0)
    def _():
        h_sc[...] = h0_ref[...]

    # Chunk-invariant loads (weights stay resident across the unrolled steps).
    keys = keys_ref[...]                  # (B, S, H)  f32 encoder outputs
    ua_k = ua_keys_ref[...]               # (B, S, H)  f32 precomputed Ua(keys)+b_ua
    wa = wa_ref[...]                      # (H, H)     bf16
    bwa = bwa_ref[...]                    # (1, H)     f32
    va = va_ref[...][None]                # (1, 1, H)  f32
    wih_ctx = wih_ctx_ref[...]            # (H, 3H)    bf16  (context half of W_ih, gate-fused)
    whh = whh_ref[...]                    # (H, 3H)    bf16  (gate-fused)
    bhh = bhh_ref[...]                    # (1, 3H)    f32
    wout = wout_ref[...]                  # (H, V)     bf16
    bout = bout_ref[...]                  # (1, V)     f32

    def step(i, h):
        # ---- Bahdanau attention: Va(tanh(Wa(h) + Ua(keys))) ----
        wa_q = jnp.dot(h.astype(jnp.bfloat16), wa,
                       preferred_element_type=jnp.float32) + bwa          # (B, H)
        e = jnp.tanh(wa_q[:, None, :] + ua_k)                             # (B, S, H)
        scores = jnp.sum(e * va, axis=-1)                                 # (B, S)
        # softmax over encoder positions (Va bias is a constant shift -> dropped)
        m = jnp.max(scores, axis=-1, keepdims=True)
        p = jnp.exp(scores - m)
        w = p / jnp.sum(p, axis=-1, keepdims=True)                        # (B, S)
        attn_ref[i] = w.astype(attn_ref.dtype)
        context = jnp.sum(w[:, :, None] * keys, axis=1)                   # (B, H)

        # ---- GRU cell, gates [r|z|n] fused into one (H, 3H) matmul per path ----
        gi = gi_emb_ref[i] + jnp.dot(context.astype(jnp.bfloat16), wih_ctx,
                                     preferred_element_type=jnp.float32)  # (B, 3H)
        gh = jnp.dot(h.astype(jnp.bfloat16), whh,
                     preferred_element_type=jnp.float32) + bhh            # (B, 3H)
        r = jax.nn.sigmoid(gi[:, :hsz] + gh[:, :hsz])
        z = jax.nn.sigmoid(gi[:, hsz:2 * hsz] + gh[:, hsz:2 * hsz])
        n = jnp.tanh(gi[:, 2 * hsz:] + r * gh[:, 2 * hsz:])
        h_new = (1.0 - z) * n + z * h                                     # (B, H) f32

        # ---- Output projection + log-softmax (per-row == module's post-concat) ----
        logits = jnp.dot(h_new.astype(jnp.bfloat16), wout,
                         preferred_element_type=jnp.float32) + bout       # (B, V)
        lmax = jnp.max(logits, axis=-1, keepdims=True)
        lse = jnp.log(jnp.sum(jnp.exp(logits - lmax), axis=-1, keepdims=True)) + lmax
        logp_ref[i] = (logits - lse).astype(logp_ref.dtype)
        return h_new

    # Fully unrolled time chunk (tc is a small static int): concrete indices give
    # static stores into the lane-dense per-chunk output slabs.
    h = h_sc[...]
    for i in range(tc):
        h = step(i, h)
    h_sc[...] = h

    @pl.when(c == pl.num_programs(0) - 1)
    def _():
        hn_ref[...] = h.astype(hn_ref.dtype)


def attn_decoder_forward(encoder_outputs, encoder_hidden, target_ids, params, *, sos_token=SOS_token):
    """Teacher-forcing AttnDecoderRNN.forward (eval mode: dropout = identity).

    Returns (log_probs (T, B, V), hidden (1, B, H), attentions (B, T, S)) — the
    module's (decoder_outputs.permute(1,0,2), decoder_hidden, attentions).
    """
    f32, bf16 = jnp.float32, jnp.bfloat16
    B, S, H = encoder_outputs.shape
    T = target_ids.shape[1]
    V = params["out_w"].shape[0]

    # ---- hoisted, sequence-parallel precompute (single large XLA matmuls) ----
    ids = jnp.concatenate(
        [jnp.full((B, 1), sos_token, jnp.int32), target_ids[:, :-1].astype(jnp.int32)],
        axis=1)                                                        # (B, T) decoder inputs
    embedded_tbh = jnp.take(params["embedding"].astype(f32), ids.T, axis=0)   # (T, B, H)
    w_ih = params["gru_w_ih"].astype(f32)                              # (3H, 2H), gate order [r|z|n]
    gi_emb_all = (embedded_tbh @ w_ih[:, :H].T
                  + params["gru_b_ih"].astype(f32)[None, None, :]).astype(f32)   # (T, B, 3H)
    keys = encoder_outputs.astype(f32)                                 # (B, S, H)
    ua_keys = (keys @ params["ua_w"].T.astype(f32)
               + params["ua_b"].astype(f32)).astype(f32)               # (B, S, H)

    # ---- recurrent-path operands: gate-fused, pre-transposed, bf16 for the MXU ----
    wa_t = params["wa_w"].T.astype(bf16)                               # (H, H)
    bwa = params["wa_b"].reshape(1, H).astype(f32)
    va = params["va_w"].reshape(1, H).astype(f32)                      # Va bias dropped (softmax shift-invariant)
    wih_ctx_t = w_ih[:, H:].T.astype(bf16)                             # (H, 3H)
    whh_t = params["gru_w_hh"].T.astype(bf16)                          # (H, 3H)
    bhh = params["gru_b_hh"].reshape(1, 3 * H).astype(f32)
    wout_t = params["out_w"].T.astype(bf16)                            # (H, V)
    bout = params["out_b"].reshape(1, V).astype(f32)
    h0 = encoder_hidden[0].astype(f32)                                 # (B, H)

    # Chunk multiple timesteps per grid iteration to amortize per-step overhead.
    tc = 1
    for cand in (8, 4, 2, 1):
        if T % cand == 0:
            tc = cand
            break

    const2 = lambda c: (0, 0)
    const3 = lambda c: (0, 0, 0)

    logp, attn_tbs, hn = pl.pallas_call(
        attn_decoder_kernel,
        out_shape=(
            jax.ShapeDtypeStruct((T, B, V), f32),
            jax.ShapeDtypeStruct((T, B, S), f32),
            jax.ShapeDtypeStruct((B, H), f32),
        ),
        grid_spec=pltpu.PrefetchScalarGridSpec(
            num_scalar_prefetch=0,
            grid=(T // tc,),
            in_specs=[
                pl.BlockSpec((tc, B, 3 * H), lambda c: (c, 0, 0)),   # hoisted input-path gates
                pl.BlockSpec((B, S, H), const3),                     # encoder outputs (keys)
                pl.BlockSpec((B, S, H), const3),                     # Ua(keys) precomputed
                pl.BlockSpec((H, H), const2),                        # Wa^T (bf16)
                pl.BlockSpec((1, H), const2),                        # b_wa
                pl.BlockSpec((1, H), const2),                        # Va weight row
                pl.BlockSpec((H, 3 * H), const2),                    # W_ih(context)^T (bf16)
                pl.BlockSpec((H, 3 * H), const2),                    # W_hh^T (bf16)
                pl.BlockSpec((1, 3 * H), const2),                    # b_hh
                pl.BlockSpec((H, V), const2),                        # W_out^T (bf16)
                pl.BlockSpec((1, V), const2),                        # b_out
                pl.BlockSpec((B, H), const2),                        # h0
            ],
            out_specs=[
                pl.BlockSpec((tc, B, V), lambda c: (c, 0, 0)),       # per-step log-probs (time-major)
                pl.BlockSpec((tc, B, S), lambda c: (c, 0, 0)),       # attention weights (time-major)
                pl.BlockSpec((B, H), const2),                        # final hidden
            ],
            scratch_shapes=[pltpu.VMEM((B, H), f32)],
        ),
        compiler_params=pltpu.CompilerParams(
            dimension_semantics=("arbitrary",),     # decode steps are sequential
            vmem_limit_bytes=64 * 1024 * 1024,
        ),
    )(gi_emb_all, keys, ua_keys, wa_t, bwa, va, wih_ctx_t, whh_t, bhh, wout_t, bout, h0)

    # logp is already in the module's final (T, B, V) layout — no big-tensor transpose.
    attentions = jnp.transpose(attn_tbs, (1, 0, 2))                    # (B, T, S), tiny
    return logp, hn[None], attentions


def attn_decoder_reference(encoder_outputs, encoder_hidden, target_ids, params, sos_token=SOS_token):
    """Plain-JAX f32 reference matching AttnDecoderRNN.forward (teacher forcing, eval)."""
    B, S, H = encoder_outputs.shape
    emb = params["embedding"]
    wa_w, wa_b = params["wa_w"], params["wa_b"]
    ua_w, ua_b = params["ua_w"], params["ua_b"]
    va_w, va_b = params["va_w"], params["va_b"]
    w_ih, w_hh = params["gru_w_ih"], params["gru_w_hh"]
    b_ih, b_hh = params["gru_b_ih"], params["gru_b_hh"]
    out_w, out_b = params["out_w"], params["out_b"]

    keys = encoder_outputs
    ua_keys = keys @ ua_w.T + ua_b
    ids = jnp.concatenate(
        [jnp.full((B, 1), sos_token, jnp.int32), target_ids[:, :-1].astype(jnp.int32)], axis=1)

    def step(h, inp_id):
        embedded = emb[inp_id]                                            # (B, H)
        e = jnp.tanh((h @ wa_w.T + wa_b)[:, None, :] + ua_keys)           # (B, S, H)
        scores = e @ va_w[0] + va_b[0]                                    # (B, S)
        w = jax.nn.softmax(scores, axis=-1)
        context = jnp.einsum("bs,bsh->bh", w, keys)                       # (B, H)
        x = jnp.concatenate([embedded, context], axis=-1)                 # (B, 2H)
        gi = x @ w_ih.T + b_ih
        gh = h @ w_hh.T + b_hh
        r = jax.nn.sigmoid(gi[:, :H] + gh[:, :H])
        z = jax.nn.sigmoid(gi[:, H:2 * H] + gh[:, H:2 * H])
        n = jnp.tanh(gi[:, 2 * H:] + r * gh[:, 2 * H:])
        h_new = (1.0 - z) * n + z * h
        logits = h_new @ out_w.T + out_b
        return h_new, (logits, w)

    hT, (logits_all, w_all) = lax.scan(step, encoder_hidden[0], ids.T)
    logp = jax.nn.log_softmax(logits_all, axis=-1)                        # (T, B, V)
    return logp, hT[None], jnp.transpose(w_all, (1, 0, 2))                # (B, T, S)


if __name__ == "__main__":
    B, S = 4, 8                 # batch, encoder sequence length
    H, V = 128, 128             # hidden_size, output_size (module defaults)
    T = MAX_LENGTH              # decode steps

    key = jax.random.PRNGKey(0)
    ks = jax.random.split(key, 16)

    def uni(k, shape, fan_in):
        b = 1.0 / jnp.sqrt(jnp.float32(fan_in))
        return jax.random.uniform(k, shape, jnp.float32, -b, b)

    params = dict(
        embedding=jax.random.normal(ks[0], (V, H), jnp.float32),
        wa_w=uni(ks[1], (H, H), H), wa_b=uni(ks[2], (H,), H),
        ua_w=uni(ks[3], (H, H), H), ua_b=uni(ks[4], (H,), H),
        va_w=uni(ks[5], (1, H), H), va_b=uni(ks[6], (1,), H),
        gru_w_ih=uni(ks[7], (3 * H, 2 * H), H), gru_w_hh=uni(ks[8], (3 * H, H), H),
        gru_b_ih=uni(ks[9], (3 * H,), H), gru_b_hh=uni(ks[10], (3 * H,), H),
        out_w=uni(ks[11], (V, H), H), out_b=uni(ks[12], (V,), H),
    )

    encoder_outputs = jax.random.normal(ks[13], (B, S, H), jnp.float32)
    encoder_hidden = jnp.tanh(jax.random.normal(ks[14], (1, B, H), jnp.float32))
    target = jax.random.randint(ks[15], (B, T), 0, V, jnp.int32)

    logp, hidden, attn = attn_decoder_forward(encoder_outputs, encoder_hidden, target, params)
    jax.block_until_ready((logp, hidden, attn))

    logp_r, hidden_r, attn_r = attn_decoder_reference(encoder_outputs, encoder_hidden, target, params)

    assert logp.shape == (T, B, V) and hidden.shape == (1, B, H) and attn.shape == (B, T, S)
    assert logp.dtype == jnp.float32 and hidden.dtype == jnp.float32 and attn.dtype == jnp.float32
    # bf16 MXU operands -> small numeric drift vs the f32 reference; loosened tolerance.
    assert jnp.allclose(logp, logp_r, rtol=5e-2, atol=5e-2)
    assert jnp.allclose(hidden, hidden_r, rtol=5e-2, atol=5e-2)
    assert jnp.allclose(attn, attn_r, rtol=5e-2, atol=5e-2)

    print("KERNEL_OK")
</pallas_src>

<mosaic_0001>
module attributes {stable_mosaic.version = 11 : i64} {
  func.func @attn_decoder_kernel(%arg0: i32, %arg1: memref<8x4x384xf32, #tpu.memory_space<vmem>>, %arg2: memref<4x8x128xf32, #tpu.memory_space<vmem>>, %arg3: memref<4x8x128xf32, #tpu.memory_space<vmem>>, %arg4: memref<128x128xbf16, #tpu.memory_space<vmem>>, %arg5: memref<1x128xf32, #tpu.memory_space<vmem>>, %arg6: memref<1x128xf32, #tpu.memory_space<vmem>>, %arg7: memref<128x384xbf16, #tpu.memory_space<vmem>>, %arg8: memref<128x384xbf16, #tpu.memory_space<vmem>>, %arg9: memref<1x384xf32, #tpu.memory_space<vmem>>, %arg10: memref<128x128xbf16, #tpu.memory_space<vmem>>, %arg11: memref<1x128xf32, #tpu.memory_space<vmem>>, %arg12: memref<4x128xf32, #tpu.memory_space<vmem>>, %arg13: memref<8x4x128xf32, #tpu.memory_space<vmem>>, %arg14: memref<8x4x8xf32, #tpu.memory_space<vmem>>, %arg15: memref<4x128xf32, #tpu.memory_space<vmem>>, %arg16: memref<4x128xf32, #tpu.memory_space<vmem>>) attributes {dimension_semantics = [#tpu.dimension_semantics<arbitrary>], iteration_bounds = array<i64: 2>, scalar_prefetch = 0 : i64, scratch_operands = 1 : i64, tpu.core_type = #tpu.core_type<tc>, window_params = [{transform_indices = @transform_0, window_bounds = array<i64: 8, 4, 384>}, {pipeline_mode = #tpu.pipeline_mode<synchronous>, transform_indices = @transform_1, window_bounds = array<i64: 4, 8, 128>}, {pipeline_mode = #tpu.pipeline_mode<synchronous>, transform_indices = @transform_2, window_bounds = array<i64: 4, 8, 128>}, {pipeline_mode = #tpu.pipeline_mode<synchronous>, transform_indices = @transform_3, window_bounds = array<i64: 128, 128>}, {pipeline_mode = #tpu.pipeline_mode<synchronous>, transform_indices = @transform_4, window_bounds = array<i64: 1, 128>}, {pipeline_mode = #tpu.pipeline_mode<synchronous>, transform_indices = @transform_5, window_bounds = array<i64: 1, 128>}, {pipeline_mode = #tpu.pipeline_mode<synchronous>, transform_indices = @transform_6, window_bounds = array<i64: 128, 384>}, {pipeline_mode = #tpu.pipeline_mode<synchronous>, transform_indices = @transform_7, window_bounds = array<i64: 128, 384>}, {pipeline_mode = #tpu.pipeline_mode<synchronous>, transform_indices = @transform_8, window_bounds = array<i64: 1, 384>}, {pipeline_mode = #tpu.pipeline_mode<synchronous>, transform_indices = @transform_9, window_bounds = array<i64: 128, 128>}, {pipeline_mode = #tpu.pipeline_mode<synchronous>, transform_indices = @transform_10, window_bounds = array<i64: 1, 128>}, {pipeline_mode = #tpu.pipeline_mode<synchronous>, transform_indices = @transform_11, window_bounds = array<i64: 4, 128>}, {transform_indices = @transform_12, window_bounds = array<i64: 8, 4, 128>}, {transform_indices = @transform_13, window_bounds = array<i64: 8, 4, 8>}, {pipeline_mode = #tpu.pipeline_mode<synchronous>, transform_indices = @transform_14, window_bounds = array<i64: 4, 128>}]} {
    %c0_i32 = arith.constant 0 : i32
    %0 = arith.cmpi eq, %arg0, %c0_i32 : i32
    %1 = arith.extui %0 : i1 to i32
    %c0_i32_0 = arith.constant 0 : i32
    %2 = arith.cmpi ne, %1, %c0_i32_0 : i32
    scf.if %2 {
      %c0_195 = arith.constant 0 : index
      %c0_196 = arith.constant 0 : index
      %659 = vector.load %arg12[%c0_195, %c0_196] : memref<4x128xf32, #tpu.memory_space<vmem>>, vector<4x128xf32>
      %c0_197 = arith.constant 0 : index
      %c0_198 = arith.constant 0 : index
      %660 = vector.load %arg16[%c0_197, %c0_198] : memref<4x128xf32, #tpu.memory_space<vmem>>, vector<4x128xf32>
      tpu.vector_store %arg16[%c0_197, %c0_198], %659 {strides = array<i32>} : memref<4x128xf32, #tpu.memory_space<vmem>>, vector<4x128xf32>,
    } else {
    }
    %c0 = arith.constant 0 : index
    %c0_1 = arith.constant 0 : index
    %c0_2 = arith.constant 0 : index
    %3 = vector.load %arg2[%c0, %c0_1, %c0_2] : memref<4x8x128xf32, #tpu.memory_space<vmem>>, vector<4x8x128xf32>
    %c0_3 = arith.constant 0 : index
    %c0_4 = arith.constant 0 : index
    %c0_5 = arith.constant 0 : index
    %4 = vector.load %arg3[%c0_3, %c0_4, %c0_5] : memref<4x8x128xf32, #tpu.memory_space<vmem>>, vector<4x8x128xf32>
    %c0_6 = arith.constant 0 : index
    %c0_7 = arith.constant 0 : index
    %5 = vector.load %arg4[%c0_6, %c0_7] : memref<128x128xbf16, #tpu.memory_space<vmem>>, vector<128x128xbf16>
    %c0_8 = arith.constant 0 : index
    %c0_9 = arith.constant 0 : index
    %6 = vector.load %arg5[%c0_8, %c0_9] : memref<1x128xf32, #tpu.memory_space<vmem>>, vector<1x128xf32>
    %c0_10 = arith.constant 0 : index
    %c0_11 = arith.constant 0 : index
    %7 = vector.load %arg6[%c0_10, %c0_11] : memref<1x128xf32, #tpu.memory_space<vmem>>, vector<1x128xf32>
    %8 = vector.shape_cast %7 : vector<1x128xf32> to vector<1x1x128xf32>
    %c0_12 = arith.constant 0 : index
    %c0_13 = arith.constant 0 : index
    %9 = vector.load %arg7[%c0_12, %c0_13] : memref<128x384xbf16, #tpu.memory_space<vmem>>, vector<128x384xbf16>
    %c0_14 = arith.constant 0 : index
    %c0_15 = arith.constant 0 : index
    %10 = vector.load %arg8[%c0_14, %c0_15] : memref<128x384xbf16, #tpu.memory_space<vmem>>, vector<128x384xbf16>
    %c0_16 = arith.constant 0 : index
    %c0_17 = arith.constant 0 : index
    %11 = vector.load %arg9[%c0_16, %c0_17] : memref<1x384xf32, #tpu.memory_space<vmem>>, vector<1x384xf32>
    %c0_18 = arith.constant 0 : index
    %c0_19 = arith.constant 0 : index
    %12 = vector.load %arg10[%c0_18, %c0_19] : memref<128x128xbf16, #tpu.memory_space<vmem>>, vector<128x128xbf16>
    %c0_20 = arith.constant 0 : index
    %c0_21 = arith.constant 0 : index
    %13 = vector.load %arg11[%c0_20, %c0_21] : memref<1x128xf32, #tpu.memory_space<vmem>>, vector<1x128xf32>
    %c0_22 = arith.constant 0 : index
    %c0_23 = arith.constant 0 : index
    %14 = vector.load %arg16[%c0_22, %c0_23] : memref<4x128xf32, #tpu.memory_space<vmem>>, vector<4x128xf32>
    %15 = arith.truncf %14 : vector<4x128xf32> to vector<4x128xbf16>
    %cst = arith.constant dense<0.000000e+00> : vector<4x128xf32>
    %16 = tpu.matmul %15, %5, %cst {dimension_numbers = #tpu.dot_dimension_numbers<[1], [0], [0], [1], [0, 0, 1, 1], [], []>} : vector<4x128xbf16>, vector<128x128xbf16>, vector<4x128xf32> -> vector<4x128xf32>
    %17 = vector.broadcast %6 : vector<1x128xf32> to vector<4x128xf32>
    %18 = arith.addf %16, %17 : vector<4x128xf32>
    %19 = vector.shape_cast %18 : vector<4x128xf32> to vector<4x1x128xf32>
    %20 = vector.broadcast %19 : vector<4x1x128xf32> to vector<4x8x128xf32>
    %21 = arith.addf %20, %4 : vector<4x8x128xf32>
    %22 = math.tanh %21 : vector<4x8x128xf32>
    %23 = vector.broadcast %8 : vector<1x1x128xf32> to vector<4x8x128xf32>
    %24 = arith.mulf %22, %23 : vector<4x8x128xf32>
    %cst_24 = arith.constant dense<0.000000e+00> : vector<4x8xf32>
    %25 = vector.multi_reduction <add>, %24, %cst_24 [2] : vector<4x8x128xf32> to vector<4x8xf32>
    %cst_25 = arith.constant dense<0xFF800000> : vector<4xf32>
    %26 = vector.multi_reduction <maximumf>, %25, %cst_25 [1] : vector<4x8xf32> to vector<4xf32>
    %27 = vector.shape_cast %26 : vector<4xf32> to vector<4x1xf32>
    %28 = vector.broadcast %27 : vector<4x1xf32> to vector<4x8xf32>
    %29 = arith.subf %25, %28 : vector<4x8xf32>
    %30 = math.exp %29 : vector<4x8xf32>
    %cst_26 = arith.constant dense<0.000000e+00> : vector<4xf32>
    %31 = vector.multi_reduction <add>, %30, %cst_26 [1] : vector<4x8xf32> to vector<4xf32>
    %32 = vector.shape_cast %31 : vector<4xf32> to vector<4x1xf32>
    %33 = vector.broadcast %32 : vector<4x1xf32> to vector<4x8xf32>
    %34 = arith.divf %30, %33 : vector<4x8xf32>
    %c0_27 = arith.constant 0 : index
    %c0_28 = arith.constant 0 : index
    %c0_29 = arith.constant 0 : index
    %35 = vector.load %arg14[%c0_27, %c0_28, %c0_29] : memref<8x4x8xf32, #tpu.memory_space<vmem>>, vector<1x4x8xf32>
    %36 = vector.shape_cast %35 : vector<1x4x8xf32> to vector<4x8xf32>
    %37 = vector.shape_cast %34 : vector<4x8xf32> to vector<1x4x8xf32>
    tpu.vector_store %arg14[%c0_27, %c0_28, %c0_29], %37 {strides = array<i32>} : memref<8x4x8xf32, #tpu.memory_space<vmem>>, vector<1x4x8xf32>,
    %38 = vector.shape_cast %34 : vector<4x8xf32> to vector<4x8x1xf32>
    %39 = vector.broadcast %38 : vector<4x8x1xf32> to vector<4x8x128xf32>
    %40 = arith.mulf %39, %3 : vector<4x8x128xf32>
    %cst_30 = arith.constant dense<0.000000e+00> : vector<4x128xf32>
    %41 = vector.multi_reduction <add>, %40, %cst_30 [1] : vector<4x8x128xf32> to vector<4x128xf32>
    %c0_31 = arith.constant 0 : index
    %c0_32 = arith.constant 0 : index
    %c0_33 = arith.constant 0 : index
    %42 = vector.load %arg1[%c0_31, %c0_32, %c0_33] : memref<8x4x384xf32, #tpu.memory_space<vmem>>, vector<1x4x384xf32>
    %43 = vector.shape_cast %42 : vector<1x4x384xf32> to vector<4x384xf32>
    %44 = arith.truncf %41 : vector<4x128xf32> to vector<4x128xbf16>
    %cst_34 = arith.constant dense<0.000000e+00> : vector<4x384xf32>
    %45 = tpu.matmul %44, %9, %cst_34 {dimension_numbers = #tpu.dot_dimension_numbers<[1], [0], [0], [1], [0, 0, 1, 1], [], []>} : vector<4x128xbf16>, vector<128x384xbf16>, vector<4x384xf32> -> vector<4x384xf32>
    %46 = arith.addf %43, %45 : vector<4x384xf32>
    %47 = arith.truncf %14 : vector<4x128xf32> to vector<4x128xbf16>
    %cst_35 = arith.constant dense<0.000000e+00> : vector<4x384xf32>
    %48 = tpu.matmul %47, %10, %cst_35 {dimension_numbers = #tpu.dot_dimension_numbers<[1], [0], [0], [1], [0, 0, 1, 1], [], []>} : vector<4x128xbf16>, vector<128x384xbf16>, vector<4x384xf32> -> vector<4x384xf32>
    %49 = vector.broadcast %11 : vector<1x384xf32> to vector<4x384xf32>
    %50 = arith.addf %48, %49 : vector<4x384xf32>
    %51 = vector.extract_strided_slice %46 {offsets = [0, 0], sizes = [4, 128], strides = [1, 1]} : vector<4x384xf32> to vector<4x128xf32>
    %52 = vector.extract_strided_slice %50 {offsets = [0, 0], sizes = [4, 128], strides = [1, 1]} : vector<4x384xf32> to vector<4x128xf32>
    %53 = arith.addf %51, %52 : vector<4x128xf32>
    %54 = arith.negf %53 : vector<4x128xf32>
    %55 = math.exp %54 : vector<4x128xf32>
    %cst_36 = arith.constant 1.000000e+00 : f32
    %56 = vector.broadcast %cst_36 : f32 to vector<4x128xf32>
    %57 = arith.addf %56, %55 : vector<4x128xf32>
    %58 = arith.divf %56, %57 : vector<4x128xf32>
    %59 = vector.extract_strided_slice %46 {offsets = [0, 128], sizes = [4, 128], strides = [1, 1]} : vector<4x384xf32> to vector<4x128xf32>
    %60 = vector.extract_strided_slice %50 {offsets = [0, 128], sizes = [4, 128], strides = [1, 1]} : vector<4x384xf32> to vector<4x128xf32>
    %61 = arith.addf %59, %60 : vector<4x128xf32>
    %62 = arith.negf %61 : vector<4x128xf32>
    %63 = math.exp %62 : vector<4x128xf32>
    %cst_37 = arith.constant 1.000000e+00 : f32
    %64 = vector.broadcast %cst_37 : f32 to vector<4x128xf32>
    %65 = arith.addf %64, %63 : vector<4x128xf32>
    %66 = arith.divf %64, %65 : vector<4x128xf32>
    %67 = vector.extract_strided_slice %46 {offsets = [0, 256], sizes = [4, 128], strides = [1, 1]} : vector<4x384xf32> to vector<4x128xf32>
    %68 = vector.extract_strided_slice %50 {offsets = [0, 256], sizes = [4, 128], strides = [1, 1]} : vector<4x384xf32> to vector<4x128xf32>
    %69 = arith.mulf %58, %68 : vector<4x128xf32>
    %70 = arith.addf %67, %69 : vector<4x128xf32>
    %71 = math.tanh %70 : vector<4x128xf32>
    %cst_38 = arith.constant 1.000000e+00 : f32
    %72 = vector.broadcast %cst_38 : f32 to vector<4x128xf32>
    %73 = arith.subf %72, %66 : vector<4x128xf32>
    %74 = arith.mulf %73, %71 : vector<4x128xf32>
    %75 = arith.mulf %66, %14 : vector<4x128xf32>
    %76 = arith.addf %74, %75 : vector<4x128xf32>
    %77 = arith.truncf %76 : vector<4x128xf32> to vector<4x128xbf16>
    %cst_39 = arith.constant dense<0.000000e+00> : vector<4x128xf32>
    %78 = tpu.matmul %77, %12, %cst_39 {dimension_numbers = #tpu.dot_dimension_numbers<[1], [0], [0], [1], [0, 0, 1, 1], [], []>} : vector<4x128xbf16>, vector<128x128xbf16>, vector<4x128xf32> -> vector<4x128xf32>
    %79 = vector.broadcast %13 : vector<1x128xf32> to vector<4x128xf32>
    %80 = arith.addf %78, %79 : vector<4x128xf32>
    %cst_40 = arith.constant dense<0xFF800000> : vector<4xf32>
    %81 = vector.multi_reduction <maximumf>, %80, %cst_40 [1] : vector<4x128xf32> to vector<4xf32>
    %82 = vector.shape_cast %81 : vector<4xf32> to vector<4x1xf32>
    %83 = vector.broadcast %82 : vector<4x1xf32> to vector<4x128xf32>
    %84 = arith.subf %80, %83 : vector<4x128xf32>
    %85 = math.exp %84 : vector<4x128xf32>
    %cst_41 = arith.constant dense<0.000000e+00> : vector<4xf32>
    %86 = vector.multi_reduction <add>, %85, %cst_41 [1] : vector<4x128xf32> to vector<4xf32>
    %87 = vector.shape_cast %86 : vector<4xf32> to vector<4x1xf32>
    %88 = math.log %87 : vector<4x1xf32>
    %89 = arith.addf %88, %82 : vector<4x1xf32>
    %90 = vector.broadcast %89 : vector<4x1xf32> to vector<4x128xf32>
    %91 = arith.subf %80, %90 : vector<4x128xf32>
    %c0_42 = arith.constant 0 : index
    %c0_43 = arith.constant 0 : index
    %c0_44 = arith.constant 0 : index
    %92 = vector.load %arg13[%c0_42, %c0_43, %c0_44] : memref<8x4x128xf32, #tpu.memory_space<vmem>>, vector<1x4x128xf32>
    %93 = vector.shape_cast %92 : vector<1x4x128xf32> to vector<4x128xf32>
    %94 = vector.shape_cast %91 : vector<4x128xf32> to vector<1x4x128xf32>
    tpu.vector_store %arg13[%c0_42, %c0_43, %c0_44], %94 {strides = array<i32>} : memref<8x4x128xf32, #tpu.memory_space<vmem>>, vector<1x4x128xf32>,
    %95 = arith.truncf %76 : vector<4x128xf32> to vector<4x128xbf16>
    %cst_45 = arith.constant dense<0.000000e+00> : vector<4x128xf32>
    %96 = tpu.matmul %95, %5, %cst_45 {dimension_numbers = #tpu.dot_dimension_numbers<[1], [0], [0], [1], [0, 0, 1, 1], [], []>} : vector<4x128xbf16>, vector<128x128xbf16>, vector<4x128xf32> -> vector<4x128xf32>
    %97 = vector.broadcast %6 : vector<1x128xf32> to vector<4x128xf32>
    %98 = arith.addf %96, %97 : vector<4x128xf32>
    %99 = vector.shape_cast %98 : vector<4x128xf32> to vector<4x1x128xf32>
    %100 = vector.broadcast %99 : vector<4x1x128xf32> to vector<4x8x128xf32>
    %101 = arith.addf %100, %4 : vector<4x8x128xf32>
    %102 = math.tanh %101 : vector<4x8x128xf32>
    %103 = vector.broadcast %8 : vector<1x1x128xf32> to vector<4x8x128xf32>
    %104 = arith.mulf %102, %103 : vector<4x8x128xf32>
    %cst_46 = arith.constant dense<0.000000e+00> : vector<4x8xf32>
    %105 = vector.multi_reduction <add>, %104, %cst_46 [2] : vector<4x8x128xf32> to vector<4x8xf32>
    %cst_47 = arith.constant dense<0xFF800000> : vector<4xf32>
    %106 = vector.multi_reduction <maximumf>, %105, %cst_47 [1] : vector<4x8xf32> to vector<4xf32>
    %107 = vector.shape_cast %106 : vector<4xf32> to vector<4x1xf32>
    %108 = vector.broadcast %107 : vector<4x1xf32> to vector<4x8xf32>
    %109 = arith.subf %105, %108 : vector<4x8xf32>
    %110 = math.exp %109 : vector<4x8xf32>
    %cst_48 = arith.constant dense<0.000000e+00> : vector<4xf32>
    %111 = vector.multi_reduction <add>, %110, %cst_48 [1] : vector<4x8xf32> to vector<4xf32>
    %112 = vector.shape_cast %111 : vector<4xf32> to vector<4x1xf32>
    %113 = vector.broadcast %112 : vector<4x1xf32> to vector<4x8xf32>
    %114 = arith.divf %110, %113 : vector<4x8xf32>
    %c1 = arith.constant 1 : index
    %c0_49 = arith.constant 0 : index
    %c0_50 = arith.constant 0 : index
    %115 = vector.load %arg14[%c1, %c0_49, %c0_50] : memref<8x4x8xf32, #tpu.memory_space<vmem>>, vector<1x4x8xf32>
    %116 = vector.shape_cast %115 : vector<1x4x8xf32> to vector<4x8xf32>
    %117 = vector.shape_cast %114 : vector<4x8xf32> to vector<1x4x8xf32>
    tpu.vector_store %arg14[%c1, %c0_49, %c0_50], %117 {strides = array<i32>} : memref<8x4x8xf32, #tpu.memory_space<vmem>>, vector<1x4x8xf32>,
    %118 = vector.shape_cast %114 : vector<4x8xf32> to vector<4x8x1xf32>
    %119 = vector.broadcast %118 : vector<4x8x1xf32> to vector<4x8x128xf32>
    %120 = arith.mulf %119, %3 : vector<4x8x128xf32>
    %cst_51 = arith.constant dense<0.000000e+00> : vector<4x128xf32>
    %121 = vector.multi_reduction <add>, %120, %cst_51 [1] : vector<4x8x128xf32> to vector<4x128xf32>
    %c1_52 = arith.constant 1 : index
    %c0_53 = arith.constant 0 : index
    %c0_54 = arith.constant 0 : index
    %122 = vector.load %arg1[%c1_52, %c0_53, %c0_54] : memref<8x4x384xf32, #tpu.memory_space<vmem>>, vector<1x4x384xf32>
    %123 = vector.shape_cast %122 : vector<1x4x384xf32> to vector<4x384xf32>
    %124 = arith.truncf %121 : vector<4x128xf32> to vector<4x128xbf16>
    %cst_55 = arith.constant dense<0.000000e+00> : vector<4x384xf32>
    %125 = tpu.matmul %124, %9, %cst_55 {dimension_numbers = #tpu.dot_dimension_numbers<[1], [0], [0], [1], [0, 0, 1, 1], [], []>} : vector<4x128xbf16>, vector<128x384xbf16>, vector<4x384xf32> -> vector<4x384xf32>
    %126 = arith.addf %123, %125 : vector<4x384xf32>
    %127 = arith.truncf %76 : vector<4x128xf32> to vector<4x128xbf16>
    %cst_56 = arith.constant dense<0.000000e+00> : vector<4x384xf32>
    %128 = tpu.matmul %127, %10, %cst_56 {dimension_numbers = #tpu.dot_dimension_numbers<[1], [0], [0], [1], [0, 0, 1, 1], [], []>} : vector<4x128xbf16>, vector<128x384xbf16>, vector<4x384xf32> -> vector<4x384xf32>
    %129 = vector.broadcast %11 : vector<1x384xf32> to vector<4x384xf32>
    %130 = arith.addf %128, %129 : vector<4x384xf32>
    %131 = vector.extract_strided_slice %126 {offsets = [0, 0], sizes = [4, 128], strides = [1, 1]} : vector<4x384xf32> to vector<4x128xf32>
    %132 = vector.extract_strided_slice %130 {offsets = [0, 0], sizes = [4, 128], strides = [1, 1]} : vector<4x384xf32> to vector<4x128xf32>
    %133 = arith.addf %131, %132 : vector<4x128xf32>
    %134 = arith.negf %133 : vector<4x128xf32>
    %135 = math.exp %134 : vector<4x128xf32>
    %cst_57 = arith.constant 1.000000e+00 : f32
    %136 = vector.broadcast %cst_57 : f32 to vector<4x128xf32>
    %137 = arith.addf %136, %135 : vector<4x128xf32>
    %138 = arith.divf %136, %137 : vector<4x128xf32>
    %139 = vector.extract_strided_slice %126 {offsets = [0, 128], sizes = [4, 128], strides = [1, 1]} : vector<4x384xf32> to vector<4x128xf32>
    %140 = vector.extract_strided_slice %130 {offsets = [0, 128], sizes = [4, 128], strides = [1, 1]} : vector<4x384xf32> to vector<4x128xf32>
    %141 = arith.addf %139, %140 : vector<4x128xf32>
    %142 = arith.negf %141 : vector<4x128xf32>
    %143 = math.exp %142 : vector<4x128xf32>
    %cst_58 = arith.constant 1.000000e+00 : f32
    %144 = vector.broadcast %cst_58 : f32 to vector<4x128xf32>
    %145 = arith.addf %144, %143 : vector<4x128xf32>
    %146 = arith.divf %144, %145 : vector<4x128xf32>
    %147 = vector.extract_strided_slice %126 {offsets = [0, 256], sizes = [4, 128], strides = [1, 1]} : vector<4x384xf32> to vector<4x128xf32>
    %148 = vector.extract_strided_slice %130 {offsets = [0, 256], sizes = [4, 128], strides = [1, 1]} : vector<4x384xf32> to vector<4x128xf32>
    %149 = arith.mulf %138, %148 : vector<4x128xf32>
    %150 = arith.addf %147, %149 : vector<4x128xf32>
    %151 = math.tanh %150 : vector<4x128xf32>
    %cst_59 = arith.constant 1.000000e+00 : f32
    %152 = vector.broadcast %cst_59 : f32 to vector<4x128xf32>
    %153 = arith.subf %152, %146 : vector<4x128xf32>
    %154 = arith.mulf %153, %151 : vector<4x128xf32>
    %155 = arith.mulf %146, %76 : vector<4x128xf32>
    %156 = arith.addf %154, %155 : vector<4x128xf32>
    %157 = arith.truncf %156 : vector<4x128xf32> to vector<4x128xbf16>
    %cst_60 = arith.constant dense<0.000000e+00> : vector<4x128xf32>
    %158 = tpu.matmul %157, %12, %cst_60 {dimension_numbers = #tpu.dot_dimension_numbers<[1], [0], [0], [1], [0, 0, 1, 1], [], []>} : vector<4x128xbf16>, vector<128x128xbf16>, vector<4x128xf32> -> vector<4x128xf32>
    %159 = vector.broadcast %13 : vector<1x128xf32> to vector<4x128xf32>
    %160 = arith.addf %158, %159 : vector<4x128xf32>
    %cst_61 = arith.constant dense<0xFF800000> : vector<4xf32>
    %161 = vector.multi_reduction <maximumf>, %160, %cst_61 [1] : vector<4x128xf32> to vector<4xf32>
    %162 = vector.shape_cast %161 : vector<4xf32> to vector<4x1xf32>
    %163 = vector.broadcast %162 : vector<4x1xf32> to vector<4x128xf32>
    %164 = arith.subf %160, %163 : vector<4x128xf32>
    %165 = math.exp %164 : vector<4x128xf32>
    %cst_62 = arith.constant dense<0.000000e+00> : vector<4xf32>
    %166 = vector.multi_reduction <add>, %165, %cst_62 [1] : vector<4x128xf32> to vector<4xf32>
    %167 = vector.shape_cast %166 : vector<4xf32> to vector<4x1xf32>
    %168 = math.log %167 : vector<4x1xf32>
    %169 = arith.addf %168, %162 : vector<4x1xf32>
    %170 = vector.broadcast %169 : vector<4x1xf32> to vector<4x128xf32>
    %171 = arith.subf %160, %170 : vector<4x128xf32>
    %c1_63 = arith.constant 1 : index
    %c0_64 = arith.constant 0 : index
    %c0_65 = arith.constant 0 : index
    %172 = vector.load %arg13[%c1_63, %c0_64, %c0_65] : memref<8x4x128xf32, #tpu.memory_space<vmem>>, vector<1x4x128xf32>
    %173 = vector.shape_cast %172 : vector<1x4x128xf32> to vector<4x128xf32>
    %174 = vector.shape_cast %171 : vector<4x128xf32> to vector<1x4x128xf32>
    tpu.vector_store %arg13[%c1_63, %c0_64, %c0_65], %174 {strides = array<i32>} : memref<8x4x128xf32, #tpu.memory_space<vmem>>, vector<1x4x128xf32>,
    %175 = arith.truncf %156 : vector<4x128xf32> to vector<4x128xbf16>
    %cst_66 = arith.constant dense<0.000000e+00> : vector<4x128xf32>
    %176 = tpu.matmul %175, %5, %cst_66 {dimension_numbers = #tpu.dot_dimension_numbers<[1], [0], [0], [1], [0, 0, 1, 1], [], []>} : vector<4x128xbf16>, vector<128x128xbf16>, vector<4x128xf32> -> vector<4x128xf32>
    %177 = vector.broadcast %6 : vector<1x128xf32> to vector<4x128xf32>
    %178 = arith.addf %176, %177 : vector<4x128xf32>
    %179 = vector.shape_cast %178 : vector<4x128xf32> to vector<4x1x128xf32>
    %180 = vector.broadcast %179 : vector<4x1x128xf32> to vector<4x8x128xf32>
    %181 = arith.addf %180, %4 : vector<4x8x128xf32>
    %182 = math.tanh %181 : vector<4x8x128xf32>
    %183 = vector.broadcast %8 : vector<1x1x128xf32> to vector<4x8x128xf32>
    %184 = arith.mulf %182, %183 : vector<4x8x128xf32>
    %cst_67 = arith.constant dense<0.000000e+00> : vector<4x8xf32>
    %185 = vector.multi_reduction <add>, %184, %cst_67 [2] : vector<4x8x128xf32> to vector<4x8xf32>
    %cst_68 = arith.constant dense<0xFF800000> : vector<4xf32>
    %186 = vector.multi_reduction <maximumf>, %185, %cst_68 [1] : vector<4x8xf32> to vector<4xf32>
    %187 = vector.shape_cast %186 : vector<4xf32> to vector<4x1xf32>
    %188 = vector.broadcast %187 : vector<4x1xf32> to vector<4x8xf32>
    %189 = arith.subf %185, %188 : vector<4x8xf32>
    %190 = math.exp %189 : vector<4x8xf32>
    %cst_69 = arith.constant dense<0.000000e+00> : vector<4xf32>
    %191 = vector.multi_reduction <add>, %190, %cst_69 [1] : vector<4x8xf32> to vector<4xf32>
    %192 = vector.shape_cast %191 : vector<4xf32> to vector<4x1xf32>
    %193 = vector.broadcast %192 : vector<4x1xf32> to vector<4x8xf32>
    %194 = arith.divf %190, %193 : vector<4x8xf32>
    %c2 = arith.constant 2 : index
    %c0_70 = arith.constant 0 : index
    %c0_71 = arith.constant 0 : index
    %195 = vector.load %arg14[%c2, %c0_70, %c0_71] : memref<8x4x8xf32, #tpu.memory_space<vmem>>, vector<1x4x8xf32>
    %196 = vector.shape_cast %195 : vector<1x4x8xf32> to vector<4x8xf32>
    %197 = vector.shape_cast %194 : vector<4x8xf32> to vector<1x4x8xf32>
    tpu.vector_store %arg14[%c2, %c0_70, %c0_71], %197 {strides = array<i32>} : memref<8x4x8xf32, #tpu.memory_space<vmem>>, vector<1x4x8xf32>,
    %198 = vector.shape_cast %194 : vector<4x8xf32> to vector<4x8x1xf32>
    %199 = vector.broadcast %198 : vector<4x8x1xf32> to vector<4x8x128xf32>
    %200 = arith.mulf %199, %3 : vector<4x8x128xf32>
    %cst_72 = arith.constant dense<0.000000e+00> : vector<4x128xf32>
    %201 = vector.multi_reduction <add>, %200, %cst_72 [1] : vector<4x8x128xf32> to vector<4x128xf32>
    %c2_73 = arith.constant 2 : index
    %c0_74 = arith.constant 0 : index
    %c0_75 = arith.constant 0 : index
    %202 = vector.load %arg1[%c2_73, %c0_74, %c0_75] : memref<8x4x384xf32, #tpu.memory_space<vmem>>, vector<1x4x384xf32>
    %203 = vector.shape_cast %202 : vector<1x4x384xf32> to vector<4x384xf32>
    %204 = arith.truncf %201 : vector<4x128xf32> to vector<4x128xbf16>
    %cst_76 = arith.constant dense<0.000000e+00> : vector<4x384xf32>
    %205 = tpu.matmul %204, %9, %cst_76 {dimension_numbers = #tpu.dot_dimension_numbers<[1], [0], [0], [1], [0, 0, 1, 1], [], []>} : vector<4x128xbf16>, vector<128x384xbf16>, vector<4x384xf32> -> vector<4x384xf32>
    %206 = arith.addf %203, %205 : vector<4x384xf32>
    %207 = arith.truncf %156 : vector<4x128xf32> to vector<4x128xbf16>
    %cst_77 = arith.constant dense<0.000000e+00> : vector<4x384xf32>
    %208 = tpu.matmul %207, %10, %cst_77 {dimension_numbers = #tpu.dot_dimension_numbers<[1], [0], [0], [1], [0, 0, 1, 1], [], []>} : vector<4x128xbf16>, vector<128x384xbf16>, vector<4x384xf32> -> vector<4x384xf32>
    %209 = vector.broadcast %11 : vector<1x384xf32> to vector<4x384xf32>
    %210 = arith.addf %208, %209 : vector<4x384xf32>
    %211 = vector.extract_strided_slice %206 {offsets = [0, 0], sizes = [4, 128], strides = [1, 1]} : vector<4x384xf32> to vector<4x128xf32>
    %212 = vector.extract_strided_slice %210 {offsets = [0, 0], sizes = [4, 128], strides = [1, 1]} : vector<4x384xf32> to vector<4x128xf32>
    %213 = arith.addf %211, %212 : vector<4x128xf32>
    %214 = arith.negf %213 : vector<4x128xf32>
    %215 = math.exp %214 : vector<4x128xf32>
    %cst_78 = arith.constant 1.000000e+00 : f32
    %216 = vector.broadcast %cst_78 : f32 to vector<4x128xf32>
    %217 = arith.addf %216, %215 : vector<4x128xf32>
    %218 = arith.divf %216, %217 : vector<4x128xf32>
    %219 = vector.extract_strided_slice %206 {offsets = [0, 128], sizes = [4, 128], strides = [1, 1]} : vector<4x384xf32> to vector<4x128xf32>
    %220 = vector.extract_strided_slice %210 {offsets = [0, 128], sizes = [4, 128], strides = [1, 1]} : vector<4x384xf32> to vector<4x128xf32>
    %221 = arith.addf %219, %220 : vector<4x128xf32>
    %222 = arith.negf %221 : vector<4x128xf32>
    %223 = math.exp %222 : vector<4x128xf32>
    %cst_79 = arith.constant 1.000000e+00 : f32
    %224 = vector.broadcast %cst_79 : f32 to vector<4x128xf32>
    %225 = arith.addf %224, %223 : vector<4x128xf32>
    %226 = arith.divf %224, %225 : vector<4x128xf32>
    %227 = vector.extract_strided_slice %206 {offsets = [0, 256], sizes = [4, 128], strides = [1, 1]} : vector<4x384xf32> to vector<4x128xf32>
    %228 = vector.extract_strided_slice %210 {offsets = [0, 256], sizes = [4, 128], strides = [1, 1]} : vector<4x384xf32> to vector<4x128xf32>
    %229 = arith.mulf %218, %228 : vector<4x128xf32>
    %230 = arith.addf %227, %229 : vector<4x128xf32>
    %231 = math.tanh %230 : vector<4x128xf32>
    %cst_80 = arith.constant 1.000000e+00 : f32
    %232 = vector.broadcast %cst_80 : f32 to vector<4x128xf32>
    %233 = arith.subf %232, %226 : vector<4x128xf32>
    %234 = arith.mulf %233, %231 : vector<4x128xf32>
    %235 = arith.mulf %226, %156 : vector<4x128xf32>
    %236 = arith.addf %234, %235 : vector<4x128xf32>
    %237 = arith.truncf %236 : vector<4x128xf32> to vector<4x128xbf16>
    %cst_81 = arith.constant dense<0.000000e+00> : vector<4x128xf32>
    %238 = tpu.matmul %237, %12, %cst_81 {dimension_numbers = #tpu.dot_dimension_numbers<[1], [0], [0], [1], [0, 0, 1, 1], [], []>} : vector<4x128xbf16>, vector<128x128xbf16>, vector<4x128xf32> -> vector<4x128xf32>
    %239 = vector.broadcast %13 : vector<1x128xf32> to vector<4x128xf32>
    %240 = arith.addf %238, %239 : vector<4x128xf32>
    %cst_82 = arith.constant dense<0xFF800000> : vector<4xf32>
    %241 = vector.multi_reduction <maximumf>, %240, %cst_82 [1] : vector<4x128xf32> to vector<4xf32>
    %242 = vector.shape_cast %241 : vector<4xf32> to vector<4x1xf32>
    %243 = vector.broadcast %242 : vector<4x1xf32> to vector<4x128xf32>
    %244 = arith.subf %240, %243 : vector<4x128xf32>
    %245 = math.exp %244 : vector<4x128xf32>
    %cst_83 = arith.constant dense<0.000000e+00> : vector<4xf32>
    %246 = vector.multi_reduction <add>, %245, %cst_83 [1] : vector<4x128xf32> to vector<4xf32>
    %247 = vector.shape_cast %246 : vector<4xf32> to vector<4x1xf32>
    %248 = math.log %247 : vector<4x1xf32>
    %249 = arith.addf %248, %242 : vector<4x1xf32>
    %250 = vector.broadcast %249 : vector<4x1xf32> to vector<4x128xf32>
    %251 = arith.subf %240, %250 : vector<4x128xf32>
    %c2_84 = arith.constant 2 : index
    %c0_85 = arith.constant 0 : index
    %c0_86 = arith.constant 0 : index
    %252 = vector.load %arg13[%c2_84, %c0_85, %c0_86] : memref<8x4x128xf32, #tpu.memory_space<vmem>>, vector<1x4x128xf32>
    %253 = vector.shape_cast %252 : vector<1x4x128xf32> to vector<4x128xf32>
    %254 = vector.shape_cast %251 : vector<4x128xf32> to vector<1x4x128xf32>
    tpu.vector_store %arg13[%c2_84, %c0_85, %c0_86], %254 {strides = array<i32>} : memref<8x4x128xf32, #tpu.memory_space<vmem>>, vector<1x4x128xf32>,
    %255 = arith.truncf %236 : vector<4x128xf32> to vector<4x128xbf16>
    %cst_87 = arith.constant dense<0.000000e+00> : vector<4x128xf32>
    %256 = tpu.matmul %255, %5, %cst_87 {dimension_numbers = #tpu.dot_dimension_numbers<[1], [0], [0], [1], [0, 0, 1, 1], [], []>} : vector<4x128xbf16>, vector<128x128xbf16>, vector<4x128xf32> -> vector<4x128xf32>
    %257 = vector.broadcast %6 : vector<1x128xf32> to vector<4x128xf32>
    %258 = arith.addf %256, %257 : vector<4x128xf32>
    %259 = vector.shape_cast %258 : vector<4x128xf32> to vector<4x1x128xf32>
    %260 = vector.broadcast %259 : vector<4x1x128xf32> to vector<4x8x128xf32>
    %261 = arith.addf %260, %4 : vector<4x8x128xf32>
    %262 = math.tanh %261 : vector<4x8x128xf32>
    %263 = vector.broadcast %8 : vector<1x1x128xf32> to vector<4x8x128xf32>
    %264 = arith.mulf %262, %263 : vector<4x8x128xf32>
    %cst_88 = arith.constant dense<0.000000e+00> : vector<4x8xf32>
    %265 = vector.multi_reduction <add>, %264, %cst_88 [2] : vector<4x8x128xf32> to vector<4x8xf32>
    %cst_89 = arith.constant dense<0xFF800000> : vector<4xf32>
    %266 = vector.multi_reduction <maximumf>, %265, %cst_89 [1] : vector<4x8xf32> to vector<4xf32>
    %267 = vector.shape_cast %266 : vector<4xf32> to vector<4x1xf32>
    %268 = vector.broadcast %267 : vector<4x1xf32> to vector<4x8xf32>
    %269 = arith.subf %265, %268 : vector<4x8xf32>
    %270 = math.exp %269 : vector<4x8xf32>
    %cst_90 = arith.constant dense<0.000000e+00> : vector<4xf32>
    %271 = vector.multi_reduction <add>, %270, %cst_90 [1] : vector<4x8xf32> to vector<4xf32>
    %272 = vector.shape_cast %271 : vector<4xf32> to vector<4x1xf32>
    %273 = vector.broadcast %272 : vector<4x1xf32> to vector<4x8xf32>
    %274 = arith.divf %270, %273 : vector<4x8xf32>
    %c3 = arith.constant 3 : index
    %c0_91 = arith.constant 0 : index
    %c0_92 = arith.constant 0 : index
    %275 = vector.load %arg14[%c3, %c0_91, %c0_92] : memref<8x4x8xf32, #tpu.memory_space<vmem>>, vector<1x4x8xf32>
    %276 = vector.shape_cast %275 : vector<1x4x8xf32> to vector<4x8xf32>
    %277 = vector.shape_cast %274 : vector<4x8xf32> to vector<1x4x8xf32>
    tpu.vector_store %arg14[%c3, %c0_91, %c0_92], %277 {strides = array<i32>} : memref<8x4x8xf32, #tpu.memory_space<vmem>>, vector<1x4x8xf32>,
    %278 = vector.shape_cast %274 : vector<4x8xf32> to vector<4x8x1xf32>
    %279 = vector.broadcast %278 : vector<4x8x1xf32> to vector<4x8x128xf32>
    %280 = arith.mulf %279, %3 : vector<4x8x128xf32>
    %cst_93 = arith.constant dense<0.000000e+00> : vector<4x128xf32>
    %281 = vector.multi_reduction <add>, %280, %cst_93 [1] : vector<4x8x128xf32> to vector<4x128xf32>
    %c3_94 = arith.constant 3 : index
    %c0_95 = arith.constant 0 : index
    %c0_96 = arith.constant 0 : index
    %282 = vector.load %arg1[%c3_94, %c0_95, %c0_96] : memref<8x4x384xf32, #tpu.memory_space<vmem>>, vector<1x4x384xf32>
    %283 = vector.shape_cast %282 : vector<1x4x384xf32> to vector<4x384xf32>
    %284 = arith.truncf %281 : vector<4x128xf32> to vector<4x128xbf16>
    %cst_97 = arith.constant dense<0.000000e+00> : vector<4x384xf32>
    %285 = tpu.matmul %284, %9, %cst_97 {dimension_numbers = #tpu.dot_dimension_numbers<[1], [0], [0], [1], [0, 0, 1, 1], [], []>} : vector<4x128xbf16>, vector<128x384xbf16>, vector<4x384xf32> -> vector<4x384xf32>
    %286 = arith.addf %283, %285 : vector<4x384xf32>
    %287 = arith.truncf %236 : vector<4x128xf32> to vector<4x128xbf16>
    %cst_98 = arith.constant dense<0.000000e+00> : vector<4x384xf32>
    %288 = tpu.matmul %287, %10, %cst_98 {dimension_numbers = #tpu.dot_dimension_numbers<[1], [0], [0], [1], [0, 0, 1, 1], [], []>} : vector<4x128xbf16>, vector<128x384xbf16>, vector<4x384xf32> -> vector<4x384xf32>
    %289 = vector.broadcast %11 : vector<1x384xf32> to vector<4x384xf32>
    %290 = arith.addf %288, %289 : vector<4x384xf32>
    %291 = vector.extract_strided_slice %286 {offsets = [0, 0], sizes = [4, 128], strides = [1, 1]} : vector<4x384xf32> to vector<4x128xf32>
    %292 = vector.extract_strided_slice %290 {offsets = [0, 0], sizes = [4, 128], strides = [1, 1]} : vector<4x384xf32> to vector<4x128xf32>
    %293 = arith.addf %291, %292 : vector<4x128xf32>
    %294 = arith.negf %293 : vector<4x128xf32>
    %295 = math.exp %294 : vector<4x128xf32>
    %cst_99 = arith.constant 1.000000e+00 : f32
    %296 = vector.broadcast %cst_99 : f32 to vector<4x128xf32>
    %297 = arith.addf %296, %295 : vector<4x128xf32>
    %298 = arith.divf %296, %297 : vector<4x128xf32>
    %299 = vector.extract_strided_slice %286 {offsets = [0, 128], sizes = [4, 128], strides = [1, 1]} : vector<4x384xf32> to vector<4x128xf32>
    %300 = vector.extract_strided_slice %290 {offsets = [0, 128], sizes = [4, 128], strides = [1, 1]} : vector<4x384xf32> to vector<4x128xf32>
    %301 = arith.addf %299, %300 : vector<4x128xf32>
    %302 = arith.negf %301 : vector<4x128xf32>
    %303 = math.exp %302 : vector<4x128xf32>
    %cst_100 = arith.constant 1.000000e+00 : f32
    %304 = vector.broadcast %cst_100 : f32 to vector<4x128xf32>
    %305 = arith.addf %304, %303 : vector<4x128xf32>
    %306 = arith.divf %304, %305 : vector<4x128xf32>
    %307 = vector.extract_strided_slice %286 {offsets = [0, 256], sizes = [4, 128], strides = [1, 1]} : vector<4x384xf32> to vector<4x128xf32>
    %308 = vector.extract_strided_slice %290 {offsets = [0, 256], sizes = [4, 128], strides = [1, 1]} : vector<4x384xf32> to vector<4x128xf32>
    %309 = arith.mulf %298, %308 : vector<4x128xf32>
    %310 = arith.addf %307, %309 : vector<4x128xf32>
    %311 = math.tanh %310 : vector<4x128xf32>
    %cst_101 = arith.constant 1.000000e+00 : f32
    %312 = vector.broadcast %cst_101 : f32 to vector<4x128xf32>
    %313 = arith.subf %312, %306 : vector<4x128xf32>
    %314 = arith.mulf %313, %311 : vector<4x128xf32>
    %315 = arith.mulf %306, %236 : vector<4x128xf32>
    %316 = arith.addf %314, %315 : vector<4x128xf32>
    %317 = arith.truncf %316 : vector<4x128xf32> to vector<4x128xbf16>
    %cst_102 = arith.constant dense<0.000000e+00> : vector<4x128xf32>
    %318 = tpu.matmul %317, %12, %cst_102 {dimension_numbers = #tpu.dot_dimension_numbers<[1], [0], [0], [1], [0, 0, 1, 1], [], []>} : vector<4x128xbf16>, vector<128x128xbf16>, vector<4x128xf32> -> vector<4x128xf32>
    %319 = vector.broadcast %13 : vector<1x128xf32> to vector<4x128xf32>
    %320 = arith.addf %318, %319 : vector<4x128xf32>
    %cst_103 = arith.constant dense<0xFF800000> : vector<4xf32>
    %321 = vector.multi_reduction <maximumf>, %320, %cst_103 [1] : vector<4x128xf32> to vector<4xf32>
    %322 = vector.shape_cast %321 : vector<4xf32> to vector<4x1xf32>
    %323 = vector.broadcast %322 : vector<4x1xf32> to vector<4x128xf32>
    %324 = arith.subf %320, %323 : vector<4x128xf32>
    %325 = math.exp %324 : vector<4x128xf32>
    %cst_104 = arith.constant dense<0.000000e+00> : vector<4xf32>
    %326 = vector.multi_reduction <add>, %325, %cst_104 [1] : vector<4x128xf32> to vector<4xf32>
    %327 = vector.shape_cast %326 : vector<4xf32> to vector<4x1xf32>
    %328 = math.log %327 : vector<4x1xf32>
    %329 = arith.addf %328, %322 : vector<4x1xf32>
    %330 = vector.broadcast %329 : vector<4x1xf32> to vector<4x128xf32>
    %331 = arith.subf %320, %330 : vector<4x128xf32>
    %c3_105 = arith.constant 3 : index
    %c0_106 = arith.constant 0 : index
    %c0_107 = arith.constant 0 : index
    %332 = vector.load %arg13[%c3_105, %c0_106, %c0_107] : memref<8x4x128xf32, #tpu.memory_space<vmem>>, vector<1x4x128xf32>
    %333 = vector.shape_cast %332 : vector<1x4x128xf32> to vector<4x128xf32>
    %334 = vector.shape_cast %331 : vector<4x128xf32> to vector<1x4x128xf32>
    tpu.vector_store %arg13[%c3_105, %c0_106, %c0_107], %334 {strides = array<i32>} : memref<8x4x128xf32, #tpu.memory_space<vmem>>, vector<1x4x128xf32>,
    %335 = arith.truncf %316 : vector<4x128xf32> to vector<4x128xbf16>
    %cst_108 = arith.constant dense<0.000000e+00> : vector<4x128xf32>
    %336 = tpu.matmul %335, %5, %cst_108 {dimension_numbers = #tpu.dot_dimension_numbers<[1], [0], [0], [1], [0, 0, 1, 1], [], []>} : vector<4x128xbf16>, vector<128x128xbf16>, vector<4x128xf32> -> vector<4x128xf32>
    %337 = vector.broadcast %6 : vector<1x128xf32> to vector<4x128xf32>
    %338 = arith.addf %336, %337 : vector<4x128xf32>
    %339 = vector.shape_cast %338 : vector<4x128xf32> to vector<4x1x128xf32>
    %340 = vector.broadcast %339 : vector<4x1x128xf32> to vector<4x8x128xf32>
    %341 = arith.addf %340, %4 : vector<4x8x128xf32>
    %342 = math.tanh %341 : vector<4x8x128xf32>
    %343 = vector.broadcast %8 : vector<1x1x128xf32> to vector<4x8x128xf32>
    %344 = arith.mulf %342, %343 : vector<4x8x128xf32>
    %cst_109 = arith.constant dense<0.000000e+00> : vector<4x8xf32>
    %345 = vector.multi_reduction <add>, %344, %cst_109 [2] : vector<4x8x128xf32> to vector<4x8xf32>
    %cst_110 = arith.constant dense<0xFF800000> : vector<4xf32>
    %346 = vector.multi_reduction <maximumf>, %345, %cst_110 [1] : vector<4x8xf32> to vector<4xf32>
    %347 = vector.shape_cast %346 : vector<4xf32> to vector<4x1xf32>
    %348 = vector.broadcast %347 : vector<4x1xf32> to vector<4x8xf32>
    %349 = arith.subf %345, %348 : vector<4x8xf32>
    %350 = math.exp %349 : vector<4x8xf32>
    %cst_111 = arith.constant dense<0.000000e+00> : vector<4xf32>
    %351 = vector.multi_reduction <add>, %350, %cst_111 [1] : vector<4x8xf32> to vector<4xf32>
    %352 = vector.shape_cast %351 : vector<4xf32> to vector<4x1xf32>
    %353 = vector.broadcast %352 : vector<4x1xf32> to vector<4x8xf32>
    %354 = arith.divf %350, %353 : vector<4x8xf32>
    %c4 = arith.constant 4 : index
    %c0_112 = arith.constant 0 : index
    %c0_113 = arith.constant 0 : index
    %355 = vector.load %arg14[%c4, %c0_112, %c0_113] : memref<8x4x8xf32, #tpu.memory_space<vmem>>, vector<1x4x8xf32>
    %356 = vector.shape_cast %355 : vector<1x4x8xf32> to vector<4x8xf32>
    %357 = vector.shape_cast %354 : vector<4x8xf32> to vector<1x4x8xf32>
    tpu.vector_store %arg14[%c4, %c0_112, %c0_113], %357 {strides = array<i32>} : memref<8x4x8xf32, #tpu.memory_space<vmem>>, vector<1x4x8xf32>,
    %358 = vector.shape_cast %354 : vector<4x8xf32> to vector<4x8x1xf32>
    %359 = vector.broadcast %358 : vector<4x8x1xf32> to vector<4x8x128xf32>
    %360 = arith.mulf %359, %3 : vector<4x8x128xf32>
    %cst_114 = arith.constant dense<0.000000e+00> : vector<4x128xf32>
    %361 = vector.multi_reduction <add>, %360, %cst_114 [1] : vector<4x8x128xf32> to vector<4x128xf32>
    %c4_115 = arith.constant 4 : index
    %c0_116 = arith.constant 0 : index
    %c0_117 = arith.constant 0 : index
    %362 = vector.load %arg1[%c4_115, %c0_116, %c0_117] : memref<8x4x384xf32, #tpu.memory_space<vmem>>, vector<1x4x384xf32>
    %363 = vector.shape_cast %362 : vector<1x4x384xf32> to vector<4x384xf32>
    %364 = arith.truncf %361 : vector<4x128xf32> to vector<4x128xbf16>
    %cst_118 = arith.constant dense<0.000000e+00> : vector<4x384xf32>
    %365 = tpu.matmul %364, %9, %cst_118 {dimension_numbers = #tpu.dot_dimension_numbers<[1], [0], [0], [1], [0, 0, 1, 1], [], []>} : vector<4x128xbf16>, vector<128x384xbf16>, vector<4x384xf32> -> vector<4x384xf32>
    %366 = arith.addf %363, %365 : vector<4x384xf32>
    %367 = arith.truncf %316 : vector<4x128xf32> to vector<4x128xbf16>
    %cst_119 = arith.constant dense<0.000000e+00> : vector<4x384xf32>
    %368 = tpu.matmul %367, %10, %cst_119 {dimension_numbers = #tpu.dot_dimension_numbers<[1], [0], [0], [1], [0, 0, 1, 1], [], []>} : vector<4x128xbf16>, vector<128x384xbf16>, vector<4x384xf32> -> vector<4x384xf32>
    %369 = vector.broadcast %11 : vector<1x384xf32> to vector<4x384xf32>
    %370 = arith.addf %368, %369 : vector<4x384xf32>
    %371 = vector.extract_strided_slice %366 {offsets = [0, 0], sizes = [4, 128], strides = [1, 1]} : vector<4x384xf32> to vector<4x128xf32>
    %372 = vector.extract_strided_slice %370 {offsets = [0, 0], sizes = [4, 128], strides = [1, 1]} : vector<4x384xf32> to vector<4x128xf32>
    %373 = arith.addf %371, %372 : vector<4x128xf32>
    %374 = arith.negf %373 : vector<4x128xf32>
    %375 = math.exp %374 : vector<4x128xf32>
    %cst_120 = arith.constant 1.000000e+00 : f32
    %376 = vector.broadcast %cst_120 : f32 to vector<4x128xf32>
    %377 = arith.addf %376, %375 : vector<4x128xf32>
    %378 = arith.divf %376, %377 : vector<4x128xf32>
    %379 = vector.extract_strided_slice %366 {offsets = [0, 128], sizes = [4, 128], strides = [1, 1]} : vector<4x384xf32> to vector<4x128xf32>
    %380 = vector.extract_strided_slice %370 {offsets = [0, 128], sizes = [4, 128], strides = [1, 1]} : vector<4x384xf32> to vector<4x128xf32>
    %381 = arith.addf %379, %380 : vector<4x128xf32>
    %382 = arith.negf %381 : vector<4x128xf32>
    %383 = math.exp %382 : vector<4x128xf32>
    %cst_121 = arith.constant 1.000000e+00 : f32
    %384 = vector.broadcast %cst_121 : f32 to vector<4x128xf32>
    %385 = arith.addf %384, %383 : vector<4x128xf32>
    %386 = arith.divf %384, %385 : vector<4x128xf32>
    %387 = vector.extract_strided_slice %366 {offsets = [0, 256], sizes = [4, 128], strides = [1, 1]} : vector<4x384xf32> to vector<4x128xf32>
    %388 = vector.extract_strided_slice %370 {offsets = [0, 256], sizes = [4, 128], strides = [1, 1]} : vector<4x384xf32> to vector<4x128xf32>
    %389 = arith.mulf %378, %388 : vector<4x128xf32>
    %390 = arith.addf %387, %389 : vector<4x128xf32>
    %391 = math.tanh %390 : vector<4x128xf32>
    %cst_122 = arith.constant 1.000000e+00 : f32
    %392 = vector.broadcast %cst_122 : f32 to vector<4x128xf32>
    %393 = arith.subf %392, %386 : vector<4x128xf32>
    %394 = arith.mulf %393, %391 : vector<4x128xf32>
    %395 = arith.mulf %386, %316 : vector<4x128xf32>
    %396 = arith.addf %394, %395 : vector<4x128xf32>
    %397 = arith.truncf %396 : vector<4x128xf32> to vector<4x128xbf16>
    %cst_123 = arith.constant dense<0.000000e+00> : vector<4x128xf32>
    %398 = tpu.matmul %397, %12, %cst_123 {dimension_numbers = #tpu.dot_dimension_numbers<[1], [0], [0], [1], [0, 0, 1, 1], [], []>} : vector<4x128xbf16>, vector<128x128xbf16>, vector<4x128xf32> -> vector<4x128xf32>
    %399 = vector.broadcast %13 : vector<1x128xf32> to vector<4x128xf32>
    %400 = arith.addf %398, %399 : vector<4x128xf32>
    %cst_124 = arith.constant dense<0xFF800000> : vector<4xf32>
    %401 = vector.multi_reduction <maximumf>, %400, %cst_124 [1] : vector<4x128xf32> to vector<4xf32>
    %402 = vector.shape_cast %401 : vector<4xf32> to vector<4x1xf32>
    %403 = vector.broadcast %402 : vector<4x1xf32> to vector<4x128xf32>
    %404 = arith.subf %400, %403 : vector<4x128xf32>
    %405 = math.exp %404 : vector<4x128xf32>
    %cst_125 = arith.constant dense<0.000000e+00> : vector<4xf32>
    %406 = vector.multi_reduction <add>, %405, %cst_125 [1] : vector<4x128xf32> to vector<4xf32>
    %407 = vector.shape_cast %406 : vector<4xf32> to vector<4x1xf32>
    %408 = math.log %407 : vector<4x1xf32>
    %409 = arith.addf %408, %402 : vector<4x1xf32>
    %410 = vector.broadcast %409 : vector<4x1xf32> to vector<4x128xf32>
    %411 = arith.subf %400, %410 : vector<4x128xf32>
    %c4_126 = arith.constant 4 : index
    %c0_127 = arith.constant 0 : index
    %c0_128 = arith.constant 0 : index
    %412 = vector.load %arg13[%c4_126, %c0_127, %c0_128] : memref<8x4x128xf32, #tpu.memory_space<vmem>>, vector<1x4x128xf32>
    %413 = vector.shape_cast %412 : vector<1x4x128xf32> to vector<4x128xf32>
    %414 = vector.shape_cast %411 : vector<4x128xf32> to vector<1x4x128xf32>
    tpu.vector_store %arg13[%c4_126, %c0_127, %c0_128], %414 {strides = array<i32>} : memref<8x4x128xf32, #tpu.memory_space<vmem>>, vector<1x4x128xf32>,
    %415 = arith.truncf %396 : vector<4x128xf32> to vector<4x128xbf16>
    %cst_129 = arith.constant dense<0.000000e+00> : vector<4x128xf32>
    %416 = tpu.matmul %415, %5, %cst_129 {dimension_numbers = #tpu.dot_dimension_numbers<[1], [0], [0], [1], [0, 0, 1, 1], [], []>} : vector<4x128xbf16>, vector<128x128xbf16>, vector<4x128xf32> -> vector<4x128xf32>
    %417 = vector.broadcast %6 : vector<1x128xf32> to vector<4x128xf32>
    %418 = arith.addf %416, %417 : vector<4x128xf32>
    %419 = vector.shape_cast %418 : vector<4x128xf32> to vector<4x1x128xf32>
    %420 = vector.broadcast %419 : vector<4x1x128xf32> to vector<4x8x128xf32>
    %421 = arith.addf %420, %4 : vector<4x8x128xf32>
    %422 = math.tanh %421 : vector<4x8x128xf32>
    %423 = vector.broadcast %8 : vector<1x1x128xf32> to vector<4x8x128xf32>
    %424 = arith.mulf %422, %423 : vector<4x8x128xf32>
    %cst_130 = arith.constant dense<0.000000e+00> : vector<4x8xf32>
    %425 = vector.multi_reduction <add>, %424, %cst_130 [2] : vector<4x8x128xf32> to vector<4x8xf32>
    %cst_131 = arith.constant dense<0xFF800000> : vector<4xf32>
    %426 = vector.multi_reduction <maximumf>, %425, %cst_131 [1] : vector<4x8xf32> to vector<4xf32>
    %427 = vector.shape_cast %426 : vector<4xf32> to vector<4x1xf32>
    %428 = vector.broadcast %427 : vector<4x1xf32> to vector<4x8xf32>
    %429 = arith.subf %425, %428 : vector<4x8xf32>
    %430 = math.exp %429 : vector<4x8xf32>
    %cst_132 = arith.constant dense<0.000000e+00> : vector<4xf32>
    %431 = vector.multi_reduction <add>, %430, %cst_132 [1] : vector<4x8xf32> to vector<4xf32>
    %432 = vector.shape_cast %431 : vector<4xf32> to vector<4x1xf32>
    %433 = vector.broadcast %432 : vector<4x1xf32> to vector<4x8xf32>
    %434 = arith.divf %430, %433 : vector<4x8xf32>
    %c5 = arith.constant 5 : index
    %c0_133 = arith.constant 0 : index
    %c0_134 = arith.constant 0 : index
    %435 = vector.load %arg14[%c5, %c0_133, %c0_134] : memref<8x4x8xf32, #tpu.memory_space<vmem>>, vector<1x4x8xf32>
    %436 = vector.shape_cast %435 : vector<1x4x8xf32> to vector<4x8xf32>
    %437 = vector.shape_cast %434 : vector<4x8xf32> to vector<1x4x8xf32>
    tpu.vector_store %arg14[%c5, %c0_133, %c0_134], %437 {strides = array<i32>} : memref<8x4x8xf32, #tpu.memory_space<vmem>>, vector<1x4x8xf32>,
    %438 = vector.shape_cast %434 : vector<4x8xf32> to vector<4x8x1xf32>
    %439 = vector.broadcast %438 : vector<4x8x1xf32> to vector<4x8x128xf32>
    %440 = arith.mulf %439, %3 : vector<4x8x128xf32>
    %cst_135 = arith.constant dense<0.000000e+00> : vector<4x128xf32>
    %441 = vector.multi_reduction <add>, %440, %cst_135 [1] : vector<4x8x128xf32> to vector<4x128xf32>
    %c5_136 = arith.constant 5 : index
    %c0_137 = arith.constant 0 : index
    %c0_138 = arith.constant 0 : index
    %442 = vector.load %arg1[%c5_136, %c0_137, %c0_138] : memref<8x4x384xf32, #tpu.memory_space<vmem>>, vector<1x4x384xf32>
    %443 = vector.shape_cast %442 : vector<1x4x384xf32> to vector<4x384xf32>
    %444 = arith.truncf %441 : vector<4x128xf32> to vector<4x128xbf16>
    %cst_139 = arith.constant dense<0.000000e+00> : vector<4x384xf32>
    %445 = tpu.matmul %444, %9, %cst_139 {dimension_numbers = #tpu.dot_dimension_numbers<[1], [0], [0], [1], [0, 0, 1, 1], [], []>} : vector<4x128xbf16>, vector<128x384xbf16>, vector<4x384xf32> -> vector<4x384xf32>
    %446 = arith.addf %443, %445 : vector<4x384xf32>
    %447 = arith.truncf %396 : vector<4x128xf32> to vector<4x128xbf16>
    %cst_140 = arith.constant dense<0.000000e+00> : vector<4x384xf32>
    %448 = tpu.matmul %447, %10, %cst_140 {dimension_numbers = #tpu.dot_dimension_numbers<[1], [0], [0], [1], [0, 0, 1, 1], [], []>} : vector<4x128xbf16>, vector<128x384xbf16>, vector<4x384xf32> -> vector<4x384xf32>
    %449 = vector.broadcast %11 : vector<1x384xf32> to vector<4x384xf32>
    %450 = arith.addf %448, %449 : vector<4x384xf32>
    %451 = vector.extract_strided_slice %446 {offsets = [0, 0], sizes = [4, 128], strides = [1, 1]} : vector<4x384xf32> to vector<4x128xf32>
    %452 = vector.extract_strided_slice %450 {offsets = [0, 0], sizes = [4, 128], strides = [1, 1]} : vector<4x384xf32> to vector<4x128xf32>
    %453 = arith.addf %451, %452 : vector<4x128xf32>
    %454 = arith.negf %453 : vector<4x128xf32>
    %455 = math.exp %454 : vector<4x128xf32>
    %cst_141 = arith.constant 1.000000e+00 : f32
    %456 = vector.broadcast %cst_141 : f32 to vector<4x128xf32>
    %457 = arith.addf %456, %455 : vector<4x128xf32>
    %458 = arith.divf %456, %457 : vector<4x128xf32>
    %459 = vector.extract_strided_slice %446 {offsets = [0, 128], sizes = [4, 128], strides = [1, 1]} : vector<4x384xf32> to vector<4x128xf32>
    %460 = vector.extract_strided_slice %450 {offsets = [0, 128], sizes = [4, 128], strides = [1, 1]} : vector<4x384xf32> to vector<4x128xf32>
    %461 = arith.addf %459, %460 : vector<4x128xf32>
    %462 = arith.negf %461 : vector<4x128xf32>
    %463 = math.exp %462 : vector<4x128xf32>
    %cst_142 = arith.constant 1.000000e+00 : f32
    %464 = vector.broadcast %cst_142 : f32 to vector<4x128xf32>
    %465 = arith.addf %464, %463 : vector<4x128xf32>
    %466 = arith.divf %464, %465 : vector<4x128xf32>
    %467 = vector.extract_strided_slice %446 {offsets = [0, 256], sizes = [4, 128], strides = [1, 1]} : vector<4x384xf32> to vector<4x128xf32>
    %468 = vector.extract_strided_slice %450 {offsets = [0, 256], sizes = [4, 128], strides = [1, 1]} : vector<4x384xf32> to vector<4x128xf32>
    %469 = arith.mulf %458, %468 : vector<4x128xf32>
    %470 = arith.addf %467, %469 : vector<4x128xf32>
    %471 = math.tanh %470 : vector<4x128xf32>
    %cst_143 = arith.constant 1.000000e+00 : f32
    %472 = vector.broadcast %cst_143 : f32 to vector<4x128xf32>
    %473 = arith.subf %472, %466 : vector<4x128xf32>
    %474 = arith.mulf %473, %471 : vector<4x128xf32>
    %475 = arith.mulf %466, %396 : vector<4x128xf32>
    %476 = arith.addf %474, %475 : vector<4x128xf32>
    %477 = arith.truncf %476 : vector<4x128xf32> to vector<4x128xbf16>
    %cst_144 = arith.constant dense<0.000000e+00> : vector<4x128xf32>
    %478 = tpu.matmul %477, %12, %cst_144 {dimension_numbers = #tpu.dot_dimension_numbers<[1], [0], [0], [1], [0, 0, 1, 1], [], []>} : vector<4x128xbf16>, vector<128x128xbf16>, vector<4x128xf32> -> vector<4x128xf32>
    %479 = vector.broadcast %13 : vector<1x128xf32> to vector<4x128xf32>
    %480 = arith.addf %478, %479 : vector<4x128xf32>
    %cst_145 = arith.constant dense<0xFF800000> : vector<4xf32>
    %481 = vector.multi_reduction <maximumf>, %480, %cst_145 [1] : vector<4x128xf32> to vector<4xf32>
    %482 = vector.shape_cast %481 : vector<4xf32> to vector<4x1xf32>
    %483 = vector.broadcast %482 : vector<4x1xf32> to vector<4x128xf32>
    %484 = arith.subf %480, %483 : vector<4x128xf32>
    %485 = math.exp %484 : vector<4x128xf32>
    %cst_146 = arith.constant dense<0.000000e+00> : vector<4xf32>
    %486 = vector.multi_reduction <add>, %485, %cst_146 [1] : vector<4x128xf32> to vector<4xf32>
    %487 = vector.shape_cast %486 : vector<4xf32> to vector<4x1xf32>
    %488 = math.log %487 : vector<4x1xf32>
    %489 = arith.addf %488, %482 : vector<4x1xf32>
    %490 = vector.broadcast %489 : vector<4x1xf32> to vector<4x128xf32>
    %491 = arith.subf %480, %490 : vector<4x128xf32>
    %c5_147 = arith.constant 5 : index
    %c0_148 = arith.constant 0 : index
    %c0_149 = arith.constant 0 : index
    %492 = vector.load %arg13[%c5_147, %c0_148, %c0_149] : memref<8x4x128xf32, #tpu.memory_space<vmem>>, vector<1x4x128xf32>
    %493 = vector.shape_cast %492 : vector<1x4x128xf32> to vector<4x128xf32>
    %494 = vector.shape_cast %491 : vector<4x128xf32> to vector<1x4x128xf32>
    tpu.vector_store %arg13[%c5_147, %c0_148, %c0_149], %494 {strides = array<i32>} : memref<8x4x128xf32, #tpu.memory_space<vmem>>, vector<1x4x128xf32>,
    %495 = arith.truncf %476 : vector<4x128xf32> to vector<4x128xbf16>
    %cst_150 = arith.constant dense<0.000000e+00> : vector<4x128xf32>
    %496 = tpu.matmul %495, %5, %cst_150 {dimension_numbers = #tpu.dot_dimension_numbers<[1], [0], [0], [1], [0, 0, 1, 1], [], []>} : vector<4x128xbf16>, vector<128x128xbf16>, vector<4x128xf32> -> vector<4x128xf32>
    %497 = vector.broadcast %6 : vector<1x128xf32> to vector<4x128xf32>
    %498 = arith.addf %496, %497 : vector<4x128xf32>
    %499 = vector.shape_cast %498 : vector<4x128xf32> to vector<4x1x128xf32>
    %500 = vector.broadcast %499 : vector<4x1x128xf32> to vector<4x8x128xf32>
    %501 = arith.addf %500, %4 : vector<4x8x128xf32>
    %502 = math.tanh %501 : vector<4x8x128xf32>
    %503 = vector.broadcast %8 : vector<1x1x128xf32> to vector<4x8x128xf32>
    %504 = arith.mulf %502, %503 : vector<4x8x128xf32>
    %cst_151 = arith.constant dense<0.000000e+00> : vector<4x8xf32>
    %505 = vector.multi_reduction <add>, %504, %cst_151 [2] : vector<4x8x128xf32> to vector<4x8xf32>
    %cst_152 = arith.constant dense<0xFF800000> : vector<4xf32>
    %506 = vector.multi_reduction <maximumf>, %505, %cst_152 [1] : vector<4x8xf32> to vector<4xf32>
    %507 = vector.shape_cast %506 : vector<4xf32> to vector<4x1xf32>
    %508 = vector.broadcast %507 : vector<4x1xf32> to vector<4x8xf32>
    %509 = arith.subf %505, %508 : vector<4x8xf32>
    %510 = math.exp %509 : vector<4x8xf32>
    %cst_153 = arith.constant dense<0.000000e+00> : vector<4xf32>
    %511 = vector.multi_reduction <add>, %510, %cst_153 [1] : vector<4x8xf32> to vector<4xf32>
    %512 = vector.shape_cast %511 : vector<4xf32> to vector<4x1xf32>
    %513 = vector.broadcast %512 : vector<4x1xf32> to vector<4x8xf32>
    %514 = arith.divf %510, %513 : vector<4x8xf32>
    %c6 = arith.constant 6 : index
    %c0_154 = arith.constant 0 : index
    %c0_155 = arith.constant 0 : index
    %515 = vector.load %arg14[%c6, %c0_154, %c0_155] : memref<8x4x8xf32, #tpu.memory_space<vmem>>, vector<1x4x8xf32>
    %516 = vector.shape_cast %515 : vector<1x4x8xf32> to vector<4x8xf32>
    %517 = vector.shape_cast %514 : vector<4x8xf32> to vector<1x4x8xf32>
    tpu.vector_store %arg14[%c6, %c0_154, %c0_155], %517 {strides = array<i32>} : memref<8x4x8xf32, #tpu.memory_space<vmem>>, vector<1x4x8xf32>,
    %518 = vector.shape_cast %514 : vector<4x8xf32> to vector<4x8x1xf32>
    %519 = vector.broadcast %518 : vector<4x8x1xf32> to vector<4x8x128xf32>
    %520 = arith.mulf %519, %3 : vector<4x8x128xf32>
    %cst_156 = arith.constant dense<0.000000e+00> : vector<4x128xf32>
    %521 = vector.multi_reduction <add>, %520, %cst_156 [1] : vector<4x8x128xf32> to vector<4x128xf32>
    %c6_157 = arith.constant 6 : index
    %c0_158 = arith.constant 0 : index
    %c0_159 = arith.constant 0 : index
    %522 = vector.load %arg1[%c6_157, %c0_158, %c0_159] : memref<8x4x384xf32, #tpu.memory_space<vmem>>, vector<1x4x384xf32>
    %523 = vector.shape_cast %522 : vector<1x4x384xf32> to vector<4x384xf32>
    %524 = arith.truncf %521 : vector<4x128xf32> to vector<4x128xbf16>
    %cst_160 = arith.constant dense<0.000000e+00> : vector<4x384xf32>
    %525 = tpu.matmul %524, %9, %cst_160 {dimension_numbers = #tpu.dot_dimension_numbers<[1], [0], [0], [1], [0, 0, 1, 1], [], []>} : vector<4x128xbf16>, vector<128x384xbf16>, vector<4x384xf32> -> vector<4x384xf32>
    %526 = arith.addf %523, %525 : vector<4x384xf32>
    %527 = arith.truncf %476 : vector<4x128xf32> to vector<4x128xbf16>
    %cst_161 = arith.constant dense<0.000000e+00> : vector<4x384xf32>
    %528 = tpu.matmul %527, %10, %cst_161 {dimension_numbers = #tpu.dot_dimension_numbers<[1], [0], [0], [1], [0, 0, 1, 1], [], []>} : vector<4x128xbf16>, vector<128x384xbf16>, vector<4x384xf32> -> vector<4x384xf32>
    %529 = vector.broadcast %11 : vector<1x384xf32> to vector<4x384xf32>
    %530 = arith.addf %528, %529 : vector<4x384xf32>
    %531 = vector.extract_strided_slice %526 {offsets = [0, 0], sizes = [4, 128], strides = [1, 1]} : vector<4x384xf32> to vector<4x128xf32>
    %532 = vector.extract_strided_slice %530 {offsets = [0, 0], sizes = [4, 128], strides = [1, 1]} : vector<4x384xf32> to vector<4x128xf32>
    %533 = arith.addf %531, %532 : vector<4x128xf32>
    %534 = arith.negf %533 : vector<4x128xf32>
    %535 = math.exp %534 : vector<4x128xf32>
    %cst_162 = arith.constant 1.000000e+00 : f32
    %536 = vector.broadcast %cst_162 : f32 to vector<4x128xf32>
    %537 = arith.addf %536, %535 : vector<4x128xf32>
    %538 = arith.divf %536, %537 : vector<4x128xf32>
    %539 = vector.extract_strided_slice %526 {offsets = [0, 128], sizes = [4, 128], strides = [1, 1]} : vector<4x384xf32> to vector<4x128xf32>
    %540 = vector.extract_strided_slice %530 {offsets = [0, 128], sizes = [4, 128], strides = [1, 1]} : vector<4x384xf32> to vector<4x128xf32>
    %541 = arith.addf %539, %540 : vector<4x128xf32>
    %542 = arith.negf %541 : vector<4x128xf32>
    %543 = math.exp %542 : vector<4x128xf32>
    %cst_163 = arith.constant 1.000000e+00 : f32
    %544 = vector.broadcast %cst_163 : f32 to vector<4x128xf32>
    %545 = arith.addf %544, %543 : vector<4x128xf32>
    %546 = arith.divf %544, %545 : vector<4x128xf32>
    %547 = vector.extract_strided_slice %526 {offsets = [0, 256], sizes = [4, 128], strides = [1, 1]} : vector<4x384xf32> to vector<4x128xf32>
    %548 = vector.extract_strided_slice %530 {offsets = [0, 256], sizes = [4, 128], strides = [1, 1]} : vector<4x384xf32> to vector<4x128xf32>
    %549 = arith.mulf %538, %548 : vector<4x128xf32>
    %550 = arith.addf %547, %549 : vector<4x128xf32>
    %551 = math.tanh %550 : vector<4x128xf32>
    %cst_164 = arith.constant 1.000000e+00 : f32
    %552 = vector.broadcast %cst_164 : f32 to vector<4x128xf32>
    %553 = arith.subf %552, %546 : vector<4x128xf32>
    %554 = arith.mulf %553, %551 : vector<4x128xf32>
    %555 = arith.mulf %546, %476 : vector<4x128xf32>
    %556 = arith.addf %554, %555 : vector<4x128xf32>
    %557 = arith.truncf %556 : vector<4x128xf32> to vector<4x128xbf16>
    %cst_165 = arith.constant dense<0.000000e+00> : vector<4x128xf32>
    %558 = tpu.matmul %557, %12, %cst_165 {dimension_numbers = #tpu.dot_dimension_numbers<[1], [0], [0], [1], [0, 0, 1, 1], [], []>} : vector<4x128xbf16>, vector<128x128xbf16>, vector<4x128xf32> -> vector<4x128xf32>
    %559 = vector.broadcast %13 : vector<1x128xf32> to vector<4x128xf32>
    %560 = arith.addf %558, %559 : vector<4x128xf32>
    %cst_166 = arith.constant dense<0xFF800000> : vector<4xf32>
    %561 = vector.multi_reduction <maximumf>, %560, %cst_166 [1] : vector<4x128xf32> to vector<4xf32>
    %562 = vector.shape_cast %561 : vector<4xf32> to vector<4x1xf32>
    %563 = vector.broadcast %562 : vector<4x1xf32> to vector<4x128xf32>
    %564 = arith.subf %560, %563 : vector<4x128xf32>
    %565 = math.exp %564 : vector<4x128xf32>
    %cst_167 = arith.constant dense<0.000000e+00> : vector<4xf32>
    %566 = vector.multi_reduction <add>, %565, %cst_167 [1] : vector<4x128xf32> to vector<4xf32>
    %567 = vector.shape_cast %566 : vector<4xf32> to vector<4x1xf32>
    %568 = math.log %567 : vector<4x1xf32>
    %569 = arith.addf %568, %562 : vector<4x1xf32>
    %570 = vector.broadcast %569 : vector<4x1xf32> to vector<4x128xf32>
    %571 = arith.subf %560, %570 : vector<4x128xf32>
    %c6_168 = arith.constant 6 : index
    %c0_169 = arith.constant 0 : index
    %c0_170 = arith.constant 0 : index
    %572 = vector.load %arg13[%c6_168, %c0_169, %c0_170] : memref<8x4x128xf32, #tpu.memory_space<vmem>>, vector<1x4x128xf32>
    %573 = vector.shape_cast %572 : vector<1x4x128xf32> to vector<4x128xf32>
    %574 = vector.shape_cast %571 : vector<4x128xf32> to vector<1x4x128xf32>
    tpu.vector_store %arg13[%c6_168, %c0_169, %c0_170], %574 {strides = array<i32>} : memref<8x4x128xf32, #tpu.memory_space<vmem>>, vector<1x4x128xf32>,
    %575 = arith.truncf %556 : vector<4x128xf32> to vector<4x128xbf16>
    %cst_171 = arith.constant dense<0.000000e+00> : vector<4x128xf32>
    %576 = tpu.matmul %575, %5, %cst_171 {dimension_numbers = #tpu.dot_dimension_numbers<[1], [0], [0], [1], [0, 0, 1, 1], [], []>} : vector<4x128xbf16>, vector<128x128xbf16>, vector<4x128xf32> -> vector<4x128xf32>
    %577 = vector.broadcast %6 : vector<1x128xf32> to vector<4x128xf32>
    %578 = arith.addf %576, %577 : vector<4x128xf32>
    %579 = vector.shape_cast %578 : vector<4x128xf32> to vector<4x1x128xf32>
    %580 = vector.broadcast %579 : vector<4x1x128xf32> to vector<4x8x128xf32>
    %581 = arith.addf %580, %4 : vector<4x8x128xf32>
    %582 = math.tanh %581 : vector<4x8x128xf32>
    %583 = vector.broadcast %8 : vector<1x1x128xf32> to vector<4x8x128xf32>
    %584 = arith.mulf %582, %583 : vector<4x8x128xf32>
    %cst_172 = arith.constant dense<0.000000e+00> : vector<4x8xf32>
    %585 = vector.multi_reduction <add>, %584, %cst_172 [2] : vector<4x8x128xf32> to vector<4x8xf32>
    %cst_173 = arith.constant dense<0xFF800000> : vector<4xf32>
    %586 = vector.multi_reduction <maximumf>, %585, %cst_173 [1] : vector<4x8xf32> to vector<4xf32>
    %587 = vector.shape_cast %586 : vector<4xf32> to vector<4x1xf32>
    %588 = vector.broadcast %587 : vector<4x1xf32> to vector<4x8xf32>
    %589 = arith.subf %585, %588 : vector<4x8xf32>
    %590 = math.exp %589 : vector<4x8xf32>
    %cst_174 = arith.constant dense<0.000000e+00> : vector<4xf32>
    %591 = vector.multi_reduction <add>, %590, %cst_174 [1] : vector<4x8xf32> to vector<4xf32>
    %592 = vector.shape_cast %591 : vector<4xf32> to vector<4x1xf32>
    %593 = vector.broadcast %592 : vector<4x1xf32> to vector<4x8xf32>
    %594 = arith.divf %590, %593 : vector<4x8xf32>
    %c7 = arith.constant 7 : index
    %c0_175 = arith.constant 0 : index
    %c0_176 = arith.constant 0 : index
    %595 = vector.load %arg14[%c7, %c0_175, %c0_176] : memref<8x4x8xf32, #tpu.memory_space<vmem>>, vector<1x4x8xf32>
    %596 = vector.shape_cast %595 : vector<1x4x8xf32> to vector<4x8xf32>
    %597 = vector.shape_cast %594 : vector<4x8xf32> to vector<1x4x8xf32>
    tpu.vector_store %arg14[%c7, %c0_175, %c0_176], %597 {strides = array<i32>} : memref<8x4x8xf32, #tpu.memory_space<vmem>>, vector<1x4x8xf32>,
    %598 = vector.shape_cast %594 : vector<4x8xf32> to vector<4x8x1xf32>
    %599 = vector.broadcast %598 : vector<4x8x1xf32> to vector<4x8x128xf32>
    %600 = arith.mulf %599, %3 : vector<4x8x128xf32>
    %cst_177 = arith.constant dense<0.000000e+00> : vector<4x128xf32>
    %601 = vector.multi_reduction <add>, %600, %cst_177 [1] : vector<4x8x128xf32> to vector<4x128xf32>
    %c7_178 = arith.constant 7 : index
    %c0_179 = arith.constant 0 : index
    %c0_180 = arith.constant 0 : index
    %602 = vector.load %arg1[%c7_178, %c0_179, %c0_180] : memref<8x4x384xf32, #tpu.memory_space<vmem>>, vector<1x4x384xf32>
    %603 = vector.shape_cast %602 : vector<1x4x384xf32> to vector<4x384xf32>
    %604 = arith.truncf %601 : vector<4x128xf32> to vector<4x128xbf16>
    %cst_181 = arith.constant dense<0.000000e+00> : vector<4x384xf32>
    %605 = tpu.matmul %604, %9, %cst_181 {dimension_numbers = #tpu.dot_dimension_numbers<[1], [0], [0], [1], [0, 0, 1, 1], [], []>} : vector<4x128xbf16>, vector<128x384xbf16>, vector<4x384xf32> -> vector<4x384xf32>
    %606 = arith.addf %603, %605 : vector<4x384xf32>
    %607 = arith.truncf %556 : vector<4x128xf32> to vector<4x128xbf16>
    %cst_182 = arith.constant dense<0.000000e+00> : vector<4x384xf32>
    %608 = tpu.matmul %607, %10, %cst_182 {dimension_numbers = #tpu.dot_dimension_numbers<[1], [0], [0], [1], [0, 0, 1, 1], [], []>} : vector<4x128xbf16>, vector<128x384xbf16>, vector<4x384xf32> -> vector<4x384xf32>
    %609 = vector.broadcast %11 : vector<1x384xf32> to vector<4x384xf32>
    %610 = arith.addf %608, %609 : vector<4x384xf32>
    %611 = vector.extract_strided_slice %606 {offsets = [0, 0], sizes = [4, 128], strides = [1, 1]} : vector<4x384xf32> to vector<4x128xf32>
    %612 = vector.extract_strided_slice %610 {offsets = [0, 0], sizes = [4, 128], strides = [1, 1]} : vector<4x384xf32> to vector<4x128xf32>
    %613 = arith.addf %611, %612 : vector<4x128xf32>
    %614 = arith.negf %613 : vector<4x128xf32>
    %615 = math.exp %614 : vector<4x128xf32>
    %cst_183 = arith.constant 1.000000e+00 : f32
    %616 = vector.broadcast %cst_183 : f32 to vector<4x128xf32>
    %617 = arith.addf %616, %615 : vector<4x128xf32>
    %618 = arith.divf %616, %617 : vector<4x128xf32>
    %619 = vector.extract_strided_slice %606 {offsets = [0, 128], sizes = [4, 128], strides = [1, 1]} : vector<4x384xf32> to vector<4x128xf32>
    %620 = vector.extract_strided_slice %610 {offsets = [0, 128], sizes = [4, 128], strides = [1, 1]} : vector<4x384xf32> to vector<4x128xf32>
    %621 = arith.addf %619, %620 : vector<4x128xf32>
    %622 = arith.negf %621 : vector<4x128xf32>
    %623 = math.exp %622 : vector<4x128xf32>
    %cst_184 = arith.constant 1.000000e+00 : f32
    %624 = vector.broadcast %cst_184 : f32 to vector<4x128xf32>
    %625 = arith.addf %624, %623 : vector<4x128xf32>
    %626 = arith.divf %624, %625 : vector<4x128xf32>
    %627 = vector.extract_strided_slice %606 {offsets = [0, 256], sizes = [4, 128], strides = [1, 1]} : vector<4x384xf32> to vector<4x128xf32>
    %628 = vector.extract_strided_slice %610 {offsets = [0, 256], sizes = [4, 128], strides = [1, 1]} : vector<4x384xf32> to vector<4x128xf32>
    %629 = arith.mulf %618, %628 : vector<4x128xf32>
    %630 = arith.addf %627, %629 : vector<4x128xf32>
    %631 = math.tanh %630 : vector<4x128xf32>
    %cst_185 = arith.constant 1.000000e+00 : f32
    %632 = vector.broadcast %cst_185 : f32 to vector<4x128xf32>
    %633 = arith.subf %632, %626 : vector<4x128xf32>
    %634 = arith.mulf %633, %631 : vector<4x128xf32>
    %635 = arith.mulf %626, %556 : vector<4x128xf32>
    %636 = arith.addf %634, %635 : vector<4x128xf32>
    %637 = arith.truncf %636 : vector<4x128xf32> to vector<4x128xbf16>
    %cst_186 = arith.constant dense<0.000000e+00> : vector<4x128xf32>
    %638 = tpu.matmul %637, %12, %cst_186 {dimension_numbers = #tpu.dot_dimension_numbers<[1], [0], [0], [1], [0, 0, 1, 1], [], []>} : vector<4x128xbf16>, vector<128x128xbf16>, vector<4x128xf32> -> vector<4x128xf32>
    %639 = vector.broadcast %13 : vector<1x128xf32> to vector<4x128xf32>
    %640 = arith.addf %638, %639 : vector<4x128xf32>
    %cst_187 = arith.constant dense<0xFF800000> : vector<4xf32>
    %641 = vector.multi_reduction <maximumf>, %640, %cst_187 [1] : vector<4x128xf32> to vector<4xf32>
    %642 = vector.shape_cast %641 : vector<4xf32> to vector<4x1xf32>
    %643 = vector.broadcast %642 : vector<4x1xf32> to vector<4x128xf32>
    %644 = arith.subf %640, %643 : vector<4x128xf32>
    %645 = math.exp %644 : vector<4x128xf32>
    %cst_188 = arith.constant dense<0.000000e+00> : vector<4xf32>
    %646 = vector.multi_reduction <add>, %645, %cst_188 [1] : vector<4x128xf32> to vector<4xf32>
    %647 = vector.shape_cast %646 : vector<4xf32> to vector<4x1xf32>
    %648 = math.log %647 : vector<4x1xf32>
    %649 = arith.addf %648, %642 : vector<4x1xf32>
    %650 = vector.broadcast %649 : vector<4x1xf32> to vector<4x128xf32>
    %651 = arith.subf %640, %650 : vector<4x128xf32>
    %c7_189 = arith.constant 7 : index
    %c0_190 = arith.constant 0 : index
    %c0_191 = arith.constant 0 : index
    %652 = vector.load %arg13[%c7_189, %c0_190, %c0_191] : memref<8x4x128xf32, #tpu.memory_space<vmem>>, vector<1x4x128xf32>
    %653 = vector.shape_cast %652 : vector<1x4x128xf32> to vector<4x128xf32>
    %654 = vector.shape_cast %651 : vector<4x128xf32> to vector<1x4x128xf32>
    tpu.vector_store %arg13[%c7_189, %c0_190, %c0_191], %654 {strides = array<i32>} : memref<8x4x128xf32, #tpu.memory_space<vmem>>, vector<1x4x128xf32>,
    %c0_192 = arith.constant 0 : index
    %c0_193 = arith.constant 0 : index
    %655 = vector.load %arg16[%c0_192, %c0_193] : memref<4x128xf32, #tpu.memory_space<vmem>>, vector<4x128xf32>
    tpu.vector_store %arg16[%c0_192, %c0_193], %636 {strides = array<i32>} : memref<4x128xf32, #tpu.memory_space<vmem>>, vector<4x128xf32>,
    %c1_i32 = arith.constant 1 : i32
    %656 = arith.cmpi eq, %arg0, %c1_i32 : i32
    %657 = arith.extui %656 : i1 to i32
    %c0_i32_194 = arith.constant 0 : i32
    %658 = arith.cmpi ne, %657, %c0_i32_194 : i32
    scf.if %658 {
      %c0_195 = arith.constant 0 : index
      %c0_196 = arith.constant 0 : index
      %659 = vector.load %arg15[%c0_195, %c0_196] : memref<4x128xf32, #tpu.memory_space<vmem>>, vector<4x128xf32>
      tpu.vector_store %arg15[%c0_195, %c0_196], %636 {strides = array<i32>} : memref<4x128xf32, #tpu.memory_space<vmem>>, vector<4x128xf32>,
    } else {
    }
    return
  }
  func.func @transform_0(%arg0: i32) -> (i32, i32, i32) {
    %c0_i32 = arith.constant 0 : i32
    %c0_i32_0 = arith.constant 0 : i32
    %c0_i32_1 = arith.constant 0 : i32
    return %arg0, %c0_i32, %c0_i32_0 : i32, i32, i32
  }
  func.func @transform_1(%arg0: i32) -> (i32, i32, i32) {
    %c0_i32 = arith.constant 0 : i32
    %c0_i32_0 = arith.constant 0 : i32
    %c0_i32_1 = arith.constant 0 : i32
    %c0_i32_2 = arith.constant 0 : i32
    return %c0_i32, %c0_i32_0, %c0_i32_1 : i32, i32, i32
  }
  func.func @transform_2(%arg0: i32) -> (i32, i32, i32) {
    %c0_i32 = arith.constant 0 : i32
    %c0_i32_0 = arith.constant 0 : i32
    %c0_i32_1 = arith.constant 0 : i32
    %c0_i32_2 = arith.constant 0 : i32
    return %c0_i32, %c0_i32_0, %c0_i32_1 : i32, i32, i32
  }
  func.func @transform_3(%arg0: i32) -> (i32, i32) {
    %c0_i32 = arith.constant 0 : i32
    %c0_i32_0 = arith.constant 0 : i32
    %c0_i32_1 = arith.constant 0 : i32
    return %c0_i32, %c0_i32_0 : i32, i32
  }
  func.func @transform_4(%arg0: i32) -> (i32, i32) {
    %c0_i32 = arith.constant 0 : i32
    %c0_i32_0 = arith.constant 0 : i32
    %c0_i32_1 = arith.constant 0 : i32
    return %c0_i32, %c0_i32_0 : i32, i32
  }
  func.func @transform_5(%arg0: i32) -> (i32, i32) {
    %c0_i32 = arith.constant 0 : i32
    %c0_i32_0 = arith.constant 0 : i32
    %c0_i32_1 = arith.constant 0 : i32
    return %c0_i32, %c0_i32_0 : i32, i32
  }
  func.func @transform_6(%arg0: i32) -> (i32, i32) {
    %c0_i32 = arith.constant 0 : i32
    %c0_i32_0 = arith.constant 0 : i32
    %c0_i32_1 = arith.constant 0 : i32
    return %c0_i32, %c0_i32_0 : i32, i32
  }
  func.func @transform_7(%arg0: i32) -> (i32, i32) {
    %c0_i32 = arith.constant 0 : i32
    %c0_i32_0 = arith.constant 0 : i32
    %c0_i32_1 = arith.constant 0 : i32
    return %c0_i32, %c0_i32_0 : i32, i32
  }
  func.func @transform_8(%arg0: i32) -> (i32, i32) {
    %c0_i32 = arith.constant 0 : i32
    %c0_i32_0 = arith.constant 0 : i32
    %c0_i32_1 = arith.constant 0 : i32
    return %c0_i32, %c0_i32_0 : i32, i32
  }
  func.func @transform_9(%arg0: i32) -> (i32, i32) {
    %c0_i32 = arith.constant 0 : i32
    %c0_i32_0 = arith.constant 0 : i32
    %c0_i32_1 = arith.constant 0 : i32
    return %c0_i32, %c0_i32_0 : i32, i32
  }
  func.func @transform_10(%arg0: i32) -> (i32, i32) {
    %c0_i32 = arith.constant 0 : i32
    %c0_i32_0 = arith.constant 0 : i32
    %c0_i32_1 = arith.constant 0 : i32
    return %c0_i32, %c0_i32_0 : i32, i32
  }
  func.func @transform_11(%arg0: i32) -> (i32, i32) {
    %c0_i32 = arith.constant 0 : i32
    %c0_i32_0 = arith.constant 0 : i32
    %c0_i32_1 = arith.constant 0 : i32
    return %c0_i32, %c0_i32_0 : i32, i32
  }
  func.func @transform_12(%arg0: i32) -> (i32, i32, i32) {
    %c0_i32 = arith.constant 0 : i32
    %c0_i32_0 = arith.constant 0 : i32
    %c0_i32_1 = arith.constant 0 : i32
    return %arg0, %c0_i32, %c0_i32_0 : i32, i32, i32
  }
  func.func @transform_13(%arg0: i32) -> (i32, i32, i32) {
    %c0_i32 = arith.constant 0 : i32
    %c0_i32_0 = arith.constant 0 : i32
    %c0_i32_1 = arith.constant 0 : i32
    return %arg0, %c0_i32, %c0_i32_0 : i32, i32, i32
  }
  func.func @transform_14(%arg0: i32) -> (i32, i32) {
    %c0_i32 = arith.constant 0 : i32
    %c0_i32_0 = arith.constant 0 : i32
    %c0_i32_1 = arith.constant 0 : i32
    return %c0_i32, %c0_i32_0 : i32, i32
  }
}

</mosaic_0001>

<llo_original>
// kernel: tpu_custom_call.1
$region0: #{tpu_custom_call.1}
  #allocation0 [shape = 'u32[]', space=smem, size = 0x4, offset = 0x4, fixed_abs, tag = 'smem constant byte address 0x4 - core index']
  #allocation1 [shape = 'u32[144,128]{1,0:T(1,128)}', space=vmem, size = 0x12000, scoped, tag = 'internal scratch']
  #allocation2 [shape = 'f32[4,128]{1,0:T(4,128)}', space=vmem, size = 0x800, scoped, tag = 'scratch operand']
  %s0 = inlined_call_operand.hbm [shape: f32[16,4,384], index: 0, kind: input, shape index: {}]
  %s1 = inlined_call_operand.hbm [shape: f32[4,8,128], index: 1, kind: input, shape index: {}]
  %s2 = inlined_call_operand.hbm [shape: f32[4,8,128], index: 2, kind: input, shape index: {}]
  %s3 = inlined_call_operand.hbm [shape: bf16[128,128], index: 3, kind: input, shape index: {}]
  %s4 = inlined_call_operand.hbm [shape: f32[1,128], index: 4, kind: input, shape index: {}]
  %s5 = inlined_call_operand.hbm [shape: f32[1,128], index: 5, kind: input, shape index: {}]
  %s6 = inlined_call_operand.hbm [shape: bf16[128,384], index: 6, kind: input, shape index: {}]
  %s7 = inlined_call_operand.hbm [shape: bf16[128,384], index: 7, kind: input, shape index: {}]
  %s8 = inlined_call_operand.hbm [shape: f32[1,384], index: 8, kind: input, shape index: {}]
  %s9 = inlined_call_operand.hbm [shape: bf16[128,128], index: 9, kind: input, shape index: {}]
  %s10 = inlined_call_operand.hbm [shape: f32[1,128], index: 10, kind: input, shape index: {}]
  %s11 = inlined_call_operand.hbm [shape: f32[4,128], index: 11, kind: input, shape index: {}]
  %s12 = inlined_call_operand.hbm [shape: f32[16,4,128], index: 12, kind: output, shape index: {0}]
  %s13 = inlined_call_operand.hbm [shape: f32[16,4,8], index: 13, kind: output, shape index: {1}]
  %s14 = inlined_call_operand.hbm [shape: f32[4,128], index: 14, kind: output, shape index: {2}]
  %15 = xla_tuple %s12, %s13, %s14
  %s16 = sld [smem:[#allocation0]]
  $region153: #{tpu_custom_call.1} parent=0
    _
  %s18 = ssub.s32 1, %s16
  %s19 = scalar_select 0, %s18, %s16
  $region1: #{tpu_custom_call.1} parent=0
    #allocation3 [shape = 'u8[98304]{0}', space=vmem, size = 0x18000, scoped, tag = 'input window, operand 0']
    #allocation4 [shape = 's32[2]{0}', space=sflag, size = 0x8, scoped, tag = 'scoped memory for tpu_custom_call.1']
    #allocation5 [shape = 's32[2]{0}', space=sflag, size = 0x8, scoped, tag = 'scoped memory for tpu_custom_call.1']
    #allocation6 [shape = 'u8[16384]{0}', space=vmem, size = 0x4000, scoped, tag = 'input window, operand 1, single buffered']
    #allocation7 [shape = 's32[1]{0}', space=sflag, size = 0x4, scoped, tag = 'scoped memory for tpu_custom_call.1']
    #allocation8 [shape = 'u8[16384]{0}', space=vmem, size = 0x4000, scoped, tag = 'input window, operand 2, single buffered']
    #allocation9 [shape = 'u8[32768]{0}', space=vmem, size = 0x8000, scoped, tag = 'input window, operand 3, single buffered']
    #allocation10 [shape = 's32[1]{0}', space=sflag, size = 0x4, scoped, tag = 'scoped memory for tpu_custom_call.1']
    #allocation11 [shape = 'u8[512]{0}', space=vmem, size = 0x400, scoped, tag = 'input window, operand 4, single buffered']
    #allocation12 [shape = 'u8[512]{0}', space=vmem, size = 0x400, scoped, tag = 'input window, operand 5, single buffered']
    #allocation13 [shape = 's32[1]{0}', space=sflag, size = 0x4, scoped, tag = 'scoped memory for tpu_custom_call.1']
    #allocation14 [shape = 'u8[98304]{0}', space=vmem, size = 0x18000, scoped, tag = 'input window, operand 6, single buffered']
    #allocation15 [shape = 'u8[98304]{0}', space=vmem, size = 0x18000, scoped, tag = 'input window, operand 7, single buffered']
    #allocation16 [shape = 's32[1]{0}', space=sflag, size = 0x4, scoped, tag = 'scoped memory for tpu_custom_call.1']
    #allocation17 [shape = 'u8[1536]{0}', space=vmem, size = 0x800, scoped, tag = 'input window, operand 8, single buffered']
    #allocation18 [shape = 'u8[32768]{0}', space=vmem, size = 0x8000, scoped, tag = 'input window, operand 9, single buffered']
    #allocation19 [shape = 's32[1]{0}', space=sflag, size = 0x4, scoped, tag = 'scoped memory for tpu_custom_call.1']
    #allocation20 [shape = 'u8[512]{0}', space=vmem, size = 0x400, scoped, tag = 'input window, operand 10, single buffered']
    #allocation21 [shape = 'u8[2048]{0}', space=vmem, size = 0x800, scoped, tag = 'input window, operand 11, single buffered']
    #allocation22 [shape = 's32[1]{0}', space=sflag, size = 0x4, scoped, tag = 'scoped memory for tpu_custom_call.1']
    #allocation23 [shape = 'u8[32768]{0}', space=vmem, size = 0x8000, scoped, tag = 'output window, operand 0']
    #allocation24 [shape = 'u8[32768]{0}', space=vmem, size = 0x8000, scoped, tag = 'output window, operand 1']
    #allocation25 [shape = 's32[2]{0}', space=sflag, size = 0x8, scoped, tag = 'scoped memory for tpu_custom_call.1']
    #allocation26 [shape = 'u8[2048]{0}', space=vmem, size = 0x800, scoped, tag = 'output window, operand 2, single buffered']
    %20 = vsyncpa [#allocation4], 0
    %s21 = scalar_lea.sflag [#allocation4], 1
    %22 = vsyncpa %s21, 0
    %23 = vsyncpa [#allocation7], 0
    %24 = vsyncpa [#allocation10], 0
    %25 = vsyncpa [#allocation13], 0
    %26 = vsyncpa [#allocation16], 0
    %27 = vsyncpa [#allocation19], 0
    %28 = vsyncpa [#allocation22], 0
    %29 = vsyncpa [#allocation5], 0
    %s30 = scalar_lea.sflag [#allocation5], 1
    %31 = vsyncpa %s30, 0
    %32 = vsyncpa [#allocation25], 0
    %s33 = scalar_lea.sflag [#allocation25], 1
    %34 = vsyncpa %s33, 0
    loop: start=0, step=1, limit=4
    $region2: #{tpu_custom_call.1} parent=1 // loop_pre_header
      _
    $region3: #{tpu_custom_call.1} parent=1 // loop_header
      %s36 = sphi 0, %s40
      %p37 = scmp.ge.s32.totalorder %s36, 4
      %s46 = sphi 0, %s48
      %s49 = sphi 0, %s46
      %s50 = sphi 0, %s49
      %s66 = sphi 0, %s50
      %s70 = sphi 0, %s70
      %s72 = sphi 0, %s70
      %s73 = sphi 0, %s72
      %s87 = sphi 0, %s73
      %s91 = sphi 0, %s91
      %s93 = sphi 0, %s91
      %s94 = sphi 0, %s93
      %s108 = sphi 0, %s94
      %s112 = sphi 0, %s112
      %s114 = sphi 0, %s112
      %s115 = sphi 0, %s114
      %s129 = sphi 0, %s115
      %s133 = sphi 0, %s133
      %s135 = sphi 0, %s133
      %s136 = sphi 0, %s135
      %s150 = sphi 0, %s136
      %s154 = sphi 0, %s154
      %s156 = sphi 0, %s154
      %s157 = sphi 0, %s156
      %s171 = sphi 0, %s157
      %s175 = sphi 0, %s175
      %s177 = sphi 0, %s175
      %s178 = sphi 0, %s177
      %s192 = sphi 0, %s178
      %s196 = sphi 0, %s196
      %s198 = sphi 0, %s196
      %s199 = sphi 0, %s198
      %s213 = sphi 0, %s199
      %s217 = sphi 0, %s217
      %s219 = sphi 0, %s217
      %s220 = sphi 0, %s219
      %s234 = sphi 0, %s220
      %s238 = sphi 0, %s238
      %s240 = sphi 0, %s238
      %s241 = sphi 0, %s240
      %s255 = sphi 0, %s241
      %s259 = sphi 0, %s259
      %s261 = sphi 0, %s259
      %s262 = sphi 0, %s261
      %s276 = sphi 0, %s262
      %s280 = sphi 0, %s280
      %s282 = sphi 0, %s280
      %s283 = sphi 0, %s282
      %s297 = sphi 0, %s283
      %s303 = sphi 0, %s305
      %s306 = sphi 0, %s303
      %s307 = sphi 0, %s306
      %s323 = sphi 0, %s307
      %s329 = sphi 0, %s331
      %s332 = sphi 0, %s329
      %s333 = sphi 0, %s332
      %s349 = sphi 0, %s333
      %s353 = sphi 0, %s353
      %s355 = sphi 0, %s353
      %s356 = sphi 0, %s355
      %s370 = sphi 0, %s356
    $region4: #{tpu_custom_call.1} parent=1 // loop_header_branch
      %39 = sbr.rel (%p37) target = $region8
    $region5: #{tpu_custom_call.1} parent=1 // loop_body
      %s41 = ssub.s32 %s36, 1
      %s42 = ssub.s32 %s36, 2
      %s43 = sadd.s32 %s36, 1
      %s44 = ssub.s32 %s36, %s43
      %p45 = scmp.eq.s32.totalorder %s44, 0
      %s47 = sadd.s32 %s46, 1
      %s48 = scalar_select %p45, %s46, %s47
      %p51 = pneg %p45
      %p52 = scmp.eq.s32.totalorder %s36, 1
      %p53 = por %p51, %p52
      %p54 = scmp.ne.s32.totalorder %s46, %s49
      %p55 = scmp.eq.s32.totalorder %s36, 0
      %p56 = por %p54, %p55
      %p57 = scmp.ne.s32.totalorder %s46, %s49
      %p58 = scmp.eq.s32.totalorder %s41, 1
      %p59 = por %p57, %p58
      %p60 = scmp.ne.s32.totalorder %s49, %s50
      %p61 = scmp.eq.s32.totalorder %s41, 0
      %p62 = por %p60, %p61
      %p63 = scmp.ne.s32.totalorder %s49, %s50
      %p64 = scmp.eq.s32.totalorder %s42, 1
      %p65 = por %p63, %p64
      %p67 = scmp.ne.s32.totalorder %s50, %s66
      %p68 = scmp.eq.s32.totalorder %s42, 0
      %p69 = por %p67, %p68
      %s71 = sadd.s32 %s70, 1
      %p74 = scmp.eq.s32.totalorder %s36, 1
      %p75 = scmp.ne.s32.totalorder %s70, %s72
      %p76 = scmp.eq.s32.totalorder %s36, 0
      %p77 = por %p75, %p76
      %p78 = scmp.ne.s32.totalorder %s70, %s72
      %p79 = scmp.eq.s32.totalorder %s41, 1
      %p80 = por %p78, %p79
      %p81 = scmp.ne.s32.totalorder %s72, %s73
      %p82 = scmp.eq.s32.totalorder %s41, 0
      %p83 = por %p81, %p82
      %p84 = scmp.ne.s32.totalorder %s72, %s73
      %p85 = scmp.eq.s32.totalorder %s42, 1
      %p86 = por %p84, %p85
      %p88 = scmp.ne.s32.totalorder %s73, %s87
      %p89 = scmp.eq.s32.totalorder %s42, 0
      %p90 = por %p88, %p89
      %s92 = sadd.s32 %s91, 1
      %p95 = scmp.eq.s32.totalorder %s36, 1
      %p96 = scmp.ne.s32.totalorder %s91, %s93
      %p97 = scmp.eq.s32.totalorder %s36, 0
      %p98 = por %p96, %p97
      %p99 = scmp.ne.s32.totalorder %s91, %s93
      %p100 = scmp.eq.s32.totalorder %s41, 1
      %p101 = por %p99, %p100
      %p102 = scmp.ne.s32.totalorder %s93, %s94
      %p103 = scmp.eq.s32.totalorder %s41, 0
      %p104 = por %p102, %p103
      %p105 = scmp.ne.s32.totalorder %s93, %s94
      %p106 = scmp.eq.s32.totalorder %s42, 1
      %p107 = por %p105, %p106
      %p109 = scmp.ne.s32.totalorder %s94, %s108
      %p110 = scmp.eq.s32.totalorder %s42, 0
      %p111 = por %p109, %p110
      %s113 = sadd.s32 %s112, 1
      %p116 = scmp.eq.s32.totalorder %s36, 1
      %p117 = scmp.ne.s32.totalorder %s112, %s114
      %p118 = scmp.eq.s32.totalorder %s36, 0
      %p119 = por %p117, %p118
      %p120 = scmp.ne.s32.totalorder %s112, %s114
      %p121 = scmp.eq.s32.totalorder %s41, 1
      %p122 = por %p120, %p121
      %p123 = scmp.ne.s32.totalorder %s114, %s115
      %p124 = scmp.eq.s32.totalorder %s41, 0
      %p125 = por %p123, %p124
      %p126 = scmp.ne.s32.totalorder %s114, %s115
      %p127 = scmp.eq.s32.totalorder %s42, 1
      %p128 = por %p126, %p127
      %p130 = scmp.ne.s32.totalorder %s115, %s129
      %p131 = scmp.eq.s32.totalorder %s42, 0
      %p132 = por %p130, %p131
      %s134 = sadd.s32 %s133, 1
      %p137 = scmp.eq.s32.totalorder %s36, 1
      %p138 = scmp.ne.s32.totalorder %s133, %s135
      %p139 = scmp.eq.s32.totalorder %s36, 0
      %p140 = por %p138, %p139
      %p141 = scmp.ne.s32.totalorder %s133, %s135
      %p142 = scmp.eq.s32.totalorder %s41, 1
      %p143 = por %p141, %p142
      %p144 = scmp.ne.s32.totalorder %s135, %s136
      %p145 = scmp.eq.s32.totalorder %s41, 0
      %p146 = por %p144, %p145
      %p147 = scmp.ne.s32.totalorder %s135, %s136
      %p148 = scmp.eq.s32.totalorder %s42, 1
      %p149 = por %p147, %p148
      %p151 = scmp.ne.s32.totalorder %s136, %s150
      %p152 = scmp.eq.s32.totalorder %s42, 0
      %p153 = por %p151, %p152
      %s155 = sadd.s32 %s154, 1
      %p158 = scmp.eq.s32.totalorder %s36, 1
      %p159 = scmp.ne.s32.totalorder %s154, %s156
      %p160 = scmp.eq.s32.totalorder %s36, 0
      %p161 = por %p159, %p160
      %p162 = scmp.ne.s32.totalorder %s154, %s156
      %p163 = scmp.eq.s32.totalorder %s41, 1
      %p164 = por %p162, %p163
      %p165 = scmp.ne.s32.totalorder %s156, %s157
      %p166 = scmp.eq.s32.totalorder %s41, 0
      %p167 = por %p165, %p166
      %p168 = scmp.ne.s32.totalorder %s156, %s157
      %p169 = scmp.eq.s32.totalorder %s42, 1
      %p170 = por %p168, %p169
      %p172 = scmp.ne.s32.totalorder %s157, %s171
      %p173 = scmp.eq.s32.totalorder %s42, 0
      %p174 = por %p172, %p173
      %s176 = sadd.s32 %s175, 1
      %p179 = scmp.eq.s32.totalorder %s36, 1
      %p180 = scmp.ne.s32.totalorder %s175, %s177
      %p181 = scmp.eq.s32.totalorder %s36, 0
      %p182 = por %p180, %p181
      %p183 = scmp.ne.s32.totalorder %s175, %s177
      %p184 = scmp.eq.s32.totalorder %s41, 1
      %p185 = por %p183, %p184
      %p186 = scmp.ne.s32.totalorder %s177, %s178
      %p187 = scmp.eq.s32.totalorder %s41, 0
      %p188 = por %p186, %p187
      %p189 = scmp.ne.s32.totalorder %s177, %s178
      %p190 = scmp.eq.s32.totalorder %s42, 1
      %p191 = por %p189, %p190
      %p193 = scmp.ne.s32.totalorder %s178, %s192
      %p194 = scmp.eq.s32.totalorder %s42, 0
      %p195 = por %p193, %p194
      %s197 = sadd.s32 %s196, 1
      %p200 = scmp.eq.s32.totalorder %s36, 1
      %p201 = scmp.ne.s32.totalorder %s196, %s198
      %p202 = scmp.eq.s32.totalorder %s36, 0
      %p203 = por %p201, %p202
      %p204 = scmp.ne.s32.totalorder %s196, %s198
      %p205 = scmp.eq.s32.totalorder %s41, 1
      %p206 = por %p204, %p205
      %p207 = scmp.ne.s32.totalorder %s198, %s199
      %p208 = scmp.eq.s32.totalorder %s41, 0
      %p209 = por %p207, %p208
      %p210 = scmp.ne.s32.totalorder %s198, %s199
      %p211 = scmp.eq.s32.totalorder %s42, 1
      %p212 = por %p210, %p211
      %p214 = scmp.ne.s32.totalorder %s199, %s213
      %p215 = scmp.eq.s32.totalorder %s42, 0
      %p216 = por %p214, %p215
      %s218 = sadd.s32 %s217, 1
      %p221 = scmp.eq.s32.totalorder %s36, 1
      %p222 = scmp.ne.s32.totalorder %s217, %s219
      %p223 = scmp.eq.s32.totalorder %s36, 0
      %p224 = por %p222, %p223
      %p225 = scmp.ne.s32.totalorder %s217, %s219
      %p226 = scmp.eq.s32.totalorder %s41, 1
      %p227 = por %p225, %p226
      %p228 = scmp.ne.s32.totalorder %s219, %s220
      %p229 = scmp.eq.s32.totalorder %s41, 0
      %p230 = por %p228, %p229
      %p231 = scmp.ne.s32.totalorder %s219, %s220
      %p232 = scmp.eq.s32.totalorder %s42, 1
      %p233 = por %p231, %p232
      %p235 = scmp.ne.s32.totalorder %s220, %s234
      %p236 = scmp.eq.s32.totalorder %s42, 0
      %p237 = por %p235, %p236
      %s239 = sadd.s32 %s238, 1
      %p242 = scmp.eq.s32.totalorder %s36, 1
      %p243 = scmp.ne.s32.totalorder %s238, %s240
      %p244 = scmp.eq.s32.totalorder %s36, 0
      %p245 = por %p243, %p244
      %p246 = scmp.ne.s32.totalorder %s238, %s240
      %p247 = scmp.eq.s32.totalorder %s41, 1
      %p248 = por %p246, %p247
      %p249 = scmp.ne.s32.totalorder %s240, %s241
      %p250 = scmp.eq.s32.totalorder %s41, 0
      %p251 = por %p249, %p250
      %p252 = scmp.ne.s32.totalorder %s240, %s241
      %p253 = scmp.eq.s32.totalorder %s42, 1
      %p254 = por %p252, %p253
      %p256 = scmp.ne.s32.totalorder %s241, %s255
      %p257 = scmp.eq.s32.totalorder %s42, 0
      %p258 = por %p256, %p257
      %s260 = sadd.s32 %s259, 1
      %p263 = scmp.eq.s32.totalorder %s36, 1
      %p264 = scmp.ne.s32.totalorder %s259, %s261
      %p265 = scmp.eq.s32.totalorder %s36, 0
      %p266 = por %p264, %p265
      %p267 = scmp.ne.s32.totalorder %s259, %s261
      %p268 = scmp.eq.s32.totalorder %s41, 1
      %p269 = por %p267, %p268
      %p270 = scmp.ne.s32.totalorder %s261, %s262
      %p271 = scmp.eq.s32.totalorder %s41, 0
      %p272 = por %p270, %p271
      %p273 = scmp.ne.s32.totalorder %s261, %s262
      %p274 = scmp.eq.s32.totalorder %s42, 1
      %p275 = por %p273, %p274
      %p277 = scmp.ne.s32.totalorder %s262, %s276
      %p278 = scmp.eq.s32.totalorder %s42, 0
      %p279 = por %p277, %p278
      %s281 = sadd.s32 %s280, 1
      %p284 = scmp.eq.s32.totalorder %s36, 1
      %p285 = scmp.ne.s32.totalorder %s280, %s282
      %p286 = scmp.eq.s32.totalorder %s36, 0
      %p287 = por %p285, %p286
      %p288 = scmp.ne.s32.totalorder %s280, %s282
      %p289 = scmp.eq.s32.totalorder %s41, 1
      %p290 = por %p288, %p289
      %p291 = scmp.ne.s32.totalorder %s282, %s283
      %p292 = scmp.eq.s32.totalorder %s41, 0
      %p293 = por %p291, %p292
      %p294 = scmp.ne.s32.totalorder %s282, %s283
      %p295 = scmp.eq.s32.totalorder %s42, 1
      %p296 = por %p294, %p295
      %p298 = scmp.ne.s32.totalorder %s283, %s297
      %p299 = scmp.eq.s32.totalorder %s42, 0
      %p300 = por %p298, %p299
      %s301 = ssub.s32 %s36, %s43
      %p302 = scmp.eq.s32.totalorder %s301, 0
      %s304 = sadd.s32 %s303, 1
      %s305 = scalar_select %p302, %s303, %s304
      %p308 = pneg %p302
      %p309 = scmp.eq.s32.totalorder %s36, 1
      %p310 = por %p308, %p309
      %p311 = scmp.ne.s32.totalorder %s303, %s306
      %p312 = scmp.eq.s32.totalorder %s36, 0
      %p313 = por %p311, %p312
      %p314 = scmp.ne.s32.totalorder %s303, %s306
      %p315 = scmp.eq.s32.totalorder %s41, 1
      %p316 = por %p314, %p315
      %p317 = scmp.ne.s32.totalorder %s306, %s307
      %p318 = scmp.eq.s32.totalorder %s41, 0
      %p319 = por %p317, %p318
      %p320 = scmp.ne.s32.totalorder %s306, %s307
      %p321 = scmp.eq.s32.totalorder %s42, 1
      %p322 = por %p320, %p321
      %p324 = scmp.ne.s32.totalorder %s307, %s323
      %p325 = scmp.eq.s32.totalorder %s42, 0
      %p326 = por %p324, %p325
      %s327 = ssub.s32 %s36, %s43
      %p328 = scmp.eq.s32.totalorder %s327, 0
      %s330 = sadd.s32 %s329, 1
      %s331 = scalar_select %p328, %s329, %s330
      %p334 = pneg %p328
      %p335 = scmp.eq.s32.totalorder %s36, 1
      %p336 = por %p334, %p335
      %p337 = scmp.ne.s32.totalorder %s329, %s332
      %p338 = scmp.eq.s32.totalorder %s36, 0
      %p339 = por %p337, %p338
      %p340 = scmp.ne.s32.totalorder %s329, %s332
      %p341 = scmp.eq.s32.totalorder %s41, 1
      %p342 = por %p340, %p341
      %p343 = scmp.ne.s32.totalorder %s332, %s333
      %p344 = scmp.eq.s32.totalorder %s41, 0
      %p345 = por %p343, %p344
      %p346 = scmp.ne.s32.totalorder %s332, %s333
      %p347 = scmp.eq.s32.totalorder %s42, 1
      %p348 = por %p346, %p347
      %p350 = scmp.ne.s32.totalorder %s333, %s349
      %p351 = scmp.eq.s32.totalorder %s42, 0
      %p352 = por %p350, %p351
      %s354 = sadd.s32 %s353, 1
      %p357 = scmp.eq.s32.totalorder %s36, 1
      %p358 = scmp.ne.s32.totalorder %s353, %s355
      %p359 = scmp.eq.s32.totalorder %s36, 0
      %p360 = por %p358, %p359
      %p361 = scmp.ne.s32.totalorder %s353, %s355
      %p362 = scmp.eq.s32.totalorder %s41, 1
      %p363 = por %p361, %p362
      %p364 = scmp.ne.s32.totalorder %s355, %s356
      %p365 = scmp.eq.s32.totalorder %s41, 0
      %p366 = por %p364, %p365
      %p367 = scmp.ne.s32.totalorder %s355, %s356
      %p368 = scmp.eq.s32.totalorder %s42, 1
      %p369 = por %p367, %p368
      %p371 = scmp.ne.s32.totalorder %s356, %s370
      %p372 = scmp.eq.s32.totalorder %s42, 0
      %p373 = por %p371, %p372
      %p374 = scmp.le.s32.totalorder 1, %s36
      %p375 = scmp.lt.s32.totalorder %s36, 3
      %p376 = pnand %p374, %p375
      %p377 = pneg %p376
      // Predicated region
      $region9: #{tpu_custom_call.1} parent=5 // pred_check
        _
      $region10: #{tpu_custom_call.1} parent=5 // pred_check_branch
        %379 = sbr.rel (%p376) target = $region12
      $region11: #{tpu_custom_call.1} parent=5 // pred_region
        %s380 = ssub.s32 %s36, 1
        // Predicated region
        $region13: #{tpu_custom_call.1} parent=11 // pred_check
          %p381 = pneg %p83
        $region14: #{tpu_custom_call.1} parent=11 // pred_check_branch
          %383 = sbr.rel (%p381) target = $region16
        $region15: #{tpu_custom_call.1} parent=11 // pred_region
          %s385 = ssub.s32 512, 512
          %386 = vsyncadd [#allocation7], %s385
          %s387 = sshll.u32 [#allocation6], 4
          %s388 = int_to_ptr.vmem [resolvable:$true] %s387
          %393 = dma.hbm_to_vmem [thread:$0]  %s1, 512, %s388, [#allocation7], 128, 128, 8
        $region16: #{tpu_custom_call.1} parent=11 // pred_fallthru
          _
        // Predicated region
        $region17: #{tpu_custom_call.1} parent=11 // pred_check
          %p394 = pneg %p104
        $region18: #{tpu_custom_call.1} parent=11 // pred_check_branch
          %396 = sbr.rel (%p394) target = $region20
        $region19: #{tpu_custom_call.1} parent=11 // pred_region
          %s398 = ssub.s32 512, 512
          %399 = vsyncadd [#allocation7], %s398
          %s400 = sshll.u32 [#allocation8], 4
          %s401 = int_to_ptr.vmem [resolvable:$true] %s400
          %406 = dma.hbm_to_vmem [thread:$0]  %s2, 512, %s401, [#allocation7], 128, 128, 8
        $region20: #{tpu_custom_call.1} parent=11 // pred_fallthru
          _
        // Predicated region
        $region21: #{tpu_custom_call.1} parent=11 // pred_check
          %p407 = pneg %p125
        $region22: #{tpu_custom_call.1} parent=11 // pred_check_branch
          %409 = sbr.rel (%p407) target = $region24
        $region23: #{tpu_custom_call.1} parent=11 // pred_region
          %s411 = ssub.s32 1024, 1024
          %412 = vsyncadd [#allocation10], %s411
          %s413 = sshll.u32 [#allocation9], 4
          %s414 = int_to_ptr.vmem [resolvable:$true] %s413
          %419 = dma.hbm_to_vmem [thread:$0]  %s3, 1024, %s414, [#allocation10], 64, 64, 4
        $region24: #{tpu_custom_call.1} parent=11 // pred_fallthru
          _
        // Predicated region
        $region25: #{tpu_custom_call.1} parent=11 // pred_check
          %p420 = pneg %p146
        $region26: #{tpu_custom_call.1} parent=11 // pred_check_branch
          %422 = sbr.rel (%p420) target = $region28
        $region27: #{tpu_custom_call.1} parent=11 // pred_region
          %s424 = ssub.s32 16, 16
          %425 = vsyncadd [#allocation10], %s424
          %s427 = sshll.u32 [#allocation11], 4
          %s428 = int_to_ptr.vmem [resolvable:$true] %s427
          %430 = dma.hbm_to_vmem [thread:$0]  %s4, 16, %s428, [#allocation10]
        $region28: #{tpu_custom_call.1} parent=11 // pred_fallthru
          _
        // Predicated region
        $region29: #{tpu_custom_call.1} parent=11 // pred_check
          %p431 = pneg %p167
        $region30: #{tpu_custom_call.1} parent=11 // pred_check_branch
          %433 = sbr.rel (%p431) target = $region32
        $region31: #{tpu_custom_call.1} parent=11 // pred_region
          %s435 = ssub.s32 16, 16
          %436 = vsyncadd [#allocation13], %s435
          %s438 = sshll.u32 [#allocation12], 4
          %s439 = int_to_ptr.vmem [resolvable:$true] %s438
          %441 = dma.hbm_to_vmem [thread:$0]  %s5, 16, %s439, [#allocation13]
        $region32: #{tpu_custom_call.1} parent=11 // pred_fallthru
          _
        // Predicated region
        $region33: #{tpu_custom_call.1} parent=11 // pred_check
          %p442 = pneg %p188
        $region34: #{tpu_custom_call.1} parent=11 // pred_check_branch
          %444 = sbr.rel (%p442) target = $region36
        $region35: #{tpu_custom_call.1} parent=11 // pred_region
          %s446 = ssub.s32 3072, 3072
          %447 = vsyncadd [#allocation13], %s446
          %s448 = sshll.u32 [#allocation14], 4
          %s449 = int_to_ptr.vmem [resolvable:$true] %s448
          %454 = dma.hbm_to_vmem [thread:$0]  %s6, 3072, %s449, [#allocation13], 192, 192, 12
        $region36: #{tpu_custom_call.1} parent=11 // pred_fallthru
          _
        // Predicated region
        $region37: #{tpu_custom_call.1} parent=11 // pred_check
          %p455 = pneg %p209
        $region38: #{tpu_custom_call.1} parent=11 // pred_check_branch
          %457 = sbr.rel (%p455) target = $region40
        $region39: #{tpu_custom_call.1} parent=11 // pred_region
          %s459 = ssub.s32 3072, 3072
          %460 = vsyncadd [#allocation16], %s459
          %s461 = sshll.u32 [#allocation15], 4
          %s462 = int_to_ptr.vmem [resolvable:$true] %s461
          %467 = dma.hbm_to_vmem [thread:$0]  %s7, 3072, %s462, [#allocation16], 192, 192, 12
        $region40: #{tpu_custom_call.1} parent=11 // pred_fallthru
          _
        // Predicated region
        $region41: #{tpu_custom_call.1} parent=11 // pred_check
          %p468 = pneg %p230
        $region42: #{tpu_custom_call.1} parent=11 // pred_check_branch
          %470 = sbr.rel (%p468) target = $region44
        $region43: #{tpu_custom_call.1} parent=11 // pred_region
          %s472 = ssub.s32 48, 48
          %473 = vsyncadd [#allocation16], %s472
          %s475 = sshll.u32 [#allocation17], 4
          %s476 = int_to_ptr.vmem [resolvable:$true] %s475
          %478 = dma.hbm_to_vmem [thread:$0]  %s8, 48, %s476, [#allocation16]
        $region44: #{tpu_custom_call.1} parent=11 // pred_fallthru
          _
        // Predicated region
        $region45: #{tpu_custom_call.1} parent=11 // pred_check
          %p479 = pneg %p251
        $region46: #{tpu_custom_call.1} parent=11 // pred_check_branch
          %481 = sbr.rel (%p479) target = $region48
        $region47: #{tpu_custom_call.1} parent=11 // pred_region
          %s483 = ssub.s32 1024, 1024
          %484 = vsyncadd [#allocation19], %s483
          %s485 = sshll.u32 [#allocation18], 4
          %s486 = int_to_ptr.vmem [resolvable:$true] %s485
          %491 = dma.hbm_to_vmem [thread:$0]  %s9, 1024, %s486, [#allocation19], 64, 64, 4
        $region48: #{tpu_custom_call.1} parent=11 // pred_fallthru
          _
        // Predicated region
        $region49: #{tpu_custom_call.1} parent=11 // pred_check
          %p492 = pneg %p272
        $region50: #{tpu_custom_call.1} parent=11 // pred_check_branch
          %494 = sbr.rel (%p492) target = $region52
        $region51: #{tpu_custom_call.1} parent=11 // pred_region
          %s496 = ssub.s32 16, 16
          %497 = vsyncadd [#allocation19], %s496
          %s499 = sshll.u32 [#allocation20], 4
          %s500 = int_to_ptr.vmem [resolvable:$true] %s499
          %502 = dma.hbm_to_vmem [thread:$0]  %s10, 16, %s500, [#allocation19]
        $region52: #{tpu_custom_call.1} parent=11 // pred_fallthru
          _
        // Predicated region
        $region53: #{tpu_custom_call.1} parent=11 // pred_check
          %p503 = pneg %p293
        $region54: #{tpu_custom_call.1} parent=11 // pred_check_branch
          %505 = sbr.rel (%p503) target = $region56
        $region55: #{tpu_custom_call.1} parent=11 // pred_region
          %s507 = ssub.s32 64, 64
          %508 = vsyncadd [#allocation22], %s507
          %s510 = sshll.u32 [#allocation21], 4
          %s511 = int_to_ptr.vmem [resolvable:$true] %s510
          %513 = dma.hbm_to_vmem [thread:$0]  %s11, 64, %s511, [#allocation22]
        $region56: #{tpu_custom_call.1} parent=11 // pred_fallthru
          _
      $region12: #{tpu_custom_call.1} parent=5 // pred_fallthru
        _
      %p514 = scmp.lt.s32.totalorder %s36, 2
      // Predicated region
      $region57: #{tpu_custom_call.1} parent=5 // pred_check
        %p515 = pneg %p514
      $region58: #{tpu_custom_call.1} parent=5 // pred_check_branch
        %517 = sbr.rel (%p515) target = $region60
      $region59: #{tpu_custom_call.1} parent=5 // pred_region
        // Predicated region
        $region61: #{tpu_custom_call.1} parent=59 // pred_check
          %p518 = pneg %p56
        $region62: #{tpu_custom_call.1} parent=59 // pred_check_branch
          %520 = sbr.rel (%p518) target = $region64
        $region63: #{tpu_custom_call.1} parent=59 // pred_region
          %s521 = sand.u32 %s46, 1
          %s522 = scalar_lea.sflag [#allocation4], %s521
          %s523 = sand.u32 %s46, 1
          %s524 = smul.addr %s523, 96
          %s525 = scalar_lea.vmem [#allocation3], %s524
          %s526 = smul.u32 8, %s36
          %s528 = ssub.s32 1536, 1536
          %529 = vsyncadd %s522, %s528
          %s530 = smul.addr %s526, 3
          %s531 = smul.addr %s530, 64
          %s532 = scalar_lea.hbm %s0, %s531
          %s533 = sshll.u32 %s525, 4
          %s534 = int_to_ptr.vmem [resolvable:$true] %s533
          %539 = dma.hbm_to_vmem [thread:$0]  %s532, 1536, %s534, %s522, 192, 192, 12
        $region64: #{tpu_custom_call.1} parent=59 // pred_fallthru
          _
      $region60: #{tpu_custom_call.1} parent=5 // pred_fallthru
        _
      %p540 = scmp.le.s32.totalorder 1, %s36
      %p541 = scmp.lt.s32.totalorder %s36, 3
      %p542 = pnand %p540, %p541
      %p543 = pneg %p542
      // Predicated region
      $region65: #{tpu_custom_call.1} parent=5 // pred_check
        _
      $region66: #{tpu_custom_call.1} parent=5 // pred_check_branch
        %545 = sbr.rel (%p542) target = $region68
      $region67: #{tpu_custom_call.1} parent=5 // pred_region
        %s546 = ssub.s32 %s36, 1
        %s547 = sand.u32 %s49, 1
        %s548 = scalar_lea.sflag [#allocation4], %s547
        %s549 = sand.u32 %s49, 1
        %s550 = smul.addr %s549, 96
        %s551 = scalar_lea.vmem [#allocation3], %s550
        // Predicated region
        $region69: #{tpu_custom_call.1} parent=67 // pred_check
          %p552 = pneg %p62
        $region70: #{tpu_custom_call.1} parent=67 // pred_check_branch
          %554 = sbr.rel (%p552) target = $region72
        $region71: #{tpu_custom_call.1} parent=67 // pred_region
          %555 = dma.done %s548, 1536
        $region72: #{tpu_custom_call.1} parent=67 // pred_fallthru
          _
        // Predicated region
        $region73: #{tpu_custom_call.1} parent=67 // pred_check
          %p556 = pneg %p83
        $region74: #{tpu_custom_call.1} parent=67 // pred_check_branch
          %558 = sbr.rel (%p556) target = $region76
        $region75: #{tpu_custom_call.1} parent=67 // pred_region
          %559 = dma.done [#allocation7], 512
        $region76: #{tpu_custom_call.1} parent=67 // pred_fallthru
          _
        // Predicated region
        $region77: #{tpu_custom_call.1} parent=67 // pred_check
          %p560 = pneg %p104
        $region78: #{tpu_custom_call.1} parent=67 // pred_check_branch
          %562 = sbr.rel (%p560) target = $region80
        $region79: #{tpu_custom_call.1} parent=67 // pred_region
          %563 = dma.done [#allocation7], 512
        $region80: #{tpu_custom_call.1} parent=67 // pred_fallthru
          _
        // Predicated region
        $region81: #{tpu_custom_call.1} parent=67 // pred_check
          %p564 = pneg %p125
        $region82: #{tpu_custom_call.1} parent=67 // pred_check_branch
          %566 = sbr.rel (%p564) target = $region84
        $region83: #{tpu_custom_call.1} parent=67 // pred_region
          %567 = dma.done [#allocation10], 1024
        $region84: #{tpu_custom_call.1} parent=67 // pred_fallthru
          _
        // Predicated region
        $region85: #{tpu_custom_call.1} parent=67 // pred_check
          %p568 = pneg %p146
        $region86: #{tpu_custom_call.1} parent=67 // pred_check_branch
          %570 = sbr.rel (%p568) target = $region88
        $region87: #{tpu_custom_call.1} parent=67 // pred_region
          %571 = dma.done [#allocation10], 16
        $region88: #{tpu_custom_call.1} parent=67 // pred_fallthru
          _
        // Predicated region
        $region89: #{tpu_custom_call.1} parent=67 // pred_check
          %p572 = pneg %p167
        $region90: #{tpu_custom_call.1} parent=67 // pred_check_branch
          %574 = sbr.rel (%p572) target = $region92
        $region91: #{tpu_custom_call.1} parent=67 // pred_region
          %575 = dma.done [#allocation13], 16
        $region92: #{tpu_custom_call.1} parent=67 // pred_fallthru
          _
        // Predicated region
        $region93: #{tpu_custom_call.1} parent=67 // pred_check
          %p576 = pneg %p188
        $region94: #{tpu_custom_call.1} parent=67 // pred_check_branch
          %578 = sbr.rel (%p576) target = $region96
        $region95: #{tpu_custom_call.1} parent=67 // pred_region
          %579 = dma.done [#allocation13], 3072
        $region96: #{tpu_custom_call.1} parent=67 // pred_fallthru
          _
        // Predicated region
        $region97: #{tpu_custom_call.1} parent=67 // pred_check
          %p580 = pneg %p209
        $region98: #{tpu_custom_call.1} parent=67 // pred_check_branch
          %582 = sbr.rel (%p580) target = $region100
        $region99: #{tpu_custom_call.1} parent=67 // pred_region
          %583 = dma.done [#allocation16], 3072
        $region100: #{tpu_custom_call.1} parent=67 // pred_fallthru
          _
        // Predicated region
        $region101: #{tpu_custom_call.1} parent=67 // pred_check
          %p584 = pneg %p230
        $region102: #{tpu_custom_call.1} parent=67 // pred_check_branch
          %586 = sbr.rel (%p584) target = $region104
        $region103: #{tpu_custom_call.1} parent=67 // pred_region
          %587 = dma.done [#allocation16], 48
        $region104: #{tpu_custom_call.1} parent=67 // pred_fallthru
          _
        // Predicated region
        $region105: #{tpu_custom_call.1} parent=67 // pred_check
          %p588 = pneg %p251
        $region106: #{tpu_custom_call.1} parent=67 // pred_check_branch
          %590 = sbr.rel (%p588) target = $region108
        $region107: #{tpu_custom_call.1} parent=67 // pred_region
          %591 = dma.done [#allocation19], 1024
        $region108: #{tpu_custom_call.1} parent=67 // pred_fallthru
          _
        // Predicated region
        $region109: #{tpu_custom_call.1} parent=67 // pred_check
          %p592 = pneg %p272
        $region110: #{tpu_custom_call.1} parent=67 // pred_check_branch
          %594 = sbr.rel (%p592) target = $region112
        $region111: #{tpu_custom_call.1} parent=67 // pred_region
          %595 = dma.done [#allocation19], 16
        $region112: #{tpu_custom_call.1} parent=67 // pred_fallthru
          _
        // Predicated region
        $region113: #{tpu_custom_call.1} parent=67 // pred_check
          %p596 = pneg %p293
        $region114: #{tpu_custom_call.1} parent=67 // pred_check_branch
          %598 = sbr.rel (%p596) target = $region116
        $region115: #{tpu_custom_call.1} parent=67 // pred_region
          %599 = dma.done [#allocation22], 64
        $region116: #{tpu_custom_call.1} parent=67 // pred_fallthru
          _
        %s600 = sand.u32 %s49, 1
        %s601 = scalar_lea.sflag [#allocation4], %s600
        %s602 = sand.u32 %s49, 1
        %s603 = smul.addr %s602, 96
        %s604 = scalar_lea.vmem [#allocation3], %s603
        %p605 = pneg %p62
        %p606 = pneg %p59
        %p607 = pneg %p83
        %p608 = pneg %p80
        %p609 = pneg %p104
        %p610 = pneg %p101
        %p611 = pneg %p125
        %p612 = pneg %p122
        %p613 = pneg %p146
        %p614 = pneg %p143
        %p615 = pneg %p167
        %p616 = pneg %p164
        %p617 = pneg %p188
        %p618 = pneg %p185
        %p619 = pneg %p209
        %p620 = pneg %p206
        %p621 = pneg %p230
        %p622 = pneg %p227
        %p623 = pneg %p251
        %p624 = pneg %p248
        %p625 = pneg %p272
        %p626 = pneg %p269
        %p627 = pneg %p293
        %p628 = pneg %p290
        %p629 = pneg %p319
        %p630 = pneg %p316
        %s631 = sand.u32 %s306, 1
        %s632 = scalar_lea.sflag [#allocation5], %s631
        %s633 = sand.u32 %s306, 1
        %s634 = smul.addr %s633, 32
        %s635 = scalar_lea.vmem [#allocation23], %s634
        %p636 = pneg %p345
        %p637 = pneg %p342
        %s638 = sand.u32 %s41, 1
        %s639 = scalar_lea.sflag [#allocation25], %s638
        %s640 = sand.u32 %s332, 1
        %s641 = smul.addr %s640, 32
        %s642 = scalar_lea.vmem [#allocation24], %s641
        %p643 = pneg %p366
        %p644 = pneg %p363
        %s645 = smul.u32 8, %s41
        %s646 = smul.u32 8, %s41
        %s647 = smul.u32 8, %s41
        %p649 = scmp.eq.s32.totalorder %s41, 0
        // Predicated region
        $region117: #{tpu_custom_call.1} parent=67 // pred_check
          %p650 = pneg %p649
        $region118: #{tpu_custom_call.1} parent=67 // pred_check_branch
          %652 = sbr.rel (%p650) target = $region120
        $region119: #{tpu_custom_call.1} parent=67 // pred_region
          %v653 = vld [vmem:[#allocation21] sm:$0xf]
          %654 = vst [vmem:[#allocation2] sm:$0xf] %v653
        $region120: #{tpu_custom_call.1} parent=67 // pred_fallthru
          _
        %v655 = vld [vmem:[#allocation6] sm:$0xff]
        %v656 = vld [vmem:[#allocation6 + $0x8] sm:$0xff]
        %v657 = vld [vmem:[#allocation6 + $0x10] sm:$0xff]
        %v658 = vld [vmem:[#allocation6 + $0x18] sm:$0xff]
        %v659 = vld [vmem:[#allocation8] sm:$0xff]
        %v660 = vld [vmem:[#allocation8 + $0x8] sm:$0xff]
        %v661 = vld [vmem:[#allocation8 + $0x10] sm:$0xff]
        %v662 = vld [vmem:[#allocation8 + $0x18] sm:$0xff]
        %v663 = vld [vmem:[#allocation9] sm:$0xf]
        %v664 = vld [vmem:[#allocation9 + $0x4] sm:$0xf]
        %v665 = vld [vmem:[#allocation9 + $0x8] sm:$0xf]
        %v666 = vld [vmem:[#allocation9 + $0xc] sm:$0xf]
        %v667 = vld [vmem:[#allocation9 + $0x10] sm:$0xf]
        %v668 = vld [vmem:[#allocation9 + $0x14] sm:$0xf]
        %v669 = vld [vmem:[#allocation9 + $0x18] sm:$0xf]
        %v670 = vld [vmem:[#allocation9 + $0x1c] sm:$0xf]
        %v671 = vld [vmem:[#allocation9 + $0x20] sm:$0xf]
        %v672 = vld [vmem:[#allocation9 + $0x24] sm:$0xf]
        %v673 = vld [vmem:[#allocation9 + $0x28] sm:$0xf]
        %v674 = vld [vmem:[#allocation9 + $0x2c] sm:$0xf]
        %v675 = vld [vmem:[#allocation9 + $0x30] sm:$0xf]
        %v676 = vld [vmem:[#allocation9 + $0x34] sm:$0xf]
        %v677 = vld [vmem:[#allocation9 + $0x38] sm:$0xf]
        %v678 = vld [vmem:[#allocation9 + $0x3c] sm:$0xf]
        %v679 = vld [vmem:[#allocation11] sm:$0x1]
        %v680 = vld [vmem:[#allocation12] sm:$0x1]
        %v681 = vld [vmem:[#allocation14] sm:$0xff]
        %v682 = vld [vmem:[#allocation14 + $0x8] sm:$0xf]
        %v683 = vld [vmem:[#allocation14 + $0xc] sm:$0xff]
        %v684 = vld [vmem:[#allocation14 + $0x14] sm:$0xf]
        %v685 = vld [vmem:[#allocation14 + $0x18] sm:$0xff]
        %v686 = vld [vmem:[#allocation14 + $0x20] sm:$0xf]
        %v687 = vld [vmem:[#allocation14 + $0x24] sm:$0xff]
        %v688 = vld [vmem:[#allocation14 + $0x2c] sm:$0xf]
        %v689 = vld [vmem:[#allocation14 + $0x30] sm:$0xff]
        %v690 = vld [vmem:[#allocation14 + $0x38] sm:$0xf]
        %v691 = vld [vmem:[#allocation14 + $0x3c] sm:$0xff]
        %v692 = vld [vmem:[#allocation14 + $0x44] sm:$0xf]
        %v693 = vld [vmem:[#allocation14 + $0x48] sm:$0xff]
        %v694 = vld [vmem:[#allocation14 + $0x50] sm:$0xf]
        %v695 = vld [vmem:[#allocation14 + $0x54] sm:$0xff]
        %v696 = vld [vmem:[#allocation14 + $0x5c] sm:$0xf]
        %v697 = vld [vmem:[#allocation14 + $0x60] sm:$0xff]
        %v698 = vld [vmem:[#allocation14 + $0x68] sm:$0xf]
        %v699 = vld [vmem:[#allocation14 + $0x6c] sm:$0xff]
        %v700 = vld [vmem:[#allocation14 + $0x74] sm:$0xf]
        %v701 = vld [vmem:[#allocation14 + $0x78] sm:$0xff]
        %v702 = vld [vmem:[#allocation14 + $0x80] sm:$0xf]
        %v703 = vld [vmem:[#allocation14 + $0x84] sm:$0xff]
        %v704 = vld [vmem:[#allocation14 + $0x8c] sm:$0xf]
        %v705 = vld [vmem:[#allocation14 + $0x90] sm:$0xff]
        %v706 = vld [vmem:[#allocation14 + $0x98] sm:$0xf]
        %v707 = vld [vmem:[#allocation14 + $0x9c] sm:$0xff]
        %v708 = vld [vmem:[#allocation14 + $0xa4] sm:$0xf]
        %v709 = vld [vmem:[#allocation14 + $0xa8] sm:$0xff]
        %v710 = vld [vmem:[#allocation14 + $0xb0] sm:$0xf]
        %v711 = vld [vmem:[#allocation14 + $0xb4] sm:$0xff]
        %v712 = vld [vmem:[#allocation14 + $0xbc] sm:$0xf]
        %v713 = vld [vmem:[#allocation15] sm:$0xff]
        %v714 = vld [vmem:[#allocation15 + $0x8] sm:$0xf]
        %v715 = vld [vmem:[#allocation15 + $0xc] sm:$0xff]
        %v716 = vld [vmem:[#allocation15 + $0x14] sm:$0xf]
        %v717 = vld [vmem:[#allocation15 + $0x18] sm:$0xff]
        %v718 = vld [vmem:[#allocation15 + $0x20] sm:$0xf]
        %v719 = vld [vmem:[#allocation15 + $0x24] sm:$0xff]
        %v720 = vld [vmem:[#allocation15 + $0x2c] sm:$0xf]
        %v721 = vld [vmem:[#allocation15 + $0x30] sm:$0xff]
        %v722 = vld [vmem:[#allocation15 + $0x38] sm:$0xf]
        %v723 = vld [vmem:[#allocation15 + $0x3c] sm:$0xff]
        %v724 = vld [vmem:[#allocation15 + $0x44] sm:$0xf]
        %v725 = vld [vmem:[#allocation15 + $0x48] sm:$0xff]
        %v726 = vld [vmem:[#allocation15 + $0x50] sm:$0xf]
        %v727 = vld [vmem:[#allocation15 + $0x54] sm:$0xff]
        %v728 = vld [vmem:[#allocation15 + $0x5c] sm:$0xf]
        %v729 = vld [vmem:[#allocation15 + $0x60] sm:$0xff]
        %v730 = vld [vmem:[#allocation15 + $0x68] sm:$0xf]
        %v731 = vld [vmem:[#allocation15 + $0x6c] sm:$0xff]
        %v732 = vld [vmem:[#allocation15 + $0x74] sm:$0xf]
        %v733 = vld [vmem:[#allocation15 + $0x78] sm:$0xff]
        %v734 = vld [vmem:[#allocation15 + $0x80] sm:$0xf]
        %v735 = vld [vmem:[#allocation15 + $0x84] sm:$0xff]
        %v736 = vld [vmem:[#allocation15 + $0x8c] sm:$0xf]
        %v737 = vld [vmem:[#allocation15 + $0x90] sm:$0xff]
        %v738 = vld [vmem:[#allocation15 + $0x98] sm:$0xf]
        %v739 = vld [vmem:[#allocation15 + $0x9c] sm:$0xff]
        %v740 = vld [vmem:[#allocation15 + $0xa4] sm:$0xf]
        %v741 = vld [vmem:[#allocation15 + $0xa8] sm:$0xff]
        %v742 = vld [vmem:[#allocation15 + $0xb0] sm:$0xf]
        %v743 = vld [vmem:[#allocation15 + $0xb4] sm:$0xff]
        %v744 = vld [vmem:[#allocation15 + $0xbc] sm:$0xf]
        %v745 = vld [vmem:[#allocation17] sm:$0x7]
        %v746 = vld [vmem:[#allocation18] sm:$0xf]
        %v747 = vld [vmem:[#allocation18 + $0x4] sm:$0xf]
        %v748 = vld [vmem:[#allocation18 + $0x8] sm:$0xf]
        %v749 = vld [vmem:[#allocation18 + $0xc] sm:$0xf]
        %v750 = vld [vmem:[#allocation18 + $0x10] sm:$0xf]
        %v751 = vld [vmem:[#allocation18 + $0x14] sm:$0xf]
        %v752 = vld [vmem:[#allocation18 + $0x18] sm:$0xf]
        %v753 = vld [vmem:[#allocation18 + $0x1c] sm:$0xf]
        %v754 = vld [vmem:[#allocation18 + $0x20] sm:$0xf]
        %v755 = vld [vmem:[#allocation18 + $0x24] sm:$0xf]
        %v756 = vld [vmem:[#allocation18 + $0x28] sm:$0xf]
        %v757 = vld [vmem:[#allocation18 + $0x2c] sm:$0xf]
        %v758 = vld [vmem:[#allocation18 + $0x30] sm:$0xf]
        %v759 = vld [vmem:[#allocation18 + $0x34] sm:$0xf]
        %v760 = vld [vmem:[#allocation18 + $0x38] sm:$0xf]
        %v761 = vld [vmem:[#allocation18 + $0x3c] sm:$0xf]
        %v762 = vld [vmem:[#allocation20] sm:$0x1]
        %v763 = vld [vmem:[#allocation2] sm:$0xf]
        %v764 = vpack.c.bf16 %v763, %v763
        %v766 = vlaneseq
        %v767 = vshrl.u32 %v766, 7
        %v768 = vsub.s32 0, %v767
        %v769 = vrot.slane %v679, %v768
        %v787 = vunpack.c.l.b16 %v663
        %v788 = vunpack.c.l.b16 %v664
        %v789 = vunpack.c.l.b16 %v665
        %v790 = vunpack.c.l.b16 %v666
        %v791 = vunpack.c.l.b16 %v667
        %v792 = vunpack.c.l.b16 %v668
        %v793 = vunpack.c.l.b16 %v669
        %v794 = vunpack.c.l.b16 %v670
        %v795 = vunpack.c.l.b16 %v671
        %v796 = vunpack.c.l.b16 %v672
        %v797 = vunpack.c.l.b16 %v673
        %v798 = vunpack.c.l.b16 %v674
        %v799 = vunpack.c.l.b16 %v675
        %v800 = vunpack.c.l.b16 %v676
        %v801 = vunpack.c.l.b16 %v677
        %v802 = vunpack.c.l.b16 %v678
        %v803 = vpack.c.b16 %v788, %v787
        %v804 = vpack.c.b16 %v790, %v789
        %v805 = vpack.c.b16 %v792, %v791
        %v806 = vpack.c.b16 %v794, %v793
        %v807 = vpack.c.b16 %v796, %v795
        %v808 = vpack.c.b16 %v798, %v797
        %v809 = vpack.c.b16 %v800, %v799
        %v810 = vpack.c.b16 %v802, %v801
        %819 = vmatprep.subr.bf16.mxu0 0
        %820 = vmatpush1.bf16.msra.mxu0 %v803
        %821 = vmatprep.subr.bf16.mxu0 0
        %822 = vmatpush1.bf16.msra.mxu0 %v804
        %823 = vmatprep.subr.bf16.mxu0 0
        %824 = vmatpush1.bf16.msra.mxu0 %v805
        %825 = vmatprep.subr.bf16.mxu0 0
        %826 = vmatpush1.bf16.msra.mxu0 %v806
        %827 = vmatprep.subr.bf16.mxu0 0
        %828 = vmatpush1.bf16.msra.mxu0 %v807
        %829 = vmatprep.subr.bf16.mxu0 0
        %830 = vmatpush1.bf16.msra.mxu0 %v808
        %831 = vmatprep.subr.bf16.mxu0 0
        %832 = vmatpush1.bf16.msra.mxu0 %v809
        %833 = vmatprep.subr.bf16.mxu0 0
        %834 = vmatpush1.bf16.msra.mxu0 %v810
        %835 = vmatprep.subr.bf16.mxu0 0
        %836 = vmatpush1.bf16.msra.mxu0 0
        %837 = vmatprep.subr.bf16.mxu0 0
        %838 = vmatpush1.bf16.msra.mxu0 0
        %839 = vmatprep.subr.bf16.mxu0 0
        %840 = vmatpush1.bf16.msra.mxu0 0
        %841 = vmatprep.subr.bf16.mxu0 0
        %842 = vmatpush1.bf16.msra.mxu0 0
        %843 = vmatprep.subr.bf16.mxu0 0
        %844 = vmatpush1.bf16.msra.mxu0 0
        %845 = vmatprep.subr.bf16.mxu0 0
        %846 = vmatpush1.bf16.msra.mxu0 0
        %847 = vmatprep.subr.bf16.mxu0 0
        %848 = vmatpush1.bf16.msra.mxu0 0
        %849 = vmatprep.subr.bf16.mxu0 0
        %850 = vmatpush1.bf16.msra.mxu0 0
        %851 = vmatprep.mubr.bf16.mxu0 0
        %852 = vmatmul.mubr.bf16.gmra.mrb[0].mxu0 %v764
        %v853 = vpop.f32.mrb[0].mxu0
        %v854 = vadd.f32 %v769, %v853
        %v855 = vpop.f32.mrb[0].mxu0
        %v856 = vpop.f32.mrb[0].mxu0
        %v857 = vpop.f32.mrb[0].mxu0
        %858 = vdwg.mxu0
        %v861 = vunpack.c.l.s4 1966171168
        %v862 = vunpack.c.0.s8 %v861
        %v863 = vlaneseq
        %v864 = vshrl.u32 %v863, 7
        %v865 = vsub.s32 %v862, %v864
        %v866 = vrot.slane %v854, %v865
        %v867 = vcombine.high %v866, %v866
        %v869 = vunpack.c.l.s4 1966171168
        %v870 = vunpack.c.0.s8 %v869
        %v871 = vlaneseq
        %v872 = vshrl.u32 %v871, 7
        %v873 = vsub.s32 %v870, %v872
        %v874 = vrot.slane %v866, %v873
        %v876 = vunpack.c.l.s4 1966171168
        %v877 = vunpack.c.0.s8 %v876
        %v878 = vlaneseq
        %v879 = vshrl.u32 %v878, 7
        %v880 = vsub.s32 %v877, %v879
        %v881 = vrot.slane %v867, %v880
        %v882 = vcombine.high %v874, %v874
        %v883 = vcombine.high %v881, %v881
        %v884 = vlaneseq
        %v885 = vshrl.u32 %v884, 7
        %v886 = vsub.s32 0, %v885
        %v887 = vrot.slane %v874, %v886
        %v888 = vlaneseq
        %v889 = vshrl.u32 %v888, 7
        %v890 = vsub.s32 0, %v889
        %v891 = vrot.slane %v881, %v890
        %v892 = vlaneseq
        %v893 = vshrl.u32 %v892, 7
        %v894 = vsub.s32 0, %v893
        %v895 = vrot.slane %v882, %v894
        %v896 = vlaneseq
        %v897 = vshrl.u32 %v896, 7
        %v898 = vsub.s32 0, %v897
        %v899 = vrot.slane %v883, %v898
        %v904 = vadd.f32 %v887, %v659
        %v905 = vadd.f32 %v891, %v660
        %v906 = vadd.f32 %v895, %v661
        %v907 = vadd.f32 %v899, %v662
        %v908 = vtanh.pop %v904
        %v909 = vtanh.pop %v905
        %v910 = vtanh.pop %v906
        %v911 = vtanh.pop %v907
        %v913 = vlaneseq
        %v914 = vshrl.u32 %v913, 7
        %v915 = vsub.s32 0, %v914
        %v916 = vrot.slane %v680, %v915
        %v918 = vmul.f32 %v908, %v916
        %v919 = vmul.f32 %v909, %v916
        %v920 = vmul.f32 %v910, %v916
        %v921 = vmul.f32 %v911, %v916
        %922 = vadd.xlane.f32.xlu0 %v918
        %v923 = vpop.xlane.xlu0 %922
        %924 = vadd.xlane.f32.xlu0 %v919
        %v925 = vpop.xlane.xlu0 %924
        %926 = vadd.xlane.f32.xlu0 %v920
        %v927 = vpop.xlane.xlu0 %926
        %928 = vadd.xlane.f32.xlu0 %v921
        %v929 = vpop.xlane.xlu0 %928
        %v934 = vlaneseq
        %v935 = vand.u32 %v934, 127
        %v936 = vlaneseq
        %v937 = vshrl.u32 %v936, 7
        %v938 = vsub.s32 %v935, %v937
        %v939 = vrot.slane %v923, %v938
        %v940 = vlaneseq
        %v941 = vshrl.u32 %v940, 7
        %v942 = vsub.s32 %v935, %v941
        %v943 = vrot.slane %v925, %v942
        %v944 = vlaneseq
        %v945 = vshrl.u32 %v944, 7
        %v946 = vsub.s32 %v935, %v945
        %v947 = vrot.slane %v927, %v946
        %v948 = vlaneseq
        %v949 = vshrl.u32 %v948, 7
        %v950 = vsub.s32 %v935, %v949
        %v951 = vrot.slane %v929, %v950
        %vm952 = vcmask 1041409
        %v953 = vsel %vm952, %v943, %v939
        %vm954 = vcmask 1042434
        %v955 = vsel %vm954, %v947, %v953
        %vm956 = vcmask 1043459
        %v957 = vsel %vm956, %v951, %v955
        %vm959 = vcmask 60416
        %v960 = vsel %vm959, %v957, -inf
        %961 = vmax.xlane.f32.xlu0 %v960
        %v962 = vpop.xlane.xlu0 %961
        %v964 = vlaneseq
        %v965 = vshrl.u32 %v964, 7
        %v966 = vsub.s32 0, %v965
        %v967 = vrot.slane %v962, %v966
        %v968 = vlaneseq
        %v969 = vshrl.u32 %v968, 7
        %v970 = vsub.s32 1, %v969
        %v971 = vrot.slane %v962, %v970
        %v972 = vlaneseq
        %v973 = vshrl.u32 %v972, 7
        %v974 = vsub.s32 2, %v973
        %v975 = vrot.slane %v962, %v974
        %v976 = vlaneseq
        %v977 = vshrl.u32 %v976, 7
        %v978 = vsub.s32 3, %v977
        %v979 = vrot.slane %v962, %v978
        %v984 = vsub.f32 %v923, %v967
        %v985 = vsub.f32 %v925, %v971
        %v986 = vsub.f32 %v927, %v975
        %v987 = vsub.f32 %v929, %v979
        %v988 = vmul.f32 %v984, 1.442695
        %v989 = vpow.pop %v988
        %v990 = vmul.f32 %v985, 1.442695
        %v991 = vpow.pop %v990
        %v992 = vmul.f32 %v986, 1.442695
        %v993 = vpow.pop %v992
        %v994 = vmul.f32 %v987, 1.442695
        %v995 = vpow.pop %v994
        %1000 = vset.pattern.permute.xlu0 0
        %1001 = vperm.xlu0 %1000, %v989
        %v1002 = vpop.permute.xlu0 %1001
        %1003 = vset.pattern.permute.xlu0 0
        %1004 = vperm.xlu0 %1003, %v991
        %v1005 = vpop.permute.xlu0 %1004
        %1006 = vset.pattern.permute.xlu0 0
        %1007 = vperm.xlu0 %1006, %v993
        %v1008 = vpop.permute.xlu0 %1007
        %1009 = vset.pattern.permute.xlu0 0
        %1010 = vperm.xlu0 %1009, %v995
        %v1011 = vpop.permute.xlu0 %1010
        %v1012 = vlaneseq
        %v1013 = vshrl.u32 %v1012, 7
        %v1014 = vsub.s32 %v935, %v1013
        %v1015 = vrot.slane %v1002, %v1014
        %v1016 = vlaneseq
        %v1017 = vshrl.u32 %v1016, 7
        %v1018 = vsub.s32 %v935, %v1017
        %v1019 = vrot.slane %v1005, %v1018
        %v1020 = vlaneseq
        %v1021 = vshrl.u32 %v1020, 7
        %v1022 = vsub.s32 %v935, %v1021
        %v1023 = vrot.slane %v1008, %v1022
        %v1024 = vlaneseq
        %v1025 = vshrl.u32 %v1024, 7
        %v1026 = vsub.s32 %v935, %v1025
        %v1027 = vrot.slane %v1011, %v1026
        %v1028 = vsel %vm952, %v1019, %v1015
        %v1029 = vsel %vm954, %v1023, %v1028
        %v1030 = vsel %vm956, %v1027, %v1029
        %v1032 = vsel %vm959, %v1030, 0.0
        %1033 = vadd.xlane.f32.xlu0 %v1032
        %v1034 = vpop.xlane.xlu0 %1033
        %v1036 = vlaneseq
        %v1037 = vshrl.u32 %v1036, 7
        %v1038 = vsub.s32 0, %v1037
        %v1039 = vrot.slane %v1034, %v1038
        %v1040 = vlaneseq
        %v1041 = vshrl.u32 %v1040, 7
        %v1042 = vsub.s32 1, %v1041
        %v1043 = vrot.slane %v1034, %v1042
        %v1044 = vlaneseq
        %v1045 = vshrl.u32 %v1044, 7
        %v1046 = vsub.s32 2, %v1045
        %v1047 = vrot.slane %v1034, %v1046
        %v1048 = vlaneseq
        %v1049 = vshrl.u32 %v1048, 7
        %v1050 = vsub.s32 3, %v1049
        %v1051 = vrot.slane %v1034, %v1050
        %v1056 = vrcp.pop %v1039
        %v1057 = vmul.f32 %v989, %v1056
        %v1058 = vrcp.pop %v1043
        %v1059 = vmul.f32 %v991, %v1058
        %v1060 = vrcp.pop %v1047
        %v1061 = vmul.f32 %v993, %v1060
        %v1062 = vrcp.pop %v1051
        %v1063 = vmul.f32 %v995, %v1062
        %1068 = vset.pattern.permute.xlu0 0
        %1069 = vperm.xlu0 %1068, %v1057
        %v1070 = vpop.permute.xlu0 %1069
        %1071 = vset.pattern.permute.xlu0 0
        %1072 = vperm.xlu0 %1071, %v1059
        %v1073 = vpop.permute.xlu0 %1072
        %1074 = vset.pattern.permute.xlu0 0
        %1075 = vperm.xlu0 %1074, %v1061
        %v1076 = vpop.permute.xlu0 %1075
        %1077 = vset.pattern.permute.xlu0 0
        %1078 = vperm.xlu0 %1077, %v1063
        %v1079 = vpop.permute.xlu0 %1078
        %v1080 = vlaneseq
        %v1081 = vshrl.u32 %v1080, 7
        %v1082 = vsub.s32 %v935, %v1081
        %v1083 = vrot.slane %v1070, %v1082
        %v1084 = vlaneseq
        %v1085 = vshrl.u32 %v1084, 7
        %v1086 = vsub.s32 %v935, %v1085
        %v1087 = vrot.slane %v1073, %v1086
        %v1088 = vlaneseq
        %v1089 = vshrl.u32 %v1088, 7
        %v1090 = vsub.s32 %v935, %v1089
        %v1091 = vrot.slane %v1076, %v1090
        %v1092 = vlaneseq
        %v1093 = vshrl.u32 %v1092, 7
        %v1094 = vsub.s32 %v935, %v1093
        %v1095 = vrot.slane %v1079, %v1094
        %v1096 = vsel %vm952, %v1087, %v1083
        %v1097 = vsel %vm954, %v1091, %v1096
        %v1098 = vsel %vm956, %v1095, %v1097
        %1100 = vst.msk [vmem:[%s642] sm:$0xf] %vm959, %v1098
        %v1105 = vmul.f32 %v1070, %v655
        %v1106 = vmul.f32 %v1073, %v656
        %v1107 = vmul.f32 %v1076, %v657
        %v1108 = vmul.f32 %v1079, %v658
        %v1109 = vrot.slane %v1105, 4
        %v1110 = vadd.f32 %v1105, %v1109
        %v1111 = vrot.slane %v1110, 2
        %v1112 = vadd.f32 %v1110, %v1111
        %v1113 = vrot.slane %v1112, 1
        %v1114 = vadd.f32 %v1112, %v1113
        %v1115 = vrot.slane %v1106, 4
        %v1116 = vadd.f32 %v1106, %v1115
        %v1117 = vrot.slane %v1116, 2
        %v1118 = vadd.f32 %v1116, %v1117
        %v1119 = vrot.slane %v1118, 1
        %v1120 = vadd.f32 %v1118, %v1119
        %v1121 = vrot.slane %v1107, 4
        %v1122 = vadd.f32 %v1107, %v1121
        %v1123 = vrot.slane %v1122, 2
        %v1124 = vadd.f32 %v1122, %v1123
        %v1125 = vrot.slane %v1124, 1
        %v1126 = vadd.f32 %v1124, %v1125
        %v1127 = vrot.slane %v1108, 4
        %v1128 = vadd.f32 %v1108, %v1127
        %v1129 = vrot.slane %v1128, 2
        %v1130 = vadd.f32 %v1128, %v1129
        %v1131 = vrot.slane %v1130, 1
        %v1132 = vadd.f32 %v1130, %v1131
        %v1133 = vld [vmem:[%s551] sm:$0xff]
        %v1134 = vld [vmem:[%s551 + $0x8] sm:$0xf]
        %v1135 = vpack.c.bf16 %v1114, %v1114
        %v1136 = vpack.c.bf16 %v1120, %v1120
        %v1137 = vpack.c.bf16 %v1126, %v1126
        %v1138 = vpack.c.bf16 %v1132, %v1132
        %v1143 = vunpack.c.l.b16 %v1135
        %v1144 = vunpack.c.l.b16 %v1136
        %v1145 = vunpack.c.l.b16 %v1137
        %v1146 = vunpack.c.l.b16 %v1138
        %v1147 = vsel %vm952, %v1144, %v1143
        %v1148 = vsel %vm954, %v1145, %v1147
        %v1149 = vsel %vm956, %v1146, %v1148
        %v1150 = vpack.c.b16 %v1149, %v1149
        %v1184 = vunpack.c.l.b16 %v681
        %v1185 = vunpack.c.h.b16 %v681
        %v1186 = vunpack.c.l.b16 %v682
        %v1187 = vunpack.c.l.b16 %v683
        %v1188 = vunpack.c.h.b16 %v683
        %v1189 = vunpack.c.l.b16 %v684
        %v1190 = vunpack.c.l.b16 %v685
        %v1191 = vunpack.c.h.b16 %v685
        %v1192 = vunpack.c.l.b16 %v686
        %v1193 = vunpack.c.l.b16 %v687
        %v1194 = vunpack.c.h.b16 %v687
        %v1195 = vunpack.c.l.b16 %v688
        %v1196 = vunpack.c.l.b16 %v689
        %v1197 = vunpack.c.h.b16 %v689
        %v1198 = vunpack.c.l.b16 %v690
        %v1199 = vunpack.c.l.b16 %v691
        %v1200 = vunpack.c.h.b16 %v691
        %v1201 = vunpack.c.l.b16 %v692
        %v1202 = vunpack.c.l.b16 %v693
        %v1203 = vunpack.c.h.b16 %v693
        %v1204 = vunpack.c.l.b16 %v694
        %v1205 = vunpack.c.l.b16 %v695
        %v1206 = vunpack.c.h.b16 %v695
        %v1207 = vunpack.c.l.b16 %v696
        %v1208 = vunpack.c.l.b16 %v697
        %v1209 = vunpack.c.h.b16 %v697
        %v1210 = vunpack.c.l.b16 %v698
        %v1211 = vunpack.c.l.b16 %v699
        %v1212 = vunpack.c.h.b16 %v699
        %v1213 = vunpack.c.l.b16 %v700
        %v1214 = vunpack.c.l.b16 %v701
        %v1215 = vunpack.c.h.b16 %v701
        %v1216 = vunpack.c.l.b16 %v702
        %v1217 = vunpack.c.l.b16 %v703
        %v1218 = vunpack.c.h.b16 %v703
        %v1219 = vunpack.c.l.b16 %v704
        %v1220 = vunpack.c.l.b16 %v705
        %v1221 = vunpack.c.h.b16 %v705
        %v1222 = vunpack.c.l.b16 %v706
        %v1223 = vunpack.c.l.b16 %v707
        %v1224 = vunpack.c.h.b16 %v707
        %v1225 = vunpack.c.l.b16 %v708
        %v1226 = vunpack.c.l.b16 %v709
        %v1227 = vunpack.c.h.b16 %v709
        %v1228 = vunpack.c.l.b16 %v710
        %v1229 = vunpack.c.l.b16 %v711
        %v1230 = vunpack.c.h.b16 %v711
        %v1231 = vunpack.c.l.b16 %v712
        %v1232 = vpack.c.b16 %v1187, %v1184
        %v1233 = vpack.c.b16 %v1188, %v1185
        %v1234 = vpack.c.b16 %v1189, %v1186
        %v1235 = vpack.c.b16 %v1193, %v1190
        %v1236 = vpack.c.b16 %v1194, %v1191
        %v1237 = vpack.c.b16 %v1195, %v1192
        %v1238 = vpack.c.b16 %v1199, %v1196
        %v1239 = vpack.c.b16 %v1200, %v1197
        %v1240 = vpack.c.b16 %v1201, %v1198
        %v1241 = vpack.c.b16 %v1205, %v1202
        %v1242 = vpack.c.b16 %v1206, %v1203
        %v1243 = vpack.c.b16 %v1207, %v1204
        %v1244 = vpack.c.b16 %v1211, %v1208
        %v1245 = vpack.c.b16 %v1212, %v1209
        %v1246 = vpack.c.b16 %v1213, %v1210
        %v1247 = vpack.c.b16 %v1217, %v1214
        %v1248 = vpack.c.b16 %v1218, %v1215
        %v1249 = vpack.c.b16 %v1219, %v1216
        %v1250 = vpack.c.b16 %v1223, %v1220
        %v1251 = vpack.c.b16 %v1224, %v1221
        %v1252 = vpack.c.b16 %v1225, %v1222
        %v1253 = vpack.c.b16 %v1229, %v1226
        %v1254 = vpack.c.b16 %v1230, %v1227
        %v1255 = vpack.c.b16 %v1231, %v1228
        %1280 = vmatprep.subr.bf16.mxu0 %v1233
        %1281 = vmatpush1.bf16.msra.mxu0 %v1232
        %1282 = vmatprep.subr.bf16.mxu0 %v1236
        %1283 = vmatpush1.bf16.msra.mxu0 %v1235
        %1284 = vmatprep.subr.bf16.mxu0 %v1239
        %1285 = vmatpush1.bf16.msra.mxu0 %v1238
        %1286 = vmatprep.subr.bf16.mxu0 %v1242
        %1287 = vmatpush1.bf16.msra.mxu0 %v1241
        %1288 = vmatprep.subr.bf16.mxu0 %v1245
        %1289 = vmatpush1.bf16.msra.mxu0 %v1244
        %1290 = vmatprep.subr.bf16.mxu0 %v1248
        %1291 = vmatpush1.bf16.msra.mxu0 %v1247
        %1292 = vmatprep.subr.bf16.mxu0 %v1251
        %1293 = vmatpush1.bf16.msra.mxu0 %v1250
        %1294 = vmatprep.subr.bf16.mxu0 %v1254
        %1295 = vmatpush1.bf16.msra.mxu0 %v1253
        %1296 = vmatprep.subr.bf16.mxu0 0
        %1297 = vmatpush1.bf16.msra.mxu0 0
        %1298 = vmatprep.subr.bf16.mxu0 0
        %1299 = vmatpush1.bf16.msra.mxu0 0
        %1300 = vmatprep.subr.bf16.mxu0 0
        %1301 = vmatpush1.bf16.msra.mxu0 0
        %1302 = vmatprep.subr.bf16.mxu0 0
        %1303 = vmatpush1.bf16.msra.mxu0 0
        %1304 = vmatprep.subr.bf16.mxu0 0
        %1305 = vmatpush1.bf16.msra.mxu0 0
        %1306 = vmatprep.subr.bf16.mxu0 0
        %1307 = vmatpush1.bf16.msra.mxu0 0
        %1308 = vmatprep.subr.bf16.mxu0 0
        %1309 = vmatpush1.bf16.msra.mxu0 0
        %1310 = vmatprep.subr.bf16.mxu0 0
        %1311 = vmatpush1.bf16.msra.mxu0 0
        %1312 = vmatprep.mubr.bf16.mxu0 0
        %1313 = vmatmul.mubr.bf16.gmra.mrb[0].mxu0 %v1150
        %v1314 = vpop.f32.mrb[0].mxu0
        %v1315 = vadd.f32 0.0, %v1314
        %v1316 = vpop.f32.mrb[0].mxu0
        %v1317 = vadd.f32 0.0, %v1316
        %v1318 = vpop.f32.mrb[0].mxu0
        %v1319 = vpop.f32.mrb[0].mxu0
        %1320 = vdwg.mxu0
        %1321 = vmatprep.subr.bf16.mxu0 0
        %1322 = vmatpush1.bf16.msra.mxu0 %v1234
        %1323 = vmatprep.subr.bf16.mxu0 0
        %1324 = vmatpush1.bf16.msra.mxu0 %v1237
        %1325 = vmatprep.subr.bf16.mxu0 0
        %1326 = vmatpush1.bf16.msra.mxu0 %v1240
        %1327 = vmatprep.subr.bf16.mxu0 0
        %1328 = vmatpush1.bf16.msra.mxu0 %v1243
        %1329 = vmatprep.subr.bf16.mxu0 0
        %1330 = vmatpush1.bf16.msra.mxu0 %v1246
        %1331 = vmatprep.subr.bf16.mxu0 0
        %1332 = vmatpush1.bf16.msra.mxu0 %v1249
        %1333 = vmatprep.subr.bf16.mxu0 0
        %1334 = vmatpush1.bf16.msra.mxu0 %v1252
        %1335 = vmatprep.subr.bf16.mxu0 0
        %1336 = vmatpush1.bf16.msra.mxu0 %v1255
        %1337 = vmatprep.subr.bf16.mxu0 0
        %1338 = vmatpush1.bf16.msra.mxu0 0
        %1339 = vmatprep.subr.bf16.mxu0 0
        %1340 = vmatpush1.bf16.msra.mxu0 0
        %1341 = vmatprep.subr.bf16.mxu0 0
        %1342 = vmatpush1.bf16.msra.mxu0 0
        %1343 = vmatprep.subr.bf16.mxu0 0
        %1344 = vmatpush1.bf16.msra.mxu0 0
        %1345 = vmatprep.subr.bf16.mxu0 0
        %1346 = vmatpush1.bf16.msra.mxu0 0
        %1347 = vmatprep.subr.bf16.mxu0 0
        %1348 = vmatpush1.bf16.msra.mxu0 0
        %1349 = vmatprep.subr.bf16.mxu0 0
        %1350 = vmatpush1.bf16.msra.mxu0 0
        %1351 = vmatprep.subr.bf16.mxu0 0
        %1352 = vmatpush1.bf16.msra.mxu0 0
        %1353 = vmatprep.mubr.bf16.mxu0 0
        %1354 = vmatmul.mubr.bf16.gmra.mrb[0].mxu0 %v1150
        %v1355 = vpop.f32.mrb[0].mxu0
        %v1356 = vadd.f32 0.0, %v1355
        %v1357 = vpop.f32.mrb[0].mxu0
        %v1358 = vpop.f32.mrb[0].mxu0
        %v1359 = vpop.f32.mrb[0].mxu0
        %1360 = vdwg.mxu0
        %v1363 = vcombine.low %v1315, %v1317
        %v1365 = vadd.f32 %v1133, %v1363
        %v1366 = vadd.f32 %v1134, %v1356
        %v1368 = vlaneseq
        %v1369 = vshrl.u32 %v1368, 7
        %v1370 = vsub.s32 0, %v1369
        %v1371 = vrot.slane %v745, %v1370
        %v1372 = vlaneseq
        %v1373 = vshrl.u32 %v1372, 7
        %v1374 = vsub.s32 1, %v1373
        %v1375 = vrot.slane %v745, %v1374
        %v1376 = vlaneseq
        %v1377 = vshrl.u32 %v1376, 7
        %v1378 = vsub.s32 2, %v1377
        %v1379 = vrot.slane %v745, %v1378
        %v1415 = vunpack.c.l.b16 %v713
        %v1416 = vunpack.c.h.b16 %v713
        %v1417 = vunpack.c.l.b16 %v714
        %v1418 = vunpack.c.l.b16 %v715
        %v1419 = vunpack.c.h.b16 %v715
        %v1420 = vunpack.c.l.b16 %v716
        %v1421 = vunpack.c.l.b16 %v717
        %v1422 = vunpack.c.h.b16 %v717
        %v1423 = vunpack.c.l.b16 %v718
        %v1424 = vunpack.c.l.b16 %v719
        %v1425 = vunpack.c.h.b16 %v719
        %v1426 = vunpack.c.l.b16 %v720
        %v1427 = vunpack.c.l.b16 %v721
        %v1428 = vunpack.c.h.b16 %v721
        %v1429 = vunpack.c.l.b16 %v722
        %v1430 = vunpack.c.l.b16 %v723
        %v1431 = vunpack.c.h.b16 %v723
        %v1432 = vunpack.c.l.b16 %v724
        %v1433 = vunpack.c.l.b16 %v725
        %v1434 = vunpack.c.h.b16 %v725
        %v1435 = vunpack.c.l.b16 %v726
        %v1436 = vunpack.c.l.b16 %v727
        %v1437 = vunpack.c.h.b16 %v727
        %v1438 = vunpack.c.l.b16 %v728
        %v1439 = vunpack.c.l.b16 %v729
        %v1440 = vunpack.c.h.b16 %v729
        %v1441 = vunpack.c.l.b16 %v730
        %v1442 = vunpack.c.l.b16 %v731
        %v1443 = vunpack.c.h.b16 %v731
        %v1444 = vunpack.c.l.b16 %v732
        %v1445 = vunpack.c.l.b16 %v733
        %v1446 = vunpack.c.h.b16 %v733
        %v1447 = vunpack.c.l.b16 %v734
        %v1448 = vunpack.c.l.b16 %v735
        %v1449 = vunpack.c.h.b16 %v735
        %v1450 = vunpack.c.l.b16 %v736
        %v1451 = vunpack.c.l.b16 %v737
        %v1452 = vunpack.c.h.b16 %v737
        %v1453 = vunpack.c.l.b16 %v738
        %v1454 = vunpack.c.l.b16 %v739
        %v1455 = vunpack.c.h.b16 %v739
        %v1456 = vunpack.c.l.b16 %v740
        %v1457 = vunpack.c.l.b16 %v741
        %v1458 = vunpack.c.h.b16 %v741
        %v1459 = vunpack.c.l.b16 %v742
        %v1460 = vunpack.c.l.b16 %v743
        %v1461 = vunpack.c.h.b16 %v743
        %v1462 = vunpack.c.l.b16 %v744
        %v1463 = vpack.c.b16 %v1418, %v1415
        %v1464 = vpack.c.b16 %v1419, %v1416
        %v1465 = vpack.c.b16 %v1420, %v1417
        %v1466 = vpack.c.b16 %v1424, %v1421
        %v1467 = vpack.c.b16 %v1425, %v1422
        %v1468 = vpack.c.b16 %v1426, %v1423
        %v1469 = vpack.c.b16 %v1430, %v1427
        %v1470 = vpack.c.b16 %v1431, %v1428
        %v1471 = vpack.c.b16 %v1432, %v1429
        %v1472 = vpack.c.b16 %v1436, %v1433
        %v1473 = vpack.c.b16 %v1437, %v1434
        %v1474 = vpack.c.b16 %v1438, %v1435
        %v1475 = vpack.c.b16 %v1442, %v1439
        %v1476 = vpack.c.b16 %v1443, %v1440
        %v1477 = vpack.c.b16 %v1444, %v1441
        %v1478 = vpack.c.b16 %v1448, %v1445
        %v1479 = vpack.c.b16 %v1449, %v1446
        %v1480 = vpack.c.b16 %v1450, %v1447
        %v1481 = vpack.c.b16 %v1454, %v1451
        %v1482 = vpack.c.b16 %v1455, %v1452
        %v1483 = vpack.c.b16 %v1456, %v1453
        %v1484 = vpack.c.b16 %v1460, %v1457
        %v1485 = vpack.c.b16 %v1461, %v1458
        %v1486 = vpack.c.b16 %v1462, %v1459
        %1511 = vmatprep.subr.bf16.mxu0 %v1464
        %1512 = vmatpush1.bf16.msra.mxu0 %v1463
        %1513 = vmatprep.subr.bf16.mxu0 %v1467
        %1514 = vmatpush1.bf16.msra.mxu0 %v1466
        %1515 = vmatprep.subr.bf16.mxu0 %v1470
        %1516 = vmatpush1.bf16.msra.mxu0 %v1469
        %1517 = vmatprep.subr.bf16.mxu0 %v1473
        %1518 = vmatpush1.bf16.msra.mxu0 %v1472
        %1519 = vmatprep.subr.bf16.mxu0 %v1476
        %1520 = vmatpush1.bf16.msra.mxu0 %v1475
        %1521 = vmatprep.subr.bf16.mxu0 %v1479
        %1522 = vmatpush1.bf16.msra.mxu0 %v1478
        %1523 = vmatprep.subr.bf16.mxu0 %v1482
        %1524 = vmatpush1.bf16.msra.mxu0 %v1481
        %1525 = vmatprep.subr.bf16.mxu0 %v1485
        %1526 = vmatpush1.bf16.msra.mxu0 %v1484
        %1527 = vmatprep.subr.bf16.mxu0 0
        %1528 = vmatpush1.bf16.msra.mxu0 0
        %1529 = vmatprep.subr.bf16.mxu0 0
        %1530 = vmatpush1.bf16.msra.mxu0 0
        %1531 = vmatprep.subr.bf16.mxu0 0
        %1532 = vmatpush1.bf16.msra.mxu0 0
        %1533 = vmatprep.subr.bf16.mxu0 0
        %1534 = vmatpush1.bf16.msra.mxu0 0
        %1535 = vmatprep.subr.bf16.mxu0 0
        %1536 = vmatpush1.bf16.msra.mxu0 0
        %1537 = vmatprep.subr.bf16.mxu0 0
        %1538 = vmatpush1.bf16.msra.mxu0 0
        %1539 = vmatprep.subr.bf16.mxu0 0
        %1540 = vmatpush1.bf16.msra.mxu0 0
        %1541 = vmatprep.subr.bf16.mxu0 0
        %1542 = vmatpush1.bf16.msra.mxu0 0
        %1543 = vmatprep.mubr.bf16.mxu0 0
        %1544 = vmatmul.mubr.bf16.gmra.mrb[0].mxu0 %v764
        %v1545 = vpop.f32.mrb[0].mxu0
        %v1546 = vadd.f32 %v1371, %v1545
        %v1547 = vpop.f32.mrb[0].mxu0
        %v1548 = vadd.f32 %v1375, %v1547
        %v1549 = vpop.f32.mrb[0].mxu0
        %v1550 = vpop.f32.mrb[0].mxu0
        %1551 = vdwg.mxu0
        %1552 = vmatprep.subr.bf16.mxu0 0
        %1553 = vmatpush1.bf16.msra.mxu0 %v1465
        %1554 = vmatprep.subr.bf16.mxu0 0
        %1555 = vmatpush1.bf16.msra.mxu0 %v1468
        %1556 = vmatprep.subr.bf16.mxu0 0
        %1557 = vmatpush1.bf16.msra.mxu0 %v1471
        %1558 = vmatprep.subr.bf16.mxu0 0
        %1559 = vmatpush1.bf16.msra.mxu0 %v1474
        %1560 = vmatprep.subr.bf16.mxu0 0
        %1561 = vmatpush1.bf16.msra.mxu0 %v1477
        %1562 = vmatprep.subr.bf16.mxu0 0
        %1563 = vmatpush1.bf16.msra.mxu0 %v1480
        %1564 = vmatprep.subr.bf16.mxu0 0
        %1565 = vmatpush1.bf16.msra.mxu0 %v1483
        %1566 = vmatprep.subr.bf16.mxu0 0
        %1567 = vmatpush1.bf16.msra.mxu0 %v1486
        %1568 = vmatprep.subr.bf16.mxu0 0
        %1569 = vmatpush1.bf16.msra.mxu0 0
        %1570 = vmatprep.subr.bf16.mxu0 0
        %1571 = vmatpush1.bf16.msra.mxu0 0
        %1572 = vmatprep.subr.bf16.mxu0 0
        %1573 = vmatpush1.bf16.msra.mxu0 0
        %1574 = vmatprep.subr.bf16.mxu0 0
        %1575 = vmatpush1.bf16.msra.mxu0 0
        %1576 = vmatprep.subr.bf16.mxu0 0
        %1577 = vmatpush1.bf16.msra.mxu0 0
        %1578 = vmatprep.subr.bf16.mxu0 0
        %1579 = vmatpush1.bf16.msra.mxu0 0
        %1580 = vmatprep.subr.bf16.mxu0 0
        %1581 = vmatpush1.bf16.msra.mxu0 0
        %1582 = vmatprep.subr.bf16.mxu0 0
        %1583 = vmatpush1.bf16.msra.mxu0 0
        %1584 = vmatprep.mubr.bf16.mxu0 0
        %1585 = vmatmul.mubr.bf16.gmra.mrb[0].mxu0 %v764
        %v1586 = vpop.f32.mrb[0].mxu0
        %v1587 = vadd.f32 %v1379, %v1586
        %v1588 = vpop.f32.mrb[0].mxu0
        %v1589 = vpop.f32.mrb[0].mxu0
        %v1590 = vpop.f32.mrb[0].mxu0
        %1591 = vdwg.mxu0
        %v1592 = vadd.f32 %v1365, %v1546
        %v1593 = vxor.u32 %v1592, 2147483648
        %v1594 = vmul.f32 %v1593, 1.442695
        %v1595 = vpow.pop %v1594
        %v1596 = vadd.f32 %v1595, 1.0
        %v1597 = vrcp.pop %v1596
        %v1598 = vmul.f32 1.0, %v1597
        %v1600 = vrot.slane %v1365, 4
        %v1602 = vadd.f32 %v1600, %v1548
        %v1603 = vxor.u32 %v1602, 2147483648
        %v1604 = vmul.f32 %v1603, 1.442695
        %v1605 = vpow.pop %v1604
        %v1606 = vadd.f32 %v1605, 1.0
        %v1607 = vrcp.pop %v1606
        %v1608 = vmul.f32 1.0, %v1607
        %v1609 = vmul.f32 %v1598, %v1587
        %v1610 = vadd.f32 %v1366, %v1609
        %v1611 = vtanh.pop %v1610
        %v1612 = vsub.f32 1.0, %v1608
        %v1613 = vmul.f32 %v1612, %v1611
        %v1614 = vmul.f32 %v1608, %v763
        %v1615 = vadd.f32 %v1613, %v1614
        %v1616 = vpack.c.bf16 %v1615, %v1615
        %v1618 = vlaneseq
        %v1619 = vshrl.u32 %v1618, 7
        %v1620 = vsub.s32 0, %v1619
        %v1621 = vrot.slane %v762, %v1620
        %v1639 = vunpack.c.l.b16 %v746
        %v1640 = vunpack.c.l.b16 %v747
        %v1641 = vunpack.c.l.b16 %v748
        %v1642 = vunpack.c.l.b16 %v749
        %v1643 = vunpack.c.l.b16 %v750
        %v1644 = vunpack.c.l.b16 %v751
        %v1645 = vunpack.c.l.b16 %v752
        %v1646 = vunpack.c.l.b16 %v753
        %v1647 = vunpack.c.l.b16 %v754
        %v1648 = vunpack.c.l.b16 %v755
        %v1649 = vunpack.c.l.b16 %v756
        %v1650 = vunpack.c.l.b16 %v757
        %v1651 = vunpack.c.l.b16 %v758
        %v1652 = vunpack.c.l.b16 %v759
        %v1653 = vunpack.c.l.b16 %v760
        %v1654 = vunpack.c.l.b16 %v761
        %v1655 = vpack.c.b16 %v1640, %v1639
        %v1656 = vpack.c.b16 %v1642, %v1641
        %v1657 = vpack.c.b16 %v1644, %v1643
        %v1658 = vpack.c.b16 %v1646, %v1645
        %v1659 = vpack.c.b16 %v1648, %v1647
        %v1660 = vpack.c.b16 %v1650, %v1649
        %v1661 = vpack.c.b16 %v1652, %v1651
        %v1662 = vpack.c.b16 %v1654, %v1653
        %1671 = vmatprep.subr.bf16.mxu0 0
        %1672 = vmatpush1.bf16.msra.mxu0 %v1655
        %1673 = vmatprep.subr.bf16.mxu0 0
        %1674 = vmatpush1.bf16.msra.mxu0 %v1656
        %1675 = vmatprep.subr.bf16.mxu0 0
        %1676 = vmatpush1.bf16.msra.mxu0 %v1657
        %1677 = vmatprep.subr.bf16.mxu0 0
        %1678 = vmatpush1.bf16.msra.mxu0 %v1658
        %1679 = vmatprep.subr.bf16.mxu0 0
        %1680 = vmatpush1.bf16.msra.mxu0 %v1659
        %1681 = vmatprep.subr.bf16.mxu0 0
        %1682 = vmatpush1.bf16.msra.mxu0 %v1660
        %1683 = vmatprep.subr.bf16.mxu0 0
        %1684 = vmatpush1.bf16.msra.mxu0 %v1661
        %1685 = vmatprep.subr.bf16.mxu0 0
        %1686 = vmatpush1.bf16.msra.mxu0 %v1662
        %1687 = vmatprep.subr.bf16.mxu0 0
        %1688 = vmatpush1.bf16.msra.mxu0 0
        %1689 = vmatprep.subr.bf16.mxu0 0
        %1690 = vmatpush1.bf16.msra.mxu0 0
        %1691 = vmatprep.subr.bf16.mxu0 0
        %1692 = vmatpush1.bf16.msra.mxu0 0
        %1693 = vmatprep.subr.bf16.mxu0 0
        %1694 = vmatpush1.bf16.msra.mxu0 0
        %1695 = vmatprep.subr.bf16.mxu0 0
        %1696 = vmatpush1.bf16.msra.mxu0 0
        %1697 = vmatprep.subr.bf16.mxu0 0
        %1698 = vmatpush1.bf16.msra.mxu0 0
        %1699 = vmatprep.subr.bf16.mxu0 0
        %1700 = vmatpush1.bf16.msra.mxu0 0
        %1701 = vmatprep.subr.bf16.mxu0 0
        %1702 = vmatpush1.bf16.msra.mxu0 0
        %1703 = vmatprep.mubr.bf16.mxu0 0
        %1704 = vmatmul.mubr.bf16.gmra.mrb[0].mxu0 %v1616
        %v1705 = vpop.f32.mrb[0].mxu0
        %v1706 = vadd.f32 %v1621, %v1705
        %v1707 = vpop.f32.mrb[0].mxu0
        %v1708 = vpop.f32.mrb[0].mxu0
        %v1709 = vpop.f32.mrb[0].mxu0
        %1710 = vdwg.mxu0
        %vm1711 = vcmask 1043456
        %v1712 = vsel %vm1711, %v1706, -inf
        %1713 = vmax.xlane.f32.xlu0 %v1712
        %v1714 = vpop.xlane.xlu0 %1713
        %v1715 = vsub.f32 %v1706, %v1714
        %v1716 = vmul.f32 %v1715, 1.442695
        %v1717 = vpow.pop %v1716
        %v1718 = vsel %vm1711, %v1717, 0.0
        %1719 = vadd.xlane.f32.xlu0 %v1718
        %v1720 = vpop.xlane.xlu0 %1719
        %v1721 = vlog2.pop %v1720
        %v1722 = vmul.f32 %v1721, 0.6931472
        %v1723 = vadd.f32 %v1722, %v1714
        %v1724 = vsub.f32 %v1706, %v1723
        %1725 = vst [vmem:[%s635] sm:$0xf] %v1724
        %1726 = vmatprep.subr.bf16.mxu0 0
        %1727 = vmatpush1.bf16.msra.mxu0 %v803
        %1728 = vmatprep.subr.bf16.mxu0 0
        %1729 = vmatpush1.bf16.msra.mxu0 %v804
        %1730 = vmatprep.subr.bf16.mxu0 0
        %1731 = vmatpush1.bf16.msra.mxu0 %v805
        %1732 = vmatprep.subr.bf16.mxu0 0
        %1733 = vmatpush1.bf16.msra.mxu0 %v806
        %1734 = vmatprep.subr.bf16.mxu0 0
        %1735 = vmatpush1.bf16.msra.mxu0 %v807
        %1736 = vmatprep.subr.bf16.mxu0 0
        %1737 = vmatpush1.bf16.msra.mxu0 %v808
        %1738 = vmatprep.subr.bf16.mxu0 0
        %1739 = vmatpush1.bf16.msra.mxu0 %v809
        %1740 = vmatprep.subr.bf16.mxu0 0
        %1741 = vmatpush1.bf16.msra.mxu0 %v810
        %1742 = vmatprep.subr.bf16.mxu0 0
        %1743 = vmatpush1.bf16.msra.mxu0 0
        %1744 = vmatprep.subr.bf16.mxu0 0
        %1745 = vmatpush1.bf16.msra.mxu0 0
        %1746 = vmatprep.subr.bf16.mxu0 0
        %1747 = vmatpush1.bf16.msra.mxu0 0
        %1748 = vmatprep.subr.bf16.mxu0 0
        %1749 = vmatpush1.bf16.msra.mxu0 0
        %1750 = vmatprep.subr.bf16.mxu0 0
        %1751 = vmatpush1.bf16.msra.mxu0 0
        %1752 = vmatprep.subr.bf16.mxu0 0
        %1753 = vmatpush1.bf16.msra.mxu0 0
        %1754 = vmatprep.subr.bf16.mxu0 0
        %1755 = vmatpush1.bf16.msra.mxu0 0
        %1756 = vmatprep.subr.bf16.mxu0 0
        %1757 = vmatpush1.bf16.msra.mxu0 0
        %1758 = vmatprep.mubr.bf16.mxu0 0
        %1759 = vmatmul.mubr.bf16.gmra.mrb[0].mxu0 %v1616
        %v1760 = vpop.f32.mrb[0].mxu0
        %v1761 = vadd.f32 %v769, %v1760
        %v1762 = vpop.f32.mrb[0].mxu0
        %v1763 = vpop.f32.mrb[0].mxu0
        %v1764 = vpop.f32.mrb[0].mxu0
        %1765 = vdwg.mxu0
        %v1768 = vunpack.c.l.s4 1966171168
        %v1769 = vunpack.c.0.s8 %v1768
        %v1770 = vlaneseq
        %v1771 = vshrl.u32 %v1770, 7
        %v1772 = vsub.s32 %v1769, %v1771
        %v1773 = vrot.slane %v1761, %v1772
        %v1774 = vcombine.high %v1773, %v1773
        %v1776 = vunpack.c.l.s4 1966171168
        %v1777 = vunpack.c.0.s8 %v1776
        %v1778 = vlaneseq
        %v1779 = vshrl.u32 %v1778, 7
        %v1780 = vsub.s32 %v1777, %v1779
        %v1781 = vrot.slane %v1773, %v1780
        %v1783 = vunpack.c.l.s4 1966171168
        %v1784 = vunpack.c.0.s8 %v1783
        %v1785 = vlaneseq
        %v1786 = vshrl.u32 %v1785, 7
        %v1787 = vsub.s32 %v1784, %v1786
        %v1788 = vrot.slane %v1774, %v1787
        %v1789 = vcombine.high %v1781, %v1781
        %v1790 = vcombine.high %v1788, %v1788
        %v1791 = vlaneseq
        %v1792 = vshrl.u32 %v1791, 7
        %v1793 = vsub.s32 0, %v1792
        %v1794 = vrot.slane %v1781, %v1793
        %v1795 = vlaneseq
        %v1796 = vshrl.u32 %v1795, 7
        %v1797 = vsub.s32 0, %v1796
        %v1798 = vrot.slane %v1788, %v1797
        %v1799 = vlaneseq
        %v1800 = vshrl.u32 %v1799, 7
        %v1801 = vsub.s32 0, %v1800
        %v1802 = vrot.slane %v1789, %v1801
        %v1803 = vlaneseq
        %v1804 = vshrl.u32 %v1803, 7
        %v1805 = vsub.s32 0, %v1804
        %v1806 = vrot.slane %v1790, %v1805
        %v1811 = vadd.f32 %v1794, %v659
        %v1812 = vadd.f32 %v1798, %v660
        %v1813 = vadd.f32 %v1802, %v661
        %v1814 = vadd.f32 %v1806, %v662
        %v1815 = vtanh.pop %v1811
        %v1816 = vtanh.pop %v1812
        %v1817 = vtanh.pop %v1813
        %v1818 = vtanh.pop %v1814
        %v1819 = vmul.f32 %v1815, %v916
        %v1820 = vmul.f32 %v1816, %v916
        %v1821 = vmul.f32 %v1817, %v916
        %v1822 = vmul.f32 %v1818, %v916
        %1823 = vadd.xlane.f32.xlu0 %v1819
        %v1824 = vpop.xlane.xlu0 %1823
        %1825 = vadd.xlane.f32.xlu0 %v1820
        %v1826 = vpop.xlane.xlu0 %1825
        %1827 = vadd.xlane.f32.xlu0 %v1821
        %v1828 = vpop.xlane.xlu0 %1827
        %1829 = vadd.xlane.f32.xlu0 %v1822
        %v1830 = vpop.xlane.xlu0 %1829
        %v1835 = vlaneseq
        %v1836 = vshrl.u32 %v1835, 7
        %v1837 = vsub.s32 %v935, %v1836
        %v1838 = vrot.slane %v1824, %v1837
        %v1839 = vlaneseq
        %v1840 = vshrl.u32 %v1839, 7
        %v1841 = vsub.s32 %v935, %v1840
        %v1842 = vrot.slane %v1826, %v1841
        %v1843 = vlaneseq
        %v1844 = vshrl.u32 %v1843, 7
        %v1845 = vsub.s32 %v935, %v1844
        %v1846 = vrot.slane %v1828, %v1845
        %v1847 = vlaneseq
        %v1848 = vshrl.u32 %v1847, 7
        %v1849 = vsub.s32 %v935, %v1848
        %v1850 = vrot.slane %v1830, %v1849
        %v1851 = vsel %vm952, %v1842, %v1838
        %v1852 = vsel %vm954, %v1846, %v1851
        %v1853 = vsel %vm956, %v1850, %v1852
        %v1855 = vsel %vm959, %v1853, -inf
        %1856 = vmax.xlane.f32.xlu0 %v1855
        %v1857 = vpop.xlane.xlu0 %1856
        %v1859 = vlaneseq
        %v1860 = vshrl.u32 %v1859, 7
        %v1861 = vsub.s32 0, %v1860
        %v1862 = vrot.slane %v1857, %v1861
        %v1863 = vlaneseq
        %v1864 = vshrl.u32 %v1863, 7
        %v1865 = vsub.s32 1, %v1864
        %v1866 = vrot.slane %v1857, %v1865
        %v1867 = vlaneseq
        %v1868 = vshrl.u32 %v1867, 7
        %v1869 = vsub.s32 2, %v1868
        %v1870 = vrot.slane %v1857, %v1869
        %v1871 = vlaneseq
        %v1872 = vshrl.u32 %v1871, 7
        %v1873 = vsub.s32 3, %v1872
        %v1874 = vrot.slane %v1857, %v1873
        %v1879 = vsub.f32 %v1824, %v1862
        %v1880 = vsub.f32 %v1826, %v1866
        %v1881 = vsub.f32 %v1828, %v1870
        %v1882 = vsub.f32 %v1830, %v1874
        %v1883 = vmul.f32 %v1879, 1.442695
        %v1884 = vpow.pop %v1883
        %v1885 = vmul.f32 %v1880, 1.442695
        %v1886 = vpow.pop %v1885
        %v1887 = vmul.f32 %v1881, 1.442695
        %v1888 = vpow.pop %v1887
        %v1889 = vmul.f32 %v1882, 1.442695
        %v1890 = vpow.pop %v1889
        %1895 = vset.pattern.permute.xlu0 0
        %1896 = vperm.xlu0 %1895, %v1884
        %v1897 = vpop.permute.xlu0 %1896
        %1898 = vset.pattern.permute.xlu0 0
        %1899 = vperm.xlu0 %1898, %v1886
        %v1900 = vpop.permute.xlu0 %1899
        %1901 = vset.pattern.permute.xlu0 0
        %1902 = vperm.xlu0 %1901, %v1888
        %v1903 = vpop.permute.xlu0 %1902
        %1904 = vset.pattern.permute.xlu0 0
        %1905 = vperm.xlu0 %1904, %v1890
        %v1906 = vpop.permute.xlu0 %1905
        %v1907 = vlaneseq
        %v1908 = vshrl.u32 %v1907, 7
        %v1909 = vsub.s32 %v935, %v1908
        %v1910 = vrot.slane %v1897, %v1909
        %v1911 = vlaneseq
        %v1912 = vshrl.u32 %v1911, 7
        %v1913 = vsub.s32 %v935, %v1912
        %v1914 = vrot.slane %v1900, %v1913
        %v1915 = vlaneseq
        %v1916 = vshrl.u32 %v1915, 7
        %v1917 = vsub.s32 %v935, %v1916
        %v1918 = vrot.slane %v1903, %v1917
        %v1919 = vlaneseq
        %v1920 = vshrl.u32 %v1919, 7
        %v1921 = vsub.s32 %v935, %v1920
        %v1922 = vrot.slane %v1906, %v1921
        %v1923 = vsel %vm952, %v1914, %v1910
        %v1924 = vsel %vm954, %v1918, %v1923
        %v1925 = vsel %vm956, %v1922, %v1924
        %v1927 = vsel %vm959, %v1925, 0.0
        %1928 = vadd.xlane.f32.xlu0 %v1927
        %v1929 = vpop.xlane.xlu0 %1928
        %v1931 = vlaneseq
        %v1932 = vshrl.u32 %v1931, 7
        %v1933 = vsub.s32 0, %v1932
        %v1934 = vrot.slane %v1929, %v1933
        %v1935 = vlaneseq
        %v1936 = vshrl.u32 %v1935, 7
        %v1937 = vsub.s32 1, %v1936
        %v1938 = vrot.slane %v1929, %v1937
        %v1939 = vlaneseq
        %v1940 = vshrl.u32 %v1939, 7
        %v1941 = vsub.s32 2, %v1940
        %v1942 = vrot.slane %v1929, %v1941
        %v1943 = vlaneseq
        %v1944 = vshrl.u32 %v1943, 7
        %v1945 = vsub.s32 3, %v1944
        %v1946 = vrot.slane %v1929, %v1945
        %v1951 = vrcp.pop %v1934
        %v1952 = vmul.f32 %v1884, %v1951
        %v1953 = vrcp.pop %v1938
        %v1954 = vmul.f32 %v1886, %v1953
        %v1955 = vrcp.pop %v1942
        %v1956 = vmul.f32 %v1888, %v1955
        %v1957 = vrcp.pop %v1946
        %v1958 = vmul.f32 %v1890, %v1957
        %1963 = vset.pattern.permute.xlu0 0
        %1964 = vperm.xlu0 %1963, %v1952
        %v1965 = vpop.permute.xlu0 %1964
        %1966 = vset.pattern.permute.xlu0 0
        %1967 = vperm.xlu0 %1966, %v1954
        %v1968 = vpop.permute.xlu0 %1967
        %1969 = vset.pattern.permute.xlu0 0
        %1970 = vperm.xlu0 %1969, %v1956
        %v1971 = vpop.permute.xlu0 %1970
        %1972 = vset.pattern.permute.xlu0 0
        %1973 = vperm.xlu0 %1972, %v1958
        %v1974 = vpop.permute.xlu0 %1973
        %v1975 = vlaneseq
        %v1976 = vshrl.u32 %v1975, 7
        %v1977 = vsub.s32 %v935, %v1976
        %v1978 = vrot.slane %v1965, %v1977
        %v1979 = vlaneseq
        %v1980 = vshrl.u32 %v1979, 7
        %v1981 = vsub.s32 %v935, %v1980
        %v1982 = vrot.slane %v1968, %v1981
        %v1983 = vlaneseq
        %v1984 = vshrl.u32 %v1983, 7
        %v1985 = vsub.s32 %v935, %v1984
        %v1986 = vrot.slane %v1971, %v1985
        %v1987 = vlaneseq
        %v1988 = vshrl.u32 %v1987, 7
        %v1989 = vsub.s32 %v935, %v1988
        %v1990 = vrot.slane %v1974, %v1989
        %v1991 = vsel %vm952, %v1982, %v1978
        %v1992 = vsel %vm954, %v1986, %v1991
        %v1993 = vsel %vm956, %v1990, %v1992
        %s1995 = scalar_lea.vmem %s642, 4 [#allocation24]
        %1996 = vst.msk [vmem:[%s1995] sm:$0xf] %vm959, %v1993
        %v2001 = vmul.f32 %v1965, %v655
        %v2002 = vmul.f32 %v1968, %v656
        %v2003 = vmul.f32 %v1971, %v657
        %v2004 = vmul.f32 %v1974, %v658
        %v2005 = vrot.slane %v2001, 4
        %v2006 = vadd.f32 %v2001, %v2005
        %v2007 = vrot.slane %v2006, 2
        %v2008 = vadd.f32 %v2006, %v2007
        %v2009 = vrot.slane %v2008, 1
        %v2010 = vadd.f32 %v2008, %v2009
        %v2011 = vrot.slane %v2002, 4
        %v2012 = vadd.f32 %v2002, %v2011
        %v2013 = vrot.slane %v2012, 2
        %v2014 = vadd.f32 %v2012, %v2013
        %v2015 = vrot.slane %v2014, 1
        %v2016 = vadd.f32 %v2014, %v2015
        %v2017 = vrot.slane %v2003, 4
        %v2018 = vadd.f32 %v2003, %v2017
        %v2019 = vrot.slane %v2018, 2
        %v2020 = vadd.f32 %v2018, %v2019
        %v2021 = vrot.slane %v2020, 1
        %v2022 = vadd.f32 %v2020, %v2021
        %v2023 = vrot.slane %v2004, 4
        %v2024 = vadd.f32 %v2004, %v2023
        %v2025 = vrot.slane %v2024, 2
        %v2026 = vadd.f32 %v2024, %v2025
        %v2027 = vrot.slane %v2026, 1
        %v2028 = vadd.f32 %v2026, %v2027
        %s2029 = scalar_lea.vmem %s551, 12 [#allocation3]
        %v2030 = vld [vmem:[%s2029] sm:$0xff]
        %v2031 = vld [vmem:[%s2029 + $0x8] sm:$0xf]
        %v2032 = vpack.c.bf16 %v2010, %v2010
        %v2033 = vpack.c.bf16 %v2016, %v2016
        %v2034 = vpack.c.bf16 %v2022, %v2022
        %v2035 = vpack.c.bf16 %v2028, %v2028
        %v2040 = vunpack.c.l.b16 %v2032
        %v2041 = vunpack.c.l.b16 %v2033
        %v2042 = vunpack.c.l.b16 %v2034
        %v2043 = vunpack.c.l.b16 %v2035
        %v2044 = vsel %vm952, %v2041, %v2040
        %v2045 = vsel %vm954, %v2042, %v2044
        %v2046 = vsel %vm956, %v2043, %v2045
        %v2047 = vpack.c.b16 %v2046, %v2046
        %2049 = vmatprep.subr.bf16.mxu0 %v1233
        %2050 = vmatpush1.bf16.msra.mxu0 %v1232
        %2051 = vmatprep.subr.bf16.mxu0 %v1236
        %2052 = vmatpush1.bf16.msra.mxu0 %v1235
        %2053 = vmatprep.subr.bf16.mxu0 %v1239
        %2054 = vmatpush1.bf16.msra.mxu0 %v1238
        %2055 = vmatprep.subr.bf16.mxu0 %v1242
        %2056 = vmatpush1.bf16.msra.mxu0 %v1241
        %2057 = vmatprep.subr.bf16.mxu0 %v1245
        %2058 = vmatpush1.bf16.msra.mxu0 %v1244
        %2059 = vmatprep.subr.bf16.mxu0 %v1248
        %2060 = vmatpush1.bf16.msra.mxu0 %v1247
        %2061 = vmatprep.subr.bf16.mxu0 %v1251
        %2062 = vmatpush1.bf16.msra.mxu0 %v1250
        %2063 = vmatprep.subr.bf16.mxu0 %v1254
        %2064 = vmatpush1.bf16.msra.mxu0 %v1253
        %2065 = vmatprep.subr.bf16.mxu0 0
        %2066 = vmatpush1.bf16.msra.mxu0 0
        %2067 = vmatprep.subr.bf16.mxu0 0
        %2068 = vmatpush1.bf16.msra.mxu0 0
        %2069 = vmatprep.subr.bf16.mxu0 0
        %2070 = vmatpush1.bf16.msra.mxu0 0
        %2071 = vmatprep.subr.bf16.mxu0 0
        %2072 = vmatpush1.bf16.msra.mxu0 0
        %2073 = vmatprep.subr.bf16.mxu0 0
        %2074 = vmatpush1.bf16.msra.mxu0 0
        %2075 = vmatprep.subr.bf16.mxu0 0
        %2076 = vmatpush1.bf16.msra.mxu0 0
        %2077 = vmatprep.subr.bf16.mxu0 0
        %2078 = vmatpush1.bf16.msra.mxu0 0
        %2079 = vmatprep.subr.bf16.mxu0 0
        %2080 = vmatpush1.bf16.msra.mxu0 0
        %2081 = vmatprep.mubr.bf16.mxu0 0
        %2082 = vmatmul.mubr.bf16.gmra.mrb[0].mxu0 %v2047
        %v2083 = vpop.f32.mrb[0].mxu0
        %v2084 = vadd.f32 0.0, %v2083
        %v2085 = vpop.f32.mrb[0].mxu0
        %v2086 = vadd.f32 0.0, %v2085
        %v2087 = vpop.f32.mrb[0].mxu0
        %v2088 = vpop.f32.mrb[0].mxu0
        %2089 = vdwg.mxu0
        %2090 = vmatprep.subr.bf16.mxu0 0
        %2091 = vmatpush1.bf16.msra.mxu0 %v1234
        %2092 = vmatprep.subr.bf16.mxu0 0
        %2093 = vmatpush1.bf16.msra.mxu0 %v1237
        %2094 = vmatprep.subr.bf16.mxu0 0
        %2095 = vmatpush1.bf16.msra.mxu0 %v1240
        %2096 = vmatprep.subr.bf16.mxu0 0
        %2097 = vmatpush1.bf16.msra.mxu0 %v1243
        %2098 = vmatprep.subr.bf16.mxu0 0
        %2099 = vmatpush1.bf16.msra.mxu0 %v1246
        %2100 = vmatprep.subr.bf16.mxu0 0
        %2101 = vmatpush1.bf16.msra.mxu0 %v1249
        %2102 = vmatprep.subr.bf16.mxu0 0
        %2103 = vmatpush1.bf16.msra.mxu0 %v1252
        %2104 = vmatprep.subr.bf16.mxu0 0
        %2105 = vmatpush1.bf16.msra.mxu0 %v1255
        %2106 = vmatprep.subr.bf16.mxu0 0
        %2107 = vmatpush1.bf16.msra.mxu0 0
        %2108 = vmatprep.subr.bf16.mxu0 0
        %2109 = vmatpush1.bf16.msra.mxu0 0
        %2110 = vmatprep.subr.bf16.mxu0 0
        %2111 = vmatpush1.bf16.msra.mxu0 0
        %2112 = vmatprep.subr.bf16.mxu0 0
        %2113 = vmatpush1.bf16.msra.mxu0 0
        %2114 = vmatprep.subr.bf16.mxu0 0
        %2115 = vmatpush1.bf16.msra.mxu0 0
        %2116 = vmatprep.subr.bf16.mxu0 0
        %2117 = vmatpush1.bf16.msra.mxu0 0
        %2118 = vmatprep.subr.bf16.mxu0 0
        %2119 = vmatpush1.bf16.msra.mxu0 0
        %2120 = vmatprep.subr.bf16.mxu0 0
        %2121 = vmatpush1.bf16.msra.mxu0 0
        %2122 = vmatprep.mubr.bf16.mxu0 0
        %2123 = vmatmul.mubr.bf16.gmra.mrb[0].mxu0 %v2047
        %v2124 = vpop.f32.mrb[0].mxu0
        %v2125 = vadd.f32 0.0, %v2124
        %v2126 = vpop.f32.mrb[0].mxu0
        %v2127 = vpop.f32.mrb[0].mxu0
        %v2128 = vpop.f32.mrb[0].mxu0
        %2129 = vdwg.mxu0
        %v2132 = vcombine.low %v2084, %v2086
        %v2134 = vadd.f32 %v2030, %v2132
        %v2135 = vadd.f32 %v2031, %v2125
        %2136 = vmatprep.subr.bf16.mxu0 %v1464
        %2137 = vmatpush1.bf16.msra.mxu0 %v1463
        %2138 = vmatprep.subr.bf16.mxu0 %v1467
        %2139 = vmatpush1.bf16.msra.mxu0 %v1466
        %2140 = vmatprep.subr.bf16.mxu0 %v1470
        %2141 = vmatpush1.bf16.msra.mxu0 %v1469
        %2142 = vmatprep.subr.bf16.mxu0 %v1473
        %2143 = vmatpush1.bf16.msra.mxu0 %v1472
        %2144 = vmatprep.subr.bf16.mxu0 %v1476
        %2145 = vmatpush1.bf16.msra.mxu0 %v1475
        %2146 = vmatprep.subr.bf16.mxu0 %v1479
        %2147 = vmatpush1.bf16.msra.mxu0 %v1478
        %2148 = vmatprep.subr.bf16.mxu0 %v1482
        %2149 = vmatpush1.bf16.msra.mxu0 %v1481
        %2150 = vmatprep.subr.bf16.mxu0 %v1485
        %2151 = vmatpush1.bf16.msra.mxu0 %v1484
        %2152 = vmatprep.subr.bf16.mxu0 0
        %2153 = vmatpush1.bf16.msra.mxu0 0
        %2154 = vmatprep.subr.bf16.mxu0 0
        %2155 = vmatpush1.bf16.msra.mxu0 0
        %2156 = vmatprep.subr.bf16.mxu0 0
        %2157 = vmatpush1.bf16.msra.mxu0 0
        %2158 = vmatprep.subr.bf16.mxu0 0
        %2159 = vmatpush1.bf16.msra.mxu0 0
        %2160 = vmatprep.subr.bf16.mxu0 0
        %2161 = vmatpush1.bf16.msra.mxu0 0
        %2162 = vmatprep.subr.bf16.mxu0 0
        %2163 = vmatpush1.bf16.msra.mxu0 0
        %2164 = vmatprep.subr.bf16.mxu0 0
        %2165 = vmatpush1.bf16.msra.mxu0 0
        %2166 = vmatprep.subr.bf16.mxu0 0
        %2167 = vmatpush1.bf16.msra.mxu0 0
        %2168 = vmatprep.mubr.bf16.mxu0 0
        %2169 = vmatmul.mubr.bf16.gmra.mrb[0].mxu0 %v1616
        %v2170 = vpop.f32.mrb[0].mxu0
        %v2171 = vadd.f32 %v1371, %v2170
        %v2172 = vpop.f32.mrb[0].mxu0
        %v2173 = vadd.f32 %v1375, %v2172
        %v2174 = vpop.f32.mrb[0].mxu0
        %v2175 = vpop.f32.mrb[0].mxu0
        %2176 = vdwg.mxu0
        %2177 = vmatprep.subr.bf16.mxu0 0
        %2178 = vmatpush1.bf16.msra.mxu0 %v1465
        %2179 = vmatprep.subr.bf16.mxu0 0
        %2180 = vmatpush1.bf16.msra.mxu0 %v1468
        %2181 = vmatprep.subr.bf16.mxu0 0
        %2182 = vmatpush1.bf16.msra.mxu0 %v1471
        %2183 = vmatprep.subr.bf16.mxu0 0
        %2184 = vmatpush1.bf16.msra.mxu0 %v1474
        %2185 = vmatprep.subr.bf16.mxu0 0
        %2186 = vmatpush1.bf16.msra.mxu0 %v1477
        %2187 = vmatprep.subr.bf16.mxu0 0
        %2188 = vmatpush1.bf16.msra.mxu0 %v1480
        %2189 = vmatprep.subr.bf16.mxu0 0
        %2190 = vmatpush1.bf16.msra.mxu0 %v1483
        %2191 = vmatprep.subr.bf16.mxu0 0
        %2192 = vmatpush1.bf16.msra.mxu0 %v1486
        %2193 = vmatprep.subr.bf16.mxu0 0
        %2194 = vmatpush1.bf16.msra.mxu0 0
        %2195 = vmatprep.subr.bf16.mxu0 0
        %2196 = vmatpush1.bf16.msra.mxu0 0
        %2197 = vmatprep.subr.bf16.mxu0 0
        %2198 = vmatpush1.bf16.msra.mxu0 0
        %2199 = vmatprep.subr.bf16.mxu0 0
        %2200 = vmatpush1.bf16.msra.mxu0 0
        %2201 = vmatprep.subr.bf16.mxu0 0
        %2202 = vmatpush1.bf16.msra.mxu0 0
        %2203 = vmatprep.subr.bf16.mxu0 0
        %2204 = vmatpush1.bf16.msra.mxu0 0
        %2205 = vmatprep.subr.bf16.mxu0 0
        %2206 = vmatpush1.bf16.msra.mxu0 0
        %2207 = vmatprep.subr.bf16.mxu0 0
        %2208 = vmatpush1.bf16.msra.mxu0 0
        %2209 = vmatprep.mubr.bf16.mxu0 0
        %2210 = vmatmul.mubr.bf16.gmra.mrb[0].mxu0 %v1616
        %v2211 = vpop.f32.mrb[0].mxu0
        %v2212 = vadd.f32 %v1379, %v2211
        %v2213 = vpop.f32.mrb[0].mxu0
        %v2214 = vpop.f32.mrb[0].mxu0
        %v2215 = vpop.f32.mrb[0].mxu0
        %2216 = vdwg.mxu0
        %v2217 = vadd.f32 %v2134, %v2171
        %v2218 = vxor.u32 %v2217, 2147483648
        %v2219 = vmul.f32 %v2218, 1.442695
        %v2220 = vpow.pop %v2219
        %v2221 = vadd.f32 %v2220, 1.0
        %v2222 = vrcp.pop %v2221
        %v2223 = vmul.f32 1.0, %v2222
        %v2225 = vrot.slane %v2134, 4
        %v2227 = vadd.f32 %v2225, %v2173
        %v2228 = vxor.u32 %v2227, 2147483648
        %v2229 = vmul.f32 %v2228, 1.442695
        %v2230 = vpow.pop %v2229
        %v2231 = vadd.f32 %v2230, 1.0
        %v2232 = vrcp.pop %v2231
        %v2233 = vmul.f32 1.0, %v2232
        %v2234 = vmul.f32 %v2223, %v2212
        %v2235 = vadd.f32 %v2135, %v2234
        %v2236 = vtanh.pop %v2235
        %v2237 = vsub.f32 1.0, %v2233
        %v2238 = vmul.f32 %v2237, %v2236
        %v2239 = vmul.f32 %v2233, %v1615
        %v2240 = vadd.f32 %v2238, %v2239
        %v2241 = vpack.c.bf16 %v2240, %v2240
        %2242 = vmatprep.subr.bf16.mxu0 0
        %2243 = vmatpush1.bf16.msra.mxu0 %v1655
        %2244 = vmatprep.subr.bf16.mxu0 0
        %2245 = vmatpush1.bf16.msra.mxu0 %v1656
        %2246 = vmatprep.subr.bf16.mxu0 0
        %2247 = vmatpush1.bf16.msra.mxu0 %v1657
        %2248 = vmatprep.subr.bf16.mxu0 0
        %2249 = vmatpush1.bf16.msra.mxu0 %v1658
        %2250 = vmatprep.subr.bf16.mxu0 0
        %2251 = vmatpush1.bf16.msra.mxu0 %v1659
        %2252 = vmatprep.subr.bf16.mxu0 0
        %2253 = vmatpush1.bf16.msra.mxu0 %v1660
        %2254 = vmatprep.subr.bf16.mxu0 0
        %2255 = vmatpush1.bf16.msra.mxu0 %v1661
        %2256 = vmatprep.subr.bf16.mxu0 0
        %2257 = vmatpush1.bf16.msra.mxu0 %v1662
        %2258 = vmatprep.subr.bf16.mxu0 0
        %2259 = vmatpush1.bf16.msra.mxu0 0
        %2260 = vmatprep.subr.bf16.mxu0 0
        %2261 = vmatpush1.bf16.msra.mxu0 0
        %2262 = vmatprep.subr.bf16.mxu0 0
        %2263 = vmatpush1.bf16.msra.mxu0 0
        %2264 = vmatprep.subr.bf16.mxu0 0
        %2265 = vmatpush1.bf16.msra.mxu0 0
        %2266 = vmatprep.subr.bf16.mxu0 0
        %2267 = vmatpush1.bf16.msra.mxu0 0
        %2268 = vmatprep.subr.bf16.mxu0 0
        %2269 = vmatpush1.bf16.msra.mxu0 0
        %2270 = vmatprep.subr.bf16.mxu0 0
        %2271 = vmatpush1.bf16.msra.mxu0 0
        %2272 = vmatprep.subr.bf16.mxu0 0
        %2273 = vmatpush1.bf16.msra.mxu0 0
        %2274 = vmatprep.mubr.bf16.mxu0 0
        %2275 = vmatmul.mubr.bf16.gmra.mrb[0].mxu0 %v2241
        %v2276 = vpop.f32.mrb[0].mxu0
        %v2277 = vadd.f32 %v1621, %v2276
        %v2278 = vpop.f32.mrb[0].mxu0
        %v2279 = vpop.f32.mrb[0].mxu0
        %v2280 = vpop.f32.mrb[0].mxu0
        %2281 = vdwg.mxu0
        %v2282 = vsel %vm1711, %v2277, -inf
        %2283 = vmax.xlane.f32.xlu0 %v2282
        %v2284 = vpop.xlane.xlu0 %2283
        %v2285 = vsub.f32 %v2277, %v2284
        %v2286 = vmul.f32 %v2285, 1.442695
        %v2287 = vpow.pop %v2286
        %v2288 = vsel %vm1711, %v2287, 0.0
        %2289 = vadd.xlane.f32.xlu0 %v2288
        %v2290 = vpop.xlane.xlu0 %2289
        %v2291 = vlog2.pop %v2290
        %v2292 = vmul.f32 %v2291, 0.6931472
        %v2293 = vadd.f32 %v2292, %v2284
        %v2294 = vsub.f32 %v2277, %v2293
        %s2295 = scalar_lea.vmem %s635, 4 [#allocation23]
        %2296 = vst [vmem:[%s2295] sm:$0xf] %v2294
        %2297 = vmatprep.subr.bf16.mxu0 0
        %2298 = vmatpush1.bf16.msra.mxu0 %v803
        %2299 = vmatprep.subr.bf16.mxu0 0
        %2300 = vmatpush1.bf16.msra.mxu0 %v804
        %2301 = vmatprep.subr.bf16.mxu0 0
        %2302 = vmatpush1.bf16.msra.mxu0 %v805
        %2303 = vmatprep.subr.bf16.mxu0 0
        %2304 = vmatpush1.bf16.msra.mxu0 %v806
        %2305 = vmatprep.subr.bf16.mxu0 0
        %2306 = vmatpush1.bf16.msra.mxu0 %v807
        %2307 = vmatprep.subr.bf16.mxu0 0
        %2308 = vmatpush1.bf16.msra.mxu0 %v808
        %2309 = vmatprep.subr.bf16.mxu0 0
        %2310 = vmatpush1.bf16.msra.mxu0 %v809
        %2311 = vmatprep.subr.bf16.mxu0 0
        %2312 = vmatpush1.bf16.msra.mxu0 %v810
        %2313 = vmatprep.subr.bf16.mxu0 0
        %2314 = vmatpush1.bf16.msra.mxu0 0
        %2315 = vmatprep.subr.bf16.mxu0 0
        %2316 = vmatpush1.bf16.msra.mxu0 0
        %2317 = vmatprep.subr.bf16.mxu0 0
        %2318 = vmatpush1.bf16.msra.mxu0 0
        %2319 = vmatprep.subr.bf16.mxu0 0
        %2320 = vmatpush1.bf16.msra.mxu0 0
        %2321 = vmatprep.subr.bf16.mxu0 0
        %2322 = vmatpush1.bf16.msra.mxu0 0
        %2323 = vmatprep.subr.bf16.mxu0 0
        %2324 = vmatpush1.bf16.msra.mxu0 0
        %2325 = vmatprep.subr.bf16.mxu0 0
        %2326 = vmatpush1.bf16.msra.mxu0 0
        %2327 = vmatprep.subr.bf16.mxu0 0
        %2328 = vmatpush1.bf16.msra.mxu0 0
        %2329 = vmatprep.mubr.bf16.mxu0 0
        %2330 = vmatmul.mubr.bf16.gmra.mrb[0].mxu0 %v2241
        %v2331 = vpop.f32.mrb[0].mxu0
        %v2332 = vadd.f32 %v769, %v2331
        %v2333 = vpop.f32.mrb[0].mxu0
        %v2334 = vpop.f32.mrb[0].mxu0
        %v2335 = vpop.f32.mrb[0].mxu0
        %2336 = vdwg.mxu0
        %v2339 = vunpack.c.l.s4 1966171168
        %v2340 = vunpack.c.0.s8 %v2339
        %v2341 = vlaneseq
        %v2342 = vshrl.u32 %v2341, 7
        %v2343 = vsub.s32 %v2340, %v2342
        %v2344 = vrot.slane %v2332, %v2343
        %v2345 = vcombine.high %v2344, %v2344
        %v2347 = vunpack.c.l.s4 1966171168
        %v2348 = vunpack.c.0.s8 %v2347
        %v2349 = vlaneseq
        %v2350 = vshrl.u32 %v2349, 7
        %v2351 = vsub.s32 %v2348, %v2350
        %v2352 = vrot.slane %v2344, %v2351
        %v2354 = vunpack.c.l.s4 1966171168
        %v2355 = vunpack.c.0.s8 %v2354
        %v2356 = vlaneseq
        %v2357 = vshrl.u32 %v2356, 7
        %v2358 = vsub.s32 %v2355, %v2357
        %v2359 = vrot.slane %v2345, %v2358
        %v2360 = vcombine.high %v2352, %v2352
        %v2361 = vcombine.high %v2359, %v2359
        %v2362 = vlaneseq
        %v2363 = vshrl.u32 %v2362, 7
        %v2364 = vsub.s32 0, %v2363
        %v2365 = vrot.slane %v2352, %v2364
        %v2366 = vlaneseq
        %v2367 = vshrl.u32 %v2366, 7
        %v2368 = vsub.s32 0, %v2367
        %v2369 = vrot.slane %v2359, %v2368
        %v2370 = vlaneseq
        %v2371 = vshrl.u32 %v2370, 7
        %v2372 = vsub.s32 0, %v2371
        %v2373 = vrot.slane %v2360, %v2372
        %v2374 = vlaneseq
        %v2375 = vshrl.u32 %v2374, 7
        %v2376 = vsub.s32 0, %v2375
        %v2377 = vrot.slane %v2361, %v2376
        %v2382 = vadd.f32 %v2365, %v659
        %v2383 = vadd.f32 %v2369, %v660
        %v2384 = vadd.f32 %v2373, %v661
        %v2385 = vadd.f32 %v2377, %v662
        %v2386 = vtanh.pop %v2382
        %v2387 = vtanh.pop %v2383
        %v2388 = vtanh.pop %v2384
        %v2389 = vtanh.pop %v2385
        %v2390 = vmul.f32 %v2386, %v916
        %v2391 = vmul.f32 %v2387, %v916
        %v2392 = vmul.f32 %v2388, %v916
        %v2393 = vmul.f32 %v2389, %v916
        %2394 = vadd.xlane.f32.xlu0 %v2390
        %v2395 = vpop.xlane.xlu0 %2394
        %2396 = vadd.xlane.f32.xlu0 %v2391
        %v2397 = vpop.xlane.xlu0 %2396
        %2398 = vadd.xlane.f32.xlu0 %v2392
        %v2399 = vpop.xlane.xlu0 %2398
        %2400 = vadd.xlane.f32.xlu0 %v2393
        %v2401 = vpop.xlane.xlu0 %2400
        %v2406 = vlaneseq
        %v2407 = vshrl.u32 %v2406, 7
        %v2408 = vsub.s32 %v935, %v2407
        %v2409 = vrot.slane %v2395, %v2408
        %v2410 = vlaneseq
        %v2411 = vshrl.u32 %v2410, 7
        %v2412 = vsub.s32 %v935, %v2411
        %v2413 = vrot.slane %v2397, %v2412
        %v2414 = vlaneseq
        %v2415 = vshrl.u32 %v2414, 7
        %v2416 = vsub.s32 %v935, %v2415
        %v2417 = vrot.slane %v2399, %v2416
        %v2418 = vlaneseq
        %v2419 = vshrl.u32 %v2418, 7
        %v2420 = vsub.s32 %v935, %v2419
        %v2421 = vrot.slane %v2401, %v2420
        %v2422 = vsel %vm952, %v2413, %v2409
        %v2423 = vsel %vm954, %v2417, %v2422
        %v2424 = vsel %vm956, %v2421, %v2423
        %v2426 = vsel %vm959, %v2424, -inf
        %2427 = vmax.xlane.f32.xlu0 %v2426
        %v2428 = vpop.xlane.xlu0 %2427
        %v2430 = vlaneseq
        %v2431 = vshrl.u32 %v2430, 7
        %v2432 = vsub.s32 0, %v2431
        %v2433 = vrot.slane %v2428, %v2432
        %v2434 = vlaneseq
        %v2435 = vshrl.u32 %v2434, 7
        %v2436 = vsub.s32 1, %v2435
        %v2437 = vrot.slane %v2428, %v2436
        %v2438 = vlaneseq
        %v2439 = vshrl.u32 %v2438, 7
        %v2440 = vsub.s32 2, %v2439
        %v2441 = vrot.slane %v2428, %v2440
        %v2442 = vlaneseq
        %v2443 = vshrl.u32 %v2442, 7
        %v2444 = vsub.s32 3, %v2443
        %v2445 = vrot.slane %v2428, %v2444
        %v2450 = vsub.f32 %v2395, %v2433
        %v2451 = vsub.f32 %v2397, %v2437
        %v2452 = vsub.f32 %v2399, %v2441
        %v2453 = vsub.f32 %v2401, %v2445
        %v2454 = vmul.f32 %v2450, 1.442695
        %v2455 = vpow.pop %v2454
        %v2456 = vmul.f32 %v2451, 1.442695
        %v2457 = vpow.pop %v2456
        %v2458 = vmul.f32 %v2452, 1.442695
        %v2459 = vpow.pop %v2458
        %v2460 = vmul.f32 %v2453, 1.442695
        %v2461 = vpow.pop %v2460
        %2466 = vset.pattern.permute.xlu0 0
        %2467 = vperm.xlu0 %2466, %v2455
        %v2468 = vpop.permute.xlu0 %2467
        %2469 = vset.pattern.permute.xlu0 0
        %2470 = vperm.xlu0 %2469, %v2457
        %v2471 = vpop.permute.xlu0 %2470
        %2472 = vset.pattern.permute.xlu0 0
        %2473 = vperm.xlu0 %2472, %v2459
        %v2474 = vpop.permute.xlu0 %2473
        %2475 = vset.pattern.permute.xlu0 0
        %2476 = vperm.xlu0 %2475, %v2461
        %v2477 = vpop.permute.xlu0 %2476
        %v2478 = vlaneseq
        %v2479 = vshrl.u32 %v2478, 7
        %v2480 = vsub.s32 %v935, %v2479
        %v2481 = vrot.slane %v2468, %v2480
        %v2482 = vlaneseq
        %v2483 = vshrl.u32 %v2482, 7
        %v2484 = vsub.s32 %v935, %v2483
        %v2485 = vrot.slane %v2471, %v2484
        %v2486 = vlaneseq
        %v2487 = vshrl.u32 %v2486, 7
        %v2488 = vsub.s32 %v935, %v2487
        %v2489 = vrot.slane %v2474, %v2488
        %v2490 = vlaneseq
        %v2491 = vshrl.u32 %v2490, 7
        %v2492 = vsub.s32 %v935, %v2491
        %v2493 = vrot.slane %v2477, %v2492
        %v2494 = vsel %vm952, %v2485, %v2481
        %v2495 = vsel %vm954, %v2489, %v2494
        %v2496 = vsel %vm956, %v2493, %v2495
        %v2498 = vsel %vm959, %v2496, 0.0
        %2499 = vadd.xlane.f32.xlu0 %v2498
        %v2500 = vpop.xlane.xlu0 %2499
        %v2502 = vlaneseq
        %v2503 = vshrl.u32 %v2502, 7
        %v2504 = vsub.s32 0, %v2503
        %v2505 = vrot.slane %v2500, %v2504
        %v2506 = vlaneseq
        %v2507 = vshrl.u32 %v2506, 7
        %v2508 = vsub.s32 1, %v2507
        %v2509 = vrot.slane %v2500, %v2508
        %v2510 = vlaneseq
        %v2511 = vshrl.u32 %v2510, 7
        %v2512 = vsub.s32 2, %v2511
        %v2513 = vrot.slane %v2500, %v2512
        %v2514 = vlaneseq
        %v2515 = vshrl.u32 %v2514, 7
        %v2516 = vsub.s32 3, %v2515
        %v2517 = vrot.slane %v2500, %v2516
        %v2522 = vrcp.pop %v2505
        %v2523 = vmul.f32 %v2455, %v2522
        %v2524 = vrcp.pop %v2509
        %v2525 = vmul.f32 %v2457, %v2524
        %v2526 = vrcp.pop %v2513
        %v2527 = vmul.f32 %v2459, %v2526
        %v2528 = vrcp.pop %v2517
        %v2529 = vmul.f32 %v2461, %v2528
        %2534 = vset.pattern.permute.xlu0 0
        %2535 = vperm.xlu0 %2534, %v2523
        %v2536 = vpop.permute.xlu0 %2535
        %2537 = vset.pattern.permute.xlu0 0
        %2538 = vperm.xlu0 %2537, %v2525
        %v2539 = vpop.permute.xlu0 %2538
        %2540 = vset.pattern.permute.xlu0 0
        %2541 = vperm.xlu0 %2540, %v2527
        %v2542 = vpop.permute.xlu0 %2541
        %2543 = vset.pattern.permute.xlu0 0
        %2544 = vperm.xlu0 %2543, %v2529
        %v2545 = vpop.permute.xlu0 %2544
        %v2546 = vlaneseq
        %v2547 = vshrl.u32 %v2546, 7
        %v2548 = vsub.s32 %v935, %v2547
        %v2549 = vrot.slane %v2536, %v2548
        %v2550 = vlaneseq
        %v2551 = vshrl.u32 %v2550, 7
        %v2552 = vsub.s32 %v935, %v2551
        %v2553 = vrot.slane %v2539, %v2552
        %v2554 = vlaneseq
        %v2555 = vshrl.u32 %v2554, 7
        %v2556 = vsub.s32 %v935, %v2555
        %v2557 = vrot.slane %v2542, %v2556
        %v2558 = vlaneseq
        %v2559 = vshrl.u32 %v2558, 7
        %v2560 = vsub.s32 %v935, %v2559
        %v2561 = vrot.slane %v2545, %v2560
        %v2562 = vsel %vm952, %v2553, %v2549
        %v2563 = vsel %vm954, %v2557, %v2562
        %v2564 = vsel %vm956, %v2561, %v2563
        %s2566 = scalar_lea.vmem %s642, 8 [#allocation24]
        %2567 = vst.msk [vmem:[%s2566] sm:$0xf] %vm959, %v2564
        %v2572 = vmul.f32 %v2536, %v655
        %v2573 = vmul.f32 %v2539, %v656
        %v2574 = vmul.f32 %v2542, %v657
        %v2575 = vmul.f32 %v2545, %v658
        %v2576 = vrot.slane %v2572, 4
        %v2577 = vadd.f32 %v2572, %v2576
        %v2578 = vrot.slane %v2577, 2
        %v2579 = vadd.f32 %v2577, %v2578
        %v2580 = vrot.slane %v2579, 1
        %v2581 = vadd.f32 %v2579, %v2580
        %v2582 = vrot.slane %v2573, 4
        %v2583 = vadd.f32 %v2573, %v2582
        %v2584 = vrot.slane %v2583, 2
        %v2585 = vadd.f32 %v2583, %v2584
        %v2586 = vrot.slane %v2585, 1
        %v2587 = vadd.f32 %v2585, %v2586
        %v2588 = vrot.slane %v2574, 4
        %v2589 = vadd.f32 %v2574, %v2588
        %v2590 = vrot.slane %v2589, 2
        %v2591 = vadd.f32 %v2589, %v2590
        %v2592 = vrot.slane %v2591, 1
        %v2593 = vadd.f32 %v2591, %v2592
        %v2594 = vrot.slane %v2575, 4
        %v2595 = vadd.f32 %v2575, %v2594
        %v2596 = vrot.slane %v2595, 2
        %v2597 = vadd.f32 %v2595, %v2596
        %v2598 = vrot.slane %v2597, 1
        %v2599 = vadd.f32 %v2597, %v2598
        %s2600 = scalar_lea.vmem %s551, 24 [#allocation3]
        %v2601 = vld [vmem:[%s2600] sm:$0xff]
        %v2602 = vld [vmem:[%s2600 + $0x8] sm:$0xf]
        %v2603 = vpack.c.bf16 %v2581, %v2581
        %v2604 = vpack.c.bf16 %v2587, %v2587
        %v2605 = vpack.c.bf16 %v2593, %v2593
        %v2606 = vpack.c.bf16 %v2599, %v2599
        %v2611 = vunpack.c.l.b16 %v2603
        %v2612 = vunpack.c.l.b16 %v2604
        %v2613 = vunpack.c.l.b16 %v2605
        %v2614 = vunpack.c.l.b16 %v2606
        %v2615 = vsel %vm952, %v2612, %v2611
        %v2616 = vsel %vm954, %v2613, %v2615
        %v2617 = vsel %vm956, %v2614, %v2616
        %v2618 = vpack.c.b16 %v2617, %v2617
        %2620 = vmatprep.subr.bf16.mxu0 %v1233
        %2621 = vmatpush1.bf16.msra.mxu0 %v1232
        %2622 = vmatprep.subr.bf16.mxu0 %v1236
        %2623 = vmatpush1.bf16.msra.mxu0 %v1235
        %2624 = vmatprep.subr.bf16.mxu0 %v1239
        %2625 = vmatpush1.bf16.msra.mxu0 %v1238
        %2626 = vmatprep.subr.bf16.mxu0 %v1242
        %2627 = vmatpush1.bf16.msra.mxu0 %v1241
        %2628 = vmatprep.subr.bf16.mxu0 %v1245
        %2629 = vmatpush1.bf16.msra.mxu0 %v1244
        %2630 = vmatprep.subr.bf16.mxu0 %v1248
        %2631 = vmatpush1.bf16.msra.mxu0 %v1247
        %2632 = vmatprep.subr.bf16.mxu0 %v1251
        %2633 = vmatpush1.bf16.msra.mxu0 %v1250
        %2634 = vmatprep.subr.bf16.mxu0 %v1254
        %2635 = vmatpush1.bf16.msra.mxu0 %v1253
        %2636 = vmatprep.subr.bf16.mxu0 0
        %2637 = vmatpush1.bf16.msra.mxu0 0
        %2638 = vmatprep.subr.bf16.mxu0 0
        %2639 = vmatpush1.bf16.msra.mxu0 0
        %2640 = vmatprep.subr.bf16.mxu0 0
        %2641 = vmatpush1.bf16.msra.mxu0 0
        %2642 = vmatprep.subr.bf16.mxu0 0
        %2643 = vmatpush1.bf16.msra.mxu0 0
        %2644 = vmatprep.subr.bf16.mxu0 0
        %2645 = vmatpush1.bf16.msra.mxu0 0
        %2646 = vmatprep.subr.bf16.mxu0 0
        %2647 = vmatpush1.bf16.msra.mxu0 0
        %2648 = vmatprep.subr.bf16.mxu0 0
        %2649 = vmatpush1.bf16.msra.mxu0 0
        %2650 = vmatprep.subr.bf16.mxu0 0
        %2651 = vmatpush1.bf16.msra.mxu0 0
        %2652 = vmatprep.mubr.bf16.mxu0 0
        %2653 = vmatmul.mubr.bf16.gmra.mrb[0].mxu0 %v2618
        %v2654 = vpop.f32.mrb[0].mxu0
        %v2655 = vadd.f32 0.0, %v2654
        %v2656 = vpop.f32.mrb[0].mxu0
        %v2657 = vadd.f32 0.0, %v2656
        %v2658 = vpop.f32.mrb[0].mxu0
        %v2659 = vpop.f32.mrb[0].mxu0
        %2660 = vdwg.mxu0
        %2661 = vmatprep.subr.bf16.mxu0 0
        %2662 = vmatpush1.bf16.msra.mxu0 %v1234
        %2663 = vmatprep.subr.bf16.mxu0 0
        %2664 = vmatpush1.bf16.msra.mxu0 %v1237
        %2665 = vmatprep.subr.bf16.mxu0 0
        %2666 = vmatpush1.bf16.msra.mxu0 %v1240
        %2667 = vmatprep.subr.bf16.mxu0 0
        %2668 = vmatpush1.bf16.msra.mxu0 %v1243
        %2669 = vmatprep.subr.bf16.mxu0 0
        %2670 = vmatpush1.bf16.msra.mxu0 %v1246
        %2671 = vmatprep.subr.bf16.mxu0 0
        %2672 = vmatpush1.bf16.msra.mxu0 %v1249
        %2673 = vmatprep.subr.bf16.mxu0 0
        %2674 = vmatpush1.bf16.msra.mxu0 %v1252
        %2675 = vmatprep.subr.bf16.mxu0 0
        %2676 = vmatpush1.bf16.msra.mxu0 %v1255
        %2677 = vmatprep.subr.bf16.mxu0 0
        %2678 = vmatpush1.bf16.msra.mxu0 0
        %2679 = vmatprep.subr.bf16.mxu0 0
        %2680 = vmatpush1.bf16.msra.mxu0 0
        %2681 = vmatprep.subr.bf16.mxu0 0
        %2682 = vmatpush1.bf16.msra.mxu0 0
        %2683 = vmatprep.subr.bf16.mxu0 0
        %2684 = vmatpush1.bf16.msra.mxu0 0
        %2685 = vmatprep.subr.bf16.mxu0 0
        %2686 = vmatpush1.bf16.msra.mxu0 0
        %2687 = vmatprep.subr.bf16.mxu0 0
        %2688 = vmatpush1.bf16.msra.mxu0 0
        %2689 = vmatprep.subr.bf16.mxu0 0
        %2690 = vmatpush1.bf16.msra.mxu0 0
        %2691 = vmatprep.subr.bf16.mxu0 0
        %2692 = vmatpush1.bf16.msra.mxu0 0
        %2693 = vmatprep.mubr.bf16.mxu0 0
        %2694 = vmatmul.mubr.bf16.gmra.mrb[0].mxu0 %v2618
        %v2695 = vpop.f32.mrb[0].mxu0
        %v2696 = vadd.f32 0.0, %v2695
        %v2697 = vpop.f32.mrb[0].mxu0
        %v2698 = vpop.f32.mrb[0].mxu0
        %v2699 = vpop.f32.mrb[0].mxu0
        %2700 = vdwg.mxu0
        %v2703 = vcombine.low %v2655, %v2657
        %v2705 = vadd.f32 %v2601, %v2703
        %v2706 = vadd.f32 %v2602, %v2696
        %2707 = vmatprep.subr.bf16.mxu0 %v1464
        %2708 = vmatpush1.bf16.msra.mxu0 %v1463
        %2709 = vmatprep.subr.bf16.mxu0 %v1467
        %2710 = vmatpush1.bf16.msra.mxu0 %v1466
        %2711 = vmatprep.subr.bf16.mxu0 %v1470
        %2712 = vmatpush1.bf16.msra.mxu0 %v1469
        %2713 = vmatprep.subr.bf16.mxu0 %v1473
        %2714 = vmatpush1.bf16.msra.mxu0 %v1472
        %2715 = vmatprep.subr.bf16.mxu0 %v1476
        %2716 = vmatpush1.bf16.msra.mxu0 %v1475
        %2717 = vmatprep.subr.bf16.mxu0 %v1479
        %2718 = vmatpush1.bf16.msra.mxu0 %v1478
        %2719 = vmatprep.subr.bf16.mxu0 %v1482
        %2720 = vmatpush1.bf16.msra.mxu0 %v1481
        %2721 = vmatprep.subr.bf16.mxu0 %v1485
        %2722 = vmatpush1.bf16.msra.mxu0 %v1484
        %2723 = vmatprep.subr.bf16.mxu0 0
        %2724 = vmatpush1.bf16.msra.mxu0 0
        %2725 = vmatprep.subr.bf16.mxu0 0
        %2726 = vmatpush1.bf16.msra.mxu0 0
        %2727 = vmatprep.subr.bf16.mxu0 0
        %2728 = vmatpush1.bf16.msra.mxu0 0
        %2729 = vmatprep.subr.bf16.mxu0 0
        %2730 = vmatpush1.bf16.msra.mxu0 0
        %2731 = vmatprep.subr.bf16.mxu0 0
        %2732 = vmatpush1.bf16.msra.mxu0 0
        %2733 = vmatprep.subr.bf16.mxu0 0
        %2734 = vmatpush1.bf16.msra.mxu0 0
        %2735 = vmatprep.subr.bf16.mxu0 0
        %2736 = vmatpush1.bf16.msra.mxu0 0
        %2737 = vmatprep.subr.bf16.mxu0 0
        %2738 = vmatpush1.bf16.msra.mxu0 0
        %2739 = vmatprep.mubr.bf16.mxu0 0
        %2740 = vmatmul.mubr.bf16.gmra.mrb[0].mxu0 %v2241
        %v2741 = vpop.f32.mrb[0].mxu0
        %v2742 = vadd.f32 %v1371, %v2741
        %v2743 = vpop.f32.mrb[0].mxu0
        %v2744 = vadd.f32 %v1375, %v2743
        %v2745 = vpop.f32.mrb[0].mxu0
        %v2746 = vpop.f32.mrb[0].mxu0
        %2747 = vdwg.mxu0
        %2748 = vmatprep.subr.bf16.mxu0 0
        %2749 = vmatpush1.bf16.msra.mxu0 %v1465
        %2750 = vmatprep.subr.bf16.mxu0 0
        %2751 = vmatpush1.bf16.msra.mxu0 %v1468
        %2752 = vmatprep.subr.bf16.mxu0 0
        %2753 = vmatpush1.bf16.msra.mxu0 %v1471
        %2754 = vmatprep.subr.bf16.mxu0 0
        %2755 = vmatpush1.bf16.msra.mxu0 %v1474
        %2756 = vmatprep.subr.bf16.mxu0 0
        %2757 = vmatpush1.bf16.msra.mxu0 %v1477
        %2758 = vmatprep.subr.bf16.mxu0 0
        %2759 = vmatpush1.bf16.msra.mxu0 %v1480
        %2760 = vmatprep.subr.bf16.mxu0 0
        %2761 = vmatpush1.bf16.msra.mxu0 %v1483
        %2762 = vmatprep.subr.bf16.mxu0 0
        %2763 = vmatpush1.bf16.msra.mxu0 %v1486
        %2764 = vmatprep.subr.bf16.mxu0 0
        %2765 = vmatpush1.bf16.msra.mxu0 0
        %2766 = vmatprep.subr.bf16.mxu0 0
        %2767 = vmatpush1.bf16.msra.mxu0 0
        %2768 = vmatprep.subr.bf16.mxu0 0
        %2769 = vmatpush1.bf16.msra.mxu0 0
        %2770 = vmatprep.subr.bf16.mxu0 0
        %2771 = vmatpush1.bf16.msra.mxu0 0
        %2772 = vmatprep.subr.bf16.mxu0 0
        %2773 = vmatpush1.bf16.msra.mxu0 0
        %2774 = vmatprep.subr.bf16.mxu0 0
        %2775 = vmatpush1.bf16.msra.mxu0 0
        %2776 = vmatprep.subr.bf16.mxu0 0
        %2777 = vmatpush1.bf16.msra.mxu0 0
        %2778 = vmatprep.subr.bf16.mxu0 0
        %2779 = vmatpush1.bf16.msra.mxu0 0
        %2780 = vmatprep.mubr.bf16.mxu0 0
        %2781 = vmatmul.mubr.bf16.gmra.mrb[0].mxu0 %v2241
        %v2782 = vpop.f32.mrb[0].mxu0
        %v2783 = vadd.f32 %v1379, %v2782
        %v2784 = vpop.f32.mrb[0].mxu0
        %v2785 = vpop.f32.mrb[0].mxu0
        %v2786 = vpop.f32.mrb[0].mxu0
        %2787 = vdwg.mxu0
        %v2788 = vadd.f32 %v2705, %v2742
        %v2789 = vxor.u32 %v2788, 2147483648
        %v2790 = vmul.f32 %v2789, 1.442695
        %v2791 = vpow.pop %v2790
        %v2792 = vadd.f32 %v2791, 1.0
        %v2793 = vrcp.pop %v2792
        %v2794 = vmul.f32 1.0, %v2793
        %v2796 = vrot.slane %v2705, 4
        %v2798 = vadd.f32 %v2796, %v2744
        %v2799 = vxor.u32 %v2798, 2147483648
        %v2800 = vmul.f32 %v2799, 1.442695
        %v2801 = vpow.pop %v2800
        %v2802 = vadd.f32 %v2801, 1.0
        %v2803 = vrcp.pop %v2802
        %v2804 = vmul.f32 1.0, %v2803
        %v2805 = vmul.f32 %v2794, %v2783
        %v2806 = vadd.f32 %v2706, %v2805
        %v2807 = vtanh.pop %v2806
        %v2808 = vsub.f32 1.0, %v2804
        %v2809 = vmul.f32 %v2808, %v2807
        %v2810 = vmul.f32 %v2804, %v2240
        %v2811 = vadd.f32 %v2809, %v2810
        %v2812 = vpack.c.bf16 %v2811, %v2811
        %2813 = vmatprep.subr.bf16.mxu0 0
        %2814 = vmatpush1.bf16.msra.mxu0 %v1655
        %2815 = vmatprep.subr.bf16.mxu0 0
        %2816 = vmatpush1.bf16.msra.mxu0 %v1656
        %2817 = vmatprep.subr.bf16.mxu0 0
        %2818 = vmatpush1.bf16.msra.mxu0 %v1657
        %2819 = vmatprep.subr.bf16.mxu0 0
        %2820 = vmatpush1.bf16.msra.mxu0 %v1658
        %2821 = vmatprep.subr.bf16.mxu0 0
        %2822 = vmatpush1.bf16.msra.mxu0 %v1659
        %2823 = vmatprep.subr.bf16.mxu0 0
        %2824 = vmatpush1.bf16.msra.mxu0 %v1660
        %2825 = vmatprep.subr.bf16.mxu0 0
        %2826 = vmatpush1.bf16.msra.mxu0 %v1661
        %2827 = vmatprep.subr.bf16.mxu0 0
        %2828 = vmatpush1.bf16.msra.mxu0 %v1662
        %2829 = vmatprep.subr.bf16.mxu0 0
        %2830 = vmatpush1.bf16.msra.mxu0 0
        %2831 = vmatprep.subr.bf16.mxu0 0
        %2832 = vmatpush1.bf16.msra.mxu0 0
        %2833 = vmatprep.subr.bf16.mxu0 0
        %2834 = vmatpush1.bf16.msra.mxu0 0
        %2835 = vmatprep.subr.bf16.mxu0 0
        %2836 = vmatpush1.bf16.msra.mxu0 0
        %2837 = vmatprep.subr.bf16.mxu0 0
        %2838 = vmatpush1.bf16.msra.mxu0 0
        %2839 = vmatprep.subr.bf16.mxu0 0
        %2840 = vmatpush1.bf16.msra.mxu0 0
        %2841 = vmatprep.subr.bf16.mxu0 0
        %2842 = vmatpush1.bf16.msra.mxu0 0
        %2843 = vmatprep.subr.bf16.mxu0 0
        %2844 = vmatpush1.bf16.msra.mxu0 0
        %2845 = vmatprep.mubr.bf16.mxu0 0
        %2846 = vmatmul.mubr.bf16.gmra.mrb[0].mxu0 %v2812
        %v2847 = vpop.f32.mrb[0].mxu0
        %v2848 = vadd.f32 %v1621, %v2847
        %v2849 = vpop.f32.mrb[0].mxu0
        %v2850 = vpop.f32.mrb[0].mxu0
        %v2851 = vpop.f32.mrb[0].mxu0
        %2852 = vdwg.mxu0
        %v2853 = vsel %vm1711, %v2848, -inf
        %2854 = vmax.xlane.f32.xlu0 %v2853
        %v2855 = vpop.xlane.xlu0 %2854
        %v2856 = vsub.f32 %v2848, %v2855
        %v2857 = vmul.f32 %v2856, 1.442695
        %v2858 = vpow.pop %v2857
        %v2859 = vsel %vm1711, %v2858, 0.0
        %2860 = vadd.xlane.f32.xlu0 %v2859
        %v2861 = vpop.xlane.xlu0 %2860
        %v2862 = vlog2.pop %v2861
        %v2863 = vmul.f32 %v2862, 0.6931472
        %v2864 = vadd.f32 %v2863, %v2855
        %v2865 = vsub.f32 %v2848, %v2864
        %s2866 = scalar_lea.vmem %s635, 8 [#allocation23]
        %2867 = vst [vmem:[%s2866] sm:$0xf] %v2865
        %2868 = vmatprep.subr.bf16.mxu0 0
        %2869 = vmatpush1.bf16.msra.mxu0 %v803
        %2870 = vmatprep.subr.bf16.mxu0 0
        %2871 = vmatpush1.bf16.msra.mxu0 %v804
        %2872 = vmatprep.subr.bf16.mxu0 0
        %2873 = vmatpush1.bf16.msra.mxu0 %v805
        %2874 = vmatprep.subr.bf16.mxu0 0
        %2875 = vmatpush1.bf16.msra.mxu0 %v806
        %2876 = vmatprep.subr.bf16.mxu0 0
        %2877 = vmatpush1.bf16.msra.mxu0 %v807
        %2878 = vmatprep.subr.bf16.mxu0 0
        %2879 = vmatpush1.bf16.msra.mxu0 %v808
        %2880 = vmatprep.subr.bf16.mxu0 0
        %2881 = vmatpush1.bf16.msra.mxu0 %v809
        %2882 = vmatprep.subr.bf16.mxu0 0
        %2883 = vmatpush1.bf16.msra.mxu0 %v810
        %2884 = vmatprep.subr.bf16.mxu0 0
        %2885 = vmatpush1.bf16.msra.mxu0 0
        %2886 = vmatprep.subr.bf16.mxu0 0
        %2887 = vmatpush1.bf16.msra.mxu0 0
        %2888 = vmatprep.subr.bf16.mxu0 0
        %2889 = vmatpush1.bf16.msra.mxu0 0
        %2890 = vmatprep.subr.bf16.mxu0 0
        %2891 = vmatpush1.bf16.msra.mxu0 0
        %2892 = vmatprep.subr.bf16.mxu0 0
        %2893 = vmatpush1.bf16.msra.mxu0 0
        %2894 = vmatprep.subr.bf16.mxu0 0
        %2895 = vmatpush1.bf16.msra.mxu0 0
        %2896 = vmatprep.subr.bf16.mxu0 0
        %2897 = vmatpush1.bf16.msra.mxu0 0
        %2898 = vmatprep.subr.bf16.mxu0 0
        %2899 = vmatpush1.bf16.msra.mxu0 0
        %2900 = vmatprep.mubr.bf16.mxu0 0
        %2901 = vmatmul.mubr.bf16.gmra.mrb[0].mxu0 %v2812
        %v2902 = vpop.f32.mrb[0].mxu0
        %v2903 = vadd.f32 %v769, %v2902
        %v2904 = vpop.f32.mrb[0].mxu0
        %v2905 = vpop.f32.mrb[0].mxu0
        %v2906 = vpop.f32.mrb[0].mxu0
        %2907 = vdwg.mxu0
        %v2910 = vunpack.c.l.s4 1966171168
        %v2911 = vunpack.c.0.s8 %v2910
        %v2912 = vlaneseq
        %v2913 = vshrl.u32 %v2912, 7
        %v2914 = vsub.s32 %v2911, %v2913
        %v2915 = vrot.slane %v2903, %v2914
        %v2916 = vcombine.high %v2915, %v2915
        %v2918 = vunpack.c.l.s4 1966171168
        %v2919 = vunpack.c.0.s8 %v2918
        %v2920 = vlaneseq
        %v2921 = vshrl.u32 %v2920, 7
        %v2922 = vsub.s32 %v2919, %v2921
        %v2923 = vrot.slane %v2915, %v2922
        %v2925 = vunpack.c.l.s4 1966171168
        %v2926 = vunpack.c.0.s8 %v2925
        %v2927 = vlaneseq
        %v2928 = vshrl.u32 %v2927, 7
        %v2929 = vsub.s32 %v2926, %v2928
        %v2930 = vrot.slane %v2916, %v2929
        %v2931 = vcombine.high %v2923, %v2923
        %v2932 = vcombine.high %v2930, %v2930
        %v2933 = vlaneseq
        %v2934 = vshrl.u32 %v2933, 7
        %v2935 = vsub.s32 0, %v2934
        %v2936 = vrot.slane %v2923, %v2935
        %v2937 = vlaneseq
        %v2938 = vshrl.u32 %v2937, 7
        %v2939 = vsub.s32 0, %v2938
        %v2940 = vrot.slane %v2930, %v2939
        %v2941 = vlaneseq
        %v2942 = vshrl.u32 %v2941, 7
        %v2943 = vsub.s32 0, %v2942
        %v2944 = vrot.slane %v2931, %v2943
        %v2945 = vlaneseq
        %v2946 = vshrl.u32 %v2945, 7
        %v2947 = vsub.s32 0, %v2946
        %v2948 = vrot.slane %v2932, %v2947
        %v2953 = vadd.f32 %v2936, %v659
        %v2954 = vadd.f32 %v2940, %v660
        %v2955 = vadd.f32 %v2944, %v661
        %v2956 = vadd.f32 %v2948, %v662
        %v2957 = vtanh.pop %v2953
        %v2958 = vtanh.pop %v2954
        %v2959 = vtanh.pop %v2955
        %v2960 = vtanh.pop %v2956
        %v2961 = vmul.f32 %v2957, %v916
        %v2962 = vmul.f32 %v2958, %v916
        %v2963 = vmul.f32 %v2959, %v916
        %v2964 = vmul.f32 %v2960, %v916
        %2965 = vadd.xlane.f32.xlu0 %v2961
        %v2966 = vpop.xlane.xlu0 %2965
        %2967 = vadd.xlane.f32.xlu0 %v2962
        %v2968 = vpop.xlane.xlu0 %2967
        %2969 = vadd.xlane.f32.xlu0 %v2963
        %v2970 = vpop.xlane.xlu0 %2969
        %2971 = vadd.xlane.f32.xlu0 %v2964
        %v2972 = vpop.xlane.xlu0 %2971
        %v2977 = vlaneseq
        %v2978 = vshrl.u32 %v2977, 7
        %v2979 = vsub.s32 %v935, %v2978
        %v2980 = vrot.slane %v2966, %v2979
        %v2981 = vlaneseq
        %v2982 = vshrl.u32 %v2981, 7
        %v2983 = vsub.s32 %v935, %v2982
        %v2984 = vrot.slane %v2968, %v2983
        %v2985 = vlaneseq
        %v2986 = vshrl.u32 %v2985, 7
        %v2987 = vsub.s32 %v935, %v2986
        %v2988 = vrot.slane %v2970, %v2987
        %v2989 = vlaneseq
        %v2990 = vshrl.u32 %v2989, 7
        %v2991 = vsub.s32 %v935, %v2990
        %v2992 = vrot.slane %v2972, %v2991
        %v2993 = vsel %vm952, %v2984, %v2980
        %v2994 = vsel %vm954, %v2988, %v2993
        %v2995 = vsel %vm956, %v2992, %v2994
        %v2997 = vsel %vm959, %v2995, -inf
        %2998 = vmax.xlane.f32.xlu0 %v2997
        %v2999 = vpop.xlane.xlu0 %2998
        %v3001 = vlaneseq
        %v3002 = vshrl.u32 %v3001, 7
        %v3003 = vsub.s32 0, %v3002
        %v3004 = vrot.slane %v2999, %v3003
        %v3005 = vlaneseq
        %v3006 = vshrl.u32 %v3005, 7
        %v3007 = vsub.s32 1, %v3006
        %v3008 = vrot.slane %v2999, %v3007
        %v3009 = vlaneseq
        %v3010 = vshrl.u32 %v3009, 7
        %v3011 = vsub.s32 2, %v3010
        %v3012 = vrot.slane %v2999, %v3011
        %v3013 = vlaneseq
        %v3014 = vshrl.u32 %v3013, 7
        %v3015 = vsub.s32 3, %v3014
        %v3016 = vrot.slane %v2999, %v3015
        %v3021 = vsub.f32 %v2966, %v3004
        %v3022 = vsub.f32 %v2968, %v3008
        %v3023 = vsub.f32 %v2970, %v3012
        %v3024 = vsub.f32 %v2972, %v3016
        %v3025 = vmul.f32 %v3021, 1.442695
        %v3026 = vpow.pop %v3025
        %v3027 = vmul.f32 %v3022, 1.442695
        %v3028 = vpow.pop %v3027
        %v3029 = vmul.f32 %v3023, 1.442695
        %v3030 = vpow.pop %v3029
        %v3031 = vmul.f32 %v3024, 1.442695
        %v3032 = vpow.pop %v3031
        %3037 = vset.pattern.permute.xlu0 0
        %3038 = vperm.xlu0 %3037, %v3026
        %v3039 = vpop.permute.xlu0 %3038
        %3040 = vset.pattern.permute.xlu0 0
        %3041 = vperm.xlu0 %3040, %v3028
        %v3042 = vpop.permute.xlu0 %3041
        %3043 = vset.pattern.permute.xlu0 0
        %3044 = vperm.xlu0 %3043, %v3030
        %v3045 = vpop.permute.xlu0 %3044
        %3046 = vset.pattern.permute.xlu0 0
        %3047 = vperm.xlu0 %3046, %v3032
        %v3048 = vpop.permute.xlu0 %3047
        %v3049 = vlaneseq
        %v3050 = vshrl.u32 %v3049, 7
        %v3051 = vsub.s32 %v935, %v3050
        %v3052 = vrot.slane %v3039, %v3051
        %v3053 = vlaneseq
        %v3054 = vshrl.u32 %v3053, 7
        %v3055 = vsub.s32 %v935, %v3054
        %v3056 = vrot.slane %v3042, %v3055
        %v3057 = vlaneseq
        %v3058 = vshrl.u32 %v3057, 7
        %v3059 = vsub.s32 %v935, %v3058
        %v3060 = vrot.slane %v3045, %v3059
        %v3061 = vlaneseq
        %v3062 = vshrl.u32 %v3061, 7
        %v3063 = vsub.s32 %v935, %v3062
        %v3064 = vrot.slane %v3048, %v3063
        %v3065 = vsel %vm952, %v3056, %v3052
        %v3066 = vsel %vm954, %v3060, %v3065
        %v3067 = vsel %vm956, %v3064, %v3066
        %v3069 = vsel %vm959, %v3067, 0.0
        %3070 = vadd.xlane.f32.xlu0 %v3069
        %v3071 = vpop.xlane.xlu0 %3070
        %v3073 = vlaneseq
        %v3074 = vshrl.u32 %v3073, 7
        %v3075 = vsub.s32 0, %v3074
        %v3076 = vrot.slane %v3071, %v3075
        %v3077 = vlaneseq
        %v3078 = vshrl.u32 %v3077, 7
        %v3079 = vsub.s32 1, %v3078
        %v3080 = vrot.slane %v3071, %v3079
        %v3081 = vlaneseq
        %v3082 = vshrl.u32 %v3081, 7
        %v3083 = vsub.s32 2, %v3082
        %v3084 = vrot.slane %v3071, %v3083
        %v3085 = vlaneseq
        %v3086 = vshrl.u32 %v3085, 7
        %v3087 = vsub.s32 3, %v3086
        %v3088 = vrot.slane %v3071, %v3087
        %v3093 = vrcp.pop %v3076
        %v3094 = vmul.f32 %v3026, %v3093
        %v3095 = vrcp.pop %v3080
        %v3096 = vmul.f32 %v3028, %v3095
        %v3097 = vrcp.pop %v3084
        %v3098 = vmul.f32 %v3030, %v3097
        %v3099 = vrcp.pop %v3088
        %v3100 = vmul.f32 %v3032, %v3099
        %3105 = vset.pattern.permute.xlu0 0
        %3106 = vperm.xlu0 %3105, %v3094
        %v3107 = vpop.permute.xlu0 %3106
        %3108 = vset.pattern.permute.xlu0 0
        %3109 = vperm.xlu0 %3108, %v3096
        %v3110 = vpop.permute.xlu0 %3109
        %3111 = vset.pattern.permute.xlu0 0
        %3112 = vperm.xlu0 %3111, %v3098
        %v3113 = vpop.permute.xlu0 %3112
        %3114 = vset.pattern.permute.xlu0 0
        %3115 = vperm.xlu0 %3114, %v3100
        %v3116 = vpop.permute.xlu0 %3115
        %v3117 = vlaneseq
        %v3118 = vshrl.u32 %v3117, 7
        %v3119 = vsub.s32 %v935, %v3118
        %v3120 = vrot.slane %v3107, %v3119
        %v3121 = vlaneseq
        %v3122 = vshrl.u32 %v3121, 7
        %v3123 = vsub.s32 %v935, %v3122
        %v3124 = vrot.slane %v3110, %v3123
        %v3125 = vlaneseq
        %v3126 = vshrl.u32 %v3125, 7
        %v3127 = vsub.s32 %v935, %v3126
        %v3128 = vrot.slane %v3113, %v3127
        %v3129 = vlaneseq
        %v3130 = vshrl.u32 %v3129, 7
        %v3131 = vsub.s32 %v935, %v3130
        %v3132 = vrot.slane %v3116, %v3131
        %v3133 = vsel %vm952, %v3124, %v3120
        %v3134 = vsel %vm954, %v3128, %v3133
        %v3135 = vsel %vm956, %v3132, %v3134
        %s3137 = scalar_lea.vmem %s642, 12 [#allocation24]
        %3138 = vst.msk [vmem:[%s3137] sm:$0xf] %vm959, %v3135
        %v3143 = vmul.f32 %v3107, %v655
        %v3144 = vmul.f32 %v3110, %v656
        %v3145 = vmul.f32 %v3113, %v657
        %v3146 = vmul.f32 %v3116, %v658
        %v3147 = vrot.slane %v3143, 4
        %v3148 = vadd.f32 %v3143, %v3147
        %v3149 = vrot.slane %v3148, 2
        %v3150 = vadd.f32 %v3148, %v3149
        %v3151 = vrot.slane %v3150, 1
        %v3152 = vadd.f32 %v3150, %v3151
        %v3153 = vrot.slane %v3144, 4
        %v3154 = vadd.f32 %v3144, %v3153
        %v3155 = vrot.slane %v3154, 2
        %v3156 = vadd.f32 %v3154, %v3155
        %v3157 = vrot.slane %v3156, 1
        %v3158 = vadd.f32 %v3156, %v3157
        %v3159 = vrot.slane %v3145, 4
        %v3160 = vadd.f32 %v3145, %v3159
        %v3161 = vrot.slane %v3160, 2
        %v3162 = vadd.f32 %v3160, %v3161
        %v3163 = vrot.slane %v3162, 1
        %v3164 = vadd.f32 %v3162, %v3163
        %v3165 = vrot.slane %v3146, 4
        %v3166 = vadd.f32 %v3146, %v3165
        %v3167 = vrot.slane %v3166, 2
        %v3168 = vadd.f32 %v3166, %v3167
        %v3169 = vrot.slane %v3168, 1
        %v3170 = vadd.f32 %v3168, %v3169
        %s3171 = scalar_lea.vmem %s551, 36 [#allocation3]
        %v3172 = vld [vmem:[%s3171] sm:$0xff]
        %v3173 = vld [vmem:[%s3171 + $0x8] sm:$0xf]
        %v3174 = vpack.c.bf16 %v3152, %v3152
        %v3175 = vpack.c.bf16 %v3158, %v3158
        %v3176 = vpack.c.bf16 %v3164, %v3164
        %v3177 = vpack.c.bf16 %v3170, %v3170
        %v3182 = vunpack.c.l.b16 %v3174
        %v3183 = vunpack.c.l.b16 %v3175
        %v3184 = vunpack.c.l.b16 %v3176
        %v3185 = vunpack.c.l.b16 %v3177
        %v3186 = vsel %vm952, %v3183, %v3182
        %v3187 = vsel %vm954, %v3184, %v3186
        %v3188 = vsel %vm956, %v3185, %v3187
        %v3189 = vpack.c.b16 %v3188, %v3188
        %3191 = vmatprep.subr.bf16.mxu0 %v1233
        %3192 = vmatpush1.bf16.msra.mxu0 %v1232
        %3193 = vmatprep.subr.bf16.mxu0 %v1236
        %3194 = vmatpush1.bf16.msra.mxu0 %v1235
        %3195 = vmatprep.subr.bf16.mxu0 %v1239
        %3196 = vmatpush1.bf16.msra.mxu0 %v1238
        %3197 = vmatprep.subr.bf16.mxu0 %v1242
        %3198 = vmatpush1.bf16.msra.mxu0 %v1241
        %3199 = vmatprep.subr.bf16.mxu0 %v1245
        %3200 = vmatpush1.bf16.msra.mxu0 %v1244
        %3201 = vmatprep.subr.bf16.mxu0 %v1248
        %3202 = vmatpush1.bf16.msra.mxu0 %v1247
        %3203 = vmatprep.subr.bf16.mxu0 %v1251
        %3204 = vmatpush1.bf16.msra.mxu0 %v1250
        %3205 = vmatprep.subr.bf16.mxu0 %v1254
        %3206 = vmatpush1.bf16.msra.mxu0 %v1253
        %3207 = vmatprep.subr.bf16.mxu0 0
        %3208 = vmatpush1.bf16.msra.mxu0 0
        %3209 = vmatprep.subr.bf16.mxu0 0
        %3210 = vmatpush1.bf16.msra.mxu0 0
        %3211 = vmatprep.subr.bf16.mxu0 0
        %3212 = vmatpush1.bf16.msra.mxu0 0
        %3213 = vmatprep.subr.bf16.mxu0 0
        %3214 = vmatpush1.bf16.msra.mxu0 0
        %3215 = vmatprep.subr.bf16.mxu0 0
        %3216 = vmatpush1.bf16.msra.mxu0 0
        %3217 = vmatprep.subr.bf16.mxu0 0
        %3218 = vmatpush1.bf16.msra.mxu0 0
        %3219 = vmatprep.subr.bf16.mxu0 0
        %3220 = vmatpush1.bf16.msra.mxu0 0
        %3221 = vmatprep.subr.bf16.mxu0 0
        %3222 = vmatpush1.bf16.msra.mxu0 0
        %3223 = vmatprep.mubr.bf16.mxu0 0
        %3224 = vmatmul.mubr.bf16.gmra.mrb[0].mxu0 %v3189
        %v3225 = vpop.f32.mrb[0].mxu0
        %v3226 = vadd.f32 0.0, %v3225
        %v3227 = vpop.f32.mrb[0].mxu0
        %v3228 = vadd.f32 0.0, %v3227
        %v3229 = vpop.f32.mrb[0].mxu0
        %v3230 = vpop.f32.mrb[0].mxu0
        %3231 = vdwg.mxu0
        %3232 = vmatprep.subr.bf16.mxu0 0
        %3233 = vmatpush1.bf16.msra.mxu0 %v1234
        %3234 = vmatprep.subr.bf16.mxu0 0
        %3235 = vmatpush1.bf16.msra.mxu0 %v1237
        %3236 = vmatprep.subr.bf16.mxu0 0
        %3237 = vmatpush1.bf16.msra.mxu0 %v1240
        %3238 = vmatprep.subr.bf16.mxu0 0
        %3239 = vmatpush1.bf16.msra.mxu0 %v1243
        %3240 = vmatprep.subr.bf16.mxu0 0
        %3241 = vmatpush1.bf16.msra.mxu0 %v1246
        %3242 = vmatprep.subr.bf16.mxu0 0
        %3243 = vmatpush1.bf16.msra.mxu0 %v1249
        %3244 = vmatprep.subr.bf16.mxu0 0
        %3245 = vmatpush1.bf16.msra.mxu0 %v1252
        %3246 = vmatprep.subr.bf16.mxu0 0
        %3247 = vmatpush1.bf16.msra.mxu0 %v1255
        %3248 = vmatprep.subr.bf16.mxu0 0
        %3249 = vmatpush1.bf16.msra.mxu0 0
        %3250 = vmatprep.subr.bf16.mxu0 0
        %3251 = vmatpush1.bf16.msra.mxu0 0
        %3252 = vmatprep.subr.bf16.mxu0 0
        %3253 = vmatpush1.bf16.msra.mxu0 0
        %3254 = vmatprep.subr.bf16.mxu0 0
        %3255 = vmatpush1.bf16.msra.mxu0 0
        %3256 = vmatprep.subr.bf16.mxu0 0
        %3257 = vmatpush1.bf16.msra.mxu0 0
        %3258 = vmatprep.subr.bf16.mxu0 0
        %3259 = vmatpush1.bf16.msra.mxu0 0
        %3260 = vmatprep.subr.bf16.mxu0 0
        %3261 = vmatpush1.bf16.msra.mxu0 0
        %3262 = vmatprep.subr.bf16.mxu0 0
        %3263 = vmatpush1.bf16.msra.mxu0 0
        %3264 = vmatprep.mubr.bf16.mxu0 0
        %3265 = vmatmul.mubr.bf16.gmra.mrb[0].mxu0 %v3189
        %v3266 = vpop.f32.mrb[0].mxu0
        %v3267 = vadd.f32 0.0, %v3266
        %v3268 = vpop.f32.mrb[0].mxu0
        %v3269 = vpop.f32.mrb[0].mxu0
        %v3270 = vpop.f32.mrb[0].mxu0
        %3271 = vdwg.mxu0
        %v3274 = vcombine.low %v3226, %v3228
        %v3276 = vadd.f32 %v3172, %v3274
        %v3277 = vadd.f32 %v3173, %v3267
        %3278 = vmatprep.subr.bf16.mxu0 %v1464
        %3279 = vmatpush1.bf16.msra.mxu0 %v1463
        %3280 = vmatprep.subr.bf16.mxu0 %v1467
        %3281 = vmatpush1.bf16.msra.mxu0 %v1466
        %3282 = vmatprep.subr.bf16.mxu0 %v1470
        %3283 = vmatpush1.bf16.msra.mxu0 %v1469
        %3284 = vmatprep.subr.bf16.mxu0 %v1473
        %3285 = vmatpush1.bf16.msra.mxu0 %v1472
        %3286 = vmatprep.subr.bf16.mxu0 %v1476
        %3287 = vmatpush1.bf16.msra.mxu0 %v1475
        %3288 = vmatprep.subr.bf16.mxu0 %v1479
        %3289 = vmatpush1.bf16.msra.mxu0 %v1478
        %3290 = vmatprep.subr.bf16.mxu0 %v1482
        %3291 = vmatpush1.bf16.msra.mxu0 %v1481
        %3292 = vmatprep.subr.bf16.mxu0 %v1485
        %3293 = vmatpush1.bf16.msra.mxu0 %v1484
        %3294 = vmatprep.subr.bf16.mxu0 0
        %3295 = vmatpush1.bf16.msra.mxu0 0
        %3296 = vmatprep.subr.bf16.mxu0 0
        %3297 = vmatpush1.bf16.msra.mxu0 0
        %3298 = vmatprep.subr.bf16.mxu0 0
        %3299 = vmatpush1.bf16.msra.mxu0 0
        %3300 = vmatprep.subr.bf16.mxu0 0
        %3301 = vmatpush1.bf16.msra.mxu0 0
        %3302 = vmatprep.subr.bf16.mxu0 0
        %3303 = vmatpush1.bf16.msra.mxu0 0
        %3304 = vmatprep.subr.bf16.mxu0 0
        %3305 = vmatpush1.bf16.msra.mxu0 0
        %3306 = vmatprep.subr.bf16.mxu0 0
        %3307 = vmatpush1.bf16.msra.mxu0 0
        %3308 = vmatprep.subr.bf16.mxu0 0
        %3309 = vmatpush1.bf16.msra.mxu0 0
        %3310 = vmatprep.mubr.bf16.mxu0 0
        %3311 = vmatmul.mubr.bf16.gmra.mrb[0].mxu0 %v2812
        %v3312 = vpop.f32.mrb[0].mxu0
        %v3313 = vadd.f32 %v1371, %v3312
        %v3314 = vpop.f32.mrb[0].mxu0
        %v3315 = vadd.f32 %v1375, %v3314
        %v3316 = vpop.f32.mrb[0].mxu0
        %v3317 = vpop.f32.mrb[0].mxu0
        %3318 = vdwg.mxu0
        %3319 = vmatprep.subr.bf16.mxu0 0
        %3320 = vmatpush1.bf16.msra.mxu0 %v1465
        %3321 = vmatprep.subr.bf16.mxu0 0
        %3322 = vmatpush1.bf16.msra.mxu0 %v1468
        %3323 = vmatprep.subr.bf16.mxu0 0
        %3324 = vmatpush1.bf16.msra.mxu0 %v1471
        %3325 = vmatprep.subr.bf16.mxu0 0
        %3326 = vmatpush1.bf16.msra.mxu0 %v1474
        %3327 = vmatprep.subr.bf16.mxu0 0
        %3328 = vmatpush1.bf16.msra.mxu0 %v1477
        %3329 = vmatprep.subr.bf16.mxu0 0
        %3330 = vmatpush1.bf16.msra.mxu0 %v1480
        %3331 = vmatprep.subr.bf16.mxu0 0
        %3332 = vmatpush1.bf16.msra.mxu0 %v1483
        %3333 = vmatprep.subr.bf16.mxu0 0
        %3334 = vmatpush1.bf16.msra.mxu0 %v1486
        %3335 = vmatprep.subr.bf16.mxu0 0
        %3336 = vmatpush1.bf16.msra.mxu0 0
        %3337 = vmatprep.subr.bf16.mxu0 0
        %3338 = vmatpush1.bf16.msra.mxu0 0
        %3339 = vmatprep.subr.bf16.mxu0 0
        %3340 = vmatpush1.bf16.msra.mxu0 0
        %3341 = vmatprep.subr.bf16.mxu0 0
        %3342 = vmatpush1.bf16.msra.mxu0 0
        %3343 = vmatprep.subr.bf16.mxu0 0
        %3344 = vmatpush1.bf16.msra.mxu0 0
        %3345 = vmatprep.subr.bf16.mxu0 0
        %3346 = vmatpush1.bf16.msra.mxu0 0
        %3347 = vmatprep.subr.bf16.mxu0 0
        %3348 = vmatpush1.bf16.msra.mxu0 0
        %3349 = vmatprep.subr.bf16.mxu0 0
        %3350 = vmatpush1.bf16.msra.mxu0 0
        %3351 = vmatprep.mubr.bf16.mxu0 0
        %3352 = vmatmul.mubr.bf16.gmra.mrb[0].mxu0 %v2812
        %v3353 = vpop.f32.mrb[0].mxu0
        %v3354 = vadd.f32 %v1379, %v3353
        %v3355 = vpop.f32.mrb[0].mxu0
        %v3356 = vpop.f32.mrb[0].mxu0
        %v3357 = vpop.f32.mrb[0].mxu0
        %3358 = vdwg.mxu0
        %v3359 = vadd.f32 %v3276, %v3313
        %v3360 = vxor.u32 %v3359, 2147483648
        %v3361 = vmul.f32 %v3360, 1.442695
        %v3362 = vpow.pop %v3361
        %v3363 = vadd.f32 %v3362, 1.0
        %v3364 = vrcp.pop %v3363
        %v3365 = vmul.f32 1.0, %v3364
        %v3367 = vrot.slane %v3276, 4
        %v3369 = vadd.f32 %v3367, %v3315
        %v3370 = vxor.u32 %v3369, 2147483648
        %v3371 = vmul.f32 %v3370, 1.442695
        %v3372 = vpow.pop %v3371
        %v3373 = vadd.f32 %v3372, 1.0
        %v3374 = vrcp.pop %v3373
        %v3375 = vmul.f32 1.0, %v3374
        %v3376 = vmul.f32 %v3365, %v3354
        %v3377 = vadd.f32 %v3277, %v3376
        %v3378 = vtanh.pop %v3377
        %v3379 = vsub.f32 1.0, %v3375
        %v3380 = vmul.f32 %v3379, %v3378
        %v3381 = vmul.f32 %v3375, %v2811
        %v3382 = vadd.f32 %v3380, %v3381
        %v3383 = vpack.c.bf16 %v3382, %v3382
        %3384 = vmatprep.subr.bf16.mxu0 0
        %3385 = vmatpush1.bf16.msra.mxu0 %v1655
        %3386 = vmatprep.subr.bf16.mxu0 0
        %3387 = vmatpush1.bf16.msra.mxu0 %v1656
        %3388 = vmatprep.subr.bf16.mxu0 0
        %3389 = vmatpush1.bf16.msra.mxu0 %v1657
        %3390 = vmatprep.subr.bf16.mxu0 0
        %3391 = vmatpush1.bf16.msra.mxu0 %v1658
        %3392 = vmatprep.subr.bf16.mxu0 0
        %3393 = vmatpush1.bf16.msra.mxu0 %v1659
        %3394 = vmatprep.subr.bf16.mxu0 0
        %3395 = vmatpush1.bf16.msra.mxu0 %v1660
        %3396 = vmatprep.subr.bf16.mxu0 0
        %3397 = vmatpush1.bf16.msra.mxu0 %v1661
        %3398 = vmatprep.subr.bf16.mxu0 0
        %3399 = vmatpush1.bf16.msra.mxu0 %v1662
        %3400 = vmatprep.subr.bf16.mxu0 0
        %3401 = vmatpush1.bf16.msra.mxu0 0
        %3402 = vmatprep.subr.bf16.mxu0 0
        %3403 = vmatpush1.bf16.msra.mxu0 0
        %3404 = vmatprep.subr.bf16.mxu0 0
        %3405 = vmatpush1.bf16.msra.mxu0 0
        %3406 = vmatprep.subr.bf16.mxu0 0
        %3407 = vmatpush1.bf16.msra.mxu0 0
        %3408 = vmatprep.subr.bf16.mxu0 0
        %3409 = vmatpush1.bf16.msra.mxu0 0
        %3410 = vmatprep.subr.bf16.mxu0 0
        %3411 = vmatpush1.bf16.msra.mxu0 0
        %3412 = vmatprep.subr.bf16.mxu0 0
        %3413 = vmatpush1.bf16.msra.mxu0 0
        %3414 = vmatprep.subr.bf16.mxu0 0
        %3415 = vmatpush1.bf16.msra.mxu0 0
        %3416 = vmatprep.mubr.bf16.mxu0 0
        %3417 = vmatmul.mubr.bf16.gmra.mrb[0].mxu0 %v3383
        %v3418 = vpop.f32.mrb[0].mxu0
        %v3419 = vadd.f32 %v1621, %v3418
        %v3420 = vpop.f32.mrb[0].mxu0
        %v3421 = vpop.f32.mrb[0].mxu0
        %v3422 = vpop.f32.mrb[0].mxu0
        %3423 = vdwg.mxu0
        %v3424 = vsel %vm1711, %v3419, -inf
        %3425 = vmax.xlane.f32.xlu0 %v3424
        %v3426 = vpop.xlane.xlu0 %3425
        %v3427 = vsub.f32 %v3419, %v3426
        %v3428 = vmul.f32 %v3427, 1.442695
        %v3429 = vpow.pop %v3428
        %v3430 = vsel %vm1711, %v3429, 0.0
        %3431 = vadd.xlane.f32.xlu0 %v3430
        %v3432 = vpop.xlane.xlu0 %3431
        %v3433 = vlog2.pop %v3432
        %v3434 = vmul.f32 %v3433, 0.6931472
        %v3435 = vadd.f32 %v3434, %v3426
        %v3436 = vsub.f32 %v3419, %v3435
        %s3437 = scalar_lea.vmem %s635, 12 [#allocation23]
        %3438 = vst [vmem:[%s3437] sm:$0xf] %v3436
        %3439 = vmatprep.subr.bf16.mxu0 0
        %3440 = vmatpush1.bf16.msra.mxu0 %v803
        %3441 = vmatprep.subr.bf16.mxu0 0
        %3442 = vmatpush1.bf16.msra.mxu0 %v804
        %3443 = vmatprep.subr.bf16.mxu0 0
        %3444 = vmatpush1.bf16.msra.mxu0 %v805
        %3445 = vmatprep.subr.bf16.mxu0 0
        %3446 = vmatpush1.bf16.msra.mxu0 %v806
        %3447 = vmatprep.subr.bf16.mxu0 0
        %3448 = vmatpush1.bf16.msra.mxu0 %v807
        %3449 = vmatprep.subr.bf16.mxu0 0
        %3450 = vmatpush1.bf16.msra.mxu0 %v808
        %3451 = vmatprep.subr.bf16.mxu0 0
        %3452 = vmatpush1.bf16.msra.mxu0 %v809
        %3453 = vmatprep.subr.bf16.mxu0 0
        %3454 = vmatpush1.bf16.msra.mxu0 %v810
        %3455 = vmatprep.subr.bf16.mxu0 0
        %3456 = vmatpush1.bf16.msra.mxu0 0
        %3457 = vmatprep.subr.bf16.mxu0 0
        %3458 = vmatpush1.bf16.msra.mxu0 0
        %3459 = vmatprep.subr.bf16.mxu0 0
        %3460 = vmatpush1.bf16.msra.mxu0 0
        %3461 = vmatprep.subr.bf16.mxu0 0
        %3462 = vmatpush1.bf16.msra.mxu0 0
        %3463 = vmatprep.subr.bf16.mxu0 0
        %3464 = vmatpush1.bf16.msra.mxu0 0
        %3465 = vmatprep.subr.bf16.mxu0 0
        %3466 = vmatpush1.bf16.msra.mxu0 0
        %3467 = vmatprep.subr.bf16.mxu0 0
        %3468 = vmatpush1.bf16.msra.mxu0 0
        %3469 = vmatprep.subr.bf16.mxu0 0
        %3470 = vmatpush1.bf16.msra.mxu0 0
        %3471 = vmatprep.mubr.bf16.mxu0 0
        %3472 = vmatmul.mubr.bf16.gmra.mrb[0].mxu0 %v3383
        %v3473 = vpop.f32.mrb[0].mxu0
        %v3474 = vadd.f32 %v769, %v3473
        %v3475 = vpop.f32.mrb[0].mxu0
        %v3476 = vpop.f32.mrb[0].mxu0
        %v3477 = vpop.f32.mrb[0].mxu0
        %3478 = vdwg.mxu0
        %v3481 = vunpack.c.l.s4 1966171168
        %v3482 = vunpack.c.0.s8 %v3481
        %v3483 = vlaneseq
        %v3484 = vshrl.u32 %v3483, 7
        %v3485 = vsub.s32 %v3482, %v3484
        %v3486 = vrot.slane %v3474, %v3485
        %v3487 = vcombine.high %v3486, %v3486
        %v3489 = vunpack.c.l.s4 1966171168
        %v3490 = vunpack.c.0.s8 %v3489
        %v3491 = vlaneseq
        %v3492 = vshrl.u32 %v3491, 7
        %v3493 = vsub.s32 %v3490, %v3492
        %v3494 = vrot.slane %v3486, %v3493
        %v3496 = vunpack.c.l.s4 1966171168
        %v3497 = vunpack.c.0.s8 %v3496
        %v3498 = vlaneseq
        %v3499 = vshrl.u32 %v3498, 7
        %v3500 = vsub.s32 %v3497, %v3499
        %v3501 = vrot.slane %v3487, %v3500
        %v3502 = vcombine.high %v3494, %v3494
        %v3503 = vcombine.high %v3501, %v3501
        %v3504 = vlaneseq
        %v3505 = vshrl.u32 %v3504, 7
        %v3506 = vsub.s32 0, %v3505
        %v3507 = vrot.slane %v3494, %v3506
        %v3508 = vlaneseq
        %v3509 = vshrl.u32 %v3508, 7
        %v3510 = vsub.s32 0, %v3509
        %v3511 = vrot.slane %v3501, %v3510
        %v3512 = vlaneseq
        %v3513 = vshrl.u32 %v3512, 7
        %v3514 = vsub.s32 0, %v3513
        %v3515 = vrot.slane %v3502, %v3514
        %v3516 = vlaneseq
        %v3517 = vshrl.u32 %v3516, 7
        %v3518 = vsub.s32 0, %v3517
        %v3519 = vrot.slane %v3503, %v3518
        %v3524 = vadd.f32 %v3507, %v659
        %v3525 = vadd.f32 %v3511, %v660
        %v3526 = vadd.f32 %v3515, %v661
        %v3527 = vadd.f32 %v3519, %v662
        %v3528 = vtanh.pop %v3524
        %v3529 = vtanh.pop %v3525
        %v3530 = vtanh.pop %v3526
        %v3531 = vtanh.pop %v3527
        %v3532 = vmul.f32 %v3528, %v916
        %v3533 = vmul.f32 %v3529, %v916
        %v3534 = vmul.f32 %v3530, %v916
        %v3535 = vmul.f32 %v3531, %v916
        %3536 = vadd.xlane.f32.xlu0 %v3532
        %v3537 = vpop.xlane.xlu0 %3536
        %3538 = vadd.xlane.f32.xlu0 %v3533
        %v3539 = vpop.xlane.xlu0 %3538
        %3540 = vadd.xlane.f32.xlu0 %v3534
        %v3541 = vpop.xlane.xlu0 %3540
        %3542 = vadd.xlane.f32.xlu0 %v3535
        %v3543 = vpop.xlane.xlu0 %3542
        %v3548 = vlaneseq
        %v3549 = vshrl.u32 %v3548, 7
        %v3550 = vsub.s32 %v935, %v3549
        %v3551 = vrot.slane %v3537, %v3550
        %v3552 = vlaneseq
        %v3553 = vshrl.u32 %v3552, 7
        %v3554 = vsub.s32 %v935, %v3553
        %v3555 = vrot.slane %v3539, %v3554
        %v3556 = vlaneseq
        %v3557 = vshrl.u32 %v3556, 7
        %v3558 = vsub.s32 %v935, %v3557
        %v3559 = vrot.slane %v3541, %v3558
        %v3560 = vlaneseq
        %v3561 = vshrl.u32 %v3560, 7
        %v3562 = vsub.s32 %v935, %v3561
        %v3563 = vrot.slane %v3543, %v3562
        %v3564 = vsel %vm952, %v3555, %v3551
        %v3565 = vsel %vm954, %v3559, %v3564
        %v3566 = vsel %vm956, %v3563, %v3565
        %v3568 = vsel %vm959, %v3566, -inf
        %3569 = vmax.xlane.f32.xlu0 %v3568
        %v3570 = vpop.xlane.xlu0 %3569
        %v3572 = vlaneseq
        %v3573 = vshrl.u32 %v3572, 7
        %v3574 = vsub.s32 0, %v3573
        %v3575 = vrot.slane %v3570, %v3574
        %v3576 = vlaneseq
        %v3577 = vshrl.u32 %v3576, 7
        %v3578 = vsub.s32 1, %v3577
        %v3579 = vrot.slane %v3570, %v3578
        %v3580 = vlaneseq
        %v3581 = vshrl.u32 %v3580, 7
        %v3582 = vsub.s32 2, %v3581
        %v3583 = vrot.slane %v3570, %v3582
        %v3584 = vlaneseq
        %v3585 = vshrl.u32 %v3584, 7
        %v3586 = vsub.s32 3, %v3585
        %v3587 = vrot.slane %v3570, %v3586
        %v3592 = vsub.f32 %v3537, %v3575
        %v3593 = vsub.f32 %v3539, %v3579
        %v3594 = vsub.f32 %v3541, %v3583
        %v3595 = vsub.f32 %v3543, %v3587
        %v3596 = vmul.f32 %v3592, 1.442695
        %v3597 = vpow.pop %v3596
        %v3598 = vmul.f32 %v3593, 1.442695
        %v3599 = vpow.pop %v3598
        %v3600 = vmul.f32 %v3594, 1.442695
        %v3601 = vpow.pop %v3600
        %v3602 = vmul.f32 %v3595, 1.442695
        %v3603 = vpow.pop %v3602
        %3608 = vset.pattern.permute.xlu0 0
        %3609 = vperm.xlu0 %3608, %v3597
        %v3610 = vpop.permute.xlu0 %3609
        %3611 = vset.pattern.permute.xlu0 0
        %3612 = vperm.xlu0 %3611, %v3599
        %v3613 = vpop.permute.xlu0 %3612
        %3614 = vset.pattern.permute.xlu0 0
        %3615 = vperm.xlu0 %3614, %v3601
        %v3616 = vpop.permute.xlu0 %3615
        %3617 = vset.pattern.permute.xlu0 0
        %3618 = vperm.xlu0 %3617, %v3603
        %v3619 = vpop.permute.xlu0 %3618
        %v3620 = vlaneseq
        %v3621 = vshrl.u32 %v3620, 7
        %v3622 = vsub.s32 %v935, %v3621
        %v3623 = vrot.slane %v3610, %v3622
        %v3624 = vlaneseq
        %v3625 = vshrl.u32 %v3624, 7
        %v3626 = vsub.s32 %v935, %v3625
        %v3627 = vrot.slane %v3613, %v3626
        %v3628 = vlaneseq
        %v3629 = vshrl.u32 %v3628, 7
        %v3630 = vsub.s32 %v935, %v3629
        %v3631 = vrot.slane %v3616, %v3630
        %v3632 = vlaneseq
        %v3633 = vshrl.u32 %v3632, 7
        %v3634 = vsub.s32 %v935, %v3633
        %v3635 = vrot.slane %v3619, %v3634
        %v3636 = vsel %vm952, %v3627, %v3623
        %v3637 = vsel %vm954, %v3631, %v3636
        %v3638 = vsel %vm956, %v3635, %v3637
        %v3640 = vsel %vm959, %v3638, 0.0
        %3641 = vadd.xlane.f32.xlu0 %v3640
        %v3642 = vpop.xlane.xlu0 %3641
        %v3644 = vlaneseq
        %v3645 = vshrl.u32 %v3644, 7
        %v3646 = vsub.s32 0, %v3645
        %v3647 = vrot.slane %v3642, %v3646
        %v3648 = vlaneseq
        %v3649 = vshrl.u32 %v3648, 7
        %v3650 = vsub.s32 1, %v3649
        %v3651 = vrot.slane %v3642, %v3650
        %v3652 = vlaneseq
        %v3653 = vshrl.u32 %v3652, 7
        %v3654 = vsub.s32 2, %v3653
        %v3655 = vrot.slane %v3642, %v3654
        %v3656 = vlaneseq
        %v3657 = vshrl.u32 %v3656, 7
        %v3658 = vsub.s32 3, %v3657
        %v3659 = vrot.slane %v3642, %v3658
        %v3664 = vrcp.pop %v3647
        %v3665 = vmul.f32 %v3597, %v3664
        %v3666 = vrcp.pop %v3651
        %v3667 = vmul.f32 %v3599, %v3666
        %v3668 = vrcp.pop %v3655
        %v3669 = vmul.f32 %v3601, %v3668
        %v3670 = vrcp.pop %v3659
        %v3671 = vmul.f32 %v3603, %v3670
        %3676 = vset.pattern.permute.xlu0 0
        %3677 = vperm.xlu0 %3676, %v3665
        %v3678 = vpop.permute.xlu0 %3677
        %3679 = vset.pattern.permute.xlu0 0
        %3680 = vperm.xlu0 %3679, %v3667
        %v3681 = vpop.permute.xlu0 %3680
        %3682 = vset.pattern.permute.xlu0 0
        %3683 = vperm.xlu0 %3682, %v3669
        %v3684 = vpop.permute.xlu0 %3683
        %3685 = vset.pattern.permute.xlu0 0
        %3686 = vperm.xlu0 %3685, %v3671
        %v3687 = vpop.permute.xlu0 %3686
        %v3688 = vlaneseq
        %v3689 = vshrl.u32 %v3688, 7
        %v3690 = vsub.s32 %v935, %v3689
        %v3691 = vrot.slane %v3678, %v3690
        %v3692 = vlaneseq
        %v3693 = vshrl.u32 %v3692, 7
        %v3694 = vsub.s32 %v935, %v3693
        %v3695 = vrot.slane %v3681, %v3694
        %v3696 = vlaneseq
        %v3697 = vshrl.u32 %v3696, 7
        %v3698 = vsub.s32 %v935, %v3697
        %v3699 = vrot.slane %v3684, %v3698
        %v3700 = vlaneseq
        %v3701 = vshrl.u32 %v3700, 7
        %v3702 = vsub.s32 %v935, %v3701
        %v3703 = vrot.slane %v3687, %v3702
        %v3704 = vsel %vm952, %v3695, %v3691
        %v3705 = vsel %vm954, %v3699, %v3704
        %v3706 = vsel %vm956, %v3703, %v3705
        %s3708 = scalar_lea.vmem %s642, 16 [#allocation24]
        %3709 = vst.msk [vmem:[%s3708] sm:$0xf] %vm959, %v3706
        %v3714 = vmul.f32 %v3678, %v655
        %v3715 = vmul.f32 %v3681, %v656
        %v3716 = vmul.f32 %v3684, %v657
        %v3717 = vmul.f32 %v3687, %v658
        %v3718 = vrot.slane %v3714, 4
        %v3719 = vadd.f32 %v3714, %v3718
        %v3720 = vrot.slane %v3719, 2
        %v3721 = vadd.f32 %v3719, %v3720
        %v3722 = vrot.slane %v3721, 1
        %v3723 = vadd.f32 %v3721, %v3722
        %v3724 = vrot.slane %v3715, 4
        %v3725 = vadd.f32 %v3715, %v3724
        %v3726 = vrot.slane %v3725, 2
        %v3727 = vadd.f32 %v3725, %v3726
        %v3728 = vrot.slane %v3727, 1
        %v3729 = vadd.f32 %v3727, %v3728
        %v3730 = vrot.slane %v3716, 4
        %v3731 = vadd.f32 %v3716, %v3730
        %v3732 = vrot.slane %v3731, 2
        %v3733 = vadd.f32 %v3731, %v3732
        %v3734 = vrot.slane %v3733, 1
        %v3735 = vadd.f32 %v3733, %v3734
        %v3736 = vrot.slane %v3717, 4
        %v3737 = vadd.f32 %v3717, %v3736
        %v3738 = vrot.slane %v3737, 2
        %v3739 = vadd.f32 %v3737, %v3738
        %v3740 = vrot.slane %v3739, 1
        %v3741 = vadd.f32 %v3739, %v3740
        %s3742 = scalar_lea.vmem %s551, 48 [#allocation3]
        %v3743 = vld [vmem:[%s3742] sm:$0xff]
        %v3744 = vld [vmem:[%s3742 + $0x8] sm:$0xf]
        %v3745 = vpack.c.bf16 %v3723, %v3723
        %v3746 = vpack.c.bf16 %v3729, %v3729
        %v3747 = vpack.c.bf16 %v3735, %v3735
        %v3748 = vpack.c.bf16 %v3741, %v3741
        %v3753 = vunpack.c.l.b16 %v3745
        %v3754 = vunpack.c.l.b16 %v3746
        %v3755 = vunpack.c.l.b16 %v3747
        %v3756 = vunpack.c.l.b16 %v3748
        %v3757 = vsel %vm952, %v3754, %v3753
        %v3758 = vsel %vm954, %v3755, %v3757
        %v3759 = vsel %vm956, %v3756, %v3758
        %v3760 = vpack.c.b16 %v3759, %v3759
        %3762 = vmatprep.subr.bf16.mxu0 %v1233
        %3763 = vmatpush1.bf16.msra.mxu0 %v1232
        %3764 = vmatprep.subr.bf16.mxu0 %v1236
        %3765 = vmatpush1.bf16.msra.mxu0 %v1235
        %3766 = vmatprep.subr.bf16.mxu0 %v1239
        %3767 = vmatpush1.bf16.msra.mxu0 %v1238
        %3768 = vmatprep.subr.bf16.mxu0 %v1242
        %3769 = vmatpush1.bf16.msra.mxu0 %v1241
        %3770 = vmatprep.subr.bf16.mxu0 %v1245
        %3771 = vmatpush1.bf16.msra.mxu0 %v1244
        %3772 = vmatprep.subr.bf16.mxu0 %v1248
        %3773 = vmatpush1.bf16.msra.mxu0 %v1247
        %3774 = vmatprep.subr.bf16.mxu0 %v1251
        %3775 = vmatpush1.bf16.msra.mxu0 %v1250
        %3776 = vmatprep.subr.bf16.mxu0 %v1254
        %3777 = vmatpush1.bf16.msra.mxu0 %v1253
        %3778 = vmatprep.subr.bf16.mxu0 0
        %3779 = vmatpush1.bf16.msra.mxu0 0
        %3780 = vmatprep.subr.bf16.mxu0 0
        %3781 = vmatpush1.bf16.msra.mxu0 0
        %3782 = vmatprep.subr.bf16.mxu0 0
        %3783 = vmatpush1.bf16.msra.mxu0 0
        %3784 = vmatprep.subr.bf16.mxu0 0
        %3785 = vmatpush1.bf16.msra.mxu0 0
        %3786 = vmatprep.subr.bf16.mxu0 0
        %3787 = vmatpush1.bf16.msra.mxu0 0
        %3788 = vmatprep.subr.bf16.mxu0 0
        %3789 = vmatpush1.bf16.msra.mxu0 0
        %3790 = vmatprep.subr.bf16.mxu0 0
        %3791 = vmatpush1.bf16.msra.mxu0 0
        %3792 = vmatprep.subr.bf16.mxu0 0
        %3793 = vmatpush1.bf16.msra.mxu0 0
        %3794 = vmatprep.mubr.bf16.mxu0 0
        %3795 = vmatmul.mubr.bf16.gmra.mrb[0].mxu0 %v3760
        %v3796 = vpop.f32.mrb[0].mxu0
        %v3797 = vadd.f32 0.0, %v3796
        %v3798 = vpop.f32.mrb[0].mxu0
        %v3799 = vadd.f32 0.0, %v3798
        %v3800 = vpop.f32.mrb[0].mxu0
        %v3801 = vpop.f32.mrb[0].mxu0
        %3802 = vdwg.mxu0
        %3803 = vmatprep.subr.bf16.mxu0 0
        %3804 = vmatpush1.bf16.msra.mxu0 %v1234
        %3805 = vmatprep.subr.bf16.mxu0 0
        %3806 = vmatpush1.bf16.msra.mxu0 %v1237
        %3807 = vmatprep.subr.bf16.mxu0 0
        %3808 = vmatpush1.bf16.msra.mxu0 %v1240
        %3809 = vmatprep.subr.bf16.mxu0 0
        %3810 = vmatpush1.bf16.msra.mxu0 %v1243
        %3811 = vmatprep.subr.bf16.mxu0 0
        %3812 = vmatpush1.bf16.msra.mxu0 %v1246
        %3813 = vmatprep.subr.bf16.mxu0 0
        %3814 = vmatpush1.bf16.msra.mxu0 %v1249
        %3815 = vmatprep.subr.bf16.mxu0 0
        %3816 = vmatpush1.bf16.msra.mxu0 %v1252
        %3817 = vmatprep.subr.bf16.mxu0 0
        %3818 = vmatpush1.bf16.msra.mxu0 %v1255
        %3819 = vmatprep.subr.bf16.mxu0 0
        %3820 = vmatpush1.bf16.msra.mxu0 0
        %3821 = vmatprep.subr.bf16.mxu0 0
        %3822 = vmatpush1.bf16.msra.mxu0 0
        %3823 = vmatprep.subr.bf16.mxu0 0
        %3824 = vmatpush1.bf16.msra.mxu0 0
        %3825 = vmatprep.subr.bf16.mxu0 0
        %3826 = vmatpush1.bf16.msra.mxu0 0
        %3827 = vmatprep.subr.bf16.mxu0 0
        %3828 = vmatpush1.bf16.msra.mxu0 0
        %3829 = vmatprep.subr.bf16.mxu0 0
        %3830 = vmatpush1.bf16.msra.mxu0 0
        %3831 = vmatprep.subr.bf16.mxu0 0
        %3832 = vmatpush1.bf16.msra.mxu0 0
        %3833 = vmatprep.subr.bf16.mxu0 0
        %3834 = vmatpush1.bf16.msra.mxu0 0
        %3835 = vmatprep.mubr.bf16.mxu0 0
        %3836 = vmatmul.mubr.bf16.gmra.mrb[0].mxu0 %v3760
        %v3837 = vpop.f32.mrb[0].mxu0
        %v3838 = vadd.f32 0.0, %v3837
        %v3839 = vpop.f32.mrb[0].mxu0
        %v3840 = vpop.f32.mrb[0].mxu0
        %v3841 = vpop.f32.mrb[0].mxu0
        %3842 = vdwg.mxu0
        %v3845 = vcombine.low %v3797, %v3799
        %v3847 = vadd.f32 %v3743, %v3845
        %v3848 = vadd.f32 %v3744, %v3838
        %3849 = vmatprep.subr.bf16.mxu0 %v1464
        %3850 = vmatpush1.bf16.msra.mxu0 %v1463
        %3851 = vmatprep.subr.bf16.mxu0 %v1467
        %3852 = vmatpush1.bf16.msra.mxu0 %v1466
        %3853 = vmatprep.subr.bf16.mxu0 %v1470
        %3854 = vmatpush1.bf16.msra.mxu0 %v1469
        %3855 = vmatprep.subr.bf16.mxu0 %v1473
        %3856 = vmatpush1.bf16.msra.mxu0 %v1472
        %3857 = vmatprep.subr.bf16.mxu0 %v1476
        %3858 = vmatpush1.bf16.msra.mxu0 %v1475
        %3859 = vmatprep.subr.bf16.mxu0 %v1479
        %3860 = vmatpush1.bf16.msra.mxu0 %v1478
        %3861 = vmatprep.subr.bf16.mxu0 %v1482
        %3862 = vmatpush1.bf16.msra.mxu0 %v1481
        %3863 = vmatprep.subr.bf16.mxu0 %v1485
        %3864 = vmatpush1.bf16.msra.mxu0 %v1484
        %3865 = vmatprep.subr.bf16.mxu0 0
        %3866 = vmatpush1.bf16.msra.mxu0 0
        %3867 = vmatprep.subr.bf16.mxu0 0
        %3868 = vmatpush1.bf16.msra.mxu0 0
        %3869 = vmatprep.subr.bf16.mxu0 0
        %3870 = vmatpush1.bf16.msra.mxu0 0
        %3871 = vmatprep.subr.bf16.mxu0 0
        %3872 = vmatpush1.bf16.msra.mxu0 0
        %3873 = vmatprep.subr.bf16.mxu0 0
        %3874 = vmatpush1.bf16.msra.mxu0 0
        %3875 = vmatprep.subr.bf16.mxu0 0
        %3876 = vmatpush1.bf16.msra.mxu0 0
        %3877 = vmatprep.subr.bf16.mxu0 0
        %3878 = vmatpush1.bf16.msra.mxu0 0
        %3879 = vmatprep.subr.bf16.mxu0 0
        %3880 = vmatpush1.bf16.msra.mxu0 0
        %3881 = vmatprep.mubr.bf16.mxu0 0
        %3882 = vmatmul.mubr.bf16.gmra.mrb[0].mxu0 %v3383
        %v3883 = vpop.f32.mrb[0].mxu0
        %v3884 = vadd.f32 %v1371, %v3883
        %v3885 = vpop.f32.mrb[0].mxu0
        %v3886 = vadd.f32 %v1375, %v3885
        %v3887 = vpop.f32.mrb[0].mxu0
        %v3888 = vpop.f32.mrb[0].mxu0
        %3889 = vdwg.mxu0
        %3890 = vmatprep.subr.bf16.mxu0 0
        %3891 = vmatpush1.bf16.msra.mxu0 %v1465
        %3892 = vmatprep.subr.bf16.mxu0 0
        %3893 = vmatpush1.bf16.msra.mxu0 %v1468
        %3894 = vmatprep.subr.bf16.mxu0 0
        %3895 = vmatpush1.bf16.msra.mxu0 %v1471
        %3896 = vmatprep.subr.bf16.mxu0 0
        %3897 = vmatpush1.bf16.msra.mxu0 %v1474
        %3898 = vmatprep.subr.bf16.mxu0 0
        %3899 = vmatpush1.bf16.msra.mxu0 %v1477
        %3900 = vmatprep.subr.bf16.mxu0 0
        %3901 = vmatpush1.bf16.msra.mxu0 %v1480
        %3902 = vmatprep.subr.bf16.mxu0 0
        %3903 = vmatpush1.bf16.msra.mxu0 %v1483
        %3904 = vmatprep.subr.bf16.mxu0 0
        %3905 = vmatpush1.bf16.msra.mxu0 %v1486
        %3906 = vmatprep.subr.bf16.mxu0 0
        %3907 = vmatpush1.bf16.msra.mxu0 0
        %3908 = vmatprep.subr.bf16.mxu0 0
        %3909 = vmatpush1.bf16.msra.mxu0 0
        %3910 = vmatprep.subr.bf16.mxu0 0
        %3911 = vmatpush1.bf16.msra.mxu0 0
        %3912 = vmatprep.subr.bf16.mxu0 0
        %3913 = vmatpush1.bf16.msra.mxu0 0
        %3914 = vmatprep.subr.bf16.mxu0 0
        %3915 = vmatpush1.bf16.msra.mxu0 0
        %3916 = vmatprep.subr.bf16.mxu0 0
        %3917 = vmatpush1.bf16.msra.mxu0 0
        %3918 = vmatprep.subr.bf16.mxu0 0
        %3919 = vmatpush1.bf16.msra.mxu0 0
        %3920 = vmatprep.subr.bf16.mxu0 0
        %3921 = vmatpush1.bf16.msra.mxu0 0
        %3922 = vmatprep.mubr.bf16.mxu0 0
        %3923 = vmatmul.mubr.bf16.gmra.mrb[0].mxu0 %v3383
        %v3924 = vpop.f32.mrb[0].mxu0
        %v3925 = vadd.f32 %v1379, %v3924
        %v3926 = vpop.f32.mrb[0].mxu0
        %v3927 = vpop.f32.mrb[0].mxu0
        %v3928 = vpop.f32.mrb[0].mxu0
        %3929 = vdwg.mxu0
        %v3930 = vadd.f32 %v3847, %v3884
        %v3931 = vxor.u32 %v3930, 2147483648
        %v3932 = vmul.f32 %v3931, 1.442695
        %v3933 = vpow.pop %v3932
        %v3934 = vadd.f32 %v3933, 1.0
        %v3935 = vrcp.pop %v3934
        %v3936 = vmul.f32 1.0, %v3935
        %v3938 = vrot.slane %v3847, 4
        %v3940 = vadd.f32 %v3938, %v3886
        %v3941 = vxor.u32 %v3940, 2147483648
        %v3942 = vmul.f32 %v3941, 1.442695
        %v3943 = vpow.pop %v3942
        %v3944 = vadd.f32 %v3943, 1.0
        %v3945 = vrcp.pop %v3944
        %v3946 = vmul.f32 1.0, %v3945
        %v3947 = vmul.f32 %v3936, %v3925
        %v3948 = vadd.f32 %v3848, %v3947
        %v3949 = vtanh.pop %v3948
        %v3950 = vsub.f32 1.0, %v3946
        %v3951 = vmul.f32 %v3950, %v3949
        %v3952 = vmul.f32 %v3946, %v3382
        %v3953 = vadd.f32 %v3951, %v3952
        %v3954 = vpack.c.bf16 %v3953, %v3953
        %3955 = vmatprep.subr.bf16.mxu0 0
        %3956 = vmatpush1.bf16.msra.mxu0 %v1655
        %3957 = vmatprep.subr.bf16.mxu0 0
        %3958 = vmatpush1.bf16.msra.mxu0 %v1656
        %3959 = vmatprep.subr.bf16.mxu0 0
        %3960 = vmatpush1.bf16.msra.mxu0 %v1657
        %3961 = vmatprep.subr.bf16.mxu0 0
        %3962 = vmatpush1.bf16.msra.mxu0 %v1658
        %3963 = vmatprep.subr.bf16.mxu0 0
        %3964 = vmatpush1.bf16.msra.mxu0 %v1659
        %3965 = vmatprep.subr.bf16.mxu0 0
        %3966 = vmatpush1.bf16.msra.mxu0 %v1660
        %3967 = vmatprep.subr.bf16.mxu0 0
        %3968 = vmatpush1.bf16.msra.mxu0 %v1661
        %3969 = vmatprep.subr.bf16.mxu0 0
        %3970 = vmatpush1.bf16.msra.mxu0 %v1662
        %3971 = vmatprep.subr.bf16.mxu0 0
        %3972 = vmatpush1.bf16.msra.mxu0 0
        %3973 = vmatprep.subr.bf16.mxu0 0
        %3974 = vmatpush1.bf16.msra.mxu0 0
        %3975 = vmatprep.subr.bf16.mxu0 0
        %3976 = vmatpush1.bf16.msra.mxu0 0
        %3977 = vmatprep.subr.bf16.mxu0 0
        %3978 = vmatpush1.bf16.msra.mxu0 0
        %3979 = vmatprep.subr.bf16.mxu0 0
        %3980 = vmatpush1.bf16.msra.mxu0 0
        %3981 = vmatprep.subr.bf16.mxu0 0
        %3982 = vmatpush1.bf16.msra.mxu0 0
        %3983 = vmatprep.subr.bf16.mxu0 0
        %3984 = vmatpush1.bf16.msra.mxu0 0
        %3985 = vmatprep.subr.bf16.mxu0 0
        %3986 = vmatpush1.bf16.msra.mxu0 0
        %3987 = vmatprep.mubr.bf16.mxu0 0
        %3988 = vmatmul.mubr.bf16.gmra.mrb[0].mxu0 %v3954
        %v3989 = vpop.f32.mrb[0].mxu0
        %v3990 = vadd.f32 %v1621, %v3989
        %v3991 = vpop.f32.mrb[0].mxu0
        %v3992 = vpop.f32.mrb[0].mxu0
        %v3993 = vpop.f32.mrb[0].mxu0
        %3994 = vdwg.mxu0
        %v3995 = vsel %vm1711, %v3990, -inf
        %3996 = vmax.xlane.f32.xlu0 %v3995
        %v3997 = vpop.xlane.xlu0 %3996
        %v3998 = vsub.f32 %v3990, %v3997
        %v3999 = vmul.f32 %v3998, 1.442695
        %v4000 = vpow.pop %v3999
        %v4001 = vsel %vm1711, %v4000, 0.0
        %4002 = vadd.xlane.f32.xlu0 %v4001
        %v4003 = vpop.xlane.xlu0 %4002
        %v4004 = vlog2.pop %v4003
        %v4005 = vmul.f32 %v4004, 0.6931472
        %v4006 = vadd.f32 %v4005, %v3997
        %v4007 = vsub.f32 %v3990, %v4006
        %s4008 = scalar_lea.vmem %s635, 16 [#allocation23]
        %4009 = vst [vmem:[%s4008] sm:$0xf] %v4007
        %4010 = vmatprep.subr.bf16.mxu0 0
        %4011 = vmatpush1.bf16.msra.mxu0 %v803
        %4012 = vmatprep.subr.bf16.mxu0 0
        %4013 = vmatpush1.bf16.msra.mxu0 %v804
        %4014 = vmatprep.subr.bf16.mxu0 0
        %4015 = vmatpush1.bf16.msra.mxu0 %v805
        %4016 = vmatprep.subr.bf16.mxu0 0
        %4017 = vmatpush1.bf16.msra.mxu0 %v806
        %4018 = vmatprep.subr.bf16.mxu0 0
        %4019 = vmatpush1.bf16.msra.mxu0 %v807
        %4020 = vmatprep.subr.bf16.mxu0 0
        %4021 = vmatpush1.bf16.msra.mxu0 %v808
        %4022 = vmatprep.subr.bf16.mxu0 0
        %4023 = vmatpush1.bf16.msra.mxu0 %v809
        %4024 = vmatprep.subr.bf16.mxu0 0
        %4025 = vmatpush1.bf16.msra.mxu0 %v810
        %4026 = vmatprep.subr.bf16.mxu0 0
        %4027 = vmatpush1.bf16.msra.mxu0 0
        %4028 = vmatprep.subr.bf16.mxu0 0
        %4029 = vmatpush1.bf16.msra.mxu0 0
        %4030 = vmatprep.subr.bf16.mxu0 0
        %4031 = vmatpush1.bf16.msra.mxu0 0
        %4032 = vmatprep.subr.bf16.mxu0 0
        %4033 = vmatpush1.bf16.msra.mxu0 0
        %4034 = vmatprep.subr.bf16.mxu0 0
        %4035 = vmatpush1.bf16.msra.mxu0 0
        %4036 = vmatprep.subr.bf16.mxu0 0
        %4037 = vmatpush1.bf16.msra.mxu0 0
        %4038 = vmatprep.subr.bf16.mxu0 0
        %4039 = vmatpush1.bf16.msra.mxu0 0
        %4040 = vmatprep.subr.bf16.mxu0 0
        %4041 = vmatpush1.bf16.msra.mxu0 0
        %4042 = vmatprep.mubr.bf16.mxu0 0
        %4043 = vmatmul.mubr.bf16.gmra.mrb[0].mxu0 %v3954
        %v4044 = vpop.f32.mrb[0].mxu0
        %v4045 = vadd.f32 %v769, %v4044
        %v4046 = vpop.f32.mrb[0].mxu0
        %v4047 = vpop.f32.mrb[0].mxu0
        %v4048 = vpop.f32.mrb[0].mxu0
        %4049 = vdwg.mxu0
        %v4052 = vunpack.c.l.s4 1966171168
        %v4053 = vunpack.c.0.s8 %v4052
        %v4054 = vlaneseq
        %v4055 = vshrl.u32 %v4054, 7
        %v4056 = vsub.s32 %v4053, %v4055
        %v4057 = vrot.slane %v4045, %v4056
        %v4058 = vcombine.high %v4057, %v4057
        %v4060 = vunpack.c.l.s4 1966171168
        %v4061 = vunpack.c.0.s8 %v4060
        %v4062 = vlaneseq
        %v4063 = vshrl.u32 %v4062, 7
        %v4064 = vsub.s32 %v4061, %v4063
        %v4065 = vrot.slane %v4057, %v4064
        %v4067 = vunpack.c.l.s4 1966171168
        %v4068 = vunpack.c.0.s8 %v4067
        %v4069 = vlaneseq
        %v4070 = vshrl.u32 %v4069, 7
        %v4071 = vsub.s32 %v4068, %v4070
        %v4072 = vrot.slane %v4058, %v4071
        %v4073 = vcombine.high %v4065, %v4065
        %v4074 = vcombine.high %v4072, %v4072
        %v4075 = vlaneseq
        %v4076 = vshrl.u32 %v4075, 7
        %v4077 = vsub.s32 0, %v4076
        %v4078 = vrot.slane %v4065, %v4077
        %v4079 = vlaneseq
        %v4080 = vshrl.u32 %v4079, 7
        %v4081 = vsub.s32 0, %v4080
        %v4082 = vrot.slane %v4072, %v4081
        %v4083 = vlaneseq
        %v4084 = vshrl.u32 %v4083, 7
        %v4085 = vsub.s32 0, %v4084
        %v4086 = vrot.slane %v4073, %v4085
        %v4087 = vlaneseq
        %v4088 = vshrl.u32 %v4087, 7
        %v4089 = vsub.s32 0, %v4088
        %v4090 = vrot.slane %v4074, %v4089
        %v4095 = vadd.f32 %v4078, %v659
        %v4096 = vadd.f32 %v4082, %v660
        %v4097 = vadd.f32 %v4086, %v661
        %v4098 = vadd.f32 %v4090, %v662
        %v4099 = vtanh.pop %v4095
        %v4100 = vtanh.pop %v4096
        %v4101 = vtanh.pop %v4097
        %v4102 = vtanh.pop %v4098
        %v4103 = vmul.f32 %v4099, %v916
        %v4104 = vmul.f32 %v4100, %v916
        %v4105 = vmul.f32 %v4101, %v916
        %v4106 = vmul.f32 %v4102, %v916
        %4107 = vadd.xlane.f32.xlu0 %v4103
        %v4108 = vpop.xlane.xlu0 %4107
        %4109 = vadd.xlane.f32.xlu0 %v4104
        %v4110 = vpop.xlane.xlu0 %4109
        %4111 = vadd.xlane.f32.xlu0 %v4105
        %v4112 = vpop.xlane.xlu0 %4111
        %4113 = vadd.xlane.f32.xlu0 %v4106
        %v4114 = vpop.xlane.xlu0 %4113
        %v4119 = vlaneseq
        %v4120 = vshrl.u32 %v4119, 7
        %v4121 = vsub.s32 %v935, %v4120
        %v4122 = vrot.slane %v4108, %v4121
        %v4123 = vlaneseq
        %v4124 = vshrl.u32 %v4123, 7
        %v4125 = vsub.s32 %v935, %v4124
        %v4126 = vrot.slane %v4110, %v4125
        %v4127 = vlaneseq
        %v4128 = vshrl.u32 %v4127, 7
        %v4129 = vsub.s32 %v935, %v4128
        %v4130 = vrot.slane %v4112, %v4129
        %v4131 = vlaneseq
        %v4132 = vshrl.u32 %v4131, 7
        %v4133 = vsub.s32 %v935, %v4132
        %v4134 = vrot.slane %v4114, %v4133
        %v4135 = vsel %vm952, %v4126, %v4122
        %v4136 = vsel %vm954, %v4130, %v4135
        %v4137 = vsel %vm956, %v4134, %v4136
        %v4139 = vsel %vm959, %v4137, -inf
        %4140 = vmax.xlane.f32.xlu0 %v4139
        %v4141 = vpop.xlane.xlu0 %4140
        %v4143 = vlaneseq
        %v4144 = vshrl.u32 %v4143, 7
        %v4145 = vsub.s32 0, %v4144
        %v4146 = vrot.slane %v4141, %v4145
        %v4147 = vlaneseq
        %v4148 = vshrl.u32 %v4147, 7
        %v4149 = vsub.s32 1, %v4148
        %v4150 = vrot.slane %v4141, %v4149
        %v4151 = vlaneseq
        %v4152 = vshrl.u32 %v4151, 7
        %v4153 = vsub.s32 2, %v4152
        %v4154 = vrot.slane %v4141, %v4153
        %v4155 = vlaneseq
        %v4156 = vshrl.u32 %v4155, 7
        %v4157 = vsub.s32 3, %v4156
        %v4158 = vrot.slane %v4141, %v4157
        %v4163 = vsub.f32 %v4108, %v4146
        %v4164 = vsub.f32 %v4110, %v4150
        %v4165 = vsub.f32 %v4112, %v4154
        %v4166 = vsub.f32 %v4114, %v4158
        %v4167 = vmul.f32 %v4163, 1.442695
        %v4168 = vpow.pop %v4167
        %v4169 = vmul.f32 %v4164, 1.442695
        %v4170 = vpow.pop %v4169
        %v4171 = vmul.f32 %v4165, 1.442695
        %v4172 = vpow.pop %v4171
        %v4173 = vmul.f32 %v4166, 1.442695
        %v4174 = vpow.pop %v4173
        %4179 = vset.pattern.permute.xlu0 0
        %4180 = vperm.xlu0 %4179, %v4168
        %v4181 = vpop.permute.xlu0 %4180
        %4182 = vset.pattern.permute.xlu0 0
        %4183 = vperm.xlu0 %4182, %v4170
        %v4184 = vpop.permute.xlu0 %4183
        %4185 = vset.pattern.permute.xlu0 0
        %4186 = vperm.xlu0 %4185, %v4172
        %v4187 = vpop.permute.xlu0 %4186
        %4188 = vset.pattern.permute.xlu0 0
        %4189 = vperm.xlu0 %4188, %v4174
        %v4190 = vpop.permute.xlu0 %4189
        %v4191 = vlaneseq
        %v4192 = vshrl.u32 %v4191, 7
        %v4193 = vsub.s32 %v935, %v4192
        %v4194 = vrot.slane %v4181, %v4193
        %v4195 = vlaneseq
        %v4196 = vshrl.u32 %v4195, 7
        %v4197 = vsub.s32 %v935, %v4196
        %v4198 = vrot.slane %v4184, %v4197
        %v4199 = vlaneseq
        %v4200 = vshrl.u32 %v4199, 7
        %v4201 = vsub.s32 %v935, %v4200
        %v4202 = vrot.slane %v4187, %v4201
        %v4203 = vlaneseq
        %v4204 = vshrl.u32 %v4203, 7
        %v4205 = vsub.s32 %v935, %v4204
        %v4206 = vrot.slane %v4190, %v4205
        %v4207 = vsel %vm952, %v4198, %v4194
        %v4208 = vsel %vm954, %v4202, %v4207
        %v4209 = vsel %vm956, %v4206, %v4208
        %v4211 = vsel %vm959, %v4209, 0.0
        %4212 = vadd.xlane.f32.xlu0 %v4211
        %v4213 = vpop.xlane.xlu0 %4212
        %v4215 = vlaneseq
        %v4216 = vshrl.u32 %v4215, 7
        %v4217 = vsub.s32 0, %v4216
        %v4218 = vrot.slane %v4213, %v4217
        %v4219 = vlaneseq
        %v4220 = vshrl.u32 %v4219, 7
        %v4221 = vsub.s32 1, %v4220
        %v4222 = vrot.slane %v4213, %v4221
        %v4223 = vlaneseq
        %v4224 = vshrl.u32 %v4223, 7
        %v4225 = vsub.s32 2, %v4224
        %v4226 = vrot.slane %v4213, %v4225
        %v4227 = vlaneseq
        %v4228 = vshrl.u32 %v4227, 7
        %v4229 = vsub.s32 3, %v4228
        %v4230 = vrot.slane %v4213, %v4229
        %v4235 = vrcp.pop %v4218
        %v4236 = vmul.f32 %v4168, %v4235
        %v4237 = vrcp.pop %v4222
        %v4238 = vmul.f32 %v4170, %v4237
        %v4239 = vrcp.pop %v4226
        %v4240 = vmul.f32 %v4172, %v4239
        %v4241 = vrcp.pop %v4230
        %v4242 = vmul.f32 %v4174, %v4241
        %4247 = vset.pattern.permute.xlu0 0
        %4248 = vperm.xlu0 %4247, %v4236
        %v4249 = vpop.permute.xlu0 %4248
        %4250 = vset.pattern.permute.xlu0 0
        %4251 = vperm.xlu0 %4250, %v4238
        %v4252 = vpop.permute.xlu0 %4251
        %4253 = vset.pattern.permute.xlu0 0
        %4254 = vperm.xlu0 %4253, %v4240
        %v4255 = vpop.permute.xlu0 %4254
        %4256 = vset.pattern.permute.xlu0 0
        %4257 = vperm.xlu0 %4256, %v4242
        %v4258 = vpop.permute.xlu0 %4257
        %v4259 = vlaneseq
        %v4260 = vshrl.u32 %v4259, 7
        %v4261 = vsub.s32 %v935, %v4260
        %v4262 = vrot.slane %v4249, %v4261
        %v4263 = vlaneseq
        %v4264 = vshrl.u32 %v4263, 7
        %v4265 = vsub.s32 %v935, %v4264
        %v4266 = vrot.slane %v4252, %v4265
        %v4267 = vlaneseq
        %v4268 = vshrl.u32 %v4267, 7
        %v4269 = vsub.s32 %v935, %v4268
        %v4270 = vrot.slane %v4255, %v4269
        %v4271 = vlaneseq
        %v4272 = vshrl.u32 %v4271, 7
        %v4273 = vsub.s32 %v935, %v4272
        %v4274 = vrot.slane %v4258, %v4273
        %v4275 = vsel %vm952, %v4266, %v4262
        %v4276 = vsel %vm954, %v4270, %v4275
        %v4277 = vsel %vm956, %v4274, %v4276
        %s4279 = scalar_lea.vmem %s642, 20 [#allocation24]
        %4280 = vst.msk [vmem:[%s4279] sm:$0xf] %vm959, %v4277
        %v4285 = vmul.f32 %v4249, %v655
        %v4286 = vmul.f32 %v4252, %v656
        %v4287 = vmul.f32 %v4255, %v657
        %v4288 = vmul.f32 %v4258, %v658
        %v4289 = vrot.slane %v4285, 4
        %v4290 = vadd.f32 %v4285, %v4289
        %v4291 = vrot.slane %v4290, 2
        %v4292 = vadd.f32 %v4290, %v4291
        %v4293 = vrot.slane %v4292, 1
        %v4294 = vadd.f32 %v4292, %v4293
        %v4295 = vrot.slane %v4286, 4
        %v4296 = vadd.f32 %v4286, %v4295
        %v4297 = vrot.slane %v4296, 2
        %v4298 = vadd.f32 %v4296, %v4297
        %v4299 = vrot.slane %v4298, 1
        %v4300 = vadd.f32 %v4298, %v4299
        %v4301 = vrot.slane %v4287, 4
        %v4302 = vadd.f32 %v4287, %v4301
        %v4303 = vrot.slane %v4302, 2
        %v4304 = vadd.f32 %v4302, %v4303
        %v4305 = vrot.slane %v4304, 1
        %v4306 = vadd.f32 %v4304, %v4305
        %v4307 = vrot.slane %v4288, 4
        %v4308 = vadd.f32 %v4288, %v4307
        %v4309 = vrot.slane %v4308, 2
        %v4310 = vadd.f32 %v4308, %v4309
        %v4311 = vrot.slane %v4310, 1
        %v4312 = vadd.f32 %v4310, %v4311
        %s4313 = scalar_lea.vmem %s551, 60 [#allocation3]
        %v4314 = vld [vmem:[%s4313] sm:$0xff]
        %v4315 = vld [vmem:[%s4313 + $0x8] sm:$0xf]
        %v4316 = vpack.c.bf16 %v4294, %v4294
        %v4317 = vpack.c.bf16 %v4300, %v4300
        %v4318 = vpack.c.bf16 %v4306, %v4306
        %v4319 = vpack.c.bf16 %v4312, %v4312
        %v4324 = vunpack.c.l.b16 %v4316
        %v4325 = vunpack.c.l.b16 %v4317
        %v4326 = vunpack.c.l.b16 %v4318
        %v4327 = vunpack.c.l.b16 %v4319
        %v4328 = vsel %vm952, %v4325, %v4324
        %v4329 = vsel %vm954, %v4326, %v4328
        %v4330 = vsel %vm956, %v4327, %v4329
        %v4331 = vpack.c.b16 %v4330, %v4330
        %4333 = vmatprep.subr.bf16.mxu0 %v1233
        %4334 = vmatpush1.bf16.msra.mxu0 %v1232
        %4335 = vmatprep.subr.bf16.mxu0 %v1236
        %4336 = vmatpush1.bf16.msra.mxu0 %v1235
        %4337 = vmatprep.subr.bf16.mxu0 %v1239
        %4338 = vmatpush1.bf16.msra.mxu0 %v1238
        %4339 = vmatprep.subr.bf16.mxu0 %v1242
        %4340 = vmatpush1.bf16.msra.mxu0 %v1241
        %4341 = vmatprep.subr.bf16.mxu0 %v1245
        %4342 = vmatpush1.bf16.msra.mxu0 %v1244
        %4343 = vmatprep.subr.bf16.mxu0 %v1248
        %4344 = vmatpush1.bf16.msra.mxu0 %v1247
        %4345 = vmatprep.subr.bf16.mxu0 %v1251
        %4346 = vmatpush1.bf16.msra.mxu0 %v1250
        %4347 = vmatprep.subr.bf16.mxu0 %v1254
        %4348 = vmatpush1.bf16.msra.mxu0 %v1253
        %4349 = vmatprep.subr.bf16.mxu0 0
        %4350 = vmatpush1.bf16.msra.mxu0 0
        %4351 = vmatprep.subr.bf16.mxu0 0
        %4352 = vmatpush1.bf16.msra.mxu0 0
        %4353 = vmatprep.subr.bf16.mxu0 0
        %4354 = vmatpush1.bf16.msra.mxu0 0
        %4355 = vmatprep.subr.bf16.mxu0 0
        %4356 = vmatpush1.bf16.msra.mxu0 0
        %4357 = vmatprep.subr.bf16.mxu0 0
        %4358 = vmatpush1.bf16.msra.mxu0 0
        %4359 = vmatprep.subr.bf16.mxu0 0
        %4360 = vmatpush1.bf16.msra.mxu0 0
        %4361 = vmatprep.subr.bf16.mxu0 0
        %4362 = vmatpush1.bf16.msra.mxu0 0
        %4363 = vmatprep.subr.bf16.mxu0 0
        %4364 = vmatpush1.bf16.msra.mxu0 0
        %4365 = vmatprep.mubr.bf16.mxu0 0
        %4366 = vmatmul.mubr.bf16.gmra.mrb[0].mxu0 %v4331
        %v4367 = vpop.f32.mrb[0].mxu0
        %v4368 = vadd.f32 0.0, %v4367
        %v4369 = vpop.f32.mrb[0].mxu0
        %v4370 = vadd.f32 0.0, %v4369
        %v4371 = vpop.f32.mrb[0].mxu0
        %v4372 = vpop.f32.mrb[0].mxu0
        %4373 = vdwg.mxu0
        %4374 = vmatprep.subr.bf16.mxu0 0
        %4375 = vmatpush1.bf16.msra.mxu0 %v1234
        %4376 = vmatprep.subr.bf16.mxu0 0
        %4377 = vmatpush1.bf16.msra.mxu0 %v1237
        %4378 = vmatprep.subr.bf16.mxu0 0
        %4379 = vmatpush1.bf16.msra.mxu0 %v1240
        %4380 = vmatprep.subr.bf16.mxu0 0
        %4381 = vmatpush1.bf16.msra.mxu0 %v1243
        %4382 = vmatprep.subr.bf16.mxu0 0
        %4383 = vmatpush1.bf16.msra.mxu0 %v1246
        %4384 = vmatprep.subr.bf16.mxu0 0
        %4385 = vmatpush1.bf16.msra.mxu0 %v1249
        %4386 = vmatprep.subr.bf16.mxu0 0
        %4387 = vmatpush1.bf16.msra.mxu0 %v1252
        %4388 = vmatprep.subr.bf16.mxu0 0
        %4389 = vmatpush1.bf16.msra.mxu0 %v1255
        %4390 = vmatprep.subr.bf16.mxu0 0
        %4391 = vmatpush1.bf16.msra.mxu0 0
        %4392 = vmatprep.subr.bf16.mxu0 0
        %4393 = vmatpush1.bf16.msra.mxu0 0
        %4394 = vmatprep.subr.bf16.mxu0 0
        %4395 = vmatpush1.bf16.msra.mxu0 0
        %4396 = vmatprep.subr.bf16.mxu0 0
        %4397 = vmatpush1.bf16.msra.mxu0 0
        %4398 = vmatprep.subr.bf16.mxu0 0
        %4399 = vmatpush1.bf16.msra.mxu0 0
        %4400 = vmatprep.subr.bf16.mxu0 0
        %4401 = vmatpush1.bf16.msra.mxu0 0
        %4402 = vmatprep.subr.bf16.mxu0 0
        %4403 = vmatpush1.bf16.msra.mxu0 0
        %4404 = vmatprep.subr.bf16.mxu0 0
        %4405 = vmatpush1.bf16.msra.mxu0 0
        %4406 = vmatprep.mubr.bf16.mxu0 0
        %4407 = vmatmul.mubr.bf16.gmra.mrb[0].mxu0 %v4331
        %v4408 = vpop.f32.mrb[0].mxu0
        %v4409 = vadd.f32 0.0, %v4408
        %v4410 = vpop.f32.mrb[0].mxu0
        %v4411 = vpop.f32.mrb[0].mxu0
        %v4412 = vpop.f32.mrb[0].mxu0
        %4413 = vdwg.mxu0
        %v4416 = vcombine.low %v4368, %v4370
        %v4418 = vadd.f32 %v4314, %v4416
        %v4419 = vadd.f32 %v4315, %v4409
        %4420 = vmatprep.subr.bf16.mxu0 %v1464
        %4421 = vmatpush1.bf16.msra.mxu0 %v1463
        %4422 = vmatprep.subr.bf16.mxu0 %v1467
        %4423 = vmatpush1.bf16.msra.mxu0 %v1466
        %4424 = vmatprep.subr.bf16.mxu0 %v1470
        %4425 = vmatpush1.bf16.msra.mxu0 %v1469
        %4426 = vmatprep.subr.bf16.mxu0 %v1473
        %4427 = vmatpush1.bf16.msra.mxu0 %v1472
        %4428 = vmatprep.subr.bf16.mxu0 %v1476
        %4429 = vmatpush1.bf16.msra.mxu0 %v1475
        %4430 = vmatprep.subr.bf16.mxu0 %v1479
        %4431 = vmatpush1.bf16.msra.mxu0 %v1478
        %4432 = vmatprep.subr.bf16.mxu0 %v1482
        %4433 = vmatpush1.bf16.msra.mxu0 %v1481
        %4434 = vmatprep.subr.bf16.mxu0 %v1485
        %4435 = vmatpush1.bf16.msra.mxu0 %v1484
        %4436 = vmatprep.subr.bf16.mxu0 0
        %4437 = vmatpush1.bf16.msra.mxu0 0
        %4438 = vmatprep.subr.bf16.mxu0 0
        %4439 = vmatpush1.bf16.msra.mxu0 0
        %4440 = vmatprep.subr.bf16.mxu0 0
        %4441 = vmatpush1.bf16.msra.mxu0 0
        %4442 = vmatprep.subr.bf16.mxu0 0
        %4443 = vmatpush1.bf16.msra.mxu0 0
        %4444 = vmatprep.subr.bf16.mxu0 0
        %4445 = vmatpush1.bf16.msra.mxu0 0
        %4446 = vmatprep.subr.bf16.mxu0 0
        %4447 = vmatpush1.bf16.msra.mxu0 0
        %4448 = vmatprep.subr.bf16.mxu0 0
        %4449 = vmatpush1.bf16.msra.mxu0 0
        %4450 = vmatprep.subr.bf16.mxu0 0
        %4451 = vmatpush1.bf16.msra.mxu0 0
        %4452 = vmatprep.mubr.bf16.mxu0 0
        %4453 = vmatmul.mubr.bf16.gmra.mrb[0].mxu0 %v3954
        %v4454 = vpop.f32.mrb[0].mxu0
        %v4455 = vadd.f32 %v1371, %v4454
        %v4456 = vpop.f32.mrb[0].mxu0
        %v4457 = vadd.f32 %v1375, %v4456
        %v4458 = vpop.f32.mrb[0].mxu0
        %v4459 = vpop.f32.mrb[0].mxu0
        %4460 = vdwg.mxu0
        %4461 = vmatprep.subr.bf16.mxu0 0
        %4462 = vmatpush1.bf16.msra.mxu0 %v1465
        %4463 = vmatprep.subr.bf16.mxu0 0
        %4464 = vmatpush1.bf16.msra.mxu0 %v1468
        %4465 = vmatprep.subr.bf16.mxu0 0
        %4466 = vmatpush1.bf16.msra.mxu0 %v1471
        %4467 = vmatprep.subr.bf16.mxu0 0
        %4468 = vmatpush1.bf16.msra.mxu0 %v1474
        %4469 = vmatprep.subr.bf16.mxu0 0
        %4470 = vmatpush1.bf16.msra.mxu0 %v1477
        %4471 = vmatprep.subr.bf16.mxu0 0
        %4472 = vmatpush1.bf16.msra.mxu0 %v1480
        %4473 = vmatprep.subr.bf16.mxu0 0
        %4474 = vmatpush1.bf16.msra.mxu0 %v1483
        %4475 = vmatprep.subr.bf16.mxu0 0
        %4476 = vmatpush1.bf16.msra.mxu0 %v1486
        %4477 = vmatprep.subr.bf16.mxu0 0
        %4478 = vmatpush1.bf16.msra.mxu0 0
        %4479 = vmatprep.subr.bf16.mxu0 0
        %4480 = vmatpush1.bf16.msra.mxu0 0
        %4481 = vmatprep.subr.bf16.mxu0 0
        %4482 = vmatpush1.bf16.msra.mxu0 0
        %4483 = vmatprep.subr.bf16.mxu0 0
        %4484 = vmatpush1.bf16.msra.mxu0 0
        %4485 = vmatprep.subr.bf16.mxu0 0
        %4486 = vmatpush1.bf16.msra.mxu0 0
        %4487 = vmatprep.subr.bf16.mxu0 0
        %4488 = vmatpush1.bf16.msra.mxu0 0
        %4489 = vmatprep.subr.bf16.mxu0 0
        %4490 = vmatpush1.bf16.msra.mxu0 0
        %4491 = vmatprep.subr.bf16.mxu0 0
        %4492 = vmatpush1.bf16.msra.mxu0 0
        %4493 = vmatprep.mubr.bf16.mxu0 0
        %4494 = vmatmul.mubr.bf16.gmra.mrb[0].mxu0 %v3954
        %v4495 = vpop.f32.mrb[0].mxu0
        %v4496 = vadd.f32 %v1379, %v4495
        %v4497 = vpop.f32.mrb[0].mxu0
        %v4498 = vpop.f32.mrb[0].mxu0
        %v4499 = vpop.f32.mrb[0].mxu0
        %4500 = vdwg.mxu0
        %v4501 = vadd.f32 %v4418, %v4455
        %v4502 = vxor.u32 %v4501, 2147483648
        %v4503 = vmul.f32 %v4502, 1.442695
        %v4504 = vpow.pop %v4503
        %v4505 = vadd.f32 %v4504, 1.0
        %v4506 = vrcp.pop %v4505
        %v4507 = vmul.f32 1.0, %v4506
        %v4509 = vrot.slane %v4418, 4
        %v4511 = vadd.f32 %v4509, %v4457
        %v4512 = vxor.u32 %v4511, 2147483648
        %v4513 = vmul.f32 %v4512, 1.442695
        %v4514 = vpow.pop %v4513
        %v4515 = vadd.f32 %v4514, 1.0
        %v4516 = vrcp.pop %v4515
        %v4517 = vmul.f32 1.0, %v4516
        %v4518 = vmul.f32 %v4507, %v4496
        %v4519 = vadd.f32 %v4419, %v4518
        %v4520 = vtanh.pop %v4519
        %v4521 = vsub.f32 1.0, %v4517
        %v4522 = vmul.f32 %v4521, %v4520
        %v4523 = vmul.f32 %v4517, %v3953
        %v4524 = vadd.f32 %v4522, %v4523
        %v4525 = vpack.c.bf16 %v4524, %v4524
        %4526 = vmatprep.subr.bf16.mxu0 0
        %4527 = vmatpush1.bf16.msra.mxu0 %v1655
        %4528 = vmatprep.subr.bf16.mxu0 0
        %4529 = vmatpush1.bf16.msra.mxu0 %v1656
        %4530 = vmatprep.subr.bf16.mxu0 0
        %4531 = vmatpush1.bf16.msra.mxu0 %v1657
        %4532 = vmatprep.subr.bf16.mxu0 0
        %4533 = vmatpush1.bf16.msra.mxu0 %v1658
        %4534 = vmatprep.subr.bf16.mxu0 0
        %4535 = vmatpush1.bf16.msra.mxu0 %v1659
        %4536 = vmatprep.subr.bf16.mxu0 0
        %4537 = vmatpush1.bf16.msra.mxu0 %v1660
        %4538 = vmatprep.subr.bf16.mxu0 0
        %4539 = vmatpush1.bf16.msra.mxu0 %v1661
        %4540 = vmatprep.subr.bf16.mxu0 0
        %4541 = vmatpush1.bf16.msra.mxu0 %v1662
        %4542 = vmatprep.subr.bf16.mxu0 0
        %4543 = vmatpush1.bf16.msra.mxu0 0
        %4544 = vmatprep.subr.bf16.mxu0 0
        %4545 = vmatpush1.bf16.msra.mxu0 0
        %4546 = vmatprep.subr.bf16.mxu0 0
        %4547 = vmatpush1.bf16.msra.mxu0 0
        %4548 = vmatprep.subr.bf16.mxu0 0
        %4549 = vmatpush1.bf16.msra.mxu0 0
        %4550 = vmatprep.subr.bf16.mxu0 0
        %4551 = vmatpush1.bf16.msra.mxu0 0
        %4552 = vmatprep.subr.bf16.mxu0 0
        %4553 = vmatpush1.bf16.msra.mxu0 0
        %4554 = vmatprep.subr.bf16.mxu0 0
        %4555 = vmatpush1.bf16.msra.mxu0 0
        %4556 = vmatprep.subr.bf16.mxu0 0
        %4557 = vmatpush1.bf16.msra.mxu0 0
        %4558 = vmatprep.mubr.bf16.mxu0 0
        %4559 = vmatmul.mubr.bf16.gmra.mrb[0].mxu0 %v4525
        %v4560 = vpop.f32.mrb[0].mxu0
        %v4561 = vadd.f32 %v1621, %v4560
        %v4562 = vpop.f32.mrb[0].mxu0
        %v4563 = vpop.f32.mrb[0].mxu0
        %v4564 = vpop.f32.mrb[0].mxu0
        %4565 = vdwg.mxu0
        %v4566 = vsel %vm1711, %v4561, -inf
        %4567 = vmax.xlane.f32.xlu0 %v4566
        %v4568 = vpop.xlane.xlu0 %4567
        %v4569 = vsub.f32 %v4561, %v4568
        %v4570 = vmul.f32 %v4569, 1.442695
        %v4571 = vpow.pop %v4570
        %v4572 = vsel %vm1711, %v4571, 0.0
        %4573 = vadd.xlane.f32.xlu0 %v4572
        %v4574 = vpop.xlane.xlu0 %4573
        %v4575 = vlog2.pop %v4574
        %v4576 = vmul.f32 %v4575, 0.6931472
        %v4577 = vadd.f32 %v4576, %v4568
        %v4578 = vsub.f32 %v4561, %v4577
        %s4579 = scalar_lea.vmem %s635, 20 [#allocation23]
        %4580 = vst [vmem:[%s4579] sm:$0xf] %v4578
        %4581 = vmatprep.subr.bf16.mxu0 0
        %4582 = vmatpush1.bf16.msra.mxu0 %v803
        %4583 = vmatprep.subr.bf16.mxu0 0
        %4584 = vmatpush1.bf16.msra.mxu0 %v804
        %4585 = vmatprep.subr.bf16.mxu0 0
        %4586 = vmatpush1.bf16.msra.mxu0 %v805
        %4587 = vmatprep.subr.bf16.mxu0 0
        %4588 = vmatpush1.bf16.msra.mxu0 %v806
        %4589 = vmatprep.subr.bf16.mxu0 0
        %4590 = vmatpush1.bf16.msra.mxu0 %v807
        %4591 = vmatprep.subr.bf16.mxu0 0
        %4592 = vmatpush1.bf16.msra.mxu0 %v808
        %4593 = vmatprep.subr.bf16.mxu0 0
        %4594 = vmatpush1.bf16.msra.mxu0 %v809
        %4595 = vmatprep.subr.bf16.mxu0 0
        %4596 = vmatpush1.bf16.msra.mxu0 %v810
        %4597 = vmatprep.subr.bf16.mxu0 0
        %4598 = vmatpush1.bf16.msra.mxu0 0
        %4599 = vmatprep.subr.bf16.mxu0 0
        %4600 = vmatpush1.bf16.msra.mxu0 0
        %4601 = vmatprep.subr.bf16.mxu0 0
        %4602 = vmatpush1.bf16.msra.mxu0 0
        %4603 = vmatprep.subr.bf16.mxu0 0
        %4604 = vmatpush1.bf16.msra.mxu0 0
        %4605 = vmatprep.subr.bf16.mxu0 0
        %4606 = vmatpush1.bf16.msra.mxu0 0
        %4607 = vmatprep.subr.bf16.mxu0 0
        %4608 = vmatpush1.bf16.msra.mxu0 0
        %4609 = vmatprep.subr.bf16.mxu0 0
        %4610 = vmatpush1.bf16.msra.mxu0 0
        %4611 = vmatprep.subr.bf16.mxu0 0
        %4612 = vmatpush1.bf16.msra.mxu0 0
        %4613 = vmatprep.mubr.bf16.mxu0 0
        %4614 = vmatmul.mubr.bf16.gmra.mrb[0].mxu0 %v4525
        %v4615 = vpop.f32.mrb[0].mxu0
        %v4616 = vadd.f32 %v769, %v4615
        %v4617 = vpop.f32.mrb[0].mxu0
        %v4618 = vpop.f32.mrb[0].mxu0
        %v4619 = vpop.f32.mrb[0].mxu0
        %4620 = vdwg.mxu0
        %v4623 = vunpack.c.l.s4 1966171168
        %v4624 = vunpack.c.0.s8 %v4623
        %v4625 = vlaneseq
        %v4626 = vshrl.u32 %v4625, 7
        %v4627 = vsub.s32 %v4624, %v4626
        %v4628 = vrot.slane %v4616, %v4627
        %v4629 = vcombine.high %v4628, %v4628
        %v4631 = vunpack.c.l.s4 1966171168
        %v4632 = vunpack.c.0.s8 %v4631
        %v4633 = vlaneseq
        %v4634 = vshrl.u32 %v4633, 7
        %v4635 = vsub.s32 %v4632, %v4634
        %v4636 = vrot.slane %v4628, %v4635
        %v4638 = vunpack.c.l.s4 1966171168
        %v4639 = vunpack.c.0.s8 %v4638
        %v4640 = vlaneseq
        %v4641 = vshrl.u32 %v4640, 7
        %v4642 = vsub.s32 %v4639, %v4641
        %v4643 = vrot.slane %v4629, %v4642
        %v4644 = vcombine.high %v4636, %v4636
        %v4645 = vcombine.high %v4643, %v4643
        %v4646 = vlaneseq
        %v4647 = vshrl.u32 %v4646, 7
        %v4648 = vsub.s32 0, %v4647
        %v4649 = vrot.slane %v4636, %v4648
        %v4650 = vlaneseq
        %v4651 = vshrl.u32 %v4650, 7
        %v4652 = vsub.s32 0, %v4651
        %v4653 = vrot.slane %v4643, %v4652
        %v4654 = vlaneseq
        %v4655 = vshrl.u32 %v4654, 7
        %v4656 = vsub.s32 0, %v4655
        %v4657 = vrot.slane %v4644, %v4656
        %v4658 = vlaneseq
        %v4659 = vshrl.u32 %v4658, 7
        %v4660 = vsub.s32 0, %v4659
        %v4661 = vrot.slane %v4645, %v4660
        %v4666 = vadd.f32 %v4649, %v659
        %v4667 = vadd.f32 %v4653, %v660
        %v4668 = vadd.f32 %v4657, %v661
        %v4669 = vadd.f32 %v4661, %v662
        %v4670 = vtanh.pop %v4666
        %v4671 = vtanh.pop %v4667
        %v4672 = vtanh.pop %v4668
        %v4673 = vtanh.pop %v4669
        %v4674 = vmul.f32 %v4670, %v916
        %v4675 = vmul.f32 %v4671, %v916
        %v4676 = vmul.f32 %v4672, %v916
        %v4677 = vmul.f32 %v4673, %v916
        %4678 = vadd.xlane.f32.xlu0 %v4674
        %v4679 = vpop.xlane.xlu0 %4678
        %4680 = vadd.xlane.f32.xlu0 %v4675
        %v4681 = vpop.xlane.xlu0 %4680
        %4682 = vadd.xlane.f32.xlu0 %v4676
        %v4683 = vpop.xlane.xlu0 %4682
        %4684 = vadd.xlane.f32.xlu0 %v4677
        %v4685 = vpop.xlane.xlu0 %4684
        %v4690 = vlaneseq
        %v4691 = vshrl.u32 %v4690, 7
        %v4692 = vsub.s32 %v935, %v4691
        %v4693 = vrot.slane %v4679, %v4692
        %v4694 = vlaneseq
        %v4695 = vshrl.u32 %v4694, 7
        %v4696 = vsub.s32 %v935, %v4695
        %v4697 = vrot.slane %v4681, %v4696
        %v4698 = vlaneseq
        %v4699 = vshrl.u32 %v4698, 7
        %v4700 = vsub.s32 %v935, %v4699
        %v4701 = vrot.slane %v4683, %v4700
        %v4702 = vlaneseq
        %v4703 = vshrl.u32 %v4702, 7
        %v4704 = vsub.s32 %v935, %v4703
        %v4705 = vrot.slane %v4685, %v4704
        %v4706 = vsel %vm952, %v4697, %v4693
        %v4707 = vsel %vm954, %v4701, %v4706
        %v4708 = vsel %vm956, %v4705, %v4707
        %v4710 = vsel %vm959, %v4708, -inf
        %4711 = vmax.xlane.f32.xlu0 %v4710
        %v4712 = vpop.xlane.xlu0 %4711
        %v4714 = vlaneseq
        %v4715 = vshrl.u32 %v4714, 7
        %v4716 = vsub.s32 0, %v4715
        %v4717 = vrot.slane %v4712, %v4716
        %v4718 = vlaneseq
        %v4719 = vshrl.u32 %v4718, 7
        %v4720 = vsub.s32 1, %v4719
        %v4721 = vrot.slane %v4712, %v4720
        %v4722 = vlaneseq
        %v4723 = vshrl.u32 %v4722, 7
        %v4724 = vsub.s32 2, %v4723
        %v4725 = vrot.slane %v4712, %v4724
        %v4726 = vlaneseq
        %v4727 = vshrl.u32 %v4726, 7
        %v4728 = vsub.s32 3, %v4727
        %v4729 = vrot.slane %v4712, %v4728
        %v4734 = vsub.f32 %v4679, %v4717
        %v4735 = vsub.f32 %v4681, %v4721
        %v4736 = vsub.f32 %v4683, %v4725
        %v4737 = vsub.f32 %v4685, %v4729
        %v4738 = vmul.f32 %v4734, 1.442695
        %v4739 = vpow.pop %v4738
        %v4740 = vmul.f32 %v4735, 1.442695
        %v4741 = vpow.pop %v4740
        %v4742 = vmul.f32 %v4736, 1.442695
        %v4743 = vpow.pop %v4742
        %v4744 = vmul.f32 %v4737, 1.442695
        %v4745 = vpow.pop %v4744
        %4750 = vset.pattern.permute.xlu0 0
        %4751 = vperm.xlu0 %4750, %v4739
        %v4752 = vpop.permute.xlu0 %4751
        %4753 = vset.pattern.permute.xlu0 0
        %4754 = vperm.xlu0 %4753, %v4741
        %v4755 = vpop.permute.xlu0 %4754
        %4756 = vset.pattern.permute.xlu0 0
        %4757 = vperm.xlu0 %4756, %v4743
        %v4758 = vpop.permute.xlu0 %4757
        %4759 = vset.pattern.permute.xlu0 0
        %4760 = vperm.xlu0 %4759, %v4745
        %v4761 = vpop.permute.xlu0 %4760
        %v4762 = vlaneseq
        %v4763 = vshrl.u32 %v4762, 7
        %v4764 = vsub.s32 %v935, %v4763
        %v4765 = vrot.slane %v4752, %v4764
        %v4766 = vlaneseq
        %v4767 = vshrl.u32 %v4766, 7
        %v4768 = vsub.s32 %v935, %v4767
        %v4769 = vrot.slane %v4755, %v4768
        %v4770 = vlaneseq
        %v4771 = vshrl.u32 %v4770, 7
        %v4772 = vsub.s32 %v935, %v4771
        %v4773 = vrot.slane %v4758, %v4772
        %v4774 = vlaneseq
        %v4775 = vshrl.u32 %v4774, 7
        %v4776 = vsub.s32 %v935, %v4775
        %v4777 = vrot.slane %v4761, %v4776
        %v4778 = vsel %vm952, %v4769, %v4765
        %v4779 = vsel %vm954, %v4773, %v4778
        %v4780 = vsel %vm956, %v4777, %v4779
        %v4782 = vsel %vm959, %v4780, 0.0
        %4783 = vadd.xlane.f32.xlu0 %v4782
        %v4784 = vpop.xlane.xlu0 %4783
        %v4786 = vlaneseq
        %v4787 = vshrl.u32 %v4786, 7
        %v4788 = vsub.s32 0, %v4787
        %v4789 = vrot.slane %v4784, %v4788
        %v4790 = vlaneseq
        %v4791 = vshrl.u32 %v4790, 7
        %v4792 = vsub.s32 1, %v4791
        %v4793 = vrot.slane %v4784, %v4792
        %v4794 = vlaneseq
        %v4795 = vshrl.u32 %v4794, 7
        %v4796 = vsub.s32 2, %v4795
        %v4797 = vrot.slane %v4784, %v4796
        %v4798 = vlaneseq
        %v4799 = vshrl.u32 %v4798, 7
        %v4800 = vsub.s32 3, %v4799
        %v4801 = vrot.slane %v4784, %v4800
        %v4806 = vrcp.pop %v4789
        %v4807 = vmul.f32 %v4739, %v4806
        %v4808 = vrcp.pop %v4793
        %v4809 = vmul.f32 %v4741, %v4808
        %v4810 = vrcp.pop %v4797
        %v4811 = vmul.f32 %v4743, %v4810
        %v4812 = vrcp.pop %v4801
        %v4813 = vmul.f32 %v4745, %v4812
        %4818 = vset.pattern.permute.xlu0 0
        %4819 = vperm.xlu0 %4818, %v4807
        %v4820 = vpop.permute.xlu0 %4819
        %4821 = vset.pattern.permute.xlu0 0
        %4822 = vperm.xlu0 %4821, %v4809
        %v4823 = vpop.permute.xlu0 %4822
        %4824 = vset.pattern.permute.xlu0 0
        %4825 = vperm.xlu0 %4824, %v4811
        %v4826 = vpop.permute.xlu0 %4825
        %4827 = vset.pattern.permute.xlu0 0
        %4828 = vperm.xlu0 %4827, %v4813
        %v4829 = vpop.permute.xlu0 %4828
        %v4830 = vlaneseq
        %v4831 = vshrl.u32 %v4830, 7
        %v4832 = vsub.s32 %v935, %v4831
        %v4833 = vrot.slane %v4820, %v4832
        %v4834 = vlaneseq
        %v4835 = vshrl.u32 %v4834, 7
        %v4836 = vsub.s32 %v935, %v4835
        %v4837 = vrot.slane %v4823, %v4836
        %v4838 = vlaneseq
        %v4839 = vshrl.u32 %v4838, 7
        %v4840 = vsub.s32 %v935, %v4839
        %v4841 = vrot.slane %v4826, %v4840
        %v4842 = vlaneseq
        %v4843 = vshrl.u32 %v4842, 7
        %v4844 = vsub.s32 %v935, %v4843
        %v4845 = vrot.slane %v4829, %v4844
        %v4846 = vsel %vm952, %v4837, %v4833
        %v4847 = vsel %vm954, %v4841, %v4846
        %v4848 = vsel %vm956, %v4845, %v4847
        %s4850 = scalar_lea.vmem %s642, 24 [#allocation24]
        %4851 = vst.msk [vmem:[%s4850] sm:$0xf] %vm959, %v4848
        %v4856 = vmul.f32 %v4820, %v655
        %v4857 = vmul.f32 %v4823, %v656
        %v4858 = vmul.f32 %v4826, %v657
        %v4859 = vmul.f32 %v4829, %v658
        %v4860 = vrot.slane %v4856, 4
        %v4861 = vadd.f32 %v4856, %v4860
        %v4862 = vrot.slane %v4861, 2
        %v4863 = vadd.f32 %v4861, %v4862
        %v4864 = vrot.slane %v4863, 1
        %v4865 = vadd.f32 %v4863, %v4864
        %v4866 = vrot.slane %v4857, 4
        %v4867 = vadd.f32 %v4857, %v4866
        %v4868 = vrot.slane %v4867, 2
        %v4869 = vadd.f32 %v4867, %v4868
        %v4870 = vrot.slane %v4869, 1
        %v4871 = vadd.f32 %v4869, %v4870
        %v4872 = vrot.slane %v4858, 4
        %v4873 = vadd.f32 %v4858, %v4872
        %v4874 = vrot.slane %v4873, 2
        %v4875 = vadd.f32 %v4873, %v4874
        %v4876 = vrot.slane %v4875, 1
        %v4877 = vadd.f32 %v4875, %v4876
        %v4878 = vrot.slane %v4859, 4
        %v4879 = vadd.f32 %v4859, %v4878
        %v4880 = vrot.slane %v4879, 2
        %v4881 = vadd.f32 %v4879, %v4880
        %v4882 = vrot.slane %v4881, 1
        %v4883 = vadd.f32 %v4881, %v4882
        %s4884 = scalar_lea.vmem %s551, 72 [#allocation3]
        %v4885 = vld [vmem:[%s4884] sm:$0xff]
        %v4886 = vld [vmem:[%s4884 + $0x8] sm:$0xf]
        %v4887 = vpack.c.bf16 %v4865, %v4865
        %v4888 = vpack.c.bf16 %v4871, %v4871
        %v4889 = vpack.c.bf16 %v4877, %v4877
        %v4890 = vpack.c.bf16 %v4883, %v4883
        %v4895 = vunpack.c.l.b16 %v4887
        %v4896 = vunpack.c.l.b16 %v4888
        %v4897 = vunpack.c.l.b16 %v4889
        %v4898 = vunpack.c.l.b16 %v4890
        %v4899 = vsel %vm952, %v4896, %v4895
        %v4900 = vsel %vm954, %v4897, %v4899
        %v4901 = vsel %vm956, %v4898, %v4900
        %v4902 = vpack.c.b16 %v4901, %v4901
        %4904 = vmatprep.subr.bf16.mxu0 %v1233
        %4905 = vmatpush1.bf16.msra.mxu0 %v1232
        %4906 = vmatprep.subr.bf16.mxu0 %v1236
        %4907 = vmatpush1.bf16.msra.mxu0 %v1235
        %4908 = vmatprep.subr.bf16.mxu0 %v1239
        %4909 = vmatpush1.bf16.msra.mxu0 %v1238
        %4910 = vmatprep.subr.bf16.mxu0 %v1242
        %4911 = vmatpush1.bf16.msra.mxu0 %v1241
        %4912 = vmatprep.subr.bf16.mxu0 %v1245
        %4913 = vmatpush1.bf16.msra.mxu0 %v1244
        %4914 = vmatprep.subr.bf16.mxu0 %v1248
        %4915 = vmatpush1.bf16.msra.mxu0 %v1247
        %4916 = vmatprep.subr.bf16.mxu0 %v1251
        %4917 = vmatpush1.bf16.msra.mxu0 %v1250
        %4918 = vmatprep.subr.bf16.mxu0 %v1254
        %4919 = vmatpush1.bf16.msra.mxu0 %v1253
        %4920 = vmatprep.subr.bf16.mxu0 0
        %4921 = vmatpush1.bf16.msra.mxu0 0
        %4922 = vmatprep.subr.bf16.mxu0 0
        %4923 = vmatpush1.bf16.msra.mxu0 0
        %4924 = vmatprep.subr.bf16.mxu0 0
        %4925 = vmatpush1.bf16.msra.mxu0 0
        %4926 = vmatprep.subr.bf16.mxu0 0
        %4927 = vmatpush1.bf16.msra.mxu0 0
        %4928 = vmatprep.subr.bf16.mxu0 0
        %4929 = vmatpush1.bf16.msra.mxu0 0
        %4930 = vmatprep.subr.bf16.mxu0 0
        %4931 = vmatpush1.bf16.msra.mxu0 0
        %4932 = vmatprep.subr.bf16.mxu0 0
        %4933 = vmatpush1.bf16.msra.mxu0 0
        %4934 = vmatprep.subr.bf16.mxu0 0
        %4935 = vmatpush1.bf16.msra.mxu0 0
        %4936 = vmatprep.mubr.bf16.mxu0 0
        %4937 = vmatmul.mubr.bf16.gmra.mrb[0].mxu0 %v4902
        %v4938 = vpop.f32.mrb[0].mxu0
        %v4939 = vadd.f32 0.0, %v4938
        %v4940 = vpop.f32.mrb[0].mxu0
        %v4941 = vadd.f32 0.0, %v4940
        %v4942 = vpop.f32.mrb[0].mxu0
        %v4943 = vpop.f32.mrb[0].mxu0
        %4944 = vdwg.mxu0
        %4945 = vmatprep.subr.bf16.mxu0 0
        %4946 = vmatpush1.bf16.msra.mxu0 %v1234
        %4947 = vmatprep.subr.bf16.mxu0 0
        %4948 = vmatpush1.bf16.msra.mxu0 %v1237
        %4949 = vmatprep.subr.bf16.mxu0 0
        %4950 = vmatpush1.bf16.msra.mxu0 %v1240
        %4951 = vmatprep.subr.bf16.mxu0 0
        %4952 = vmatpush1.bf16.msra.mxu0 %v1243
        %4953 = vmatprep.subr.bf16.mxu0 0
        %4954 = vmatpush1.bf16.msra.mxu0 %v1246
        %4955 = vmatprep.subr.bf16.mxu0 0
        %4956 = vmatpush1.bf16.msra.mxu0 %v1249
        %4957 = vmatprep.subr.bf16.mxu0 0
        %4958 = vmatpush1.bf16.msra.mxu0 %v1252
        %4959 = vmatprep.subr.bf16.mxu0 0
        %4960 = vmatpush1.bf16.msra.mxu0 %v1255
        %4961 = vmatprep.subr.bf16.mxu0 0
        %4962 = vmatpush1.bf16.msra.mxu0 0
        %4963 = vmatprep.subr.bf16.mxu0 0
        %4964 = vmatpush1.bf16.msra.mxu0 0
        %4965 = vmatprep.subr.bf16.mxu0 0
        %4966 = vmatpush1.bf16.msra.mxu0 0
        %4967 = vmatprep.subr.bf16.mxu0 0
        %4968 = vmatpush1.bf16.msra.mxu0 0
        %4969 = vmatprep.subr.bf16.mxu0 0
        %4970 = vmatpush1.bf16.msra.mxu0 0
        %4971 = vmatprep.subr.bf16.mxu0 0
        %4972 = vmatpush1.bf16.msra.mxu0 0
        %4973 = vmatprep.subr.bf16.mxu0 0
        %4974 = vmatpush1.bf16.msra.mxu0 0
        %4975 = vmatprep.subr.bf16.mxu0 0
        %4976 = vmatpush1.bf16.msra.mxu0 0
        %4977 = vmatprep.mubr.bf16.mxu0 0
        %4978 = vmatmul.mubr.bf16.gmra.mrb[0].mxu0 %v4902
        %v4979 = vpop.f32.mrb[0].mxu0
        %v4980 = vadd.f32 0.0, %v4979
        %v4981 = vpop.f32.mrb[0].mxu0
        %v4982 = vpop.f32.mrb[0].mxu0
        %v4983 = vpop.f32.mrb[0].mxu0
        %4984 = vdwg.mxu0
        %v4987 = vcombine.low %v4939, %v4941
        %v4989 = vadd.f32 %v4885, %v4987
        %v4990 = vadd.f32 %v4886, %v4980
        %4991 = vmatprep.subr.bf16.mxu0 %v1464
        %4992 = vmatpush1.bf16.msra.mxu0 %v1463
        %4993 = vmatprep.subr.bf16.mxu0 %v1467
        %4994 = vmatpush1.bf16.msra.mxu0 %v1466
        %4995 = vmatprep.subr.bf16.mxu0 %v1470
        %4996 = vmatpush1.bf16.msra.mxu0 %v1469
        %4997 = vmatprep.subr.bf16.mxu0 %v1473
        %4998 = vmatpush1.bf16.msra.mxu0 %v1472
        %4999 = vmatprep.subr.bf16.mxu0 %v1476
        %5000 = vmatpush1.bf16.msra.mxu0 %v1475
        %5001 = vmatprep.subr.bf16.mxu0 %v1479
        %5002 = vmatpush1.bf16.msra.mxu0 %v1478
        %5003 = vmatprep.subr.bf16.mxu0 %v1482
        %5004 = vmatpush1.bf16.msra.mxu0 %v1481
        %5005 = vmatprep.subr.bf16.mxu0 %v1485
        %5006 = vmatpush1.bf16.msra.mxu0 %v1484
        %5007 = vmatprep.subr.bf16.mxu0 0
        %5008 = vmatpush1.bf16.msra.mxu0 0
        %5009 = vmatprep.subr.bf16.mxu0 0
        %5010 = vmatpush1.bf16.msra.mxu0 0
        %5011 = vmatprep.subr.bf16.mxu0 0
        %5012 = vmatpush1.bf16.msra.mxu0 0
        %5013 = vmatprep.subr.bf16.mxu0 0
        %5014 = vmatpush1.bf16.msra.mxu0 0
        %5015 = vmatprep.subr.bf16.mxu0 0
        %5016 = vmatpush1.bf16.msra.mxu0 0
        %5017 = vmatprep.subr.bf16.mxu0 0
        %5018 = vmatpush1.bf16.msra.mxu0 0
        %5019 = vmatprep.subr.bf16.mxu0 0
        %5020 = vmatpush1.bf16.msra.mxu0 0
        %5021 = vmatprep.subr.bf16.mxu0 0
        %5022 = vmatpush1.bf16.msra.mxu0 0
        %5023 = vmatprep.mubr.bf16.mxu0 0
        %5024 = vmatmul.mubr.bf16.gmra.mrb[0].mxu0 %v4525
        %v5025 = vpop.f32.mrb[0].mxu0
        %v5026 = vadd.f32 %v1371, %v5025
        %v5027 = vpop.f32.mrb[0].mxu0
        %v5028 = vadd.f32 %v1375, %v5027
        %v5029 = vpop.f32.mrb[0].mxu0
        %v5030 = vpop.f32.mrb[0].mxu0
        %5031 = vdwg.mxu0
        %5032 = vmatprep.subr.bf16.mxu0 0
        %5033 = vmatpush1.bf16.msra.mxu0 %v1465
        %5034 = vmatprep.subr.bf16.mxu0 0
        %5035 = vmatpush1.bf16.msra.mxu0 %v1468
        %5036 = vmatprep.subr.bf16.mxu0 0
        %5037 = vmatpush1.bf16.msra.mxu0 %v1471
        %5038 = vmatprep.subr.bf16.mxu0 0
        %5039 = vmatpush1.bf16.msra.mxu0 %v1474
        %5040 = vmatprep.subr.bf16.mxu0 0
        %5041 = vmatpush1.bf16.msra.mxu0 %v1477
        %5042 = vmatprep.subr.bf16.mxu0 0
        %5043 = vmatpush1.bf16.msra.mxu0 %v1480
        %5044 = vmatprep.subr.bf16.mxu0 0
        %5045 = vmatpush1.bf16.msra.mxu0 %v1483
        %5046 = vmatprep.subr.bf16.mxu0 0
        %5047 = vmatpush1.bf16.msra.mxu0 %v1486
        %5048 = vmatprep.subr.bf16.mxu0 0
        %5049 = vmatpush1.bf16.msra.mxu0 0
        %5050 = vmatprep.subr.bf16.mxu0 0
        %5051 = vmatpush1.bf16.msra.mxu0 0
        %5052 = vmatprep.subr.bf16.mxu0 0
        %5053 = vmatpush1.bf16.msra.mxu0 0
        %5054 = vmatprep.subr.bf16.mxu0 0
        %5055 = vmatpush1.bf16.msra.mxu0 0
        %5056 = vmatprep.subr.bf16.mxu0 0
        %5057 = vmatpush1.bf16.msra.mxu0 0
        %5058 = vmatprep.subr.bf16.mxu0 0
        %5059 = vmatpush1.bf16.msra.mxu0 0
        %5060 = vmatprep.subr.bf16.mxu0 0
        %5061 = vmatpush1.bf16.msra.mxu0 0
        %5062 = vmatprep.subr.bf16.mxu0 0
        %5063 = vmatpush1.bf16.msra.mxu0 0
        %5064 = vmatprep.mubr.bf16.mxu0 0
        %5065 = vmatmul.mubr.bf16.gmra.mrb[0].mxu0 %v4525
        %v5066 = vpop.f32.mrb[0].mxu0
        %v5067 = vadd.f32 %v1379, %v5066
        %v5068 = vpop.f32.mrb[0].mxu0
        %v5069 = vpop.f32.mrb[0].mxu0
        %v5070 = vpop.f32.mrb[0].mxu0
        %5071 = vdwg.mxu0
        %v5072 = vadd.f32 %v4989, %v5026
        %v5073 = vxor.u32 %v5072, 2147483648
        %v5074 = vmul.f32 %v5073, 1.442695
        %v5075 = vpow.pop %v5074
        %v5076 = vadd.f32 %v5075, 1.0
        %v5077 = vrcp.pop %v5076
        %v5078 = vmul.f32 1.0, %v5077
        %v5080 = vrot.slane %v4989, 4
        %v5082 = vadd.f32 %v5080, %v5028
        %v5083 = vxor.u32 %v5082, 2147483648
        %v5084 = vmul.f32 %v5083, 1.442695
        %v5085 = vpow.pop %v5084
        %v5086 = vadd.f32 %v5085, 1.0
        %v5087 = vrcp.pop %v5086
        %v5088 = vmul.f32 1.0, %v5087
        %v5089 = vmul.f32 %v5078, %v5067
        %v5090 = vadd.f32 %v4990, %v5089
        %v5091 = vtanh.pop %v5090
        %v5092 = vsub.f32 1.0, %v5088
        %v5093 = vmul.f32 %v5092, %v5091
        %v5094 = vmul.f32 %v5088, %v4524
        %v5095 = vadd.f32 %v5093, %v5094
        %v5096 = vpack.c.bf16 %v5095, %v5095
        %5097 = vmatprep.subr.bf16.mxu0 0
        %5098 = vmatpush1.bf16.msra.mxu0 %v1655
        %5099 = vmatprep.subr.bf16.mxu0 0
        %5100 = vmatpush1.bf16.msra.mxu0 %v1656
        %5101 = vmatprep.subr.bf16.mxu0 0
        %5102 = vmatpush1.bf16.msra.mxu0 %v1657
        %5103 = vmatprep.subr.bf16.mxu0 0
        %5104 = vmatpush1.bf16.msra.mxu0 %v1658
        %5105 = vmatprep.subr.bf16.mxu0 0
        %5106 = vmatpush1.bf16.msra.mxu0 %v1659
        %5107 = vmatprep.subr.bf16.mxu0 0
        %5108 = vmatpush1.bf16.msra.mxu0 %v1660
        %5109 = vmatprep.subr.bf16.mxu0 0
        %5110 = vmatpush1.bf16.msra.mxu0 %v1661
        %5111 = vmatprep.subr.bf16.mxu0 0
        %5112 = vmatpush1.bf16.msra.mxu0 %v1662
        %5113 = vmatprep.subr.bf16.mxu0 0
        %5114 = vmatpush1.bf16.msra.mxu0 0
        %5115 = vmatprep.subr.bf16.mxu0 0
        %5116 = vmatpush1.bf16.msra.mxu0 0
        %5117 = vmatprep.subr.bf16.mxu0 0
        %5118 = vmatpush1.bf16.msra.mxu0 0
        %5119 = vmatprep.subr.bf16.mxu0 0
        %5120 = vmatpush1.bf16.msra.mxu0 0
        %5121 = vmatprep.subr.bf16.mxu0 0
        %5122 = vmatpush1.bf16.msra.mxu0 0
        %5123 = vmatprep.subr.bf16.mxu0 0
        %5124 = vmatpush1.bf16.msra.mxu0 0
        %5125 = vmatprep.subr.bf16.mxu0 0
        %5126 = vmatpush1.bf16.msra.mxu0 0
        %5127 = vmatprep.subr.bf16.mxu0 0
        %5128 = vmatpush1.bf16.msra.mxu0 0
        %5129 = vmatprep.mubr.bf16.mxu0 0
        %5130 = vmatmul.mubr.bf16.gmra.mrb[0].mxu0 %v5096
        %v5131 = vpop.f32.mrb[0].mxu0
        %v5132 = vadd.f32 %v1621, %v5131
        %v5133 = vpop.f32.mrb[0].mxu0
        %v5134 = vpop.f32.mrb[0].mxu0
        %v5135 = vpop.f32.mrb[0].mxu0
        %5136 = vdwg.mxu0
        %v5137 = vsel %vm1711, %v5132, -inf
        %5138 = vmax.xlane.f32.xlu0 %v5137
        %v5139 = vpop.xlane.xlu0 %5138
        %v5140 = vsub.f32 %v5132, %v5139
        %v5141 = vmul.f32 %v5140, 1.442695
        %v5142 = vpow.pop %v5141
        %v5143 = vsel %vm1711, %v5142, 0.0
        %5144 = vadd.xlane.f32.xlu0 %v5143
        %v5145 = vpop.xlane.xlu0 %5144
        %v5146 = vlog2.pop %v5145
        %v5147 = vmul.f32 %v5146, 0.6931472
        %v5148 = vadd.f32 %v5147, %v5139
        %v5149 = vsub.f32 %v5132, %v5148
        %s5150 = scalar_lea.vmem %s635, 24 [#allocation23]
        %5151 = vst [vmem:[%s5150] sm:$0xf] %v5149
        %5152 = vmatprep.subr.bf16.mxu0 0
        %5153 = vmatpush1.bf16.msra.mxu0 %v803
        %5154 = vmatprep.subr.bf16.mxu0 0
        %5155 = vmatpush1.bf16.msra.mxu0 %v804
        %5156 = vmatprep.subr.bf16.mxu0 0
        %5157 = vmatpush1.bf16.msra.mxu0 %v805
        %5158 = vmatprep.subr.bf16.mxu0 0
        %5159 = vmatpush1.bf16.msra.mxu0 %v806
        %5160 = vmatprep.subr.bf16.mxu0 0
        %5161 = vmatpush1.bf16.msra.mxu0 %v807
        %5162 = vmatprep.subr.bf16.mxu0 0
        %5163 = vmatpush1.bf16.msra.mxu0 %v808
        %5164 = vmatprep.subr.bf16.mxu0 0
        %5165 = vmatpush1.bf16.msra.mxu0 %v809
        %5166 = vmatprep.subr.bf16.mxu0 0
        %5167 = vmatpush1.bf16.msra.mxu0 %v810
        %5168 = vmatprep.subr.bf16.mxu0 0
        %5169 = vmatpush1.bf16.msra.mxu0 0
        %5170 = vmatprep.subr.bf16.mxu0 0
        %5171 = vmatpush1.bf16.msra.mxu0 0
        %5172 = vmatprep.subr.bf16.mxu0 0
        %5173 = vmatpush1.bf16.msra.mxu0 0
        %5174 = vmatprep.subr.bf16.mxu0 0
        %5175 = vmatpush1.bf16.msra.mxu0 0
        %5176 = vmatprep.subr.bf16.mxu0 0
        %5177 = vmatpush1.bf16.msra.mxu0 0
        %5178 = vmatprep.subr.bf16.mxu0 0
        %5179 = vmatpush1.bf16.msra.mxu0 0
        %5180 = vmatprep.subr.bf16.mxu0 0
        %5181 = vmatpush1.bf16.msra.mxu0 0
        %5182 = vmatprep.subr.bf16.mxu0 0
        %5183 = vmatpush1.bf16.msra.mxu0 0
        %5184 = vmatprep.mubr.bf16.mxu0 0
        %5185 = vmatmul.mubr.bf16.gmra.mrb[0].mxu0 %v5096
        %v5186 = vpop.f32.mrb[0].mxu0
        %v5187 = vadd.f32 %v769, %v5186
        %v5188 = vpop.f32.mrb[0].mxu0
        %v5189 = vpop.f32.mrb[0].mxu0
        %v5190 = vpop.f32.mrb[0].mxu0
        %5191 = vdwg.mxu0
        %v5194 = vunpack.c.l.s4 1966171168
        %v5195 = vunpack.c.0.s8 %v5194
        %v5196 = vlaneseq
        %v5197 = vshrl.u32 %v5196, 7
        %v5198 = vsub.s32 %v5195, %v5197
        %v5199 = vrot.slane %v5187, %v5198
        %v5200 = vcombine.high %v5199, %v5199
        %v5202 = vunpack.c.l.s4 1966171168
        %v5203 = vunpack.c.0.s8 %v5202
        %v5204 = vlaneseq
        %v5205 = vshrl.u32 %v5204, 7
        %v5206 = vsub.s32 %v5203, %v5205
        %v5207 = vrot.slane %v5199, %v5206
        %v5209 = vunpack.c.l.s4 1966171168
        %v5210 = vunpack.c.0.s8 %v5209
        %v5211 = vlaneseq
        %v5212 = vshrl.u32 %v5211, 7
        %v5213 = vsub.s32 %v5210, %v5212
        %v5214 = vrot.slane %v5200, %v5213
        %v5215 = vcombine.high %v5207, %v5207
        %v5216 = vcombine.high %v5214, %v5214
        %v5217 = vlaneseq
        %v5218 = vshrl.u32 %v5217, 7
        %v5219 = vsub.s32 0, %v5218
        %v5220 = vrot.slane %v5207, %v5219
        %v5221 = vlaneseq
        %v5222 = vshrl.u32 %v5221, 7
        %v5223 = vsub.s32 0, %v5222
        %v5224 = vrot.slane %v5214, %v5223
        %v5225 = vlaneseq
        %v5226 = vshrl.u32 %v5225, 7
        %v5227 = vsub.s32 0, %v5226
        %v5228 = vrot.slane %v5215, %v5227
        %v5229 = vlaneseq
        %v5230 = vshrl.u32 %v5229, 7
        %v5231 = vsub.s32 0, %v5230
        %v5232 = vrot.slane %v5216, %v5231
        %v5237 = vadd.f32 %v5220, %v659
        %v5238 = vadd.f32 %v5224, %v660
        %v5239 = vadd.f32 %v5228, %v661
        %v5240 = vadd.f32 %v5232, %v662
        %v5241 = vtanh.pop %v5237
        %v5242 = vtanh.pop %v5238
        %v5243 = vtanh.pop %v5239
        %v5244 = vtanh.pop %v5240
        %v5245 = vmul.f32 %v5241, %v916
        %v5246 = vmul.f32 %v5242, %v916
        %v5247 = vmul.f32 %v5243, %v916
        %v5248 = vmul.f32 %v5244, %v916
        %5249 = vadd.xlane.f32.xlu0 %v5245
        %v5250 = vpop.xlane.xlu0 %5249
        %5251 = vadd.xlane.f32.xlu0 %v5246
        %v5252 = vpop.xlane.xlu0 %5251
        %5253 = vadd.xlane.f32.xlu0 %v5247
        %v5254 = vpop.xlane.xlu0 %5253
        %5255 = vadd.xlane.f32.xlu0 %v5248
        %v5256 = vpop.xlane.xlu0 %5255
        %v5261 = vlaneseq
        %v5262 = vshrl.u32 %v5261, 7
        %v5263 = vsub.s32 %v935, %v5262
        %v5264 = vrot.slane %v5250, %v5263
        %v5265 = vlaneseq
        %v5266 = vshrl.u32 %v5265, 7
        %v5267 = vsub.s32 %v935, %v5266
        %v5268 = vrot.slane %v5252, %v5267
        %v5269 = vlaneseq
        %v5270 = vshrl.u32 %v5269, 7
        %v5271 = vsub.s32 %v935, %v5270
        %v5272 = vrot.slane %v5254, %v5271
        %v5273 = vlaneseq
        %v5274 = vshrl.u32 %v5273, 7
        %v5275 = vsub.s32 %v935, %v5274
        %v5276 = vrot.slane %v5256, %v5275
        %v5277 = vsel %vm952, %v5268, %v5264
        %v5278 = vsel %vm954, %v5272, %v5277
        %v5279 = vsel %vm956, %v5276, %v5278
        %v5281 = vsel %vm959, %v5279, -inf
        %5282 = vmax.xlane.f32.xlu0 %v5281
        %v5283 = vpop.xlane.xlu0 %5282
        %v5285 = vlaneseq
        %v5286 = vshrl.u32 %v5285, 7
        %v5287 = vsub.s32 0, %v5286
        %v5288 = vrot.slane %v5283, %v5287
        %v5289 = vlaneseq
        %v5290 = vshrl.u32 %v5289, 7
        %v5291 = vsub.s32 1, %v5290
        %v5292 = vrot.slane %v5283, %v5291
        %v5293 = vlaneseq
        %v5294 = vshrl.u32 %v5293, 7
        %v5295 = vsub.s32 2, %v5294
        %v5296 = vrot.slane %v5283, %v5295
        %v5297 = vlaneseq
        %v5298 = vshrl.u32 %v5297, 7
        %v5299 = vsub.s32 3, %v5298
        %v5300 = vrot.slane %v5283, %v5299
        %v5305 = vsub.f32 %v5250, %v5288
        %v5306 = vsub.f32 %v5252, %v5292
        %v5307 = vsub.f32 %v5254, %v5296
        %v5308 = vsub.f32 %v5256, %v5300
        %v5309 = vmul.f32 %v5305, 1.442695
        %v5310 = vpow.pop %v5309
        %v5311 = vmul.f32 %v5306, 1.442695
        %v5312 = vpow.pop %v5311
        %v5313 = vmul.f32 %v5307, 1.442695
        %v5314 = vpow.pop %v5313
        %v5315 = vmul.f32 %v5308, 1.442695
        %v5316 = vpow.pop %v5315
        %5321 = vset.pattern.permute.xlu0 0
        %5322 = vperm.xlu0 %5321, %v5310
        %v5323 = vpop.permute.xlu0 %5322
        %5324 = vset.pattern.permute.xlu0 0
        %5325 = vperm.xlu0 %5324, %v5312
        %v5326 = vpop.permute.xlu0 %5325
        %5327 = vset.pattern.permute.xlu0 0
        %5328 = vperm.xlu0 %5327, %v5314
        %v5329 = vpop.permute.xlu0 %5328
        %5330 = vset.pattern.permute.xlu0 0
        %5331 = vperm.xlu0 %5330, %v5316
        %v5332 = vpop.permute.xlu0 %5331
        %v5333 = vlaneseq
        %v5334 = vshrl.u32 %v5333, 7
        %v5335 = vsub.s32 %v935, %v5334
        %v5336 = vrot.slane %v5323, %v5335
        %v5337 = vlaneseq
        %v5338 = vshrl.u32 %v5337, 7
        %v5339 = vsub.s32 %v935, %v5338
        %v5340 = vrot.slane %v5326, %v5339
        %v5341 = vlaneseq
        %v5342 = vshrl.u32 %v5341, 7
        %v5343 = vsub.s32 %v935, %v5342
        %v5344 = vrot.slane %v5329, %v5343
        %v5345 = vlaneseq
        %v5346 = vshrl.u32 %v5345, 7
        %v5347 = vsub.s32 %v935, %v5346
        %v5348 = vrot.slane %v5332, %v5347
        %v5349 = vsel %vm952, %v5340, %v5336
        %v5350 = vsel %vm954, %v5344, %v5349
        %v5351 = vsel %vm956, %v5348, %v5350
        %v5353 = vsel %vm959, %v5351, 0.0
        %5354 = vadd.xlane.f32.xlu0 %v5353
        %v5355 = vpop.xlane.xlu0 %5354
        %v5357 = vlaneseq
        %v5358 = vshrl.u32 %v5357, 7
        %v5359 = vsub.s32 0, %v5358
        %v5360 = vrot.slane %v5355, %v5359
        %v5361 = vlaneseq
        %v5362 = vshrl.u32 %v5361, 7
        %v5363 = vsub.s32 1, %v5362
        %v5364 = vrot.slane %v5355, %v5363
        %v5365 = vlaneseq
        %v5366 = vshrl.u32 %v5365, 7
        %v5367 = vsub.s32 2, %v5366
        %v5368 = vrot.slane %v5355, %v5367
        %v5369 = vlaneseq
        %v5370 = vshrl.u32 %v5369, 7
        %v5371 = vsub.s32 3, %v5370
        %v5372 = vrot.slane %v5355, %v5371
        %v5377 = vrcp.pop %v5360
        %v5378 = vmul.f32 %v5310, %v5377
        %v5379 = vrcp.pop %v5364
        %v5380 = vmul.f32 %v5312, %v5379
        %v5381 = vrcp.pop %v5368
        %v5382 = vmul.f32 %v5314, %v5381
        %v5383 = vrcp.pop %v5372
        %v5384 = vmul.f32 %v5316, %v5383
        %5389 = vset.pattern.permute.xlu0 0
        %5390 = vperm.xlu0 %5389, %v5378
        %v5391 = vpop.permute.xlu0 %5390
        %5392 = vset.pattern.permute.xlu0 0
        %5393 = vperm.xlu0 %5392, %v5380
        %v5394 = vpop.permute.xlu0 %5393
        %5395 = vset.pattern.permute.xlu0 0
        %5396 = vperm.xlu0 %5395, %v5382
        %v5397 = vpop.permute.xlu0 %5396
        %5398 = vset.pattern.permute.xlu0 0
        %5399 = vperm.xlu0 %5398, %v5384
        %v5400 = vpop.permute.xlu0 %5399
        %v5401 = vlaneseq
        %v5402 = vshrl.u32 %v5401, 7
        %v5403 = vsub.s32 %v935, %v5402
        %v5404 = vrot.slane %v5391, %v5403
        %v5405 = vlaneseq
        %v5406 = vshrl.u32 %v5405, 7
        %v5407 = vsub.s32 %v935, %v5406
        %v5408 = vrot.slane %v5394, %v5407
        %v5409 = vlaneseq
        %v5410 = vshrl.u32 %v5409, 7
        %v5411 = vsub.s32 %v935, %v5410
        %v5412 = vrot.slane %v5397, %v5411
        %v5413 = vlaneseq
        %v5414 = vshrl.u32 %v5413, 7
        %v5415 = vsub.s32 %v935, %v5414
        %v5416 = vrot.slane %v5400, %v5415
        %v5417 = vsel %vm952, %v5408, %v5404
        %v5418 = vsel %vm954, %v5412, %v5417
        %v5419 = vsel %vm956, %v5416, %v5418
        %s5421 = scalar_lea.vmem %s642, 28 [#allocation24]
        %5422 = vst.msk [vmem:[%s5421] sm:$0xf] %vm959, %v5419
        %v5427 = vmul.f32 %v5391, %v655
        %v5428 = vmul.f32 %v5394, %v656
        %v5429 = vmul.f32 %v5397, %v657
        %v5430 = vmul.f32 %v5400, %v658
        %v5431 = vrot.slane %v5427, 4
        %v5432 = vadd.f32 %v5427, %v5431
        %v5433 = vrot.slane %v5432, 2
        %v5434 = vadd.f32 %v5432, %v5433
        %v5435 = vrot.slane %v5434, 1
        %v5436 = vadd.f32 %v5434, %v5435
        %v5437 = vrot.slane %v5428, 4
        %v5438 = vadd.f32 %v5428, %v5437
        %v5439 = vrot.slane %v5438, 2
        %v5440 = vadd.f32 %v5438, %v5439
        %v5441 = vrot.slane %v5440, 1
        %v5442 = vadd.f32 %v5440, %v5441
        %v5443 = vrot.slane %v5429, 4
        %v5444 = vadd.f32 %v5429, %v5443
        %v5445 = vrot.slane %v5444, 2
        %v5446 = vadd.f32 %v5444, %v5445
        %v5447 = vrot.slane %v5446, 1
        %v5448 = vadd.f32 %v5446, %v5447
        %v5449 = vrot.slane %v5430, 4
        %v5450 = vadd.f32 %v5430, %v5449
        %v5451 = vrot.slane %v5450, 2
        %v5452 = vadd.f32 %v5450, %v5451
        %v5453 = vrot.slane %v5452, 1
        %v5454 = vadd.f32 %v5452, %v5453
        %s5455 = scalar_lea.vmem %s551, 84 [#allocation3]
        %v5456 = vld [vmem:[%s5455] sm:$0xff]
        %v5457 = vld [vmem:[%s5455 + $0x8] sm:$0xf]
        %v5458 = vpack.c.bf16 %v5436, %v5436
        %v5459 = vpack.c.bf16 %v5442, %v5442
        %v5460 = vpack.c.bf16 %v5448, %v5448
        %v5461 = vpack.c.bf16 %v5454, %v5454
        %v5466 = vunpack.c.l.b16 %v5458
        %v5467 = vunpack.c.l.b16 %v5459
        %v5468 = vunpack.c.l.b16 %v5460
        %v5469 = vunpack.c.l.b16 %v5461
        %v5470 = vsel %vm952, %v5467, %v5466
        %v5471 = vsel %vm954, %v5468, %v5470
        %v5472 = vsel %vm956, %v5469, %v5471
        %v5473 = vpack.c.b16 %v5472, %v5472
        %5475 = vmatprep.subr.bf16.mxu0 %v1233
        %5476 = vmatpush1.bf16.msra.mxu0 %v1232
        %5477 = vmatprep.subr.bf16.mxu0 %v1236
        %5478 = vmatpush1.bf16.msra.mxu0 %v1235
        %5479 = vmatprep.subr.bf16.mxu0 %v1239
        %5480 = vmatpush1.bf16.msra.mxu0 %v1238
        %5481 = vmatprep.subr.bf16.mxu0 %v1242
        %5482 = vmatpush1.bf16.msra.mxu0 %v1241
        %5483 = vmatprep.subr.bf16.mxu0 %v1245
        %5484 = vmatpush1.bf16.msra.mxu0 %v1244
        %5485 = vmatprep.subr.bf16.mxu0 %v1248
        %5486 = vmatpush1.bf16.msra.mxu0 %v1247
        %5487 = vmatprep.subr.bf16.mxu0 %v1251
        %5488 = vmatpush1.bf16.msra.mxu0 %v1250
        %5489 = vmatprep.subr.bf16.mxu0 %v1254
        %5490 = vmatpush1.bf16.msra.mxu0 %v1253
        %5491 = vmatprep.subr.bf16.mxu0 0
        %5492 = vmatpush1.bf16.msra.mxu0 0
        %5493 = vmatprep.subr.bf16.mxu0 0
        %5494 = vmatpush1.bf16.msra.mxu0 0
        %5495 = vmatprep.subr.bf16.mxu0 0
        %5496 = vmatpush1.bf16.msra.mxu0 0
        %5497 = vmatprep.subr.bf16.mxu0 0
        %5498 = vmatpush1.bf16.msra.mxu0 0
        %5499 = vmatprep.subr.bf16.mxu0 0
        %5500 = vmatpush1.bf16.msra.mxu0 0
        %5501 = vmatprep.subr.bf16.mxu0 0
        %5502 = vmatpush1.bf16.msra.mxu0 0
        %5503 = vmatprep.subr.bf16.mxu0 0
        %5504 = vmatpush1.bf16.msra.mxu0 0
        %5505 = vmatprep.subr.bf16.mxu0 0
        %5506 = vmatpush1.bf16.msra.mxu0 0
        %5507 = vmatprep.mubr.bf16.mxu0 0
        %5508 = vmatmul.mubr.bf16.gmra.mrb[0].mxu0 %v5473
        %v5509 = vpop.f32.mrb[0].mxu0
        %v5510 = vadd.f32 0.0, %v5509
        %v5511 = vpop.f32.mrb[0].mxu0
        %v5512 = vadd.f32 0.0, %v5511
        %v5513 = vpop.f32.mrb[0].mxu0
        %v5514 = vpop.f32.mrb[0].mxu0
        %5515 = vdwg.mxu0
        %5516 = vmatprep.subr.bf16.mxu0 0
        %5517 = vmatpush1.bf16.msra.mxu0 %v1234
        %5518 = vmatprep.subr.bf16.mxu0 0
        %5519 = vmatpush1.bf16.msra.mxu0 %v1237
        %5520 = vmatprep.subr.bf16.mxu0 0
        %5521 = vmatpush1.bf16.msra.mxu0 %v1240
        %5522 = vmatprep.subr.bf16.mxu0 0
        %5523 = vmatpush1.bf16.msra.mxu0 %v1243
        %5524 = vmatprep.subr.bf16.mxu0 0
        %5525 = vmatpush1.bf16.msra.mxu0 %v1246
        %5526 = vmatprep.subr.bf16.mxu0 0
        %5527 = vmatpush1.bf16.msra.mxu0 %v1249
        %5528 = vmatprep.subr.bf16.mxu0 0
        %5529 = vmatpush1.bf16.msra.mxu0 %v1252
        %5530 = vmatprep.subr.bf16.mxu0 0
        %5531 = vmatpush1.bf16.msra.mxu0 %v1255
        %5532 = vmatprep.subr.bf16.mxu0 0
        %5533 = vmatpush1.bf16.msra.mxu0 0
        %5534 = vmatprep.subr.bf16.mxu0 0
        %5535 = vmatpush1.bf16.msra.mxu0 0
        %5536 = vmatprep.subr.bf16.mxu0 0
        %5537 = vmatpush1.bf16.msra.mxu0 0
        %5538 = vmatprep.subr.bf16.mxu0 0
        %5539 = vmatpush1.bf16.msra.mxu0 0
        %5540 = vmatprep.subr.bf16.mxu0 0
        %5541 = vmatpush1.bf16.msra.mxu0 0
        %5542 = vmatprep.subr.bf16.mxu0 0
        %5543 = vmatpush1.bf16.msra.mxu0 0
        %5544 = vmatprep.subr.bf16.mxu0 0
        %5545 = vmatpush1.bf16.msra.mxu0 0
        %5546 = vmatprep.subr.bf16.mxu0 0
        %5547 = vmatpush1.bf16.msra.mxu0 0
        %5548 = vmatprep.mubr.bf16.mxu0 0
        %5549 = vmatmul.mubr.bf16.gmra.mrb[0].mxu0 %v5473
        %v5550 = vpop.f32.mrb[0].mxu0
        %v5551 = vadd.f32 0.0, %v5550
        %v5552 = vpop.f32.mrb[0].mxu0
        %v5553 = vpop.f32.mrb[0].mxu0
        %v5554 = vpop.f32.mrb[0].mxu0
        %5555 = vdwg.mxu0
        %v5558 = vcombine.low %v5510, %v5512
        %v5560 = vadd.f32 %v5456, %v5558
        %v5561 = vadd.f32 %v5457, %v5551
        %5562 = vmatprep.subr.bf16.mxu0 %v1464
        %5563 = vmatpush1.bf16.msra.mxu0 %v1463
        %5564 = vmatprep.subr.bf16.mxu0 %v1467
        %5565 = vmatpush1.bf16.msra.mxu0 %v1466
        %5566 = vmatprep.subr.bf16.mxu0 %v1470
        %5567 = vmatpush1.bf16.msra.mxu0 %v1469
        %5568 = vmatprep.subr.bf16.mxu0 %v1473
        %5569 = vmatpush1.bf16.msra.mxu0 %v1472
        %5570 = vmatprep.subr.bf16.mxu0 %v1476
        %5571 = vmatpush1.bf16.msra.mxu0 %v1475
        %5572 = vmatprep.subr.bf16.mxu0 %v1479
        %5573 = vmatpush1.bf16.msra.mxu0 %v1478
        %5574 = vmatprep.subr.bf16.mxu0 %v1482
        %5575 = vmatpush1.bf16.msra.mxu0 %v1481
        %5576 = vmatprep.subr.bf16.mxu0 %v1485
        %5577 = vmatpush1.bf16.msra.mxu0 %v1484
        %5578 = vmatprep.subr.bf16.mxu0 0
        %5579 = vmatpush1.bf16.msra.mxu0 0
        %5580 = vmatprep.subr.bf16.mxu0 0
        %5581 = vmatpush1.bf16.msra.mxu0 0
        %5582 = vmatprep.subr.bf16.mxu0 0
        %5583 = vmatpush1.bf16.msra.mxu0 0
        %5584 = vmatprep.subr.bf16.mxu0 0
        %5585 = vmatpush1.bf16.msra.mxu0 0
        %5586 = vmatprep.subr.bf16.mxu0 0
        %5587 = vmatpush1.bf16.msra.mxu0 0
        %5588 = vmatprep.subr.bf16.mxu0 0
        %5589 = vmatpush1.bf16.msra.mxu0 0
        %5590 = vmatprep.subr.bf16.mxu0 0
        %5591 = vmatpush1.bf16.msra.mxu0 0
        %5592 = vmatprep.subr.bf16.mxu0 0
        %5593 = vmatpush1.bf16.msra.mxu0 0
        %5594 = vmatprep.mubr.bf16.mxu0 0
        %5595 = vmatmul.mubr.bf16.gmra.mrb[0].mxu0 %v5096
        %v5596 = vpop.f32.mrb[0].mxu0
        %v5597 = vadd.f32 %v1371, %v5596
        %v5598 = vpop.f32.mrb[0].mxu0
        %v5599 = vadd.f32 %v1375, %v5598
        %v5600 = vpop.f32.mrb[0].mxu0
        %v5601 = vpop.f32.mrb[0].mxu0
        %5602 = vdwg.mxu0
        %5603 = vmatprep.subr.bf16.mxu0 0
        %5604 = vmatpush1.bf16.msra.mxu0 %v1465
        %5605 = vmatprep.subr.bf16.mxu0 0
        %5606 = vmatpush1.bf16.msra.mxu0 %v1468
        %5607 = vmatprep.subr.bf16.mxu0 0
        %5608 = vmatpush1.bf16.msra.mxu0 %v1471
        %5609 = vmatprep.subr.bf16.mxu0 0
        %5610 = vmatpush1.bf16.msra.mxu0 %v1474
        %5611 = vmatprep.subr.bf16.mxu0 0
        %5612 = vmatpush1.bf16.msra.mxu0 %v1477
        %5613 = vmatprep.subr.bf16.mxu0 0
        %5614 = vmatpush1.bf16.msra.mxu0 %v1480
        %5615 = vmatprep.subr.bf16.mxu0 0
        %5616 = vmatpush1.bf16.msra.mxu0 %v1483
        %5617 = vmatprep.subr.bf16.mxu0 0
        %5618 = vmatpush1.bf16.msra.mxu0 %v1486
        %5619 = vmatprep.subr.bf16.mxu0 0
        %5620 = vmatpush1.bf16.msra.mxu0 0
        %5621 = vmatprep.subr.bf16.mxu0 0
        %5622 = vmatpush1.bf16.msra.mxu0 0
        %5623 = vmatprep.subr.bf16.mxu0 0
        %5624 = vmatpush1.bf16.msra.mxu0 0
        %5625 = vmatprep.subr.bf16.mxu0 0
        %5626 = vmatpush1.bf16.msra.mxu0 0
        %5627 = vmatprep.subr.bf16.mxu0 0
        %5628 = vmatpush1.bf16.msra.mxu0 0
        %5629 = vmatprep.subr.bf16.mxu0 0
        %5630 = vmatpush1.bf16.msra.mxu0 0
        %5631 = vmatprep.subr.bf16.mxu0 0
        %5632 = vmatpush1.bf16.msra.mxu0 0
        %5633 = vmatprep.subr.bf16.mxu0 0
        %5634 = vmatpush1.bf16.msra.mxu0 0
        %5635 = vmatprep.mubr.bf16.mxu0 0
        %5636 = vmatmul.mubr.bf16.gmra.mrb[0].mxu0 %v5096
        %v5637 = vpop.f32.mrb[0].mxu0
        %v5638 = vadd.f32 %v1379, %v5637
        %v5639 = vpop.f32.mrb[0].mxu0
        %v5640 = vpop.f32.mrb[0].mxu0
        %v5641 = vpop.f32.mrb[0].mxu0
        %5642 = vdwg.mxu0
        %v5643 = vadd.f32 %v5560, %v5597
        %v5644 = vxor.u32 %v5643, 2147483648
        %v5645 = vmul.f32 %v5644, 1.442695
        %v5646 = vpow.pop %v5645
        %v5647 = vadd.f32 %v5646, 1.0
        %v5648 = vrcp.pop %v5647
        %v5649 = vmul.f32 1.0, %v5648
        %v5651 = vrot.slane %v5560, 4
        %v5653 = vadd.f32 %v5651, %v5599
        %v5654 = vxor.u32 %v5653, 2147483648
        %v5655 = vmul.f32 %v5654, 1.442695
        %v5656 = vpow.pop %v5655
        %v5657 = vadd.f32 %v5656, 1.0
        %v5658 = vrcp.pop %v5657
        %v5659 = vmul.f32 1.0, %v5658
        %v5660 = vmul.f32 %v5649, %v5638
        %v5661 = vadd.f32 %v5561, %v5660
        %v5662 = vtanh.pop %v5661
        %v5663 = vsub.f32 1.0, %v5659
        %v5664 = vmul.f32 %v5663, %v5662
        %v5665 = vmul.f32 %v5659, %v5095
        %v5666 = vadd.f32 %v5664, %v5665
        %v5667 = vpack.c.bf16 %v5666, %v5666
        %5668 = vmatprep.subr.bf16.mxu0 0
        %5669 = vmatpush1.bf16.msra.mxu0 %v1655
        %5670 = vmatprep.subr.bf16.mxu0 0
        %5671 = vmatpush1.bf16.msra.mxu0 %v1656
        %5672 = vmatprep.subr.bf16.mxu0 0
        %5673 = vmatpush1.bf16.msra.mxu0 %v1657
        %5674 = vmatprep.subr.bf16.mxu0 0
        %5675 = vmatpush1.bf16.msra.mxu0 %v1658
        %5676 = vmatprep.subr.bf16.mxu0 0
        %5677 = vmatpush1.bf16.msra.mxu0 %v1659
        %5678 = vmatprep.subr.bf16.mxu0 0
        %5679 = vmatpush1.bf16.msra.mxu0 %v1660
        %5680 = vmatprep.subr.bf16.mxu0 0
        %5681 = vmatpush1.bf16.msra.mxu0 %v1661
        %5682 = vmatprep.subr.bf16.mxu0 0
        %5683 = vmatpush1.bf16.msra.mxu0 %v1662
        %5684 = vmatprep.subr.bf16.mxu0 0
        %5685 = vmatpush1.bf16.msra.mxu0 0
        %5686 = vmatprep.subr.bf16.mxu0 0
        %5687 = vmatpush1.bf16.msra.mxu0 0
        %5688 = vmatprep.subr.bf16.mxu0 0
        %5689 = vmatpush1.bf16.msra.mxu0 0
        %5690 = vmatprep.subr.bf16.mxu0 0
        %5691 = vmatpush1.bf16.msra.mxu0 0
        %5692 = vmatprep.subr.bf16.mxu0 0
        %5693 = vmatpush1.bf16.msra.mxu0 0
        %5694 = vmatprep.subr.bf16.mxu0 0
        %5695 = vmatpush1.bf16.msra.mxu0 0
        %5696 = vmatprep.subr.bf16.mxu0 0
        %5697 = vmatpush1.bf16.msra.mxu0 0
        %5698 = vmatprep.subr.bf16.mxu0 0
        %5699 = vmatpush1.bf16.msra.mxu0 0
        %5700 = vmatprep.mubr.bf16.mxu0 0
        %5701 = vmatmul.mubr.bf16.gmra.mrb[0].mxu0 %v5667
        %v5702 = vpop.f32.mrb[0].mxu0
        %v5703 = vadd.f32 %v1621, %v5702
        %v5704 = vpop.f32.mrb[0].mxu0
        %v5705 = vpop.f32.mrb[0].mxu0
        %v5706 = vpop.f32.mrb[0].mxu0
        %5707 = vdwg.mxu0
        %v5708 = vsel %vm1711, %v5703, -inf
        %5709 = vmax.xlane.f32.xlu0 %v5708
        %v5710 = vpop.xlane.xlu0 %5709
        %v5711 = vsub.f32 %v5703, %v5710
        %v5712 = vmul.f32 %v5711, 1.442695
        %v5713 = vpow.pop %v5712
        %v5714 = vsel %vm1711, %v5713, 0.0
        %5715 = vadd.xlane.f32.xlu0 %v5714
        %v5716 = vpop.xlane.xlu0 %5715
        %v5717 = vlog2.pop %v5716
        %v5718 = vmul.f32 %v5717, 0.6931472
        %v5719 = vadd.f32 %v5718, %v5710
        %v5720 = vsub.f32 %v5703, %v5719
        %s5721 = scalar_lea.vmem %s635, 28 [#allocation23]
        %5722 = vst [vmem:[%s5721] sm:$0xf] %v5720
        %5723 = vst [vmem:[#allocation2] sm:$0xf] %v5666
        %p5724 = scmp.eq.s32.totalorder %s41, 1
        // Predicated region
        $region121: #{tpu_custom_call.1} parent=67 // pred_check
          %p5725 = pneg %p5724
        $region122: #{tpu_custom_call.1} parent=67 // pred_check_branch
          %5727 = sbr.rel (%p5725) target = $region124
        $region123: #{tpu_custom_call.1} parent=67 // pred_region
          %5728 = vst [vmem:[#allocation26] sm:$0xf] %v5666
        $region124: #{tpu_custom_call.1} parent=67 // pred_fallthru
          _
        %s5729 = sand.u32 %s306, 1
        %s5730 = scalar_lea.sflag [#allocation5], %s5729
        %s5731 = sand.u32 %s306, 1
        %s5732 = smul.addr %s5731, 32
        %s5733 = scalar_lea.vmem [#allocation23], %s5732
        %s5734 = sand.u32 %s41, 1
        %s5735 = scalar_lea.sflag [#allocation25], %s5734
        %s5736 = sand.u32 %s332, 1
        %s5737 = smul.addr %s5736, 32
        %s5738 = scalar_lea.vmem [#allocation24], %s5737
        // Predicated region
        $region125: #{tpu_custom_call.1} parent=67 // pred_check
          %p5739 = pneg %p316
        $region126: #{tpu_custom_call.1} parent=67 // pred_check_branch
          %5741 = sbr.rel (%p5739) target = $region128
        $region127: #{tpu_custom_call.1} parent=67 // pred_region
          %s5742 = smul.u32 8, %s41
          %s5744 = ssub.s32 512, 512
          %5745 = vsyncadd %s5730, %s5744
          %s5746 = smul.addr %s5742, 64
          %s5747 = scalar_lea.hbm %s12, %s5746
          %s5748 = sshll.u32 %s5733, 4
          %s5749 = int_to_ptr.vmem [resolvable:$true] %s5748
          %5754 = dma.vmem_to_hbm [thread:$0]  %s5749, 512, %s5747, %s5730, 64, 64, 4
        $region128: #{tpu_custom_call.1} parent=67 // pred_fallthru
          _
        // Predicated region
        $region129: #{tpu_custom_call.1} parent=67 // pred_check
          %p5755 = pneg %p342
        $region130: #{tpu_custom_call.1} parent=67 // pred_check_branch
          %5757 = sbr.rel (%p5755) target = $region132
        $region131: #{tpu_custom_call.1} parent=67 // pred_region
          %s5758 = smul.u32 8, %s41
          %s5760 = ssub.s32 512, 512
          %5761 = vsyncadd %s5735, %s5760
          %s5762 = smul.addr %s5758, 64
          %s5763 = scalar_lea.hbm %s13, %s5762
          %s5764 = sshll.u32 %s5738, 4
          %s5765 = int_to_ptr.vmem [resolvable:$true] %s5764
          %5770 = dma.vmem_to_hbm [thread:$0]  %s5765, 512, %s5763, %s5735, 64, 64, 4
        $region132: #{tpu_custom_call.1} parent=67 // pred_fallthru
          _
        // Predicated region
        $region133: #{tpu_custom_call.1} parent=67 // pred_check
          %p5771 = pneg %p363
        $region134: #{tpu_custom_call.1} parent=67 // pred_check_branch
          %5773 = sbr.rel (%p5771) target = $region136
        $region135: #{tpu_custom_call.1} parent=67 // pred_region
          %s5775 = ssub.s32 64, 64
          %5776 = vsyncadd [#allocation25], %s5775
          %s5778 = sshll.u32 [#allocation26], 4
          %s5779 = int_to_ptr.vmem [resolvable:$true] %s5778
          %5781 = dma.vmem_to_hbm [thread:$0]  %s5779, 64, %s14, [#allocation25]
        $region136: #{tpu_custom_call.1} parent=67 // pred_fallthru
          _
        // Predicated region
        $region137: #{tpu_custom_call.1} parent=67 // pred_check
          %p5782 = pneg %p363
        $region138: #{tpu_custom_call.1} parent=67 // pred_check_branch
          %5784 = sbr.rel (%p5782) target = $region140
        $region139: #{tpu_custom_call.1} parent=67 // pred_region
          %5785 = dma.done [#allocation25], 64
        $region140: #{tpu_custom_call.1} parent=67 // pred_fallthru
          _
      $region68: #{tpu_custom_call.1} parent=5 // pred_fallthru
        _
      %p5786 = scmp.le.s32.totalorder 2, %s36
      // Predicated region
      $region141: #{tpu_custom_call.1} parent=5 // pred_check
        %p5787 = pneg %p5786
      $region142: #{tpu_custom_call.1} parent=5 // pred_check_branch
        %5789 = sbr.rel (%p5787) target = $region144
      $region143: #{tpu_custom_call.1} parent=5 // pred_region
        %s5790 = ssub.s32 %s36, 2
        // Predicated region
        $region145: #{tpu_custom_call.1} parent=143 // pred_check
          %p5791 = pneg %p322
        $region146: #{tpu_custom_call.1} parent=143 // pred_check_branch
          %5793 = sbr.rel (%p5791) target = $region148
        $region147: #{tpu_custom_call.1} parent=143 // pred_region
          %s5794 = sand.u32 %s307, 1
          %s5795 = scalar_lea.sflag [#allocation5], %s5794
          %s5796 = sand.u32 %s307, 1
          %s5797 = smul.addr %s5796, 32
          %s5798 = scalar_lea.vmem [#allocation23], %s5797
          %5799 = dma.done %s5795, 512
        $region148: #{tpu_custom_call.1} parent=143 // pred_fallthru
          _
        // Predicated region
        $region149: #{tpu_custom_call.1} parent=143 // pred_check
          %p5800 = pneg %p348
        $region150: #{tpu_custom_call.1} parent=143 // pred_check_branch
          %5802 = sbr.rel (%p5800) target = $region152
        $region151: #{tpu_custom_call.1} parent=143 // pred_region
          %s5803 = sand.u32 %s42, 1
          %s5804 = scalar_lea.sflag [#allocation25], %s5803
          %s5805 = sand.u32 %s333, 1
          %s5806 = smul.addr %s5805, 32
          %s5807 = scalar_lea.vmem [#allocation24], %s5806
          %5808 = dma.done %s5804, 512
        $region152: #{tpu_custom_call.1} parent=143 // pred_fallthru
          _
      $region144: #{tpu_custom_call.1} parent=5 // pred_fallthru
        _
    $region6: #{tpu_custom_call.1} parent=1 // loop_footer
      %s40 = sadd.s32 1, %s36
    $region7: #{tpu_custom_call.1} parent=1 // loop_footer_branch
      %35 = sbr.rel target = $region3
    $region8: #{tpu_custom_call.1} parent=1 // loop_exit
      _
    %5809 = vsyncpa [#allocation4], 1
    %s5810 = scalar_lea.sflag [#allocation4], 1
    %5811 = vsyncpa %s5810, 1
    %5812 = vsyncpa [#allocation7], 1
    %5813 = vsyncpa [#allocation10], 1
    %5814 = vsyncpa [#allocation13], 1
    %5815 = vsyncpa [#allocation16], 1
    %5816 = vsyncpa [#allocation19], 1
    %5817 = vsyncpa [#allocation22], 1
    %5818 = vsyncpa [#allocation5], 1
    %s5819 = scalar_lea.sflag [#allocation5], 1
    %5820 = vsyncpa %s5819, 1
    %5821 = vsyncpa [#allocation25], 1
    %s5822 = scalar_lea.sflag [#allocation25], 1
    %5823 = vsyncpa %s5822, 1

</llo_original>
